<compile_context>
chip_gen: v7x
topology: tpu7x:2x2x1
jax: 0.10.0
libtpu: 0.0.40
codegen_flags: <defaults>
</compile_context>

<pallas_src>
import math
from functools import partial

import jax
import jax.numpy as jnp
from jax.experimental import pallas as pl
from jax.experimental.pallas import tpu as pltpu

# ----------------------------- config ---------------------------------------
HIDDEN_SIZE = 32                       # transformer hidden dim (real base: 768)
W2V_CONV_DIM = 16                      # feature-extractor channels (real base: 512)
W2V_CONV_LAYERS = [(10, 5), (3, 2)]    # (kernel, stride); layer 0 has group norm
W2V_FF_DIM = 4 * HIDDEN_SIZE           # 128
W2V_LAYERS = 2                         # transformer layers (real base: 12)
W2V_HEADS = 4
VOCAB = 32                             # CTC vocab (wav2vec2-base-960h char vocab)
VOCAB_PAD = 128                        # lane-dense padded logits width
NEG = -1e9                             # stands in for -inf in attention masks
LN_EPS = 1e-5
GELU_C = 1.0 / math.sqrt(2.0)
MAX_BATCH_BLOCK = 8                    # max batch rows fused per K2 grid step


# ----------------------------- in-kernel helpers -----------------------------


def _gelu(x):
    # exact (erf) GELU, matching torch nn.GELU default
    return 0.5 * x * (1.0 + jax.lax.erf(x * GELU_C))


def _ln(x, g, b, eps=LN_EPS):
    mu = jnp.mean(x, axis=-1, keepdims=True)
    xc = x - mu
    var = jnp.mean(xc * xc, axis=-1, keepdims=True)
    return xc * jax.lax.rsqrt(var + eps) * g + b


# --------------- K1: fused feature extractor + projection + pos-conv ---------


def _frontend_kernel(x_ref, m_ref, c0w_ref, c0b_ref, gng_ref, gnb_ref,
                     c1w_ref, c1b_ref, fplng_ref, fplnb_ref, fpw_ref, fpb_ref,
                     pcw_ref, pcb_ref, elng_ref, elnb_ref, o_ref, *,
                     k0, s0, l1, t, eps):
    # x_ref: (1, n_even, k0)  audio reshaped (pure host reshape, no gather):
    #   X[m, j] = audio[k0*m + j],   k0 = 2*s0
    X = x_ref[0]                                   # (n_even, k0)
    w0 = c0w_ref[...]                              # (k0, C)   (Cin=1 folded)
    C = w0.shape[-1]
    n_even = (l1 + 1) // 2
    n_odd = l1 // 2
    b0 = c0b_ref[...]                              # (1, C)

    # ---- conv layer 0 as a VPU FIR (polyphase: even/odd output frames) ----
    # h_even[m] = sum_j X[m, j]      * w0[j]
    # h_odd [m] = sum_{j<s0} X[m, s0+j]*w0[j] + sum_{j>=s0} X[m+1, j-s0]*w0[j]
    he = jnp.zeros((n_even, C), jnp.float32) + b0
    ho = jnp.zeros((n_odd, C), jnp.float32) + b0
    for j in range(k0):
        wj = w0[j:j + 1, :]                        # (1, C)
        he = he + X[:, j:j + 1] * wj
        if j < s0:
            ho = ho + X[0:n_odd, s0 + j:s0 + j + 1] * wj
        else:
            ho = ho + X[1:n_odd + 1, j - s0:j - s0 + 1] * wj

    # GroupNorm(num_groups=C) == per-channel stats over ALL l1 frames (both phases)
    cnt = float(l1)
    mu = (jnp.sum(he, axis=0, keepdims=True)
          + jnp.sum(ho, axis=0, keepdims=True)) / cnt
    sq = (jnp.sum(he * he, axis=0, keepdims=True)
          + jnp.sum(ho * ho, axis=0, keepdims=True)) / cnt
    inv = jax.lax.rsqrt(sq - mu * mu + eps)
    g = gng_ref[...]
    bb = gnb_ref[...]
    he = _gelu((he - mu) * inv * g + bb)
    ho = _gelu((ho - mu) * inv * g + bb)

    # ---- conv layer 1 (k=3, s=2): taps are (even[t], odd[t], even[t+1]) ----
    y = (jnp.dot(he[0:t, :], c1w_ref[0], preferred_element_type=jnp.float32)
         + jnp.dot(ho[0:t, :], c1w_ref[1], preferred_element_type=jnp.float32)
         + jnp.dot(he[1:t + 1, :], c1w_ref[2], preferred_element_type=jnp.float32)
         + c1b_ref[...])
    y = _gelu(y)                                   # (T, C)

    # ---- feature projection: LN -> Linear -> zero padded frames ----
    yn = _ln(y, fplng_ref[...], fplnb_ref[...], eps)
    hd = jnp.dot(yn, fpw_ref[...], preferred_element_type=jnp.float32) + fpb_ref[...]
    hd = hd * m_ref[0]                             # (T, 1) valid-frame mask

    # ---- positional conv (simplified k=3, same-pad) ----
    # TODO(synk): HF uses a weight-normed grouped conv (k=128, groups=16); simplified.
    prev = pltpu.roll(hd, shift=1, axis=0)         # row i <- row i-1 (row 0 wraps)
    nxt = pltpu.roll(hd, shift=t - 1, axis=0)      # row i <- row i+1 (row T-1 wraps)
    row = jax.lax.broadcasted_iota(jnp.int32, (t, 1), 0)
    prev = jnp.where(row == 0, 0.0, prev)          # mask the wrapped rows
    nxt = jnp.where(row == t - 1, 0.0, nxt)
    cat = jnp.concatenate([prev, hd, nxt], axis=-1)          # (T, 3D)
    pos = jnp.dot(cat, pcw_ref[...], preferred_element_type=jnp.float32) + pcb_ref[...]
    hd = hd + _gelu(pos)

    o_ref[0] = _ln(hd, elng_ref[...], elnb_ref[...], eps)    # encoder layer_norm


def feature_frontend(x3, feat_mask, p, *, k0, s0, l1, t):
    B, n_even, _ = x3.shape
    C, D = W2V_CONV_DIM, HIDDEN_SIZE
    mask3 = feat_mask[:, :, None]                             # (B, T, 1)
    return pl.pallas_call(
        partial(_frontend_kernel, k0=k0, s0=s0, l1=l1, t=t, eps=LN_EPS),
        out_shape=jax.ShapeDtypeStruct((B, t, D), jnp.float32),
        grid=(B,),
        in_specs=[pl.BlockSpec((1, n_even, k0), lambda i: (i, 0, 0)),
                  pl.BlockSpec((1, t, 1), lambda i: (i, 0, 0)),
                  pl.BlockSpec((k0, C), lambda i: (0, 0)),
                  pl.BlockSpec((1, C), lambda i: (0, 0)),
                  pl.BlockSpec((1, C), lambda i: (0, 0)),
                  pl.BlockSpec((1, C), lambda i: (0, 0)),
                  pl.BlockSpec((3, C, C), lambda i: (0, 0, 0)),
                  pl.BlockSpec((1, C), lambda i: (0, 0)),
                  pl.BlockSpec((1, C), lambda i: (0, 0)),
                  pl.BlockSpec((1, C), lambda i: (0, 0)),
                  pl.BlockSpec((C, D), lambda i: (0, 0)),
                  pl.BlockSpec((1, D), lambda i: (0, 0)),
                  pl.BlockSpec((3 * D, D), lambda i: (0, 0)),
                  pl.BlockSpec((1, D), lambda i: (0, 0)),
                  pl.BlockSpec((1, D), lambda i: (0, 0)),
                  pl.BlockSpec((1, D), lambda i: (0, 0))],
        out_specs=pl.BlockSpec((1, t, D), lambda i: (i, 0, 0)),
        compiler_params=pltpu.CompilerParams(dimension_semantics=("parallel",)),
    )(x3, mask3,
      p["c0_w"], p["c0_b"], p["gn_g"], p["gn_b"],
      p["c1_w"], p["c1_b"],
      p["fp_ln_g"], p["fp_ln_b"], p["fp_w"], p["fp_b"],
      p["pc_w"], p["pc_b"], p["enc_ln_g"], p["enc_ln_b"])


# -------------- K2: batch-blocked transformer stack + CTC head ---------------


def _w2v_stack_kernel(h_ref, mask_ref,
                      wq_ref, wk_ref, wv_ref, bq_ref, bk_ref, bv_ref,
                      wo_ref, bo_ref, ln1g_ref, ln1b_ref,
                      wff1_ref, bff1_ref, wff2_ref, bff2_ref,
                      ln2g_ref, ln2b_ref, lmw_ref, lmb_ref,
                      hid_ref, logit_ref, x_sc, *, n_heads, eps):
    l = pl.program_id(1)
    Bb, T, D = h_ref.shape
    H = n_heads
    Dh = D // H
    M = Bb * T
    scale = 1.0 / math.sqrt(Dh)

    @pl.when(l == 0)
    def _():
        # load this batch block into the resident VMEM scratch (flattened rows)
        x_sc[...] = h_ref[...].reshape(M, D)

    x = x_sc[...]                                   # (Bb*T, D) f32, layer-resident
    xb = x.astype(jnp.bfloat16)                     # bf16 operand for MXU matmuls
    # additive key-mask bias rebuilt from the (Bb, 1, T) valid mask
    bias = jnp.where(mask_ref[...] > 0.5, 0.0, NEG)            # (Bb, 1, T)

    # ---- self-attention, head-major weight layout (no lane slicing / concat) ----
    o_acc = jnp.zeros((M, D), jnp.float32)
    for h in range(H):                                         # static unroll
        q = (jnp.dot(xb, wq_ref[0, h], preferred_element_type=jnp.float32)
             + bq_ref[0, h]).reshape(Bb, T, Dh)
        k = (jnp.dot(xb, wk_ref[0, h], preferred_element_type=jnp.float32)
             + bk_ref[0, h]).reshape(Bb, T, Dh)
        v = (jnp.dot(xb, wv_ref[0, h], preferred_element_type=jnp.float32)
             + bv_ref[0, h]).reshape(Bb, T, Dh)
        s = jnp.einsum('bqd,bkd->bqk', q, k,
                       preferred_element_type=jnp.float32) * scale + bias
        m = jnp.max(s, axis=-1, keepdims=True)
        e = jnp.exp(s - m)
        p_attn = e * pl.reciprocal(jnp.sum(e, axis=-1, keepdims=True), approx=True)
        ctx = jnp.einsum('bqk,bkd->bqd', p_attn, v,
                         preferred_element_type=jnp.float32).reshape(M, Dh)
        # fold the head merge into the output projection (per-head Wo rows)
        o_acc = o_acc + jnp.dot(ctx.astype(jnp.bfloat16), wo_ref[0, h],
                                preferred_element_type=jnp.float32)

    x = _ln(x + o_acc + bo_ref[0], ln1g_ref[0], ln1b_ref[0], eps)

    # ---- feed-forward ----
    xb2 = x.astype(jnp.bfloat16)
    ff = _gelu(jnp.dot(xb2, wff1_ref[0], preferred_element_type=jnp.float32)
               + bff1_ref[0])
    x = _ln(x + jnp.dot(ff.astype(jnp.bfloat16), wff2_ref[0],
                        preferred_element_type=jnp.float32) + bff2_ref[0],
            ln2g_ref[0], ln2b_ref[0], eps)

    x_sc[...] = x

    @pl.when(l == pl.num_programs(1) - 1)
    def _():
        hid_ref[...] = x.reshape(Bb, T, D)                     # hidden_states[-1]
        # CTC lm_head fused; 128-lane padded logits tile (unmasked stores)
        lg = (jnp.dot(x.astype(jnp.bfloat16), lmw_ref[...],
                      preferred_element_type=jnp.float32) + lmb_ref[...])
        logit_ref[...] = lg.reshape(Bb, T, lg.shape[-1])


def _pick_batch_block(B, cap=MAX_BATCH_BLOCK):
    for bb in range(min(B, cap), 0, -1):
        if B % bb == 0:
            return bb
    return 1


def encoder_stack(h0, feat_mask, stack, lm_w, lm_b, *, n_heads):
    B, T, D = h0.shape
    Lyr = stack["w_q"].shape[0]
    H = n_heads
    Dh = D // H
    F = stack["w_ff1"].shape[-1]
    VP = lm_w.shape[-1]
    Bb = _pick_batch_block(B)
    maskk = feat_mask[:, None, :]                              # (B, 1, T)

    bmap3 = lambda bb, l: (bb, 0, 0)
    wmap3 = lambda bb, l: (l, 0, 0)
    wmap4 = lambda bb, l: (l, 0, 0, 0)

    hid, logits_pad = pl.pallas_call(
        partial(_w2v_stack_kernel, n_heads=n_heads, eps=LN_EPS),
        out_shape=(jax.ShapeDtypeStruct((B, T, D), jnp.float32),
                   jax.ShapeDtypeStruct((B, T, VP), jnp.float32)),
        grid=(B // Bb, Lyr),
        in_specs=[
            pl.BlockSpec((Bb, T, D), bmap3),           # h0 (used at l==0)
            pl.BlockSpec((Bb, 1, T), bmap3),           # key-valid mask
            pl.BlockSpec((1, H, D, Dh), wmap4),        # Wq (bf16, head-major)
            pl.BlockSpec((1, H, D, Dh), wmap4),        # Wk
            pl.BlockSpec((1, H, D, Dh), wmap4),        # Wv
            pl.BlockSpec((1, H, 1, Dh), wmap4),        # bq
            pl.BlockSpec((1, H, 1, Dh), wmap4),        # bk
            pl.BlockSpec((1, H, 1, Dh), wmap4),        # bv
            pl.BlockSpec((1, H, Dh, D), wmap4),        # Wo (bf16, head-major)
            pl.BlockSpec((1, 1, D), wmap3),            # bo
            pl.BlockSpec((1, 1, D), wmap3),            # ln1 g
            pl.BlockSpec((1, 1, D), wmap3),            # ln1 b
            pl.BlockSpec((1, D, F), wmap3),            # Wff1 (bf16)
            pl.BlockSpec((1, 1, F), wmap3),            # bff1
            pl.BlockSpec((1, F, D), wmap3),            # Wff2 (bf16)
            pl.BlockSpec((1, 1, D), wmap3),            # bff2
            pl.BlockSpec((1, 1, D), wmap3),            # ln2 g
            pl.BlockSpec((1, 1, D), wmap3),            # ln2 b
            pl.BlockSpec((D, VP), lambda bb, l: (0, 0)),   # lm_head W (bf16, padded)
            pl.BlockSpec((1, VP), lambda bb, l: (0, 0)),   # lm_head b (padded)
        ],
        out_specs=[pl.BlockSpec((Bb, T, D), bmap3),
                   pl.BlockSpec((Bb, T, VP), bmap3)],
        scratch_shapes=[pltpu.VMEM((Bb * T, D), jnp.float32)],
        compiler_params=pltpu.CompilerParams(
            dimension_semantics=("parallel", "arbitrary"),
            vmem_limit_bytes=32 * 1024 * 1024),
    )(h0, maskk,
      stack["w_q"], stack["w_k"], stack["w_v"],
      stack["b_q"], stack["b_k"], stack["b_v"],
      stack["w_o"], stack["b_o"], stack["ln1_g"], stack["ln1_b"],
      stack["w_ff1"], stack["b_ff1"], stack["w_ff2"], stack["b_ff2"],
      stack["ln2_g"], stack["ln2_b"], lm_w, lm_b)
    return hid, logits_pad


# ----------------------------- full forward ----------------------------------


def hf_wav2vec2_for_ctc_forward(p, audio, attention_mask):
    """audio: (B, L) f32, attention_mask: (B, L) {0,1} -> (logits, last_hidden)."""
    B, L = audio.shape
    (k0, s0), (k1, s1) = W2V_CONV_LAYERS
    assert k0 == 2 * s0 and (k1, s1) == (3, 2)      # polyphase frontend assumptions
    L1 = (L - k0) // s0 + 1
    assert L1 % 2 == 1
    T = (L1 - k1) // s1 + 1
    n_even = (L1 + 1) // 2

    # host glue: pure reshape (no gather) feeding the fused frontend kernel
    x3 = audio[:, : n_even * k0].reshape(B, n_even, k0).astype(jnp.float32)

    # HF feature-extractor output lengths from the attention mask
    lens = attention_mask.astype(jnp.int32).sum(axis=-1)
    lens = (lens - k0) // s0 + 1
    lens = (lens - k1) // s1 + 1
    feat_mask = (jnp.arange(T)[None, :] < lens[:, None]).astype(jnp.float32)

    h0 = feature_frontend(x3, feat_mask, p, k0=k0, s0=s0, l1=L1, t=T)   # (B, T, D)
    hid, logits_pad = encoder_stack(h0, feat_mask, p["stack"],
                                    p["lm_w_pad"], p["lm_b_pad"], n_heads=W2V_HEADS)
    # slice the lane-padded logits inside the same jit so XLA fuses it
    logits = logits_pad[..., :VOCAB]
    return logits, hid                              # (s.logits, s.hidden_states[-1])


# ----------------------------- deterministic parameter init -----------------
# TODO(synk): Wav2Vec2ForCTC.from_pretrained weights cannot be reproduced here;
# a structurally-equivalent small stack with synthetic weights is built instead.


def init_params(key):
    ks = iter(jax.random.split(key, 64))

    def rnd(shape, scale=0.02):
        return jax.random.normal(next(ks), shape, jnp.float32) * scale

    D, C, F, Lyr, H = HIDDEN_SIZE, W2V_CONV_DIM, W2V_FF_DIM, W2V_LAYERS, W2V_HEADS
    Dh = D // H
    (k0, _), (k1, _) = W2V_CONV_LAYERS
    bf = jnp.bfloat16
    p = {}

    # conv feature extractor (layer 0 has GroupNorm; Cin=1 folded into (k0, C))
    p["c0_w"] = rnd((k0, C), 0.05)
    p["c0_b"] = rnd((1, C), 0.01)
    p["gn_g"] = jnp.ones((1, C), jnp.float32)
    p["gn_b"] = jnp.zeros((1, C), jnp.float32)
    p["c1_w"] = rnd((k1, C, C), 0.05)
    p["c1_b"] = rnd((1, C), 0.01)

    # feature projection + positional conv (pre-concatenated (3D, D)) + encoder LN
    p["fp_ln_g"] = jnp.ones((1, C), jnp.float32)
    p["fp_ln_b"] = jnp.zeros((1, C), jnp.float32)
    p["fp_w"] = rnd((C, D))
    p["fp_b"] = rnd((1, D), 0.01)
    p["pc_w"] = rnd((3 * D, D))
    p["pc_b"] = rnd((1, D), 0.01)
    p["enc_ln_g"] = jnp.ones((1, D), jnp.float32)
    p["enc_ln_b"] = jnp.zeros((1, D), jnp.float32)

    # stacked transformer-layer weights (leading axis = layer, head-major attention
    # weights, matmul weights streamed as bf16 with f32 accumulation in-kernel)
    p["stack"] = {
        "w_q": rnd((Lyr, H, D, Dh)).astype(bf),
        "w_k": rnd((Lyr, H, D, Dh)).astype(bf),
        "w_v": rnd((Lyr, H, D, Dh)).astype(bf),
        "b_q": rnd((Lyr, H, 1, Dh), 0.01),
        "b_k": rnd((Lyr, H, 1, Dh), 0.01),
        "b_v": rnd((Lyr, H, 1, Dh), 0.01),
        "w_o": rnd((Lyr, H, Dh, D)).astype(bf),
        "b_o": rnd((Lyr, 1, D), 0.01),
        "ln1_g": jnp.ones((Lyr, 1, D), jnp.float32),
        "ln1_b": jnp.zeros((Lyr, 1, D), jnp.float32),
        "w_ff1": rnd((Lyr, D, F)).astype(bf),
        "b_ff1": rnd((Lyr, 1, F), 0.01),
        "w_ff2": rnd((Lyr, F, D)).astype(bf),
        "b_ff2": rnd((Lyr, 1, D), 0.01),
        "ln2_g": jnp.ones((Lyr, 1, D), jnp.float32),
        "ln2_b": jnp.zeros((Lyr, 1, D), jnp.float32),
    }

    # CTC lm_head, padded to a 128-lane-wide output tile; W streamed as bf16
    lm_w = rnd((D, VOCAB))
    lm_b = rnd((VOCAB,), 0.01)
    p["lm_w_pad"] = (jnp.zeros((D, VOCAB_PAD), jnp.float32)
                     .at[:, :VOCAB].set(lm_w).astype(bf))
    p["lm_b_pad"] = jnp.zeros((1, VOCAB_PAD), jnp.float32).at[:, :VOCAB].set(lm_b)
    return p


# ----------------------------- main ------------------------------------------

if __name__ == "__main__":
    key = jax.random.PRNGKey(0)
    pkey, akey = jax.random.split(key)
    params = init_params(pkey)

    B, L = 2, 170                                  # feature extractor: 170 -> 33 -> 16 frames
    audio = jax.random.normal(akey, (B, L), jnp.float32)
    attention_mask = jnp.stack([jnp.ones((L,), jnp.int32),
                                (jnp.arange(L) < 130).astype(jnp.int32)])  # 130 -> 12 frames
    audio = audio * attention_mask.astype(jnp.float32)   # zero-padded, as the HF processor does

    # expected output frame count
    T = L
    for k, s in W2V_CONV_LAYERS:
        T = (T - k) // s + 1

    fwd = jax.jit(hf_wav2vec2_for_ctc_forward)
    logits, hidden = fwd(params, audio, attention_mask)
    logits, hidden = jax.block_until_ready((logits, hidden))

    assert logits.shape == (B, T, VOCAB), logits.shape
    assert hidden.shape == (B, T, HIDDEN_SIZE), hidden.shape
    assert bool(jnp.all(jnp.isfinite(logits)))
    assert bool(jnp.all(jnp.isfinite(hidden)))
    print("KERNEL_OK")
</pallas_src>

<mosaic_0001>
module attributes {stable_mosaic.version = 11 : i64} {
  func.func @_frontend_kernel(%arg0: i32, %arg1: memref<1x17x10xf32, #tpu.memory_space<vmem>>, %arg2: memref<1x16x1xf32, #tpu.memory_space<vmem>>, %arg3: memref<10x16xf32, #tpu.memory_space<vmem>>, %arg4: memref<1x16xf32, #tpu.memory_space<vmem>>, %arg5: memref<1x16xf32, #tpu.memory_space<vmem>>, %arg6: memref<1x16xf32, #tpu.memory_space<vmem>>, %arg7: memref<3x16x16xf32, #tpu.memory_space<vmem>>, %arg8: memref<1x16xf32, #tpu.memory_space<vmem>>, %arg9: memref<1x16xf32, #tpu.memory_space<vmem>>, %arg10: memref<1x16xf32, #tpu.memory_space<vmem>>, %arg11: memref<16x32xf32, #tpu.memory_space<vmem>>, %arg12: memref<1x32xf32, #tpu.memory_space<vmem>>, %arg13: memref<96x32xf32, #tpu.memory_space<vmem>>, %arg14: memref<1x32xf32, #tpu.memory_space<vmem>>, %arg15: memref<1x32xf32, #tpu.memory_space<vmem>>, %arg16: memref<1x32xf32, #tpu.memory_space<vmem>>, %arg17: memref<1x16x32xf32, #tpu.memory_space<vmem>>) attributes {dimension_semantics = [#tpu.dimension_semantics<parallel>], iteration_bounds = array<i64: 2>, scalar_prefetch = 0 : i64, scratch_operands = 0 : i64, tpu.core_type = #tpu.core_type<tc>, window_params = [{transform_indices = @transform_0, window_bounds = array<i64: 1, 17, 10>}, {transform_indices = @transform_1, window_bounds = array<i64: 1, 16, 1>}, {pipeline_mode = #tpu.pipeline_mode<synchronous>, transform_indices = @transform_2, window_bounds = array<i64: 10, 16>}, {pipeline_mode = #tpu.pipeline_mode<synchronous>, transform_indices = @transform_3, window_bounds = array<i64: 1, 16>}, {pipeline_mode = #tpu.pipeline_mode<synchronous>, transform_indices = @transform_4, window_bounds = array<i64: 1, 16>}, {pipeline_mode = #tpu.pipeline_mode<synchronous>, transform_indices = @transform_5, window_bounds = array<i64: 1, 16>}, {pipeline_mode = #tpu.pipeline_mode<synchronous>, transform_indices = @transform_6, window_bounds = array<i64: 3, 16, 16>}, {pipeline_mode = #tpu.pipeline_mode<synchronous>, transform_indices = @transform_7, window_bounds = array<i64: 1, 16>}, {pipeline_mode = #tpu.pipeline_mode<synchronous>, transform_indices = @transform_8, window_bounds = array<i64: 1, 16>}, {pipeline_mode = #tpu.pipeline_mode<synchronous>, transform_indices = @transform_9, window_bounds = array<i64: 1, 16>}, {pipeline_mode = #tpu.pipeline_mode<synchronous>, transform_indices = @transform_10, window_bounds = array<i64: 16, 32>}, {pipeline_mode = #tpu.pipeline_mode<synchronous>, transform_indices = @transform_11, window_bounds = array<i64: 1, 32>}, {pipeline_mode = #tpu.pipeline_mode<synchronous>, transform_indices = @transform_12, window_bounds = array<i64: 96, 32>}, {pipeline_mode = #tpu.pipeline_mode<synchronous>, transform_indices = @transform_13, window_bounds = array<i64: 1, 32>}, {pipeline_mode = #tpu.pipeline_mode<synchronous>, transform_indices = @transform_14, window_bounds = array<i64: 1, 32>}, {pipeline_mode = #tpu.pipeline_mode<synchronous>, transform_indices = @transform_15, window_bounds = array<i64: 1, 32>}, {transform_indices = @transform_16, window_bounds = array<i64: 1, 16, 32>}]} {
    %c0 = arith.constant 0 : index
    %c0_0 = arith.constant 0 : index
    %c0_1 = arith.constant 0 : index
    %0 = vector.load %arg1[%c0, %c0_0, %c0_1] : memref<1x17x10xf32, #tpu.memory_space<vmem>>, vector<1x17x10xf32>
    %1 = vector.shape_cast %0 : vector<1x17x10xf32> to vector<17x10xf32>
    %c0_2 = arith.constant 0 : index
    %c0_3 = arith.constant 0 : index
    %2 = vector.load %arg3[%c0_2, %c0_3] : memref<10x16xf32, #tpu.memory_space<vmem>>, vector<10x16xf32>
    %c0_4 = arith.constant 0 : index
    %c0_5 = arith.constant 0 : index
    %3 = vector.load %arg4[%c0_4, %c0_5] : memref<1x16xf32, #tpu.memory_space<vmem>>, vector<1x16xf32>
    %cst = arith.constant 0.000000e+00 : f32
    %4 = vector.broadcast %cst : f32 to vector<17x16xf32>
    %5 = vector.broadcast %3 : vector<1x16xf32> to vector<17x16xf32>
    %6 = arith.addf %4, %5 : vector<17x16xf32>
    %cst_6 = arith.constant 0.000000e+00 : f32
    %7 = vector.broadcast %cst_6 : f32 to vector<16x16xf32>
    %8 = vector.broadcast %3 : vector<1x16xf32> to vector<16x16xf32>
    %9 = arith.addf %7, %8 : vector<16x16xf32>
    %10 = vector.extract_strided_slice %2 {offsets = [0, 0], sizes = [1, 16], strides = [1, 1]} : vector<10x16xf32> to vector<1x16xf32>
    %11 = vector.extract_strided_slice %1 {offsets = [0, 0], sizes = [17, 1], strides = [1, 1]} : vector<17x10xf32> to vector<17x1xf32>
    %12 = vector.broadcast %11 : vector<17x1xf32> to vector<17x16xf32>
    %13 = vector.broadcast %10 : vector<1x16xf32> to vector<17x16xf32>
    %14 = arith.mulf %12, %13 : vector<17x16xf32>
    %15 = arith.addf %6, %14 : vector<17x16xf32>
    %16 = vector.extract_strided_slice %1 {offsets = [0, 5], sizes = [16, 1], strides = [1, 1]} : vector<17x10xf32> to vector<16x1xf32>
    %17 = vector.broadcast %16 : vector<16x1xf32> to vector<16x16xf32>
    %18 = vector.broadcast %10 : vector<1x16xf32> to vector<16x16xf32>
    %19 = arith.mulf %17, %18 : vector<16x16xf32>
    %20 = arith.addf %9, %19 : vector<16x16xf32>
    %21 = vector.extract_strided_slice %2 {offsets = [1, 0], sizes = [1, 16], strides = [1, 1]} : vector<10x16xf32> to vector<1x16xf32>
    %22 = vector.extract_strided_slice %1 {offsets = [0, 1], sizes = [17, 1], strides = [1, 1]} : vector<17x10xf32> to vector<17x1xf32>
    %23 = vector.broadcast %22 : vector<17x1xf32> to vector<17x16xf32>
    %24 = vector.broadcast %21 : vector<1x16xf32> to vector<17x16xf32>
    %25 = arith.mulf %23, %24 : vector<17x16xf32>
    %26 = arith.addf %15, %25 : vector<17x16xf32>
    %27 = vector.extract_strided_slice %1 {offsets = [0, 6], sizes = [16, 1], strides = [1, 1]} : vector<17x10xf32> to vector<16x1xf32>
    %28 = vector.broadcast %27 : vector<16x1xf32> to vector<16x16xf32>
    %29 = vector.broadcast %21 : vector<1x16xf32> to vector<16x16xf32>
    %30 = arith.mulf %28, %29 : vector<16x16xf32>
    %31 = arith.addf %20, %30 : vector<16x16xf32>
    %32 = vector.extract_strided_slice %2 {offsets = [2, 0], sizes = [1, 16], strides = [1, 1]} : vector<10x16xf32> to vector<1x16xf32>
    %33 = vector.extract_strided_slice %1 {offsets = [0, 2], sizes = [17, 1], strides = [1, 1]} : vector<17x10xf32> to vector<17x1xf32>
    %34 = vector.broadcast %33 : vector<17x1xf32> to vector<17x16xf32>
    %35 = vector.broadcast %32 : vector<1x16xf32> to vector<17x16xf32>
    %36 = arith.mulf %34, %35 : vector<17x16xf32>
    %37 = arith.addf %26, %36 : vector<17x16xf32>
    %38 = vector.extract_strided_slice %1 {offsets = [0, 7], sizes = [16, 1], strides = [1, 1]} : vector<17x10xf32> to vector<16x1xf32>
    %39 = vector.broadcast %38 : vector<16x1xf32> to vector<16x16xf32>
    %40 = vector.broadcast %32 : vector<1x16xf32> to vector<16x16xf32>
    %41 = arith.mulf %39, %40 : vector<16x16xf32>
    %42 = arith.addf %31, %41 : vector<16x16xf32>
    %43 = vector.extract_strided_slice %2 {offsets = [3, 0], sizes = [1, 16], strides = [1, 1]} : vector<10x16xf32> to vector<1x16xf32>
    %44 = vector.extract_strided_slice %1 {offsets = [0, 3], sizes = [17, 1], strides = [1, 1]} : vector<17x10xf32> to vector<17x1xf32>
    %45 = vector.broadcast %44 : vector<17x1xf32> to vector<17x16xf32>
    %46 = vector.broadcast %43 : vector<1x16xf32> to vector<17x16xf32>
    %47 = arith.mulf %45, %46 : vector<17x16xf32>
    %48 = arith.addf %37, %47 : vector<17x16xf32>
    %49 = vector.extract_strided_slice %1 {offsets = [0, 8], sizes = [16, 1], strides = [1, 1]} : vector<17x10xf32> to vector<16x1xf32>
    %50 = vector.broadcast %49 : vector<16x1xf32> to vector<16x16xf32>
    %51 = vector.broadcast %43 : vector<1x16xf32> to vector<16x16xf32>
    %52 = arith.mulf %50, %51 : vector<16x16xf32>
    %53 = arith.addf %42, %52 : vector<16x16xf32>
    %54 = vector.extract_strided_slice %2 {offsets = [4, 0], sizes = [1, 16], strides = [1, 1]} : vector<10x16xf32> to vector<1x16xf32>
    %55 = vector.extract_strided_slice %1 {offsets = [0, 4], sizes = [17, 1], strides = [1, 1]} : vector<17x10xf32> to vector<17x1xf32>
    %56 = vector.broadcast %55 : vector<17x1xf32> to vector<17x16xf32>
    %57 = vector.broadcast %54 : vector<1x16xf32> to vector<17x16xf32>
    %58 = arith.mulf %56, %57 : vector<17x16xf32>
    %59 = arith.addf %48, %58 : vector<17x16xf32>
    %60 = vector.extract_strided_slice %1 {offsets = [0, 9], sizes = [16, 1], strides = [1, 1]} : vector<17x10xf32> to vector<16x1xf32>
    %61 = vector.broadcast %60 : vector<16x1xf32> to vector<16x16xf32>
    %62 = vector.broadcast %54 : vector<1x16xf32> to vector<16x16xf32>
    %63 = arith.mulf %61, %62 : vector<16x16xf32>
    %64 = arith.addf %53, %63 : vector<16x16xf32>
    %65 = vector.extract_strided_slice %2 {offsets = [5, 0], sizes = [1, 16], strides = [1, 1]} : vector<10x16xf32> to vector<1x16xf32>
    %66 = vector.extract_strided_slice %1 {offsets = [0, 5], sizes = [17, 1], strides = [1, 1]} : vector<17x10xf32> to vector<17x1xf32>
    %67 = vector.broadcast %66 : vector<17x1xf32> to vector<17x16xf32>
    %68 = vector.broadcast %65 : vector<1x16xf32> to vector<17x16xf32>
    %69 = arith.mulf %67, %68 : vector<17x16xf32>
    %70 = arith.addf %59, %69 : vector<17x16xf32>
    %71 = vector.extract_strided_slice %1 {offsets = [1, 0], sizes = [16, 1], strides = [1, 1]} : vector<17x10xf32> to vector<16x1xf32>
    %72 = vector.broadcast %71 : vector<16x1xf32> to vector<16x16xf32>
    %73 = vector.broadcast %65 : vector<1x16xf32> to vector<16x16xf32>
    %74 = arith.mulf %72, %73 : vector<16x16xf32>
    %75 = arith.addf %64, %74 : vector<16x16xf32>
    %76 = vector.extract_strided_slice %2 {offsets = [6, 0], sizes = [1, 16], strides = [1, 1]} : vector<10x16xf32> to vector<1x16xf32>
    %77 = vector.extract_strided_slice %1 {offsets = [0, 6], sizes = [17, 1], strides = [1, 1]} : vector<17x10xf32> to vector<17x1xf32>
    %78 = vector.broadcast %77 : vector<17x1xf32> to vector<17x16xf32>
    %79 = vector.broadcast %76 : vector<1x16xf32> to vector<17x16xf32>
    %80 = arith.mulf %78, %79 : vector<17x16xf32>
    %81 = arith.addf %70, %80 : vector<17x16xf32>
    %82 = vector.extract_strided_slice %1 {offsets = [1, 1], sizes = [16, 1], strides = [1, 1]} : vector<17x10xf32> to vector<16x1xf32>
    %83 = vector.broadcast %82 : vector<16x1xf32> to vector<16x16xf32>
    %84 = vector.broadcast %76 : vector<1x16xf32> to vector<16x16xf32>
    %85 = arith.mulf %83, %84 : vector<16x16xf32>
    %86 = arith.addf %75, %85 : vector<16x16xf32>
    %87 = vector.extract_strided_slice %2 {offsets = [7, 0], sizes = [1, 16], strides = [1, 1]} : vector<10x16xf32> to vector<1x16xf32>
    %88 = vector.extract_strided_slice %1 {offsets = [0, 7], sizes = [17, 1], strides = [1, 1]} : vector<17x10xf32> to vector<17x1xf32>
    %89 = vector.broadcast %88 : vector<17x1xf32> to vector<17x16xf32>
    %90 = vector.broadcast %87 : vector<1x16xf32> to vector<17x16xf32>
    %91 = arith.mulf %89, %90 : vector<17x16xf32>
    %92 = arith.addf %81, %91 : vector<17x16xf32>
    %93 = vector.extract_strided_slice %1 {offsets = [1, 2], sizes = [16, 1], strides = [1, 1]} : vector<17x10xf32> to vector<16x1xf32>
    %94 = vector.broadcast %93 : vector<16x1xf32> to vector<16x16xf32>
    %95 = vector.broadcast %87 : vector<1x16xf32> to vector<16x16xf32>
    %96 = arith.mulf %94, %95 : vector<16x16xf32>
    %97 = arith.addf %86, %96 : vector<16x16xf32>
    %98 = vector.extract_strided_slice %2 {offsets = [8, 0], sizes = [1, 16], strides = [1, 1]} : vector<10x16xf32> to vector<1x16xf32>
    %99 = vector.extract_strided_slice %1 {offsets = [0, 8], sizes = [17, 1], strides = [1, 1]} : vector<17x10xf32> to vector<17x1xf32>
    %100 = vector.broadcast %99 : vector<17x1xf32> to vector<17x16xf32>
    %101 = vector.broadcast %98 : vector<1x16xf32> to vector<17x16xf32>
    %102 = arith.mulf %100, %101 : vector<17x16xf32>
    %103 = arith.addf %92, %102 : vector<17x16xf32>
    %104 = vector.extract_strided_slice %1 {offsets = [1, 3], sizes = [16, 1], strides = [1, 1]} : vector<17x10xf32> to vector<16x1xf32>
    %105 = vector.broadcast %104 : vector<16x1xf32> to vector<16x16xf32>
    %106 = vector.broadcast %98 : vector<1x16xf32> to vector<16x16xf32>
    %107 = arith.mulf %105, %106 : vector<16x16xf32>
    %108 = arith.addf %97, %107 : vector<16x16xf32>
    %109 = vector.extract_strided_slice %2 {offsets = [9, 0], sizes = [1, 16], strides = [1, 1]} : vector<10x16xf32> to vector<1x16xf32>
    %110 = vector.extract_strided_slice %1 {offsets = [0, 9], sizes = [17, 1], strides = [1, 1]} : vector<17x10xf32> to vector<17x1xf32>
    %111 = vector.broadcast %110 : vector<17x1xf32> to vector<17x16xf32>
    %112 = vector.broadcast %109 : vector<1x16xf32> to vector<17x16xf32>
    %113 = arith.mulf %111, %112 : vector<17x16xf32>
    %114 = arith.addf %103, %113 : vector<17x16xf32>
    %115 = vector.extract_strided_slice %1 {offsets = [1, 4], sizes = [16, 1], strides = [1, 1]} : vector<17x10xf32> to vector<16x1xf32>
    %116 = vector.broadcast %115 : vector<16x1xf32> to vector<16x16xf32>
    %117 = vector.broadcast %109 : vector<1x16xf32> to vector<16x16xf32>
    %118 = arith.mulf %116, %117 : vector<16x16xf32>
    %119 = arith.addf %108, %118 : vector<16x16xf32>
    %cst_7 = arith.constant dense<0.000000e+00> : vector<16xf32>
    %120 = vector.multi_reduction <add>, %114, %cst_7 [0] : vector<17x16xf32> to vector<16xf32>
    %121 = vector.shape_cast %120 : vector<16xf32> to vector<1x16xf32>
    %cst_8 = arith.constant dense<0.000000e+00> : vector<16xf32>
    %122 = vector.multi_reduction <add>, %119, %cst_8 [0] : vector<16x16xf32> to vector<16xf32>
    %123 = vector.shape_cast %122 : vector<16xf32> to vector<1x16xf32>
    %124 = arith.addf %121, %123 : vector<1x16xf32>
    %cst_9 = arith.constant 3.300000e+01 : f32
    %125 = vector.broadcast %cst_9 : f32 to vector<1x16xf32>
    %126 = arith.divf %124, %125 : vector<1x16xf32>
    %127 = arith.mulf %114, %114 : vector<17x16xf32>
    %cst_10 = arith.constant dense<0.000000e+00> : vector<16xf32>
    %128 = vector.multi_reduction <add>, %127, %cst_10 [0] : vector<17x16xf32> to vector<16xf32>
    %129 = vector.shape_cast %128 : vector<16xf32> to vector<1x16xf32>
    %130 = arith.mulf %119, %119 : vector<16x16xf32>
    %cst_11 = arith.constant dense<0.000000e+00> : vector<16xf32>
    %131 = vector.multi_reduction <add>, %130, %cst_11 [0] : vector<16x16xf32> to vector<16xf32>
    %132 = vector.shape_cast %131 : vector<16xf32> to vector<1x16xf32>
    %133 = arith.addf %129, %132 : vector<1x16xf32>
    %cst_12 = arith.constant 3.300000e+01 : f32
    %134 = vector.broadcast %cst_12 : f32 to vector<1x16xf32>
    %135 = arith.divf %133, %134 : vector<1x16xf32>
    %136 = arith.mulf %126, %126 : vector<1x16xf32>
    %137 = arith.subf %135, %136 : vector<1x16xf32>
    %cst_13 = arith.constant 9.99999974E-6 : f32
    %138 = vector.broadcast %cst_13 : f32 to vector<1x16xf32>
    %139 = arith.addf %137, %138 : vector<1x16xf32>
    %140 = math.rsqrt %139 : vector<1x16xf32>
    %c0_14 = arith.constant 0 : index
    %c0_15 = arith.constant 0 : index
    %141 = vector.load %arg5[%c0_14, %c0_15] : memref<1x16xf32, #tpu.memory_space<vmem>>, vector<1x16xf32>
    %c0_16 = arith.constant 0 : index
    %c0_17 = arith.constant 0 : index
    %142 = vector.load %arg6[%c0_16, %c0_17] : memref<1x16xf32, #tpu.memory_space<vmem>>, vector<1x16xf32>
    %143 = vector.broadcast %126 : vector<1x16xf32> to vector<17x16xf32>
    %144 = arith.subf %114, %143 : vector<17x16xf32>
    %145 = vector.broadcast %140 : vector<1x16xf32> to vector<17x16xf32>
    %146 = arith.mulf %144, %145 : vector<17x16xf32>
    %147 = vector.broadcast %141 : vector<1x16xf32> to vector<17x16xf32>
    %148 = arith.mulf %146, %147 : vector<17x16xf32>
    %149 = vector.broadcast %142 : vector<1x16xf32> to vector<17x16xf32>
    %150 = arith.addf %148, %149 : vector<17x16xf32>
    %cst_18 = arith.constant 5.000000e-01 : f32
    %151 = vector.broadcast %cst_18 : f32 to vector<17x16xf32>
    %152 = arith.mulf %151, %150 : vector<17x16xf32>
    %cst_19 = arith.constant 0.707106769 : f32
    %153 = vector.broadcast %cst_19 : f32 to vector<17x16xf32>
    %154 = arith.mulf %150, %153 : vector<17x16xf32>
    %155 = math.erf %154 : vector<17x16xf32>
    %cst_20 = arith.constant 1.000000e+00 : f32
    %156 = vector.broadcast %cst_20 : f32 to vector<17x16xf32>
    %157 = arith.addf %156, %155 : vector<17x16xf32>
    %158 = arith.mulf %152, %157 : vector<17x16xf32>
    %159 = vector.broadcast %126 : vector<1x16xf32> to vector<16x16xf32>
    %160 = arith.subf %119, %159 : vector<16x16xf32>
    %161 = vector.broadcast %140 : vector<1x16xf32> to vector<16x16xf32>
    %162 = arith.mulf %160, %161 : vector<16x16xf32>
    %163 = vector.broadcast %141 : vector<1x16xf32> to vector<16x16xf32>
    %164 = arith.mulf %162, %163 : vector<16x16xf32>
    %165 = vector.broadcast %142 : vector<1x16xf32> to vector<16x16xf32>
    %166 = arith.addf %164, %165 : vector<16x16xf32>
    %cst_21 = arith.constant 5.000000e-01 : f32
    %167 = vector.broadcast %cst_21 : f32 to vector<16x16xf32>
    %168 = arith.mulf %167, %166 : vector<16x16xf32>
    %cst_22 = arith.constant 0.707106769 : f32
    %169 = vector.broadcast %cst_22 : f32 to vector<16x16xf32>
    %170 = arith.mulf %166, %169 : vector<16x16xf32>
    %171 = math.erf %170 : vector<16x16xf32>
    %cst_23 = arith.constant 1.000000e+00 : f32
    %172 = vector.broadcast %cst_23 : f32 to vector<16x16xf32>
    %173 = arith.addf %172, %171 : vector<16x16xf32>
    %174 = arith.mulf %168, %173 : vector<16x16xf32>
    %175 = vector.extract_strided_slice %158 {offsets = [0, 0], sizes = [16, 16], strides = [1, 1]} : vector<17x16xf32> to vector<16x16xf32>
    %c0_24 = arith.constant 0 : index
    %c0_25 = arith.constant 0 : index
    %c0_26 = arith.constant 0 : index
    %176 = vector.load %arg7[%c0_24, %c0_25, %c0_26] : memref<3x16x16xf32, #tpu.memory_space<vmem>>, vector<1x16x16xf32>
    %177 = vector.shape_cast %176 : vector<1x16x16xf32> to vector<16x16xf32>
    %cst_27 = arith.constant dense<0.000000e+00> : vector<16x16xf32>
    %178 = tpu.matmul %175, %177, %cst_27 {dimension_numbers = #tpu.dot_dimension_numbers<[1], [0], [0], [1], [0, 0, 1, 1], [], []>} : vector<16x16xf32>, vector<16x16xf32>, vector<16x16xf32> -> vector<16x16xf32>
    %c1 = arith.constant 1 : index
    %c0_28 = arith.constant 0 : index
    %c0_29 = arith.constant 0 : index
    %179 = vector.load %arg7[%c1, %c0_28, %c0_29] : memref<3x16x16xf32, #tpu.memory_space<vmem>>, vector<1x16x16xf32>
    %180 = vector.shape_cast %179 : vector<1x16x16xf32> to vector<16x16xf32>
    %cst_30 = arith.constant dense<0.000000e+00> : vector<16x16xf32>
    %181 = tpu.matmul %174, %180, %cst_30 {dimension_numbers = #tpu.dot_dimension_numbers<[1], [0], [0], [1], [0, 0, 1, 1], [], []>} : vector<16x16xf32>, vector<16x16xf32>, vector<16x16xf32> -> vector<16x16xf32>
    %182 = arith.addf %178, %181 : vector<16x16xf32>
    %183 = vector.extract_strided_slice %158 {offsets = [1, 0], sizes = [16, 16], strides = [1, 1]} : vector<17x16xf32> to vector<16x16xf32>
    %c2 = arith.constant 2 : index
    %c0_31 = arith.constant 0 : index
    %c0_32 = arith.constant 0 : index
    %184 = vector.load %arg7[%c2, %c0_31, %c0_32] : memref<3x16x16xf32, #tpu.memory_space<vmem>>, vector<1x16x16xf32>
    %185 = vector.shape_cast %184 : vector<1x16x16xf32> to vector<16x16xf32>
    %cst_33 = arith.constant dense<0.000000e+00> : vector<16x16xf32>
    %186 = tpu.matmul %183, %185, %cst_33 {dimension_numbers = #tpu.dot_dimension_numbers<[1], [0], [0], [1], [0, 0, 1, 1], [], []>} : vector<16x16xf32>, vector<16x16xf32>, vector<16x16xf32> -> vector<16x16xf32>
    %187 = arith.addf %182, %186 : vector<16x16xf32>
    %c0_34 = arith.constant 0 : index
    %c0_35 = arith.constant 0 : index
    %188 = vector.load %arg8[%c0_34, %c0_35] : memref<1x16xf32, #tpu.memory_space<vmem>>, vector<1x16xf32>
    %189 = vector.broadcast %188 : vector<1x16xf32> to vector<16x16xf32>
    %190 = arith.addf %187, %189 : vector<16x16xf32>
    %cst_36 = arith.constant 5.000000e-01 : f32
    %191 = vector.broadcast %cst_36 : f32 to vector<16x16xf32>
    %192 = arith.mulf %191, %190 : vector<16x16xf32>
    %cst_37 = arith.constant 0.707106769 : f32
    %193 = vector.broadcast %cst_37 : f32 to vector<16x16xf32>
    %194 = arith.mulf %190, %193 : vector<16x16xf32>
    %195 = math.erf %194 : vector<16x16xf32>
    %cst_38 = arith.constant 1.000000e+00 : f32
    %196 = vector.broadcast %cst_38 : f32 to vector<16x16xf32>
    %197 = arith.addf %196, %195 : vector<16x16xf32>
    %198 = arith.mulf %192, %197 : vector<16x16xf32>
    %c0_39 = arith.constant 0 : index
    %c0_40 = arith.constant 0 : index
    %199 = vector.load %arg9[%c0_39, %c0_40] : memref<1x16xf32, #tpu.memory_space<vmem>>, vector<1x16xf32>
    %c0_41 = arith.constant 0 : index
    %c0_42 = arith.constant 0 : index
    %200 = vector.load %arg10[%c0_41, %c0_42] : memref<1x16xf32, #tpu.memory_space<vmem>>, vector<1x16xf32>
    %cst_43 = arith.constant dense<0.000000e+00> : vector<16xf32>
    %201 = vector.multi_reduction <add>, %198, %cst_43 [1] : vector<16x16xf32> to vector<16xf32>
    %202 = vector.shape_cast %201 : vector<16xf32> to vector<16x1xf32>
    %cst_44 = arith.constant 1.600000e+01 : f32
    %203 = vector.broadcast %cst_44 : f32 to vector<16x1xf32>
    %204 = arith.divf %202, %203 : vector<16x1xf32>
    %205 = vector.broadcast %204 : vector<16x1xf32> to vector<16x16xf32>
    %206 = arith.subf %198, %205 : vector<16x16xf32>
    %207 = arith.mulf %206, %206 : vector<16x16xf32>
    %cst_45 = arith.constant dense<0.000000e+00> : vector<16xf32>
    %208 = vector.multi_reduction <add>, %207, %cst_45 [1] : vector<16x16xf32> to vector<16xf32>
    %209 = vector.shape_cast %208 : vector<16xf32> to vector<16x1xf32>
    %cst_46 = arith.constant 1.600000e+01 : f32
    %210 = vector.broadcast %cst_46 : f32 to vector<16x1xf32>
    %211 = arith.divf %209, %210 : vector<16x1xf32>
    %cst_47 = arith.constant 9.99999974E-6 : f32
    %212 = vector.broadcast %cst_47 : f32 to vector<16x1xf32>
    %213 = arith.addf %211, %212 : vector<16x1xf32>
    %214 = math.rsqrt %213 : vector<16x1xf32>
    %215 = vector.broadcast %214 : vector<16x1xf32> to vector<16x16xf32>
    %216 = arith.mulf %206, %215 : vector<16x16xf32>
    %217 = vector.broadcast %199 : vector<1x16xf32> to vector<16x16xf32>
    %218 = arith.mulf %216, %217 : vector<16x16xf32>
    %219 = vector.broadcast %200 : vector<1x16xf32> to vector<16x16xf32>
    %220 = arith.addf %218, %219 : vector<16x16xf32>
    %c0_48 = arith.constant 0 : index
    %c0_49 = arith.constant 0 : index
    %221 = vector.load %arg11[%c0_48, %c0_49] : memref<16x32xf32, #tpu.memory_space<vmem>>, vector<16x32xf32>
    %cst_50 = arith.constant dense<0.000000e+00> : vector<16x32xf32>
    %222 = tpu.matmul %220, %221, %cst_50 {dimension_numbers = #tpu.dot_dimension_numbers<[1], [0], [0], [1], [0, 0, 1, 1], [], []>} : vector<16x16xf32>, vector<16x32xf32>, vector<16x32xf32> -> vector<16x32xf32>
    %c0_51 = arith.constant 0 : index
    %c0_52 = arith.constant 0 : index
    %223 = vector.load %arg12[%c0_51, %c0_52] : memref<1x32xf32, #tpu.memory_space<vmem>>, vector<1x32xf32>
    %224 = vector.broadcast %223 : vector<1x32xf32> to vector<16x32xf32>
    %225 = arith.addf %222, %224 : vector<16x32xf32>
    %c0_53 = arith.constant 0 : index
    %c0_54 = arith.constant 0 : index
    %c0_55 = arith.constant 0 : index
    %226 = vector.load %arg2[%c0_53, %c0_54, %c0_55] : memref<1x16x1xf32, #tpu.memory_space<vmem>>, vector<1x16x1xf32>
    %227 = vector.shape_cast %226 : vector<1x16x1xf32> to vector<16x1xf32>
    %228 = vector.broadcast %227 : vector<16x1xf32> to vector<16x32xf32>
    %229 = arith.mulf %225, %228 : vector<16x32xf32>
    %c1_i32 = arith.constant 1 : i32
    %230 = tpu.dynamic_rotate %229 by %c1_i32 dim 0 : vector<16x32xf32>, i32 -> vector<16x32xf32>
    %c15_i32 = arith.constant 15 : i32
    %231 = tpu.dynamic_rotate %229 by %c15_i32 dim 0 : vector<16x32xf32>, i32 -> vector<16x32xf32>
    %232 = tpu.iota {dimensions = array<i32: 0>} : vector<16x1xi32>
    %c0_i32 = arith.constant 0 : i32
    %233 = vector.broadcast %c0_i32 : i32 to vector<16x1xi32>
    %234 = arith.cmpi eq, %232, %233 : vector<16x1xi32>
    %cst_56 = arith.constant 0.000000e+00 : f32
    %235 = vector.shape_cast %234 : vector<16x1xi1> to vector<16x1xi1>
    %236 = vector.broadcast %235 : vector<16x1xi1> to vector<16x32xi1>
    %237 = vector.broadcast %cst_56 : f32 to vector<16x32xf32>
    %238 = arith.select %236, %237, %230 : vector<16x32xi1>, vector<16x32xf32>
    %c15_i32_57 = arith.constant 15 : i32
    %239 = vector.broadcast %c15_i32_57 : i32 to vector<16x1xi32>
    %240 = arith.cmpi eq, %232, %239 : vector<16x1xi32>
    %cst_58 = arith.constant 0.000000e+00 : f32
    %241 = vector.shape_cast %240 : vector<16x1xi1> to vector<16x1xi1>
    %242 = vector.broadcast %241 : vector<16x1xi1> to vector<16x32xi1>
    %243 = vector.broadcast %cst_58 : f32 to vector<16x32xf32>
    %244 = arith.select %242, %243, %231 : vector<16x32xi1>, vector<16x32xf32>
    %245 = tpu.concatenate %238, %229, %244 in 1 : vector<16x32xf32>, vector<16x32xf32>, vector<16x32xf32> -> vector<16x96xf32>
    %c0_59 = arith.constant 0 : index
    %c0_60 = arith.constant 0 : index
    %246 = vector.load %arg13[%c0_59, %c0_60] : memref<96x32xf32, #tpu.memory_space<vmem>>, vector<96x32xf32>
    %cst_61 = arith.constant dense<0.000000e+00> : vector<16x32xf32>
    %247 = tpu.matmul %245, %246, %cst_61 {dimension_numbers = #tpu.dot_dimension_numbers<[1], [0], [0], [1], [0, 0, 1, 1], [], []>} : vector<16x96xf32>, vector<96x32xf32>, vector<16x32xf32> -> vector<16x32xf32>
    %c0_62 = arith.constant 0 : index
    %c0_63 = arith.constant 0 : index
    %248 = vector.load %arg14[%c0_62, %c0_63] : memref<1x32xf32, #tpu.memory_space<vmem>>, vector<1x32xf32>
    %249 = vector.broadcast %248 : vector<1x32xf32> to vector<16x32xf32>
    %250 = arith.addf %247, %249 : vector<16x32xf32>
    %cst_64 = arith.constant 5.000000e-01 : f32
    %251 = vector.broadcast %cst_64 : f32 to vector<16x32xf32>
    %252 = arith.mulf %251, %250 : vector<16x32xf32>
    %cst_65 = arith.constant 0.707106769 : f32
    %253 = vector.broadcast %cst_65 : f32 to vector<16x32xf32>
    %254 = arith.mulf %250, %253 : vector<16x32xf32>
    %255 = math.erf %254 : vector<16x32xf32>
    %cst_66 = arith.constant 1.000000e+00 : f32
    %256 = vector.broadcast %cst_66 : f32 to vector<16x32xf32>
    %257 = arith.addf %256, %255 : vector<16x32xf32>
    %258 = arith.mulf %252, %257 : vector<16x32xf32>
    %259 = arith.addf %229, %258 : vector<16x32xf32>
    %c0_67 = arith.constant 0 : index
    %c0_68 = arith.constant 0 : index
    %260 = vector.load %arg15[%c0_67, %c0_68] : memref<1x32xf32, #tpu.memory_space<vmem>>, vector<1x32xf32>
    %c0_69 = arith.constant 0 : index
    %c0_70 = arith.constant 0 : index
    %261 = vector.load %arg16[%c0_69, %c0_70] : memref<1x32xf32, #tpu.memory_space<vmem>>, vector<1x32xf32>
    %cst_71 = arith.constant dense<0.000000e+00> : vector<16xf32>
    %262 = vector.multi_reduction <add>, %259, %cst_71 [1] : vector<16x32xf32> to vector<16xf32>
    %263 = vector.shape_cast %262 : vector<16xf32> to vector<16x1xf32>
    %cst_72 = arith.constant 3.200000e+01 : f32
    %264 = vector.broadcast %cst_72 : f32 to vector<16x1xf32>
    %265 = arith.divf %263, %264 : vector<16x1xf32>
    %266 = vector.broadcast %265 : vector<16x1xf32> to vector<16x32xf32>
    %267 = arith.subf %259, %266 : vector<16x32xf32>
    %268 = arith.mulf %267, %267 : vector<16x32xf32>
    %cst_73 = arith.constant dense<0.000000e+00> : vector<16xf32>
    %269 = vector.multi_reduction <add>, %268, %cst_73 [1] : vector<16x32xf32> to vector<16xf32>
    %270 = vector.shape_cast %269 : vector<16xf32> to vector<16x1xf32>
    %cst_74 = arith.constant 3.200000e+01 : f32
    %271 = vector.broadcast %cst_74 : f32 to vector<16x1xf32>
    %272 = arith.divf %270, %271 : vector<16x1xf32>
    %cst_75 = arith.constant 9.99999974E-6 : f32
    %273 = vector.broadcast %cst_75 : f32 to vector<16x1xf32>
    %274 = arith.addf %272, %273 : vector<16x1xf32>
    %275 = math.rsqrt %274 : vector<16x1xf32>
    %276 = vector.broadcast %275 : vector<16x1xf32> to vector<16x32xf32>
    %277 = arith.mulf %267, %276 : vector<16x32xf32>
    %278 = vector.broadcast %260 : vector<1x32xf32> to vector<16x32xf32>
    %279 = arith.mulf %277, %278 : vector<16x32xf32>
    %280 = vector.broadcast %261 : vector<1x32xf32> to vector<16x32xf32>
    %281 = arith.addf %279, %280 : vector<16x32xf32>
    %c0_76 = arith.constant 0 : index
    %c0_77 = arith.constant 0 : index
    %c0_78 = arith.constant 0 : index
    %282 = vector.load %arg17[%c0_76, %c0_77, %c0_78] : memref<1x16x32xf32, #tpu.memory_space<vmem>>, vector<1x16x32xf32>
    %283 = vector.shape_cast %282 : vector<1x16x32xf32> to vector<16x32xf32>
    %284 = vector.shape_cast %281 : vector<16x32xf32> to vector<1x16x32xf32>
    tpu.vector_store %arg17[%c0_76, %c0_77, %c0_78], %284 {strides = array<i32>} : memref<1x16x32xf32, #tpu.memory_space<vmem>>, vector<1x16x32xf32>,
    return
  }
  func.func @transform_0(%arg0: i32) -> (i32, i32, i32) {
    %c0_i32 = arith.constant 0 : i32
    %c0_i32_0 = arith.constant 0 : i32
    %c0_i32_1 = arith.constant 0 : i32
    return %arg0, %c0_i32, %c0_i32_0 : i32, i32, i32
  }
  func.func @transform_1(%arg0: i32) -> (i32, i32, i32) {
    %c0_i32 = arith.constant 0 : i32
    %c0_i32_0 = arith.constant 0 : i32
    %c0_i32_1 = arith.constant 0 : i32
    return %arg0, %c0_i32, %c0_i32_0 : i32, i32, i32
  }
  func.func @transform_2(%arg0: i32) -> (i32, i32) {
    %c0_i32 = arith.constant 0 : i32
    %c0_i32_0 = arith.constant 0 : i32
    %c0_i32_1 = arith.constant 0 : i32
    return %c0_i32, %c0_i32_0 : i32, i32
  }
  func.func @transform_3(%arg0: i32) -> (i32, i32) {
    %c0_i32 = arith.constant 0 : i32
    %c0_i32_0 = arith.constant 0 : i32
    %c0_i32_1 = arith.constant 0 : i32
    return %c0_i32, %c0_i32_0 : i32, i32
  }
  func.func @transform_4(%arg0: i32) -> (i32, i32) {
    %c0_i32 = arith.constant 0 : i32
    %c0_i32_0 = arith.constant 0 : i32
    %c0_i32_1 = arith.constant 0 : i32
    return %c0_i32, %c0_i32_0 : i32, i32
  }
  func.func @transform_5(%arg0: i32) -> (i32, i32) {
    %c0_i32 = arith.constant 0 : i32
    %c0_i32_0 = arith.constant 0 : i32
    %c0_i32_1 = arith.constant 0 : i32
    return %c0_i32, %c0_i32_0 : i32, i32
  }
  func.func @transform_6(%arg0: i32) -> (i32, i32, i32) {
    %c0_i32 = arith.constant 0 : i32
    %c0_i32_0 = arith.constant 0 : i32
    %c0_i32_1 = arith.constant 0 : i32
    %c0_i32_2 = arith.constant 0 : i32
    return %c0_i32, %c0_i32_0, %c0_i32_1 : i32, i32, i32
  }
  func.func @transform_7(%arg0: i32) -> (i32, i32) {
    %c0_i32 = arith.constant 0 : i32
    %c0_i32_0 = arith.constant 0 : i32
    %c0_i32_1 = arith.constant 0 : i32
    return %c0_i32, %c0_i32_0 : i32, i32
  }
  func.func @transform_8(%arg0: i32) -> (i32, i32) {
    %c0_i32 = arith.constant 0 : i32
    %c0_i32_0 = arith.constant 0 : i32
    %c0_i32_1 = arith.constant 0 : i32
    return %c0_i32, %c0_i32_0 : i32, i32
  }
  func.func @transform_9(%arg0: i32) -> (i32, i32) {
    %c0_i32 = arith.constant 0 : i32
    %c0_i32_0 = arith.constant 0 : i32
    %c0_i32_1 = arith.constant 0 : i32
    return %c0_i32, %c0_i32_0 : i32, i32
  }
  func.func @transform_10(%arg0: i32) -> (i32, i32) {
    %c0_i32 = arith.constant 0 : i32
    %c0_i32_0 = arith.constant 0 : i32
    %c0_i32_1 = arith.constant 0 : i32
    return %c0_i32, %c0_i32_0 : i32, i32
  }
  func.func @transform_11(%arg0: i32) -> (i32, i32) {
    %c0_i32 = arith.constant 0 : i32
    %c0_i32_0 = arith.constant 0 : i32
    %c0_i32_1 = arith.constant 0 : i32
    return %c0_i32, %c0_i32_0 : i32, i32
  }
  func.func @transform_12(%arg0: i32) -> (i32, i32) {
    %c0_i32 = arith.constant 0 : i32
    %c0_i32_0 = arith.constant 0 : i32
    %c0_i32_1 = arith.constant 0 : i32
    return %c0_i32, %c0_i32_0 : i32, i32
  }
  func.func @transform_13(%arg0: i32) -> (i32, i32) {
    %c0_i32 = arith.constant 0 : i32
    %c0_i32_0 = arith.constant 0 : i32
    %c0_i32_1 = arith.constant 0 : i32
    return %c0_i32, %c0_i32_0 : i32, i32
  }
  func.func @transform_14(%arg0: i32) -> (i32, i32) {
    %c0_i32 = arith.constant 0 : i32
    %c0_i32_0 = arith.constant 0 : i32
    %c0_i32_1 = arith.constant 0 : i32
    return %c0_i32, %c0_i32_0 : i32, i32
  }
  func.func @transform_15(%arg0: i32) -> (i32, i32) {
    %c0_i32 = arith.constant 0 : i32
    %c0_i32_0 = arith.constant 0 : i32
    %c0_i32_1 = arith.constant 0 : i32
    return %c0_i32, %c0_i32_0 : i32, i32
  }
  func.func @transform_16(%arg0: i32) -> (i32, i32, i32) {
    %c0_i32 = arith.constant 0 : i32
    %c0_i32_0 = arith.constant 0 : i32
    %c0_i32_1 = arith.constant 0 : i32
    return %arg0, %c0_i32, %c0_i32_0 : i32, i32, i32
  }
}

module attributes {stable_mosaic.version = 11 : i64} {
  func.func @_w2v_stack_kernel(%arg0: i32, %arg1: i32, %arg2: memref<2x16x32xf32, #tpu.memory_space<vmem>>, %arg3: memref<2x1x16xf32, #tpu.memory_space<vmem>>, %arg4: memref<1x4x32x8xbf16, #tpu.memory_space<vmem>>, %arg5: memref<1x4x32x8xbf16, #tpu.memory_space<vmem>>, %arg6: memref<1x4x32x8xbf16, #tpu.memory_space<vmem>>, %arg7: memref<1x4x1x8xf32, #tpu.memory_space<vmem>>, %arg8: memref<1x4x1x8xf32, #tpu.memory_space<vmem>>, %arg9: memref<1x4x1x8xf32, #tpu.memory_space<vmem>>, %arg10: memref<1x4x8x32xbf16, #tpu.memory_space<vmem>>, %arg11: memref<1x1x32xf32, #tpu.memory_space<vmem>>, %arg12: memref<1x1x32xf32, #tpu.memory_space<vmem>>, %arg13: memref<1x1x32xf32, #tpu.memory_space<vmem>>, %arg14: memref<1x32x128xbf16, #tpu.memory_space<vmem>>, %arg15: memref<1x1x128xf32, #tpu.memory_space<vmem>>, %arg16: memref<1x128x32xbf16, #tpu.memory_space<vmem>>, %arg17: memref<1x1x32xf32, #tpu.memory_space<vmem>>, %arg18: memref<1x1x32xf32, #tpu.memory_space<vmem>>, %arg19: memref<1x1x32xf32, #tpu.memory_space<vmem>>, %arg20: memref<32x128xbf16, #tpu.memory_space<vmem>>, %arg21: memref<1x128xf32, #tpu.memory_space<vmem>>, %arg22: memref<2x16x32xf32, #tpu.memory_space<vmem>>, %arg23: memref<2x16x128xf32, #tpu.memory_space<vmem>>, %arg24: memref<32x32xf32, #tpu.memory_space<vmem>>) attributes {dimension_semantics = [#tpu.dimension_semantics<parallel>, #tpu.dimension_semantics<arbitrary>], iteration_bounds = array<i64: 1, 2>, scalar_prefetch = 0 : i64, scratch_operands = 1 : i64, tpu.core_type = #tpu.core_type<tc>, window_params = [{transform_indices = @transform_0, window_bounds = array<i64: 2, 16, 32>}, {transform_indices = @transform_1, window_bounds = array<i64: 2, 1, 16>}, {transform_indices = @transform_2, window_bounds = array<i64: 1, 4, 32, 8>}, {transform_indices = @transform_3, window_bounds = array<i64: 1, 4, 32, 8>}, {transform_indices = @transform_4, window_bounds = array<i64: 1, 4, 32, 8>}, {transform_indices = @transform_5, window_bounds = array<i64: 1, 4, 1, 8>}, {transform_indices = @transform_6, window_bounds = array<i64: 1, 4, 1, 8>}, {transform_indices = @transform_7, window_bounds = array<i64: 1, 4, 1, 8>}, {transform_indices = @transform_8, window_bounds = array<i64: 1, 4, 8, 32>}, {transform_indices = @transform_9, window_bounds = array<i64: 1, 1, 32>}, {transform_indices = @transform_10, window_bounds = array<i64: 1, 1, 32>}, {transform_indices = @transform_11, window_bounds = array<i64: 1, 1, 32>}, {transform_indices = @transform_12, window_bounds = array<i64: 1, 32, 128>}, {transform_indices = @transform_13, window_bounds = array<i64: 1, 1, 128>}, {transform_indices = @transform_14, window_bounds = array<i64: 1, 128, 32>}, {transform_indices = @transform_15, window_bounds = array<i64: 1, 1, 32>}, {transform_indices = @transform_16, window_bounds = array<i64: 1, 1, 32>}, {transform_indices = @transform_17, window_bounds = array<i64: 1, 1, 32>}, {pipeline_mode = #tpu.pipeline_mode<synchronous>, transform_indices = @transform_18, window_bounds = array<i64: 32, 128>}, {pipeline_mode = #tpu.pipeline_mode<synchronous>, transform_indices = @transform_19, window_bounds = array<i64: 1, 128>}, {transform_indices = @transform_20, window_bounds = array<i64: 2, 16, 32>}, {transform_indices = @transform_21, window_bounds = array<i64: 2, 16, 128>}]} {
    %c0_i32 = arith.constant 0 : i32
    %0 = arith.cmpi eq, %arg1, %c0_i32 : i32
    %1 = arith.extui %0 : i1 to i32
    %c0_i32_0 = arith.constant 0 : i32
    %2 = arith.cmpi ne, %1, %c0_i32_0 : i32
    scf.if %2 {
      %c0_198 = arith.constant 0 : index
      %c0_199 = arith.constant 0 : index
      %c0_200 = arith.constant 0 : index
      %278 = vector.load %arg2[%c0_198, %c0_199, %c0_200] : memref<2x16x32xf32, #tpu.memory_space<vmem>>, vector<2x16x32xf32>
      %279 = vector.shape_cast %278 : vector<2x16x32xf32> to vector<32x32xf32>
      %c0_201 = arith.constant 0 : index
      %c0_202 = arith.constant 0 : index
      %280 = vector.load %arg24[%c0_201, %c0_202] : memref<32x32xf32, #tpu.memory_space<vmem>>, vector<32x32xf32>
      tpu.vector_store %arg24[%c0_201, %c0_202], %279 {strides = array<i32>} : memref<32x32xf32, #tpu.memory_space<vmem>>, vector<32x32xf32>,
    } else {
    }
    %c0 = arith.constant 0 : index
    %c0_1 = arith.constant 0 : index
    %3 = vector.load %arg24[%c0, %c0_1] : memref<32x32xf32, #tpu.memory_space<vmem>>, vector<32x32xf32>
    %4 = arith.truncf %3 : vector<32x32xf32> to vector<32x32xbf16>
    %c0_2 = arith.constant 0 : index
    %c0_3 = arith.constant 0 : index
    %c0_4 = arith.constant 0 : index
    %5 = vector.load %arg3[%c0_2, %c0_3, %c0_4] : memref<2x1x16xf32, #tpu.memory_space<vmem>>, vector<2x1x16xf32>
    %cst = arith.constant 5.000000e-01 : f32
    %6 = vector.broadcast %cst : f32 to vector<2x1x16xf32>
    %7 = arith.cmpf ogt, %5, %6 : vector<2x1x16xf32>
    %cst_5 = arith.constant 0.000000e+00 : f32
    %cst_6 = arith.constant -1.000000e+09 : f32
    %8 = vector.broadcast %cst_5 : f32 to vector<2x1x16xf32>
    %9 = vector.broadcast %cst_6 : f32 to vector<2x1x16xf32>
    %10 = arith.select %7, %8, %9 : vector<2x1x16xi1>, vector<2x1x16xf32>
    %cst_7 = arith.constant 0.000000e+00 : f32
    %11 = vector.broadcast %cst_7 : f32 to vector<32x32xf32>
    %c0_8 = arith.constant 0 : index
    %c0_9 = arith.constant 0 : index
    %c0_10 = arith.constant 0 : index
    %c0_11 = arith.constant 0 : index
    %12 = vector.load %arg4[%c0_8, %c0_9, %c0_10, %c0_11] : memref<1x4x32x8xbf16, #tpu.memory_space<vmem>>, vector<1x1x32x8xbf16>
    %13 = vector.shape_cast %12 : vector<1x1x32x8xbf16> to vector<32x8xbf16>
    %cst_12 = arith.constant dense<0.000000e+00> : vector<32x8xf32>
    %14 = tpu.matmul %4, %13, %cst_12 {dimension_numbers = #tpu.dot_dimension_numbers<[1], [0], [0], [1], [0, 0, 1, 1], [], []>} : vector<32x32xbf16>, vector<32x8xbf16>, vector<32x8xf32> -> vector<32x8xf32>
    %c0_13 = arith.constant 0 : index
    %c0_14 = arith.constant 0 : index
    %c0_15 = arith.constant 0 : index
    %c0_16 = arith.constant 0 : index
    %15 = vector.load %arg7[%c0_13, %c0_14, %c0_15, %c0_16] : memref<1x4x1x8xf32, #tpu.memory_space<vmem>>, vector<1x1x1x8xf32>
    %16 = vector.shape_cast %15 : vector<1x1x1x8xf32> to vector<1x8xf32>
    %17 = vector.broadcast %16 : vector<1x8xf32> to vector<32x8xf32>
    %18 = arith.addf %14, %17 : vector<32x8xf32>
    %19 = vector.shape_cast %18 : vector<32x8xf32> to vector<2x16x8xf32>
    %c0_17 = arith.constant 0 : index
    %c0_18 = arith.constant 0 : index
    %c0_19 = arith.constant 0 : index
    %c0_20 = arith.constant 0 : index
    %20 = vector.load %arg5[%c0_17, %c0_18, %c0_19, %c0_20] : memref<1x4x32x8xbf16, #tpu.memory_space<vmem>>, vector<1x1x32x8xbf16>
    %21 = vector.shape_cast %20 : vector<1x1x32x8xbf16> to vector<32x8xbf16>
    %cst_21 = arith.constant dense<0.000000e+00> : vector<32x8xf32>
    %22 = tpu.matmul %4, %21, %cst_21 {dimension_numbers = #tpu.dot_dimension_numbers<[1], [0], [0], [1], [0, 0, 1, 1], [], []>} : vector<32x32xbf16>, vector<32x8xbf16>, vector<32x8xf32> -> vector<32x8xf32>
    %c0_22 = arith.constant 0 : index
    %c0_23 = arith.constant 0 : index
    %c0_24 = arith.constant 0 : index
    %c0_25 = arith.constant 0 : index
    %23 = vector.load %arg8[%c0_22, %c0_23, %c0_24, %c0_25] : memref<1x4x1x8xf32, #tpu.memory_space<vmem>>, vector<1x1x1x8xf32>
    %24 = vector.shape_cast %23 : vector<1x1x1x8xf32> to vector<1x8xf32>
    %25 = vector.broadcast %24 : vector<1x8xf32> to vector<32x8xf32>
    %26 = arith.addf %22, %25 : vector<32x8xf32>
    %27 = vector.shape_cast %26 : vector<32x8xf32> to vector<2x16x8xf32>
    %c0_26 = arith.constant 0 : index
    %c0_27 = arith.constant 0 : index
    %c0_28 = arith.constant 0 : index
    %c0_29 = arith.constant 0 : index
    %28 = vector.load %arg6[%c0_26, %c0_27, %c0_28, %c0_29] : memref<1x4x32x8xbf16, #tpu.memory_space<vmem>>, vector<1x1x32x8xbf16>
    %29 = vector.shape_cast %28 : vector<1x1x32x8xbf16> to vector<32x8xbf16>
    %cst_30 = arith.constant dense<0.000000e+00> : vector<32x8xf32>
    %30 = tpu.matmul %4, %29, %cst_30 {dimension_numbers = #tpu.dot_dimension_numbers<[1], [0], [0], [1], [0, 0, 1, 1], [], []>} : vector<32x32xbf16>, vector<32x8xbf16>, vector<32x8xf32> -> vector<32x8xf32>
    %c0_31 = arith.constant 0 : index
    %c0_32 = arith.constant 0 : index
    %c0_33 = arith.constant 0 : index
    %c0_34 = arith.constant 0 : index
    %31 = vector.load %arg9[%c0_31, %c0_32, %c0_33, %c0_34] : memref<1x4x1x8xf32, #tpu.memory_space<vmem>>, vector<1x1x1x8xf32>
    %32 = vector.shape_cast %31 : vector<1x1x1x8xf32> to vector<1x8xf32>
    %33 = vector.broadcast %32 : vector<1x8xf32> to vector<32x8xf32>
    %34 = arith.addf %30, %33 : vector<32x8xf32>
    %35 = vector.shape_cast %34 : vector<32x8xf32> to vector<2x16x8xf32>
    "tpu.trace_start"() <{level = 10 : i32, message = "bqd,bkd->bqk"}> : () -> ()
    %cst_35 = arith.constant dense<0.000000e+00> : vector<2x16x16xf32>
    %36 = tpu.matmul %19, %27, %cst_35 {dimension_numbers = #tpu.dot_dimension_numbers<[2], [2], [1], [1], [0, 0, 0, 1, 1, 1], [0], [0]>} : vector<2x16x8xf32>, vector<2x16x8xf32>, vector<2x16x16xf32> -> vector<2x16x16xf32>
    "tpu.trace_stop"() : () -> ()
    %cst_36 = arith.constant 0.353553385 : f32
    %37 = vector.broadcast %cst_36 : f32 to vector<2x16x16xf32>
    %38 = arith.mulf %36, %37 : vector<2x16x16xf32>
    %39 = vector.broadcast %10 : vector<2x1x16xf32> to vector<2x16x16xf32>
    %40 = arith.addf %38, %39 : vector<2x16x16xf32>
    %cst_37 = arith.constant dense<0xFF800000> : vector<2x16xf32>
    %41 = vector.multi_reduction <maximumf>, %40, %cst_37 [2] : vector<2x16x16xf32> to vector<2x16xf32>
    %42 = vector.shape_cast %41 : vector<2x16xf32> to vector<2x16x1xf32>
    %43 = vector.broadcast %42 : vector<2x16x1xf32> to vector<2x16x16xf32>
    %44 = arith.subf %40, %43 : vector<2x16x16xf32>
    %45 = math.exp %44 : vector<2x16x16xf32>
    %cst_38 = arith.constant dense<0.000000e+00> : vector<2x16xf32>
    %46 = vector.multi_reduction <add>, %45, %cst_38 [2] : vector<2x16x16xf32> to vector<2x16xf32>
    %47 = vector.shape_cast %46 : vector<2x16xf32> to vector<2x16x1xf32>
    %48 = tpu.reciprocal %47 {approx = true} : vector<2x16x1xf32> -> vector<2x16x1xf32>
    %49 = vector.broadcast %48 : vector<2x16x1xf32> to vector<2x16x16xf32>
    %50 = arith.mulf %45, %49 : vector<2x16x16xf32>
    "tpu.trace_start"() <{level = 10 : i32, message = "bqk,bkd->bqd"}> : () -> ()
    %cst_39 = arith.constant dense<0.000000e+00> : vector<2x16x8xf32>
    %51 = tpu.matmul %50, %35, %cst_39 {dimension_numbers = #tpu.dot_dimension_numbers<[2], [1], [1], [2], [0, 0, 0, 1, 1, 2], [0], [0]>} : vector<2x16x16xf32>, vector<2x16x8xf32>, vector<2x16x8xf32> -> vector<2x16x8xf32>
    "tpu.trace_stop"() : () -> ()
    %52 = vector.shape_cast %51 : vector<2x16x8xf32> to vector<32x8xf32>
    %53 = arith.truncf %52 : vector<32x8xf32> to vector<32x8xbf16>
    %c0_40 = arith.constant 0 : index
    %c0_41 = arith.constant 0 : index
    %c0_42 = arith.constant 0 : index
    %c0_43 = arith.constant 0 : index
    %54 = vector.load %arg10[%c0_40, %c0_41, %c0_42, %c0_43] : memref<1x4x8x32xbf16, #tpu.memory_space<vmem>>, vector<1x1x8x32xbf16>
    %55 = vector.shape_cast %54 : vector<1x1x8x32xbf16> to vector<8x32xbf16>
    %cst_44 = arith.constant dense<0.000000e+00> : vector<32x32xf32>
    %56 = tpu.matmul %53, %55, %cst_44 {dimension_numbers = #tpu.dot_dimension_numbers<[1], [0], [0], [1], [0, 0, 1, 1], [], []>} : vector<32x8xbf16>, vector<8x32xbf16>, vector<32x32xf32> -> vector<32x32xf32>
    %57 = arith.addf %11, %56 : vector<32x32xf32>
    %c0_45 = arith.constant 0 : index
    %c1 = arith.constant 1 : index
    %c0_46 = arith.constant 0 : index
    %c0_47 = arith.constant 0 : index
    %58 = vector.load %arg4[%c0_45, %c1, %c0_46, %c0_47] : memref<1x4x32x8xbf16, #tpu.memory_space<vmem>>, vector<1x1x32x8xbf16>
    %59 = vector.shape_cast %58 : vector<1x1x32x8xbf16> to vector<32x8xbf16>
    %cst_48 = arith.constant dense<0.000000e+00> : vector<32x8xf32>
    %60 = tpu.matmul %4, %59, %cst_48 {dimension_numbers = #tpu.dot_dimension_numbers<[1], [0], [0], [1], [0, 0, 1, 1], [], []>} : vector<32x32xbf16>, vector<32x8xbf16>, vector<32x8xf32> -> vector<32x8xf32>
    %c0_49 = arith.constant 0 : index
    %c1_50 = arith.constant 1 : index
    %c0_51 = arith.constant 0 : index
    %c0_52 = arith.constant 0 : index
    %61 = vector.load %arg7[%c0_49, %c1_50, %c0_51, %c0_52] : memref<1x4x1x8xf32, #tpu.memory_space<vmem>>, vector<1x1x1x8xf32>
    %62 = vector.shape_cast %61 : vector<1x1x1x8xf32> to vector<1x8xf32>
    %63 = vector.broadcast %62 : vector<1x8xf32> to vector<32x8xf32>
    %64 = arith.addf %60, %63 : vector<32x8xf32>
    %65 = vector.shape_cast %64 : vector<32x8xf32> to vector<2x16x8xf32>
    %c0_53 = arith.constant 0 : index
    %c1_54 = arith.constant 1 : index
    %c0_55 = arith.constant 0 : index
    %c0_56 = arith.constant 0 : index
    %66 = vector.load %arg5[%c0_53, %c1_54, %c0_55, %c0_56] : memref<1x4x32x8xbf16, #tpu.memory_space<vmem>>, vector<1x1x32x8xbf16>
    %67 = vector.shape_cast %66 : vector<1x1x32x8xbf16> to vector<32x8xbf16>
    %cst_57 = arith.constant dense<0.000000e+00> : vector<32x8xf32>
    %68 = tpu.matmul %4, %67, %cst_57 {dimension_numbers = #tpu.dot_dimension_numbers<[1], [0], [0], [1], [0, 0, 1, 1], [], []>} : vector<32x32xbf16>, vector<32x8xbf16>, vector<32x8xf32> -> vector<32x8xf32>
    %c0_58 = arith.constant 0 : index
    %c1_59 = arith.constant 1 : index
    %c0_60 = arith.constant 0 : index
    %c0_61 = arith.constant 0 : index
    %69 = vector.load %arg8[%c0_58, %c1_59, %c0_60, %c0_61] : memref<1x4x1x8xf32, #tpu.memory_space<vmem>>, vector<1x1x1x8xf32>
    %70 = vector.shape_cast %69 : vector<1x1x1x8xf32> to vector<1x8xf32>
    %71 = vector.broadcast %70 : vector<1x8xf32> to vector<32x8xf32>
    %72 = arith.addf %68, %71 : vector<32x8xf32>
    %73 = vector.shape_cast %72 : vector<32x8xf32> to vector<2x16x8xf32>
    %c0_62 = arith.constant 0 : index
    %c1_63 = arith.constant 1 : index
    %c0_64 = arith.constant 0 : index
    %c0_65 = arith.constant 0 : index
    %74 = vector.load %arg6[%c0_62, %c1_63, %c0_64, %c0_65] : memref<1x4x32x8xbf16, #tpu.memory_space<vmem>>, vector<1x1x32x8xbf16>
    %75 = vector.shape_cast %74 : vector<1x1x32x8xbf16> to vector<32x8xbf16>
    %cst_66 = arith.constant dense<0.000000e+00> : vector<32x8xf32>
    %76 = tpu.matmul %4, %75, %cst_66 {dimension_numbers = #tpu.dot_dimension_numbers<[1], [0], [0], [1], [0, 0, 1, 1], [], []>} : vector<32x32xbf16>, vector<32x8xbf16>, vector<32x8xf32> -> vector<32x8xf32>
    %c0_67 = arith.constant 0 : index
    %c1_68 = arith.constant 1 : index
    %c0_69 = arith.constant 0 : index
    %c0_70 = arith.constant 0 : index
    %77 = vector.load %arg9[%c0_67, %c1_68, %c0_69, %c0_70] : memref<1x4x1x8xf32, #tpu.memory_space<vmem>>, vector<1x1x1x8xf32>
    %78 = vector.shape_cast %77 : vector<1x1x1x8xf32> to vector<1x8xf32>
    %79 = vector.broadcast %78 : vector<1x8xf32> to vector<32x8xf32>
    %80 = arith.addf %76, %79 : vector<32x8xf32>
    %81 = vector.shape_cast %80 : vector<32x8xf32> to vector<2x16x8xf32>
    "tpu.trace_start"() <{level = 10 : i32, message = "bqd,bkd->bqk"}> : () -> ()
    %cst_71 = arith.constant dense<0.000000e+00> : vector<2x16x16xf32>
    %82 = tpu.matmul %65, %73, %cst_71 {dimension_numbers = #tpu.dot_dimension_numbers<[2], [2], [1], [1], [0, 0, 0, 1, 1, 1], [0], [0]>} : vector<2x16x8xf32>, vector<2x16x8xf32>, vector<2x16x16xf32> -> vector<2x16x16xf32>
    "tpu.trace_stop"() : () -> ()
    %cst_72 = arith.constant 0.353553385 : f32
    %83 = vector.broadcast %cst_72 : f32 to vector<2x16x16xf32>
    %84 = arith.mulf %82, %83 : vector<2x16x16xf32>
    %85 = vector.broadcast %10 : vector<2x1x16xf32> to vector<2x16x16xf32>
    %86 = arith.addf %84, %85 : vector<2x16x16xf32>
    %cst_73 = arith.constant dense<0xFF800000> : vector<2x16xf32>
    %87 = vector.multi_reduction <maximumf>, %86, %cst_73 [2] : vector<2x16x16xf32> to vector<2x16xf32>
    %88 = vector.shape_cast %87 : vector<2x16xf32> to vector<2x16x1xf32>
    %89 = vector.broadcast %88 : vector<2x16x1xf32> to vector<2x16x16xf32>
    %90 = arith.subf %86, %89 : vector<2x16x16xf32>
    %91 = math.exp %90 : vector<2x16x16xf32>
    %cst_74 = arith.constant dense<0.000000e+00> : vector<2x16xf32>
    %92 = vector.multi_reduction <add>, %91, %cst_74 [2] : vector<2x16x16xf32> to vector<2x16xf32>
    %93 = vector.shape_cast %92 : vector<2x16xf32> to vector<2x16x1xf32>
    %94 = tpu.reciprocal %93 {approx = true} : vector<2x16x1xf32> -> vector<2x16x1xf32>
    %95 = vector.broadcast %94 : vector<2x16x1xf32> to vector<2x16x16xf32>
    %96 = arith.mulf %91, %95 : vector<2x16x16xf32>
    "tpu.trace_start"() <{level = 10 : i32, message = "bqk,bkd->bqd"}> : () -> ()
    %cst_75 = arith.constant dense<0.000000e+00> : vector<2x16x8xf32>
    %97 = tpu.matmul %96, %81, %cst_75 {dimension_numbers = #tpu.dot_dimension_numbers<[2], [1], [1], [2], [0, 0, 0, 1, 1, 2], [0], [0]>} : vector<2x16x16xf32>, vector<2x16x8xf32>, vector<2x16x8xf32> -> vector<2x16x8xf32>
    "tpu.trace_stop"() : () -> ()
    %98 = vector.shape_cast %97 : vector<2x16x8xf32> to vector<32x8xf32>
    %99 = arith.truncf %98 : vector<32x8xf32> to vector<32x8xbf16>
    %c0_76 = arith.constant 0 : index
    %c1_77 = arith.constant 1 : index
    %c0_78 = arith.constant 0 : index
    %c0_79 = arith.constant 0 : index
    %100 = vector.load %arg10[%c0_76, %c1_77, %c0_78, %c0_79] : memref<1x4x8x32xbf16, #tpu.memory_space<vmem>>, vector<1x1x8x32xbf16>
    %101 = vector.shape_cast %100 : vector<1x1x8x32xbf16> to vector<8x32xbf16>
    %cst_80 = arith.constant dense<0.000000e+00> : vector<32x32xf32>
    %102 = tpu.matmul %99, %101, %cst_80 {dimension_numbers = #tpu.dot_dimension_numbers<[1], [0], [0], [1], [0, 0, 1, 1], [], []>} : vector<32x8xbf16>, vector<8x32xbf16>, vector<32x32xf32> -> vector<32x32xf32>
    %103 = arith.addf %57, %102 : vector<32x32xf32>
    %c0_81 = arith.constant 0 : index
    %c2 = arith.constant 2 : index
    %c0_82 = arith.constant 0 : index
    %c0_83 = arith.constant 0 : index
    %104 = vector.load %arg4[%c0_81, %c2, %c0_82, %c0_83] : memref<1x4x32x8xbf16, #tpu.memory_space<vmem>>, vector<1x1x32x8xbf16>
    %105 = vector.shape_cast %104 : vector<1x1x32x8xbf16> to vector<32x8xbf16>
    %cst_84 = arith.constant dense<0.000000e+00> : vector<32x8xf32>
    %106 = tpu.matmul %4, %105, %cst_84 {dimension_numbers = #tpu.dot_dimension_numbers<[1], [0], [0], [1], [0, 0, 1, 1], [], []>} : vector<32x32xbf16>, vector<32x8xbf16>, vector<32x8xf32> -> vector<32x8xf32>
    %c0_85 = arith.constant 0 : index
    %c2_86 = arith.constant 2 : index
    %c0_87 = arith.constant 0 : index
    %c0_88 = arith.constant 0 : index
    %107 = vector.load %arg7[%c0_85, %c2_86, %c0_87, %c0_88] : memref<1x4x1x8xf32, #tpu.memory_space<vmem>>, vector<1x1x1x8xf32>
    %108 = vector.shape_cast %107 : vector<1x1x1x8xf32> to vector<1x8xf32>
    %109 = vector.broadcast %108 : vector<1x8xf32> to vector<32x8xf32>
    %110 = arith.addf %106, %109 : vector<32x8xf32>
    %111 = vector.shape_cast %110 : vector<32x8xf32> to vector<2x16x8xf32>
    %c0_89 = arith.constant 0 : index
    %c2_90 = arith.constant 2 : index
    %c0_91 = arith.constant 0 : index
    %c0_92 = arith.constant 0 : index
    %112 = vector.load %arg5[%c0_89, %c2_90, %c0_91, %c0_92] : memref<1x4x32x8xbf16, #tpu.memory_space<vmem>>, vector<1x1x32x8xbf16>
    %113 = vector.shape_cast %112 : vector<1x1x32x8xbf16> to vector<32x8xbf16>
    %cst_93 = arith.constant dense<0.000000e+00> : vector<32x8xf32>
    %114 = tpu.matmul %4, %113, %cst_93 {dimension_numbers = #tpu.dot_dimension_numbers<[1], [0], [0], [1], [0, 0, 1, 1], [], []>} : vector<32x32xbf16>, vector<32x8xbf16>, vector<32x8xf32> -> vector<32x8xf32>
    %c0_94 = arith.constant 0 : index
    %c2_95 = arith.constant 2 : index
    %c0_96 = arith.constant 0 : index
    %c0_97 = arith.constant 0 : index
    %115 = vector.load %arg8[%c0_94, %c2_95, %c0_96, %c0_97] : memref<1x4x1x8xf32, #tpu.memory_space<vmem>>, vector<1x1x1x8xf32>
    %116 = vector.shape_cast %115 : vector<1x1x1x8xf32> to vector<1x8xf32>
    %117 = vector.broadcast %116 : vector<1x8xf32> to vector<32x8xf32>
    %118 = arith.addf %114, %117 : vector<32x8xf32>
    %119 = vector.shape_cast %118 : vector<32x8xf32> to vector<2x16x8xf32>
    %c0_98 = arith.constant 0 : index
    %c2_99 = arith.constant 2 : index
    %c0_100 = arith.constant 0 : index
    %c0_101 = arith.constant 0 : index
    %120 = vector.load %arg6[%c0_98, %c2_99, %c0_100, %c0_101] : memref<1x4x32x8xbf16, #tpu.memory_space<vmem>>, vector<1x1x32x8xbf16>
    %121 = vector.shape_cast %120 : vector<1x1x32x8xbf16> to vector<32x8xbf16>
    %cst_102 = arith.constant dense<0.000000e+00> : vector<32x8xf32>
    %122 = tpu.matmul %4, %121, %cst_102 {dimension_numbers = #tpu.dot_dimension_numbers<[1], [0], [0], [1], [0, 0, 1, 1], [], []>} : vector<32x32xbf16>, vector<32x8xbf16>, vector<32x8xf32> -> vector<32x8xf32>
    %c0_103 = arith.constant 0 : index
    %c2_104 = arith.constant 2 : index
    %c0_105 = arith.constant 0 : index
    %c0_106 = arith.constant 0 : index
    %123 = vector.load %arg9[%c0_103, %c2_104, %c0_105, %c0_106] : memref<1x4x1x8xf32, #tpu.memory_space<vmem>>, vector<1x1x1x8xf32>
    %124 = vector.shape_cast %123 : vector<1x1x1x8xf32> to vector<1x8xf32>
    %125 = vector.broadcast %124 : vector<1x8xf32> to vector<32x8xf32>
    %126 = arith.addf %122, %125 : vector<32x8xf32>
    %127 = vector.shape_cast %126 : vector<32x8xf32> to vector<2x16x8xf32>
    "tpu.trace_start"() <{level = 10 : i32, message = "bqd,bkd->bqk"}> : () -> ()
    %cst_107 = arith.constant dense<0.000000e+00> : vector<2x16x16xf32>
    %128 = tpu.matmul %111, %119, %cst_107 {dimension_numbers = #tpu.dot_dimension_numbers<[2], [2], [1], [1], [0, 0, 0, 1, 1, 1], [0], [0]>} : vector<2x16x8xf32>, vector<2x16x8xf32>, vector<2x16x16xf32> -> vector<2x16x16xf32>
    "tpu.trace_stop"() : () -> ()
    %cst_108 = arith.constant 0.353553385 : f32
    %129 = vector.broadcast %cst_108 : f32 to vector<2x16x16xf32>
    %130 = arith.mulf %128, %129 : vector<2x16x16xf32>
    %131 = vector.broadcast %10 : vector<2x1x16xf32> to vector<2x16x16xf32>
    %132 = arith.addf %130, %131 : vector<2x16x16xf32>
    %cst_109 = arith.constant dense<0xFF800000> : vector<2x16xf32>
    %133 = vector.multi_reduction <maximumf>, %132, %cst_109 [2] : vector<2x16x16xf32> to vector<2x16xf32>
    %134 = vector.shape_cast %133 : vector<2x16xf32> to vector<2x16x1xf32>
    %135 = vector.broadcast %134 : vector<2x16x1xf32> to vector<2x16x16xf32>
    %136 = arith.subf %132, %135 : vector<2x16x16xf32>
    %137 = math.exp %136 : vector<2x16x16xf32>
    %cst_110 = arith.constant dense<0.000000e+00> : vector<2x16xf32>
    %138 = vector.multi_reduction <add>, %137, %cst_110 [2] : vector<2x16x16xf32> to vector<2x16xf32>
    %139 = vector.shape_cast %138 : vector<2x16xf32> to vector<2x16x1xf32>
    %140 = tpu.reciprocal %139 {approx = true} : vector<2x16x1xf32> -> vector<2x16x1xf32>
    %141 = vector.broadcast %140 : vector<2x16x1xf32> to vector<2x16x16xf32>
    %142 = arith.mulf %137, %141 : vector<2x16x16xf32>
    "tpu.trace_start"() <{level = 10 : i32, message = "bqk,bkd->bqd"}> : () -> ()
    %cst_111 = arith.constant dense<0.000000e+00> : vector<2x16x8xf32>
    %143 = tpu.matmul %142, %127, %cst_111 {dimension_numbers = #tpu.dot_dimension_numbers<[2], [1], [1], [2], [0, 0, 0, 1, 1, 2], [0], [0]>} : vector<2x16x16xf32>, vector<2x16x8xf32>, vector<2x16x8xf32> -> vector<2x16x8xf32>
    "tpu.trace_stop"() : () -> ()
    %144 = vector.shape_cast %143 : vector<2x16x8xf32> to vector<32x8xf32>
    %145 = arith.truncf %144 : vector<32x8xf32> to vector<32x8xbf16>
    %c0_112 = arith.constant 0 : index
    %c2_113 = arith.constant 2 : index
    %c0_114 = arith.constant 0 : index
    %c0_115 = arith.constant 0 : index
    %146 = vector.load %arg10[%c0_112, %c2_113, %c0_114, %c0_115] : memref<1x4x8x32xbf16, #tpu.memory_space<vmem>>, vector<1x1x8x32xbf16>
    %147 = vector.shape_cast %146 : vector<1x1x8x32xbf16> to vector<8x32xbf16>
    %cst_116 = arith.constant dense<0.000000e+00> : vector<32x32xf32>
    %148 = tpu.matmul %145, %147, %cst_116 {dimension_numbers = #tpu.dot_dimension_numbers<[1], [0], [0], [1], [0, 0, 1, 1], [], []>} : vector<32x8xbf16>, vector<8x32xbf16>, vector<32x32xf32> -> vector<32x32xf32>
    %149 = arith.addf %103, %148 : vector<32x32xf32>
    %c0_117 = arith.constant 0 : index
    %c3 = arith.constant 3 : index
    %c0_118 = arith.constant 0 : index
    %c0_119 = arith.constant 0 : index
    %150 = vector.load %arg4[%c0_117, %c3, %c0_118, %c0_119] : memref<1x4x32x8xbf16, #tpu.memory_space<vmem>>, vector<1x1x32x8xbf16>
    %151 = vector.shape_cast %150 : vector<1x1x32x8xbf16> to vector<32x8xbf16>
    %cst_120 = arith.constant dense<0.000000e+00> : vector<32x8xf32>
    %152 = tpu.matmul %4, %151, %cst_120 {dimension_numbers = #tpu.dot_dimension_numbers<[1], [0], [0], [1], [0, 0, 1, 1], [], []>} : vector<32x32xbf16>, vector<32x8xbf16>, vector<32x8xf32> -> vector<32x8xf32>
    %c0_121 = arith.constant 0 : index
    %c3_122 = arith.constant 3 : index
    %c0_123 = arith.constant 0 : index
    %c0_124 = arith.constant 0 : index
    %153 = vector.load %arg7[%c0_121, %c3_122, %c0_123, %c0_124] : memref<1x4x1x8xf32, #tpu.memory_space<vmem>>, vector<1x1x1x8xf32>
    %154 = vector.shape_cast %153 : vector<1x1x1x8xf32> to vector<1x8xf32>
    %155 = vector.broadcast %154 : vector<1x8xf32> to vector<32x8xf32>
    %156 = arith.addf %152, %155 : vector<32x8xf32>
    %157 = vector.shape_cast %156 : vector<32x8xf32> to vector<2x16x8xf32>
    %c0_125 = arith.constant 0 : index
    %c3_126 = arith.constant 3 : index
    %c0_127 = arith.constant 0 : index
    %c0_128 = arith.constant 0 : index
    %158 = vector.load %arg5[%c0_125, %c3_126, %c0_127, %c0_128] : memref<1x4x32x8xbf16, #tpu.memory_space<vmem>>, vector<1x1x32x8xbf16>
    %159 = vector.shape_cast %158 : vector<1x1x32x8xbf16> to vector<32x8xbf16>
    %cst_129 = arith.constant dense<0.000000e+00> : vector<32x8xf32>
    %160 = tpu.matmul %4, %159, %cst_129 {dimension_numbers = #tpu.dot_dimension_numbers<[1], [0], [0], [1], [0, 0, 1, 1], [], []>} : vector<32x32xbf16>, vector<32x8xbf16>, vector<32x8xf32> -> vector<32x8xf32>
    %c0_130 = arith.constant 0 : index
    %c3_131 = arith.constant 3 : index
    %c0_132 = arith.constant 0 : index
    %c0_133 = arith.constant 0 : index
    %161 = vector.load %arg8[%c0_130, %c3_131, %c0_132, %c0_133] : memref<1x4x1x8xf32, #tpu.memory_space<vmem>>, vector<1x1x1x8xf32>
    %162 = vector.shape_cast %161 : vector<1x1x1x8xf32> to vector<1x8xf32>
    %163 = vector.broadcast %162 : vector<1x8xf32> to vector<32x8xf32>
    %164 = arith.addf %160, %163 : vector<32x8xf32>
    %165 = vector.shape_cast %164 : vector<32x8xf32> to vector<2x16x8xf32>
    %c0_134 = arith.constant 0 : index
    %c3_135 = arith.constant 3 : index
    %c0_136 = arith.constant 0 : index
    %c0_137 = arith.constant 0 : index
    %166 = vector.load %arg6[%c0_134, %c3_135, %c0_136, %c0_137] : memref<1x4x32x8xbf16, #tpu.memory_space<vmem>>, vector<1x1x32x8xbf16>
    %167 = vector.shape_cast %166 : vector<1x1x32x8xbf16> to vector<32x8xbf16>
    %cst_138 = arith.constant dense<0.000000e+00> : vector<32x8xf32>
    %168 = tpu.matmul %4, %167, %cst_138 {dimension_numbers = #tpu.dot_dimension_numbers<[1], [0], [0], [1], [0, 0, 1, 1], [], []>} : vector<32x32xbf16>, vector<32x8xbf16>, vector<32x8xf32> -> vector<32x8xf32>
    %c0_139 = arith.constant 0 : index
    %c3_140 = arith.constant 3 : index
    %c0_141 = arith.constant 0 : index
    %c0_142 = arith.constant 0 : index
    %169 = vector.load %arg9[%c0_139, %c3_140, %c0_141, %c0_142] : memref<1x4x1x8xf32, #tpu.memory_space<vmem>>, vector<1x1x1x8xf32>
    %170 = vector.shape_cast %169 : vector<1x1x1x8xf32> to vector<1x8xf32>
    %171 = vector.broadcast %170 : vector<1x8xf32> to vector<32x8xf32>
    %172 = arith.addf %168, %171 : vector<32x8xf32>
    %173 = vector.shape_cast %172 : vector<32x8xf32> to vector<2x16x8xf32>
    "tpu.trace_start"() <{level = 10 : i32, message = "bqd,bkd->bqk"}> : () -> ()
    %cst_143 = arith.constant dense<0.000000e+00> : vector<2x16x16xf32>
    %174 = tpu.matmul %157, %165, %cst_143 {dimension_numbers = #tpu.dot_dimension_numbers<[2], [2], [1], [1], [0, 0, 0, 1, 1, 1], [0], [0]>} : vector<2x16x8xf32>, vector<2x16x8xf32>, vector<2x16x16xf32> -> vector<2x16x16xf32>
    "tpu.trace_stop"() : () -> ()
    %cst_144 = arith.constant 0.353553385 : f32
    %175 = vector.broadcast %cst_144 : f32 to vector<2x16x16xf32>
    %176 = arith.mulf %174, %175 : vector<2x16x16xf32>
    %177 = vector.broadcast %10 : vector<2x1x16xf32> to vector<2x16x16xf32>
    %178 = arith.addf %176, %177 : vector<2x16x16xf32>
    %cst_145 = arith.constant dense<0xFF800000> : vector<2x16xf32>
    %179 = vector.multi_reduction <maximumf>, %178, %cst_145 [2] : vector<2x16x16xf32> to vector<2x16xf32>
    %180 = vector.shape_cast %179 : vector<2x16xf32> to vector<2x16x1xf32>
    %181 = vector.broadcast %180 : vector<2x16x1xf32> to vector<2x16x16xf32>
    %182 = arith.subf %178, %181 : vector<2x16x16xf32>
    %183 = math.exp %182 : vector<2x16x16xf32>
    %cst_146 = arith.constant dense<0.000000e+00> : vector<2x16xf32>
    %184 = vector.multi_reduction <add>, %183, %cst_146 [2] : vector<2x16x16xf32> to vector<2x16xf32>
    %185 = vector.shape_cast %184 : vector<2x16xf32> to vector<2x16x1xf32>
    %186 = tpu.reciprocal %185 {approx = true} : vector<2x16x1xf32> -> vector<2x16x1xf32>
    %187 = vector.broadcast %186 : vector<2x16x1xf32> to vector<2x16x16xf32>
    %188 = arith.mulf %183, %187 : vector<2x16x16xf32>
    "tpu.trace_start"() <{level = 10 : i32, message = "bqk,bkd->bqd"}> : () -> ()
    %cst_147 = arith.constant dense<0.000000e+00> : vector<2x16x8xf32>
    %189 = tpu.matmul %188, %173, %cst_147 {dimension_numbers = #tpu.dot_dimension_numbers<[2], [1], [1], [2], [0, 0, 0, 1, 1, 2], [0], [0]>} : vector<2x16x16xf32>, vector<2x16x8xf32>, vector<2x16x8xf32> -> vector<2x16x8xf32>
    "tpu.trace_stop"() : () -> ()
    %190 = vector.shape_cast %189 : vector<2x16x8xf32> to vector<32x8xf32>
    %191 = arith.truncf %190 : vector<32x8xf32> to vector<32x8xbf16>
    %c0_148 = arith.constant 0 : index
    %c3_149 = arith.constant 3 : index
    %c0_150 = arith.constant 0 : index
    %c0_151 = arith.constant 0 : index
    %192 = vector.load %arg10[%c0_148, %c3_149, %c0_150, %c0_151] : memref<1x4x8x32xbf16, #tpu.memory_space<vmem>>, vector<1x1x8x32xbf16>
    %193 = vector.shape_cast %192 : vector<1x1x8x32xbf16> to vector<8x32xbf16>
    %cst_152 = arith.constant dense<0.000000e+00> : vector<32x32xf32>
    %194 = tpu.matmul %191, %193, %cst_152 {dimension_numbers = #tpu.dot_dimension_numbers<[1], [0], [0], [1], [0, 0, 1, 1], [], []>} : vector<32x8xbf16>, vector<8x32xbf16>, vector<32x32xf32> -> vector<32x32xf32>
    %195 = arith.addf %149, %194 : vector<32x32xf32>
    %196 = arith.addf %3, %195 : vector<32x32xf32>
    %c0_153 = arith.constant 0 : index
    %c0_154 = arith.constant 0 : index
    %c0_155 = arith.constant 0 : index
    %197 = vector.load %arg11[%c0_153, %c0_154, %c0_155] : memref<1x1x32xf32, #tpu.memory_space<vmem>>, vector<1x1x32xf32>
    %198 = vector.shape_cast %197 : vector<1x1x32xf32> to vector<1x32xf32>
    %199 = vector.broadcast %198 : vector<1x32xf32> to vector<32x32xf32>
    %200 = arith.addf %196, %199 : vector<32x32xf32>
    %c0_156 = arith.constant 0 : index
    %c0_157 = arith.constant 0 : index
    %c0_158 = arith.constant 0 : index
    %201 = vector.load %arg12[%c0_156, %c0_157, %c0_158] : memref<1x1x32xf32, #tpu.memory_space<vmem>>, vector<1x1x32xf32>
    %202 = vector.shape_cast %201 : vector<1x1x32xf32> to vector<1x32xf32>
    %c0_159 = arith.constant 0 : index
    %c0_160 = arith.constant 0 : index
    %c0_161 = arith.constant 0 : index
    %203 = vector.load %arg13[%c0_159, %c0_160, %c0_161] : memref<1x1x32xf32, #tpu.memory_space<vmem>>, vector<1x1x32xf32>
    %204 = vector.shape_cast %203 : vector<1x1x32xf32> to vector<1x32xf32>
    %cst_162 = arith.constant dense<0.000000e+00> : vector<32xf32>
    %205 = vector.multi_reduction <add>, %200, %cst_162 [1] : vector<32x32xf32> to vector<32xf32>
    %206 = vector.shape_cast %205 : vector<32xf32> to vector<32x1xf32>
    %cst_163 = arith.constant 3.200000e+01 : f32
    %207 = vector.broadcast %cst_163 : f32 to vector<32x1xf32>
    %208 = arith.divf %206, %207 : vector<32x1xf32>
    %209 = vector.broadcast %208 : vector<32x1xf32> to vector<32x32xf32>
    %210 = arith.subf %200, %209 : vector<32x32xf32>
    %211 = arith.mulf %210, %210 : vector<32x32xf32>
    %cst_164 = arith.constant dense<0.000000e+00> : vector<32xf32>
    %212 = vector.multi_reduction <add>, %211, %cst_164 [1] : vector<32x32xf32> to vector<32xf32>
    %213 = vector.shape_cast %212 : vector<32xf32> to vector<32x1xf32>
    %cst_165 = arith.constant 3.200000e+01 : f32
    %214 = vector.broadcast %cst_165 : f32 to vector<32x1xf32>
    %215 = arith.divf %213, %214 : vector<32x1xf32>
    %cst_166 = arith.constant 9.99999974E-6 : f32
    %216 = vector.broadcast %cst_166 : f32 to vector<32x1xf32>
    %217 = arith.addf %215, %216 : vector<32x1xf32>
    %218 = math.rsqrt %217 : vector<32x1xf32>
    %219 = vector.broadcast %218 : vector<32x1xf32> to vector<32x32xf32>
    %220 = arith.mulf %210, %219 : vector<32x32xf32>
    %221 = vector.broadcast %202 : vector<1x32xf32> to vector<32x32xf32>
    %222 = arith.mulf %220, %221 : vector<32x32xf32>
    %223 = vector.broadcast %204 : vector<1x32xf32> to vector<32x32xf32>
    %224 = arith.addf %222, %223 : vector<32x32xf32>
    %225 = arith.truncf %224 : vector<32x32xf32> to vector<32x32xbf16>
    %c0_167 = arith.constant 0 : index
    %c0_168 = arith.constant 0 : index
    %c0_169 = arith.constant 0 : index
    %226 = vector.load %arg14[%c0_167, %c0_168, %c0_169] : memref<1x32x128xbf16, #tpu.memory_space<vmem>>, vector<1x32x128xbf16>
    %227 = vector.shape_cast %226 : vector<1x32x128xbf16> to vector<32x128xbf16>
    %cst_170 = arith.constant dense<0.000000e+00> : vector<32x128xf32>
    %228 = tpu.matmul %225, %227, %cst_170 {dimension_numbers = #tpu.dot_dimension_numbers<[1], [0], [0], [1], [0, 0, 1, 1], [], []>} : vector<32x32xbf16>, vector<32x128xbf16>, vector<32x128xf32> -> vector<32x128xf32>
    %c0_171 = arith.constant 0 : index
    %c0_172 = arith.constant 0 : index
    %c0_173 = arith.constant 0 : index
    %229 = vector.load %arg15[%c0_171, %c0_172, %c0_173] : memref<1x1x128xf32, #tpu.memory_space<vmem>>, vector<1x1x128xf32>
    %230 = vector.shape_cast %229 : vector<1x1x128xf32> to vector<1x128xf32>
    %231 = vector.broadcast %230 : vector<1x128xf32> to vector<32x128xf32>
    %232 = arith.addf %228, %231 : vector<32x128xf32>
    %cst_174 = arith.constant 5.000000e-01 : f32
    %233 = vector.broadcast %cst_174 : f32 to vector<32x128xf32>
    %234 = arith.mulf %233, %232 : vector<32x128xf32>
    %cst_175 = arith.constant 0.707106769 : f32
    %235 = vector.broadcast %cst_175 : f32 to vector<32x128xf32>
    %236 = arith.mulf %232, %235 : vector<32x128xf32>
    %237 = math.erf %236 : vector<32x128xf32>
    %cst_176 = arith.constant 1.000000e+00 : f32
    %238 = vector.broadcast %cst_176 : f32 to vector<32x128xf32>
    %239 = arith.addf %238, %237 : vector<32x128xf32>
    %240 = arith.mulf %234, %239 : vector<32x128xf32>
    %241 = arith.truncf %240 : vector<32x128xf32> to vector<32x128xbf16>
    %c0_177 = arith.constant 0 : index
    %c0_178 = arith.constant 0 : index
    %c0_179 = arith.constant 0 : index
    %242 = vector.load %arg16[%c0_177, %c0_178, %c0_179] : memref<1x128x32xbf16, #tpu.memory_space<vmem>>, vector<1x128x32xbf16>
    %243 = vector.shape_cast %242 : vector<1x128x32xbf16> to vector<128x32xbf16>
    %cst_180 = arith.constant dense<0.000000e+00> : vector<32x32xf32>
    %244 = tpu.matmul %241, %243, %cst_180 {dimension_numbers = #tpu.dot_dimension_numbers<[1], [0], [0], [1], [0, 0, 1, 1], [], []>} : vector<32x128xbf16>, vector<128x32xbf16>, vector<32x32xf32> -> vector<32x32xf32>
    %245 = arith.addf %224, %244 : vector<32x32xf32>
    %c0_181 = arith.constant 0 : index
    %c0_182 = arith.constant 0 : index
    %c0_183 = arith.constant 0 : index
    %246 = vector.load %arg17[%c0_181, %c0_182, %c0_183] : memref<1x1x32xf32, #tpu.memory_space<vmem>>, vector<1x1x32xf32>
    %247 = vector.shape_cast %246 : vector<1x1x32xf32> to vector<1x32xf32>
    %248 = vector.broadcast %247 : vector<1x32xf32> to vector<32x32xf32>
    %249 = arith.addf %245, %248 : vector<32x32xf32>
    %c0_184 = arith.constant 0 : index
    %c0_185 = arith.constant 0 : index
    %c0_186 = arith.constant 0 : index
    %250 = vector.load %arg18[%c0_184, %c0_185, %c0_186] : memref<1x1x32xf32, #tpu.memory_space<vmem>>, vector<1x1x32xf32>
    %251 = vector.shape_cast %250 : vector<1x1x32xf32> to vector<1x32xf32>
    %c0_187 = arith.constant 0 : index
    %c0_188 = arith.constant 0 : index
    %c0_189 = arith.constant 0 : index
    %252 = vector.load %arg19[%c0_187, %c0_188, %c0_189] : memref<1x1x32xf32, #tpu.memory_space<vmem>>, vector<1x1x32xf32>
    %253 = vector.shape_cast %252 : vector<1x1x32xf32> to vector<1x32xf32>
    %cst_190 = arith.constant dense<0.000000e+00> : vector<32xf32>
    %254 = vector.multi_reduction <add>, %249, %cst_190 [1] : vector<32x32xf32> to vector<32xf32>
    %255 = vector.shape_cast %254 : vector<32xf32> to vector<32x1xf32>
    %cst_191 = arith.constant 3.200000e+01 : f32
    %256 = vector.broadcast %cst_191 : f32 to vector<32x1xf32>
    %257 = arith.divf %255, %256 : vector<32x1xf32>
    %258 = vector.broadcast %257 : vector<32x1xf32> to vector<32x32xf32>
    %259 = arith.subf %249, %258 : vector<32x32xf32>
    %260 = arith.mulf %259, %259 : vector<32x32xf32>
    %cst_192 = arith.constant dense<0.000000e+00> : vector<32xf32>
    %261 = vector.multi_reduction <add>, %260, %cst_192 [1] : vector<32x32xf32> to vector<32xf32>
    %262 = vector.shape_cast %261 : vector<32xf32> to vector<32x1xf32>
    %cst_193 = arith.constant 3.200000e+01 : f32
    %263 = vector.broadcast %cst_193 : f32 to vector<32x1xf32>
    %264 = arith.divf %262, %263 : vector<32x1xf32>
    %cst_194 = arith.constant 9.99999974E-6 : f32
    %265 = vector.broadcast %cst_194 : f32 to vector<32x1xf32>
    %266 = arith.addf %264, %265 : vector<32x1xf32>
    %267 = math.rsqrt %266 : vector<32x1xf32>
    %268 = vector.broadcast %267 : vector<32x1xf32> to vector<32x32xf32>
    %269 = arith.mulf %259, %268 : vector<32x32xf32>
    %270 = vector.broadcast %251 : vector<1x32xf32> to vector<32x32xf32>
    %271 = arith.mulf %269, %270 : vector<32x32xf32>
    %272 = vector.broadcast %253 : vector<1x32xf32> to vector<32x32xf32>
    %273 = arith.addf %271, %272 : vector<32x32xf32>
    %c0_195 = arith.constant 0 : index
    %c0_196 = arith.constant 0 : index
    %274 = vector.load %arg24[%c0_195, %c0_196] : memref<32x32xf32, #tpu.memory_space<vmem>>, vector<32x32xf32>
    tpu.vector_store %arg24[%c0_195, %c0_196], %273 {strides = array<i32>} : memref<32x32xf32, #tpu.memory_space<vmem>>, vector<32x32xf32>,
    %c1_i32 = arith.constant 1 : i32
    %275 = arith.cmpi eq, %arg1, %c1_i32 : i32
    %276 = arith.extui %275 : i1 to i32
    %c0_i32_197 = arith.constant 0 : i32
    %277 = arith.cmpi ne, %276, %c0_i32_197 : i32
    scf.if %277 {
      %278 = vector.shape_cast %273 : vector<32x32xf32> to vector<2x16x32xf32>
      %c0_198 = arith.constant 0 : index
      %c0_199 = arith.constant 0 : index
      %c0_200 = arith.constant 0 : index
      %279 = vector.load %arg22[%c0_198, %c0_199, %c0_200] : memref<2x16x32xf32, #tpu.memory_space<vmem>>, vector<2x16x32xf32>
      tpu.vector_store %arg22[%c0_198, %c0_199, %c0_200], %278 {strides = array<i32>} : memref<2x16x32xf32, #tpu.memory_space<vmem>>, vector<2x16x32xf32>,
      %280 = arith.truncf %273 : vector<32x32xf32> to vector<32x32xbf16>
      %c0_201 = arith.constant 0 : index
      %c0_202 = arith.constant 0 : index
      %281 = vector.load %arg20[%c0_201, %c0_202] : memref<32x128xbf16, #tpu.memory_space<vmem>>, vector<32x128xbf16>
      %cst_203 = arith.constant dense<0.000000e+00> : vector<32x128xf32>
      %282 = tpu.matmul %280, %281, %cst_203 {dimension_numbers = #tpu.dot_dimension_numbers<[1], [0], [0], [1], [0, 0, 1, 1], [], []>} : vector<32x32xbf16>, vector<32x128xbf16>, vector<32x128xf32> -> vector<32x128xf32>
      %c0_204 = arith.constant 0 : index
      %c0_205 = arith.constant 0 : index
      %283 = vector.load %arg21[%c0_204, %c0_205] : memref<1x128xf32, #tpu.memory_space<vmem>>, vector<1x128xf32>
      %284 = vector.broadcast %283 : vector<1x128xf32> to vector<32x128xf32>
      %285 = arith.addf %282, %284 : vector<32x128xf32>
      %286 = vector.shape_cast %285 : vector<32x128xf32> to vector<2x16x128xf32>
      %c0_206 = arith.constant 0 : index
      %c0_207 = arith.constant 0 : index
      %c0_208 = arith.constant 0 : index
      %287 = vector.load %arg23[%c0_206, %c0_207, %c0_208] : memref<2x16x128xf32, #tpu.memory_space<vmem>>, vector<2x16x128xf32>
      tpu.vector_store %arg23[%c0_206, %c0_207, %c0_208], %286 {strides = array<i32>} : memref<2x16x128xf32, #tpu.memory_space<vmem>>, vector<2x16x128xf32>,
    } else {
    }
    return
  }
  func.func @transform_0(%arg0: i32, %arg1: i32) -> (i32, i32, i32) {
    %c0_i32 = arith.constant 0 : i32
    %c0_i32_0 = arith.constant 0 : i32
    %c0_i32_1 = arith.constant 0 : i32
    return %arg0, %c0_i32, %c0_i32_0 : i32, i32, i32
  }
  func.func @transform_1(%arg0: i32, %arg1: i32) -> (i32, i32, i32) {
    %c0_i32 = arith.constant 0 : i32
    %c0_i32_0 = arith.constant 0 : i32
    %c0_i32_1 = arith.constant 0 : i32
    return %arg0, %c0_i32, %c0_i32_0 : i32, i32, i32
  }
  func.func @transform_2(%arg0: i32, %arg1: i32) -> (i32, i32, i32, i32) {
    %c0_i32 = arith.constant 0 : i32
    %c0_i32_0 = arith.constant 0 : i32
    %c0_i32_1 = arith.constant 0 : i32
    %c0_i32_2 = arith.constant 0 : i32
    return %arg1, %c0_i32, %c0_i32_0, %c0_i32_1 : i32, i32, i32, i32
  }
  func.func @transform_3(%arg0: i32, %arg1: i32) -> (i32, i32, i32, i32) {
    %c0_i32 = arith.constant 0 : i32
    %c0_i32_0 = arith.constant 0 : i32
    %c0_i32_1 = arith.constant 0 : i32
    %c0_i32_2 = arith.constant 0 : i32
    return %arg1, %c0_i32, %c0_i32_0, %c0_i32_1 : i32, i32, i32, i32
  }
  func.func @transform_4(%arg0: i32, %arg1: i32) -> (i32, i32, i32, i32) {
    %c0_i32 = arith.constant 0 : i32
    %c0_i32_0 = arith.constant 0 : i32
    %c0_i32_1 = arith.constant 0 : i32
    %c0_i32_2 = arith.constant 0 : i32
    return %arg1, %c0_i32, %c0_i32_0, %c0_i32_1 : i32, i32, i32, i32
  }
  func.func @transform_5(%arg0: i32, %arg1: i32) -> (i32, i32, i32, i32) {
    %c0_i32 = arith.constant 0 : i32
    %c0_i32_0 = arith.constant 0 : i32
    %c0_i32_1 = arith.constant 0 : i32
    %c0_i32_2 = arith.constant 0 : i32
    return %arg1, %c0_i32, %c0_i32_0, %c0_i32_1 : i32, i32, i32, i32
  }
  func.func @transform_6(%arg0: i32, %arg1: i32) -> (i32, i32, i32, i32) {
    %c0_i32 = arith.constant 0 : i32
    %c0_i32_0 = arith.constant 0 : i32
    %c0_i32_1 = arith.constant 0 : i32
    %c0_i32_2 = arith.constant 0 : i32
    return %arg1, %c0_i32, %c0_i32_0, %c0_i32_1 : i32, i32, i32, i32
  }
  func.func @transform_7(%arg0: i32, %arg1: i32) -> (i32, i32, i32, i32) {
    %c0_i32 = arith.constant 0 : i32
    %c0_i32_0 = arith.constant 0 : i32
    %c0_i32_1 = arith.constant 0 : i32
    %c0_i32_2 = arith.constant 0 : i32
    return %arg1, %c0_i32, %c0_i32_0, %c0_i32_1 : i32, i32, i32, i32
  }
  func.func @transform_8(%arg0: i32, %arg1: i32) -> (i32, i32, i32, i32) {
    %c0_i32 = arith.constant 0 : i32
    %c0_i32_0 = arith.constant 0 : i32
    %c0_i32_1 = arith.constant 0 : i32
    %c0_i32_2 = arith.constant 0 : i32
    return %arg1, %c0_i32, %c0_i32_0, %c0_i32_1 : i32, i32, i32, i32
  }
  func.func @transform_9(%arg0: i32, %arg1: i32) -> (i32, i32, i32) {
    %c0_i32 = arith.constant 0 : i32
    %c0_i32_0 = arith.constant 0 : i32
    %c0_i32_1 = arith.constant 0 : i32
    return %arg1, %c0_i32, %c0_i32_0 : i32, i32, i32
  }
  func.func @transform_10(%arg0: i32, %arg1: i32) -> (i32, i32, i32) {
    %c0_i32 = arith.constant 0 : i32
    %c0_i32_0 = arith.constant 0 : i32
    %c0_i32_1 = arith.constant 0 : i32
    return %arg1, %c0_i32, %c0_i32_0 : i32, i32, i32
  }
  func.func @transform_11(%arg0: i32, %arg1: i32) -> (i32, i32, i32) {
    %c0_i32 = arith.constant 0 : i32
    %c0_i32_0 = arith.constant 0 : i32
    %c0_i32_1 = arith.constant 0 : i32
    return %arg1, %c0_i32, %c0_i32_0 : i32, i32, i32
  }
  func.func @transform_12(%arg0: i32, %arg1: i32) -> (i32, i32, i32) {
    %c0_i32 = arith.constant 0 : i32
    %c0_i32_0 = arith.constant 0 : i32
    %c0_i32_1 = arith.constant 0 : i32
    return %arg1, %c0_i32, %c0_i32_0 : i32, i32, i32
  }
  func.func @transform_13(%arg0: i32, %arg1: i32) -> (i32, i32, i32) {
    %c0_i32 = arith.constant 0 : i32
    %c0_i32_0 = arith.constant 0 : i32
    %c0_i32_1 = arith.constant 0 : i32
    return %arg1, %c0_i32, %c0_i32_0 : i32, i32, i32
  }
  func.func @transform_14(%arg0: i32, %arg1: i32) -> (i32, i32, i32) {
    %c0_i32 = arith.constant 0 : i32
    %c0_i32_0 = arith.constant 0 : i32
    %c0_i32_1 = arith.constant 0 : i32
    return %arg1, %c0_i32, %c0_i32_0 : i32, i32, i32
  }
  func.func @transform_15(%arg0: i32, %arg1: i32) -> (i32, i32, i32) {
    %c0_i32 = arith.constant 0 : i32
    %c0_i32_0 = arith.constant 0 : i32
    %c0_i32_1 = arith.constant 0 : i32
    return %arg1, %c0_i32, %c0_i32_0 : i32, i32, i32
  }
  func.func @transform_16(%arg0: i32, %arg1: i32) -> (i32, i32, i32) {
    %c0_i32 = arith.constant 0 : i32
    %c0_i32_0 = arith.constant 0 : i32
    %c0_i32_1 = arith.constant 0 : i32
    return %arg1, %c0_i32, %c0_i32_0 : i32, i32, i32
  }
  func.func @transform_17(%arg0: i32, %arg1: i32) -> (i32, i32, i32) {
    %c0_i32 = arith.constant 0 : i32
    %c0_i32_0 = arith.constant 0 : i32
    %c0_i32_1 = arith.constant 0 : i32
    return %arg1, %c0_i32, %c0_i32_0 : i32, i32, i32
  }
  func.func @transform_18(%arg0: i32, %arg1: i32) -> (i32, i32) {
    %c0_i32 = arith.constant 0 : i32
    %c0_i32_0 = arith.constant 0 : i32
    %c0_i32_1 = arith.constant 0 : i32
    return %c0_i32, %c0_i32_0 : i32, i32
  }
  func.func @transform_19(%arg0: i32, %arg1: i32) -> (i32, i32) {
    %c0_i32 = arith.constant 0 : i32
    %c0_i32_0 = arith.constant 0 : i32
    %c0_i32_1 = arith.constant 0 : i32
    return %c0_i32, %c0_i32_0 : i32, i32
  }
  func.func @transform_20(%arg0: i32, %arg1: i32) -> (i32, i32, i32) {
    %c0_i32 = arith.constant 0 : i32
    %c0_i32_0 = arith.constant 0 : i32
    %c0_i32_1 = arith.constant 0 : i32
    return %arg0, %c0_i32, %c0_i32_0 : i32, i32, i32
  }
  func.func @transform_21(%arg0: i32, %arg1: i32) -> (i32, i32, i32) {
    %c0_i32 = arith.constant 0 : i32
    %c0_i32_0 = arith.constant 0 : i32
    %c0_i32_1 = arith.constant 0 : i32
    return %arg0, %c0_i32, %c0_i32_0 : i32, i32, i32
  }
}

</mosaic_0001>

<llo_original>
// kernel: hf_wav2vec2_for_ctc_forward.2
$region0: #{hf_wav2vec2_for_ctc_forward.2}
  #allocation0 [shape = 'u32[]', space=smem, size = 0x4, offset = 0x4, fixed_abs, tag = 'smem constant byte address 0x4 - core index']
  #allocation1 [shape = 'u32[144,128]{1,0:T(1,128)}', space=vmem, size = 0x12000, scoped, tag = 'internal scratch']
  %s0 = inlined_call_operand.vmem [shape: f32[2,17,10], index: 0, kind: input, shape index: {}]
  %s1 = inlined_call_operand.vmem [shape: f32[2,16,1], index: 1, kind: input, shape index: {}]
  %s2 = inlined_call_operand.vmem [shape: f32[10,16], index: 2, kind: input, shape index: {}]
  %s3 = inlined_call_operand.vmem [shape: f32[1,16], index: 3, kind: input, shape index: {}]
  %s4 = inlined_call_operand.vmem [shape: f32[1,16], index: 4, kind: input, shape index: {}]
  %s5 = inlined_call_operand.vmem [shape: f32[1,16], index: 5, kind: input, shape index: {}]
  %s6 = inlined_call_operand.vmem [shape: f32[3,16,16], index: 6, kind: input, shape index: {}]
  %s7 = inlined_call_operand.vmem [shape: f32[1,16], index: 7, kind: input, shape index: {}]
  %s8 = inlined_call_operand.vmem [shape: f32[1,16], index: 8, kind: input, shape index: {}]
  %s9 = inlined_call_operand.vmem [shape: f32[1,16], index: 9, kind: input, shape index: {}]
  %s10 = inlined_call_operand.vmem [shape: f32[16,32], index: 10, kind: input, shape index: {}]
  %s11 = inlined_call_operand.vmem [shape: f32[1,32], index: 11, kind: input, shape index: {}]
  %s12 = inlined_call_operand.vmem [shape: f32[96,32], index: 12, kind: input, shape index: {}]
  %s13 = inlined_call_operand.vmem [shape: f32[1,32], index: 13, kind: input, shape index: {}]
  %s14 = inlined_call_operand.vmem [shape: f32[1,32], index: 14, kind: input, shape index: {}]
  %s15 = inlined_call_operand.vmem [shape: f32[1,32], index: 15, kind: input, shape index: {}]
  %s16 = inlined_call_operand.vmem [shape: f32[2,16,32], index: 16, kind: output, shape index: {}]
  %s17 = sld [smem:[#allocation0]]
  $region97: #{hf_wav2vec2_for_ctc_forward.2} parent=0
    _
  %s19 = ssub.s32 1, %s17
  %s20 = scalar_select 0, %s19, %s17
  loop: start=0, step=1, limit=4
  $region2: #{hf_wav2vec2_for_ctc_forward.2} parent=0 // loop_pre_header
    _
  $region3: #{hf_wav2vec2_for_ctc_forward.2} parent=0 // loop_header
    %s22 = sphi 0, %s26
    %p23 = scmp.ge.s32.totalorder %s22, 4
    %s32 = sphi 0, %s34
    %s35 = sphi 0, %s32
    %s36 = sphi 0, %s35
    %s52 = sphi 0, %s36
    %s58 = sphi 0, %s60
    %s61 = sphi 0, %s58
    %s62 = sphi 0, %s61
    %s78 = sphi 0, %s62
    %s82 = sphi 0, %s82
    %s84 = sphi 0, %s82
    %s85 = sphi 0, %s84
    %s99 = sphi 0, %s85
    %s103 = sphi 0, %s103
    %s105 = sphi 0, %s103
    %s106 = sphi 0, %s105
    %s120 = sphi 0, %s106
    %s124 = sphi 0, %s124
    %s126 = sphi 0, %s124
    %s127 = sphi 0, %s126
    %s141 = sphi 0, %s127
    %s145 = sphi 0, %s145
    %s147 = sphi 0, %s145
    %s148 = sphi 0, %s147
    %s162 = sphi 0, %s148
    %s166 = sphi 0, %s166
    %s168 = sphi 0, %s166
    %s169 = sphi 0, %s168
    %s183 = sphi 0, %s169
    %s187 = sphi 0, %s187
    %s189 = sphi 0, %s187
    %s190 = sphi 0, %s189
    %s204 = sphi 0, %s190
    %s208 = sphi 0, %s208
    %s210 = sphi 0, %s208
    %s211 = sphi 0, %s210
    %s225 = sphi 0, %s211
    %s229 = sphi 0, %s229
    %s231 = sphi 0, %s229
    %s232 = sphi 0, %s231
    %s246 = sphi 0, %s232
    %s250 = sphi 0, %s250
    %s252 = sphi 0, %s250
    %s253 = sphi 0, %s252
    %s267 = sphi 0, %s253
    %s271 = sphi 0, %s271
    %s273 = sphi 0, %s271
    %s274 = sphi 0, %s273
    %s288 = sphi 0, %s274
    %s292 = sphi 0, %s292
    %s294 = sphi 0, %s292
    %s295 = sphi 0, %s294
    %s309 = sphi 0, %s295
    %s313 = sphi 0, %s313
    %s315 = sphi 0, %s313
    %s316 = sphi 0, %s315
    %s330 = sphi 0, %s316
    %s334 = sphi 0, %s334
    %s336 = sphi 0, %s334
    %s337 = sphi 0, %s336
    %s351 = sphi 0, %s337
    %s355 = sphi 0, %s355
    %s357 = sphi 0, %s355
    %s358 = sphi 0, %s357
    %s372 = sphi 0, %s358
    %s378 = sphi 0, %s380
    %s381 = sphi 0, %s378
    %s382 = sphi 0, %s381
    %s398 = sphi 0, %s382
  $region4: #{hf_wav2vec2_for_ctc_forward.2} parent=0 // loop_header_branch
    %25 = sbr.rel (%p23) target = $region8
  $region5: #{hf_wav2vec2_for_ctc_forward.2} parent=0 // loop_body
    %s27 = ssub.s32 %s22, 1
    %s28 = ssub.s32 %s22, 2
    %s29 = sadd.s32 %s22, 1
    %s30 = ssub.s32 %s22, %s29
    %p31 = scmp.eq.s32.totalorder %s30, 0
    %s33 = sadd.s32 %s32, 1
    %s34 = scalar_select %p31, %s32, %s33
    %p37 = pneg %p31
    %p38 = scmp.eq.s32.totalorder %s22, 1
    %p39 = por %p37, %p38
    %p40 = scmp.ne.s32.totalorder %s32, %s35
    %p41 = scmp.eq.s32.totalorder %s22, 0
    %p42 = por %p40, %p41
    %p43 = scmp.ne.s32.totalorder %s32, %s35
    %p44 = scmp.eq.s32.totalorder %s27, 1
    %p45 = por %p43, %p44
    %p46 = scmp.ne.s32.totalorder %s35, %s36
    %p47 = scmp.eq.s32.totalorder %s27, 0
    %p48 = por %p46, %p47
    %p49 = scmp.ne.s32.totalorder %s35, %s36
    %p50 = scmp.eq.s32.totalorder %s28, 1
    %p51 = por %p49, %p50
    %p53 = scmp.ne.s32.totalorder %s36, %s52
    %p54 = scmp.eq.s32.totalorder %s28, 0
    %p55 = por %p53, %p54
    %s56 = ssub.s32 %s22, %s29
    %p57 = scmp.eq.s32.totalorder %s56, 0
    %s59 = sadd.s32 %s58, 1
    %s60 = scalar_select %p57, %s58, %s59
    %p63 = pneg %p57
    %p64 = scmp.eq.s32.totalorder %s22, 1
    %p65 = por %p63, %p64
    %p66 = scmp.ne.s32.totalorder %s58, %s61
    %p67 = scmp.eq.s32.totalorder %s22, 0
    %p68 = por %p66, %p67
    %p69 = scmp.ne.s32.totalorder %s58, %s61
    %p70 = scmp.eq.s32.totalorder %s27, 1
    %p71 = por %p69, %p70
    %p72 = scmp.ne.s32.totalorder %s61, %s62
    %p73 = scmp.eq.s32.totalorder %s27, 0
    %p74 = por %p72, %p73
    %p75 = scmp.ne.s32.totalorder %s61, %s62
    %p76 = scmp.eq.s32.totalorder %s28, 1
    %p77 = por %p75, %p76
    %p79 = scmp.ne.s32.totalorder %s62, %s78
    %p80 = scmp.eq.s32.totalorder %s28, 0
    %p81 = por %p79, %p80
    %s83 = sadd.s32 %s82, 1
    %p86 = scmp.eq.s32.totalorder %s22, 1
    %p87 = scmp.ne.s32.totalorder %s82, %s84
    %p88 = scmp.eq.s32.totalorder %s22, 0
    %p89 = por %p87, %p88
    %p90 = scmp.ne.s32.totalorder %s82, %s84
    %p91 = scmp.eq.s32.totalorder %s27, 1
    %p92 = por %p90, %p91
    %p93 = scmp.ne.s32.totalorder %s84, %s85
    %p94 = scmp.eq.s32.totalorder %s27, 0
    %p95 = por %p93, %p94
    %p96 = scmp.ne.s32.totalorder %s84, %s85
    %p97 = scmp.eq.s32.totalorder %s28, 1
    %p98 = por %p96, %p97
    %p100 = scmp.ne.s32.totalorder %s85, %s99
    %p101 = scmp.eq.s32.totalorder %s28, 0
    %p102 = por %p100, %p101
    %s104 = sadd.s32 %s103, 1
    %p107 = scmp.eq.s32.totalorder %s22, 1
    %p108 = scmp.ne.s32.totalorder %s103, %s105
    %p109 = scmp.eq.s32.totalorder %s22, 0
    %p110 = por %p108, %p109
    %p111 = scmp.ne.s32.totalorder %s103, %s105
    %p112 = scmp.eq.s32.totalorder %s27, 1
    %p113 = por %p111, %p112
    %p114 = scmp.ne.s32.totalorder %s105, %s106
    %p115 = scmp.eq.s32.totalorder %s27, 0
    %p116 = por %p114, %p115
    %p117 = scmp.ne.s32.totalorder %s105, %s106
    %p118 = scmp.eq.s32.totalorder %s28, 1
    %p119 = por %p117, %p118
    %p121 = scmp.ne.s32.totalorder %s106, %s120
    %p122 = scmp.eq.s32.totalorder %s28, 0
    %p123 = por %p121, %p122
    %s125 = sadd.s32 %s124, 1
    %p128 = scmp.eq.s32.totalorder %s22, 1
    %p129 = scmp.ne.s32.totalorder %s124, %s126
    %p130 = scmp.eq.s32.totalorder %s22, 0
    %p131 = por %p129, %p130
    %p132 = scmp.ne.s32.totalorder %s124, %s126
    %p133 = scmp.eq.s32.totalorder %s27, 1
    %p134 = por %p132, %p133
    %p135 = scmp.ne.s32.totalorder %s126, %s127
    %p136 = scmp.eq.s32.totalorder %s27, 0
    %p137 = por %p135, %p136
    %p138 = scmp.ne.s32.totalorder %s126, %s127
    %p139 = scmp.eq.s32.totalorder %s28, 1
    %p140 = por %p138, %p139
    %p142 = scmp.ne.s32.totalorder %s127, %s141
    %p143 = scmp.eq.s32.totalorder %s28, 0
    %p144 = por %p142, %p143
    %s146 = sadd.s32 %s145, 1
    %p149 = scmp.eq.s32.totalorder %s22, 1
    %p150 = scmp.ne.s32.totalorder %s145, %s147
    %p151 = scmp.eq.s32.totalorder %s22, 0
    %p152 = por %p150, %p151
    %p153 = scmp.ne.s32.totalorder %s145, %s147
    %p154 = scmp.eq.s32.totalorder %s27, 1
    %p155 = por %p153, %p154
    %p156 = scmp.ne.s32.totalorder %s147, %s148
    %p157 = scmp.eq.s32.totalorder %s27, 0
    %p158 = por %p156, %p157
    %p159 = scmp.ne.s32.totalorder %s147, %s148
    %p160 = scmp.eq.s32.totalorder %s28, 1
    %p161 = por %p159, %p160
    %p163 = scmp.ne.s32.totalorder %s148, %s162
    %p164 = scmp.eq.s32.totalorder %s28, 0
    %p165 = por %p163, %p164
    %s167 = sadd.s32 %s166, 1
    %p170 = scmp.eq.s32.totalorder %s22, 1
    %p171 = scmp.ne.s32.totalorder %s166, %s168
    %p172 = scmp.eq.s32.totalorder %s22, 0
    %p173 = por %p171, %p172
    %p174 = scmp.ne.s32.totalorder %s166, %s168
    %p175 = scmp.eq.s32.totalorder %s27, 1
    %p176 = por %p174, %p175
    %p177 = scmp.ne.s32.totalorder %s168, %s169
    %p178 = scmp.eq.s32.totalorder %s27, 0
    %p179 = por %p177, %p178
    %p180 = scmp.ne.s32.totalorder %s168, %s169
    %p181 = scmp.eq.s32.totalorder %s28, 1
    %p182 = por %p180, %p181
    %p184 = scmp.ne.s32.totalorder %s169, %s183
    %p185 = scmp.eq.s32.totalorder %s28, 0
    %p186 = por %p184, %p185
    %s188 = sadd.s32 %s187, 1
    %p191 = scmp.eq.s32.totalorder %s22, 1
    %p192 = scmp.ne.s32.totalorder %s187, %s189
    %p193 = scmp.eq.s32.totalorder %s22, 0
    %p194 = por %p192, %p193
    %p195 = scmp.ne.s32.totalorder %s187, %s189
    %p196 = scmp.eq.s32.totalorder %s27, 1
    %p197 = por %p195, %p196
    %p198 = scmp.ne.s32.totalorder %s189, %s190
    %p199 = scmp.eq.s32.totalorder %s27, 0
    %p200 = por %p198, %p199
    %p201 = scmp.ne.s32.totalorder %s189, %s190
    %p202 = scmp.eq.s32.totalorder %s28, 1
    %p203 = por %p201, %p202
    %p205 = scmp.ne.s32.totalorder %s190, %s204
    %p206 = scmp.eq.s32.totalorder %s28, 0
    %p207 = por %p205, %p206
    %s209 = sadd.s32 %s208, 1
    %p212 = scmp.eq.s32.totalorder %s22, 1
    %p213 = scmp.ne.s32.totalorder %s208, %s210
    %p214 = scmp.eq.s32.totalorder %s22, 0
    %p215 = por %p213, %p214
    %p216 = scmp.ne.s32.totalorder %s208, %s210
    %p217 = scmp.eq.s32.totalorder %s27, 1
    %p218 = por %p216, %p217
    %p219 = scmp.ne.s32.totalorder %s210, %s211
    %p220 = scmp.eq.s32.totalorder %s27, 0
    %p221 = por %p219, %p220
    %p222 = scmp.ne.s32.totalorder %s210, %s211
    %p223 = scmp.eq.s32.totalorder %s28, 1
    %p224 = por %p222, %p223
    %p226 = scmp.ne.s32.totalorder %s211, %s225
    %p227 = scmp.eq.s32.totalorder %s28, 0
    %p228 = por %p226, %p227
    %s230 = sadd.s32 %s229, 1
    %p233 = scmp.eq.s32.totalorder %s22, 1
    %p234 = scmp.ne.s32.totalorder %s229, %s231
    %p235 = scmp.eq.s32.totalorder %s22, 0
    %p236 = por %p234, %p235
    %p237 = scmp.ne.s32.totalorder %s229, %s231
    %p238 = scmp.eq.s32.totalorder %s27, 1
    %p239 = por %p237, %p238
    %p240 = scmp.ne.s32.totalorder %s231, %s232
    %p241 = scmp.eq.s32.totalorder %s27, 0
    %p242 = por %p240, %p241
    %p243 = scmp.ne.s32.totalorder %s231, %s232
    %p244 = scmp.eq.s32.totalorder %s28, 1
    %p245 = por %p243, %p244
    %p247 = scmp.ne.s32.totalorder %s232, %s246
    %p248 = scmp.eq.s32.totalorder %s28, 0
    %p249 = por %p247, %p248
    %s251 = sadd.s32 %s250, 1
    %p254 = scmp.eq.s32.totalorder %s22, 1
    %p255 = scmp.ne.s32.totalorder %s250, %s252
    %p256 = scmp.eq.s32.totalorder %s22, 0
    %p257 = por %p255, %p256
    %p258 = scmp.ne.s32.totalorder %s250, %s252
    %p259 = scmp.eq.s32.totalorder %s27, 1
    %p260 = por %p258, %p259
    %p261 = scmp.ne.s32.totalorder %s252, %s253
    %p262 = scmp.eq.s32.totalorder %s27, 0
    %p263 = por %p261, %p262
    %p264 = scmp.ne.s32.totalorder %s252, %s253
    %p265 = scmp.eq.s32.totalorder %s28, 1
    %p266 = por %p264, %p265
    %p268 = scmp.ne.s32.totalorder %s253, %s267
    %p269 = scmp.eq.s32.totalorder %s28, 0
    %p270 = por %p268, %p269
    %s272 = sadd.s32 %s271, 1
    %p275 = scmp.eq.s32.totalorder %s22, 1
    %p276 = scmp.ne.s32.totalorder %s271, %s273
    %p277 = scmp.eq.s32.totalorder %s22, 0
    %p278 = por %p276, %p277
    %p279 = scmp.ne.s32.totalorder %s271, %s273
    %p280 = scmp.eq.s32.totalorder %s27, 1
    %p281 = por %p279, %p280
    %p282 = scmp.ne.s32.totalorder %s273, %s274
    %p283 = scmp.eq.s32.totalorder %s27, 0
    %p284 = por %p282, %p283
    %p285 = scmp.ne.s32.totalorder %s273, %s274
    %p286 = scmp.eq.s32.totalorder %s28, 1
    %p287 = por %p285, %p286
    %p289 = scmp.ne.s32.totalorder %s274, %s288
    %p290 = scmp.eq.s32.totalorder %s28, 0
    %p291 = por %p289, %p290
    %s293 = sadd.s32 %s292, 1
    %p296 = scmp.eq.s32.totalorder %s22, 1
    %p297 = scmp.ne.s32.totalorder %s292, %s294
    %p298 = scmp.eq.s32.totalorder %s22, 0
    %p299 = por %p297, %p298
    %p300 = scmp.ne.s32.totalorder %s292, %s294
    %p301 = scmp.eq.s32.totalorder %s27, 1
    %p302 = por %p300, %p301
    %p303 = scmp.ne.s32.totalorder %s294, %s295
    %p304 = scmp.eq.s32.totalorder %s27, 0
    %p305 = por %p303, %p304
    %p306 = scmp.ne.s32.totalorder %s294, %s295
    %p307 = scmp.eq.s32.totalorder %s28, 1
    %p308 = por %p306, %p307
    %p310 = scmp.ne.s32.totalorder %s295, %s309
    %p311 = scmp.eq.s32.totalorder %s28, 0
    %p312 = por %p310, %p311
    %s314 = sadd.s32 %s313, 1
    %p317 = scmp.eq.s32.totalorder %s22, 1
    %p318 = scmp.ne.s32.totalorder %s313, %s315
    %p319 = scmp.eq.s32.totalorder %s22, 0
    %p320 = por %p318, %p319
    %p321 = scmp.ne.s32.totalorder %s313, %s315
    %p322 = scmp.eq.s32.totalorder %s27, 1
    %p323 = por %p321, %p322
    %p324 = scmp.ne.s32.totalorder %s315, %s316
    %p325 = scmp.eq.s32.totalorder %s27, 0
    %p326 = por %p324, %p325
    %p327 = scmp.ne.s32.totalorder %s315, %s316
    %p328 = scmp.eq.s32.totalorder %s28, 1
    %p329 = por %p327, %p328
    %p331 = scmp.ne.s32.totalorder %s316, %s330
    %p332 = scmp.eq.s32.totalorder %s28, 0
    %p333 = por %p331, %p332
    %s335 = sadd.s32 %s334, 1
    %p338 = scmp.eq.s32.totalorder %s22, 1
    %p339 = scmp.ne.s32.totalorder %s334, %s336
    %p340 = scmp.eq.s32.totalorder %s22, 0
    %p341 = por %p339, %p340
    %p342 = scmp.ne.s32.totalorder %s334, %s336
    %p343 = scmp.eq.s32.totalorder %s27, 1
    %p344 = por %p342, %p343
    %p345 = scmp.ne.s32.totalorder %s336, %s337
    %p346 = scmp.eq.s32.totalorder %s27, 0
    %p347 = por %p345, %p346
    %p348 = scmp.ne.s32.totalorder %s336, %s337
    %p349 = scmp.eq.s32.totalorder %s28, 1
    %p350 = por %p348, %p349
    %p352 = scmp.ne.s32.totalorder %s337, %s351
    %p353 = scmp.eq.s32.totalorder %s28, 0
    %p354 = por %p352, %p353
    %s356 = sadd.s32 %s355, 1
    %p359 = scmp.eq.s32.totalorder %s22, 1
    %p360 = scmp.ne.s32.totalorder %s355, %s357
    %p361 = scmp.eq.s32.totalorder %s22, 0
    %p362 = por %p360, %p361
    %p363 = scmp.ne.s32.totalorder %s355, %s357
    %p364 = scmp.eq.s32.totalorder %s27, 1
    %p365 = por %p363, %p364
    %p366 = scmp.ne.s32.totalorder %s357, %s358
    %p367 = scmp.eq.s32.totalorder %s27, 0
    %p368 = por %p366, %p367
    %p369 = scmp.ne.s32.totalorder %s357, %s358
    %p370 = scmp.eq.s32.totalorder %s28, 1
    %p371 = por %p369, %p370
    %p373 = scmp.ne.s32.totalorder %s358, %s372
    %p374 = scmp.eq.s32.totalorder %s28, 0
    %p375 = por %p373, %p374
    %s376 = ssub.s32 %s22, %s29
    %p377 = scmp.eq.s32.totalorder %s376, 0
    %s379 = sadd.s32 %s378, 1
    %s380 = scalar_select %p377, %s378, %s379
    %p383 = pneg %p377
    %p384 = scmp.eq.s32.totalorder %s22, 1
    %p385 = por %p383, %p384
    %p386 = scmp.ne.s32.totalorder %s378, %s381
    %p387 = scmp.eq.s32.totalorder %s22, 0
    %p388 = por %p386, %p387
    %p389 = scmp.ne.s32.totalorder %s378, %s381
    %p390 = scmp.eq.s32.totalorder %s27, 1
    %p391 = por %p389, %p390
    %p392 = scmp.ne.s32.totalorder %s381, %s382
    %p393 = scmp.eq.s32.totalorder %s27, 0
    %p394 = por %p392, %p393
    %p395 = scmp.ne.s32.totalorder %s381, %s382
    %p396 = scmp.eq.s32.totalorder %s28, 1
    %p397 = por %p395, %p396
    %p399 = scmp.ne.s32.totalorder %s382, %s398
    %p400 = scmp.eq.s32.totalorder %s28, 0
    %p401 = por %p399, %p400
    %p402 = scmp.le.s32.totalorder 1, %s22
    %p403 = scmp.lt.s32.totalorder %s22, 3
    %p404 = pnand %p402, %p403
    %p405 = pneg %p404
    // Predicated region
    $region9: #{hf_wav2vec2_for_ctc_forward.2} parent=5 // pred_check
      _
    $region10: #{hf_wav2vec2_for_ctc_forward.2} parent=5 // pred_check_branch
      %407 = sbr.rel (%p404) target = $region12
    $region11: #{hf_wav2vec2_for_ctc_forward.2} parent=5 // pred_region
      %s408 = ssub.s32 %s22, 1
      // Predicated region
      $region13: #{hf_wav2vec2_for_ctc_forward.2} parent=11 // pred_check
        %p409 = pneg %p95
      $region14: #{hf_wav2vec2_for_ctc_forward.2} parent=11 // pred_check_branch
        %411 = sbr.rel (%p409) target = $region16
      $region15: #{hf_wav2vec2_for_ctc_forward.2} parent=11 // pred_region
        _
      $region16: #{hf_wav2vec2_for_ctc_forward.2} parent=11 // pred_fallthru
        _
      // Predicated region
      $region17: #{hf_wav2vec2_for_ctc_forward.2} parent=11 // pred_check
        %p412 = pneg %p116
      $region18: #{hf_wav2vec2_for_ctc_forward.2} parent=11 // pred_check_branch
        %414 = sbr.rel (%p412) target = $region20
      $region19: #{hf_wav2vec2_for_ctc_forward.2} parent=11 // pred_region
        _
      $region20: #{hf_wav2vec2_for_ctc_forward.2} parent=11 // pred_fallthru
        _
      // Predicated region
      $region21: #{hf_wav2vec2_for_ctc_forward.2} parent=11 // pred_check
        %p415 = pneg %p137
      $region22: #{hf_wav2vec2_for_ctc_forward.2} parent=11 // pred_check_branch
        %417 = sbr.rel (%p415) target = $region24
      $region23: #{hf_wav2vec2_for_ctc_forward.2} parent=11 // pred_region
        _
      $region24: #{hf_wav2vec2_for_ctc_forward.2} parent=11 // pred_fallthru
        _
      // Predicated region
      $region25: #{hf_wav2vec2_for_ctc_forward.2} parent=11 // pred_check
        %p418 = pneg %p158
      $region26: #{hf_wav2vec2_for_ctc_forward.2} parent=11 // pred_check_branch
        %420 = sbr.rel (%p418) target = $region28
      $region27: #{hf_wav2vec2_for_ctc_forward.2} parent=11 // pred_region
        _
      $region28: #{hf_wav2vec2_for_ctc_forward.2} parent=11 // pred_fallthru
        _
      // Predicated region
      $region29: #{hf_wav2vec2_for_ctc_forward.2} parent=11 // pred_check
        %p421 = pneg %p179
      $region30: #{hf_wav2vec2_for_ctc_forward.2} parent=11 // pred_check_branch
        %423 = sbr.rel (%p421) target = $region32
      $region31: #{hf_wav2vec2_for_ctc_forward.2} parent=11 // pred_region
        _
      $region32: #{hf_wav2vec2_for_ctc_forward.2} parent=11 // pred_fallthru
        _
      // Predicated region
      $region33: #{hf_wav2vec2_for_ctc_forward.2} parent=11 // pred_check
        %p424 = pneg %p200
      $region34: #{hf_wav2vec2_for_ctc_forward.2} parent=11 // pred_check_branch
        %426 = sbr.rel (%p424) target = $region36
      $region35: #{hf_wav2vec2_for_ctc_forward.2} parent=11 // pred_region
        _
      $region36: #{hf_wav2vec2_for_ctc_forward.2} parent=11 // pred_fallthru
        _
      // Predicated region
      $region37: #{hf_wav2vec2_for_ctc_forward.2} parent=11 // pred_check
        %p427 = pneg %p221
      $region38: #{hf_wav2vec2_for_ctc_forward.2} parent=11 // pred_check_branch
        %429 = sbr.rel (%p427) target = $region40
      $region39: #{hf_wav2vec2_for_ctc_forward.2} parent=11 // pred_region
        _
      $region40: #{hf_wav2vec2_for_ctc_forward.2} parent=11 // pred_fallthru
        _
      // Predicated region
      $region41: #{hf_wav2vec2_for_ctc_forward.2} parent=11 // pred_check
        %p430 = pneg %p242
      $region42: #{hf_wav2vec2_for_ctc_forward.2} parent=11 // pred_check_branch
        %432 = sbr.rel (%p430) target = $region44
      $region43: #{hf_wav2vec2_for_ctc_forward.2} parent=11 // pred_region
        _
      $region44: #{hf_wav2vec2_for_ctc_forward.2} parent=11 // pred_fallthru
        _
      // Predicated region
      $region45: #{hf_wav2vec2_for_ctc_forward.2} parent=11 // pred_check
        %p433 = pneg %p263
      $region46: #{hf_wav2vec2_for_ctc_forward.2} parent=11 // pred_check_branch
        %435 = sbr.rel (%p433) target = $region48
      $region47: #{hf_wav2vec2_for_ctc_forward.2} parent=11 // pred_region
        _
      $region48: #{hf_wav2vec2_for_ctc_forward.2} parent=11 // pred_fallthru
        _
      // Predicated region
      $region49: #{hf_wav2vec2_for_ctc_forward.2} parent=11 // pred_check
        %p436 = pneg %p284
      $region50: #{hf_wav2vec2_for_ctc_forward.2} parent=11 // pred_check_branch
        %438 = sbr.rel (%p436) target = $region52
      $region51: #{hf_wav2vec2_for_ctc_forward.2} parent=11 // pred_region
        _
      $region52: #{hf_wav2vec2_for_ctc_forward.2} parent=11 // pred_fallthru
        _
      // Predicated region
      $region53: #{hf_wav2vec2_for_ctc_forward.2} parent=11 // pred_check
        %p439 = pneg %p305
      $region54: #{hf_wav2vec2_for_ctc_forward.2} parent=11 // pred_check_branch
        %441 = sbr.rel (%p439) target = $region56
      $region55: #{hf_wav2vec2_for_ctc_forward.2} parent=11 // pred_region
        _
      $region56: #{hf_wav2vec2_for_ctc_forward.2} parent=11 // pred_fallthru
        _
      // Predicated region
      $region57: #{hf_wav2vec2_for_ctc_forward.2} parent=11 // pred_check
        %p442 = pneg %p326
      $region58: #{hf_wav2vec2_for_ctc_forward.2} parent=11 // pred_check_branch
        %444 = sbr.rel (%p442) target = $region60
      $region59: #{hf_wav2vec2_for_ctc_forward.2} parent=11 // pred_region
        _
      $region60: #{hf_wav2vec2_for_ctc_forward.2} parent=11 // pred_fallthru
        _
      // Predicated region
      $region61: #{hf_wav2vec2_for_ctc_forward.2} parent=11 // pred_check
        %p445 = pneg %p347
      $region62: #{hf_wav2vec2_for_ctc_forward.2} parent=11 // pred_check_branch
        %447 = sbr.rel (%p445) target = $region64
      $region63: #{hf_wav2vec2_for_ctc_forward.2} parent=11 // pred_region
        _
      $region64: #{hf_wav2vec2_for_ctc_forward.2} parent=11 // pred_fallthru
        _
      // Predicated region
      $region65: #{hf_wav2vec2_for_ctc_forward.2} parent=11 // pred_check
        %p448 = pneg %p368
      $region66: #{hf_wav2vec2_for_ctc_forward.2} parent=11 // pred_check_branch
        %450 = sbr.rel (%p448) target = $region68
      $region67: #{hf_wav2vec2_for_ctc_forward.2} parent=11 // pred_region
        _
      $region68: #{hf_wav2vec2_for_ctc_forward.2} parent=11 // pred_fallthru
        _
    $region12: #{hf_wav2vec2_for_ctc_forward.2} parent=5 // pred_fallthru
      _
    %p451 = scmp.lt.s32.totalorder %s22, 2
    // Predicated region
    $region69: #{hf_wav2vec2_for_ctc_forward.2} parent=5 // pred_check
      %p452 = pneg %p451
    $region70: #{hf_wav2vec2_for_ctc_forward.2} parent=5 // pred_check_branch
      %454 = sbr.rel (%p452) target = $region72
    $region71: #{hf_wav2vec2_for_ctc_forward.2} parent=5 // pred_region
      // Predicated region
      $region73: #{hf_wav2vec2_for_ctc_forward.2} parent=71 // pred_check
        %p455 = pneg %p42
      $region74: #{hf_wav2vec2_for_ctc_forward.2} parent=71 // pred_check_branch
        %457 = sbr.rel (%p455) target = $region76
      $region75: #{hf_wav2vec2_for_ctc_forward.2} parent=71 // pred_region
        %p458 = scmp.lt.s32.totalorder %s22, 1
        %s459 = scalar_select %p458, %s22, 1
        %s460 = smul.addr %s459, 3
        %s461 = smul.addr %s460, 8
        %s462 = scalar_lea.vmem %s0, %s461
      $region76: #{hf_wav2vec2_for_ctc_forward.2} parent=71 // pred_fallthru
        _
      // Predicated region
      $region77: #{hf_wav2vec2_for_ctc_forward.2} parent=71 // pred_check
        %p463 = pneg %p68
      $region78: #{hf_wav2vec2_for_ctc_forward.2} parent=71 // pred_check_branch
        %465 = sbr.rel (%p463) target = $region80
      $region79: #{hf_wav2vec2_for_ctc_forward.2} parent=71 // pred_region
        %p466 = scmp.lt.s32.totalorder %s22, 1
        %s467 = scalar_select %p466, %s22, 1
        %s468 = smul.addr %s467, 2
        %s469 = smul.addr %s468, 8
        %s470 = scalar_lea.vmem %s1, %s469
      $region80: #{hf_wav2vec2_for_ctc_forward.2} parent=71 // pred_fallthru
        _
    $region72: #{hf_wav2vec2_for_ctc_forward.2} parent=5 // pred_fallthru
      _
    %p471 = scmp.le.s32.totalorder 1, %s22
    %p472 = scmp.lt.s32.totalorder %s22, 3
    %p473 = pnand %p471, %p472
    %p474 = pneg %p473
    // Predicated region
    $region81: #{hf_wav2vec2_for_ctc_forward.2} parent=5 // pred_check
      _
    $region82: #{hf_wav2vec2_for_ctc_forward.2} parent=5 // pred_check_branch
      %476 = sbr.rel (%p473) target = $region84
    $region83: #{hf_wav2vec2_for_ctc_forward.2} parent=5 // pred_region
      %s477 = ssub.s32 %s22, 1
      %p478 = scmp.lt.s32.totalorder %s27, 1
      %s479 = scalar_select %p478, %s27, 1
      %s480 = smul.addr %s479, 3
      %s481 = smul.addr %s480, 8
      %s482 = scalar_lea.vmem %s0, %s481
      %p483 = pneg %p48
      %p484 = pneg %p45
      %p485 = scmp.lt.s32.totalorder %s27, 1
      %s486 = scalar_select %p485, %s27, 1
      %s487 = smul.addr %s486, 2
      %s488 = smul.addr %s487, 8
      %s489 = scalar_lea.vmem %s1, %s488
      %p490 = pneg %p74
      %p491 = pneg %p71
      %p492 = pneg %p95
      %p493 = pneg %p92
      %p494 = pneg %p116
      %p495 = pneg %p113
      %p496 = pneg %p137
      %p497 = pneg %p134
      %p498 = pneg %p158
      %p499 = pneg %p155
      %p500 = pneg %p179
      %p501 = pneg %p176
      %p502 = pneg %p200
      %p503 = pneg %p197
      %p504 = pneg %p221
      %p505 = pneg %p218
      %p506 = pneg %p242
      %p507 = pneg %p239
      %p508 = pneg %p263
      %p509 = pneg %p260
      %p510 = pneg %p284
      %p511 = pneg %p281
      %p512 = pneg %p305
      %p513 = pneg %p302
      %p514 = pneg %p326
      %p515 = pneg %p323
      %p516 = pneg %p347
      %p517 = pneg %p344
      %p518 = pneg %p368
      %p519 = pneg %p365
      %p520 = pneg %p394
      %p521 = pneg %p391
      %p522 = scmp.lt.s32.totalorder %s27, 1
      %s523 = scalar_select %p522, %s27, 1
      %s524 = smul.addr %s523, 2
      %s525 = smul.addr %s524, 8
      %s526 = scalar_lea.vmem %s16, %s525
      %p527 = scmp.lt.s32.totalorder %s27, 1
      %s528 = scalar_select %p527, %s27, 1
      %s529 = smul.addr %s528, 3
      %s530 = smul.addr %s529, 8
      %s531 = scalar_lea.vmem %s0, %s530
      %p532 = scmp.lt.s32.totalorder %s27, 1
      %s533 = scalar_select %p532, %s27, 1
      %s534 = smul.addr %s533, 2
      %s535 = smul.addr %s534, 8
      %s536 = scalar_lea.vmem %s1, %s535
      %p537 = scmp.lt.s32.totalorder %s27, 1
      %s538 = scalar_select %p537, %s27, 1
      %s539 = smul.addr %s538, 2
      %s540 = smul.addr %s539, 8
      %s541 = scalar_lea.vmem %s16, %s540
      %v542 = vld [vmem:[%s531] sm:$0xff]
      %v543 = vld [vmem:[%s531 + $0x8] sm:$0xff]
      %v544 = vld [vmem:[%s531 + $0x10] sm:$0x1]
      %v545 = vld [vmem:[%s2] sm:$0xff]
      %v546 = vld [vmem:[%s2 + $0x8] sm:$0x3]
      %v547 = vld [vmem:[%s3] sm:$0x1]
      %v549 = vlaneseq
      %v550 = vshrl.u32 %v549, 7
      %v551 = vsub.s32 0, %v550
      %v552 = vrot.slane %v547, %v551
      %v554 = vadd.f32 %v552, 0.0
      %556 = vset.pattern.permute.xlu0 0
      %557 = vperm.xlu0 %556, %v542
      %v558 = vpop.permute.xlu0 %557
      %561 = vset.pattern.permute.xlu0 0
      %562 = vperm.xlu0 %561, %v543
      %v563 = vpop.permute.xlu0 %562
      %566 = vset.pattern.permute.xlu0 0
      %567 = vperm.xlu0 %566, %v544
      %v568 = vpop.permute.xlu0 %567
      %v570 = vlaneseq
      %v571 = vshrl.u32 %v570, 7
      %v572 = vsub.s32 0, %v571
      %v573 = vrot.slane %v545, %v572
      %v574 = vmul.f32 %v558, %v573
      %v575 = vmul.f32 %v563, %v573
      %v576 = vmul.f32 %v568, %v573
      %v577 = vadd.f32 %v554, %v574
      %v578 = vadd.f32 %v554, %v575
      %v579 = vadd.f32 %v554, %v576
      %580 = vset.pattern.permute.xlu0 5
      %581 = vperm.xlu0 %580, %v542
      %v582 = vpop.permute.xlu0 %581
      %584 = vset.pattern.permute.xlu0 5
      %585 = vperm.xlu0 %584, %v543
      %v586 = vpop.permute.xlu0 %585
      %v588 = vmul.f32 %v582, %v573
      %v589 = vmul.f32 %v586, %v573
      %v590 = vadd.f32 %v554, %v588
      %v591 = vadd.f32 %v554, %v589
      %592 = vset.pattern.permute.xlu0 1
      %593 = vperm.xlu0 %592, %v542
      %v594 = vpop.permute.xlu0 %593
      %596 = vset.pattern.permute.xlu0 1
      %597 = vperm.xlu0 %596, %v543
      %v598 = vpop.permute.xlu0 %597
      %600 = vset.pattern.permute.xlu0 1
      %601 = vperm.xlu0 %600, %v544
      %v602 = vpop.permute.xlu0 %601
      %v604 = vlaneseq
      %v605 = vshrl.u32 %v604, 7
      %v606 = vsub.s32 1, %v605
      %v607 = vrot.slane %v545, %v606
      %v608 = vmul.f32 %v594, %v607
      %v609 = vmul.f32 %v598, %v607
      %v610 = vmul.f32 %v602, %v607
      %v611 = vadd.f32 %v577, %v608
      %v612 = vadd.f32 %v578, %v609
      %v613 = vadd.f32 %v579, %v610
      %614 = vset.pattern.permute.xlu0 6
      %615 = vperm.xlu0 %614, %v542
      %v616 = vpop.permute.xlu0 %615
      %618 = vset.pattern.permute.xlu0 6
      %619 = vperm.xlu0 %618, %v543
      %v620 = vpop.permute.xlu0 %619
      %v622 = vmul.f32 %v616, %v607
      %v623 = vmul.f32 %v620, %v607
      %v624 = vadd.f32 %v590, %v622
      %v625 = vadd.f32 %v591, %v623
      %626 = vset.pattern.permute.xlu0 2
      %627 = vperm.xlu0 %626, %v542
      %v628 = vpop.permute.xlu0 %627
      %630 = vset.pattern.permute.xlu0 2
      %631 = vperm.xlu0 %630, %v543
      %v632 = vpop.permute.xlu0 %631
      %634 = vset.pattern.permute.xlu0 2
      %635 = vperm.xlu0 %634, %v544
      %v636 = vpop.permute.xlu0 %635
      %v638 = vlaneseq
      %v639 = vshrl.u32 %v638, 7
      %v640 = vsub.s32 2, %v639
      %v641 = vrot.slane %v545, %v640
      %v642 = vmul.f32 %v628, %v641
      %v643 = vmul.f32 %v632, %v641
      %v644 = vmul.f32 %v636, %v641
      %v645 = vadd.f32 %v611, %v642
      %v646 = vadd.f32 %v612, %v643
      %v647 = vadd.f32 %v613, %v644
      %648 = vset.pattern.permute.xlu0 7
      %649 = vperm.xlu0 %648, %v542
      %v650 = vpop.permute.xlu0 %649
      %652 = vset.pattern.permute.xlu0 7
      %653 = vperm.xlu0 %652, %v543
      %v654 = vpop.permute.xlu0 %653
      %v656 = vmul.f32 %v650, %v641
      %v657 = vmul.f32 %v654, %v641
      %v658 = vadd.f32 %v624, %v656
      %v659 = vadd.f32 %v625, %v657
      %660 = vset.pattern.permute.xlu0 3
      %661 = vperm.xlu0 %660, %v542
      %v662 = vpop.permute.xlu0 %661
      %664 = vset.pattern.permute.xlu0 3
      %665 = vperm.xlu0 %664, %v543
      %v666 = vpop.permute.xlu0 %665
      %668 = vset.pattern.permute.xlu0 3
      %669 = vperm.xlu0 %668, %v544
      %v670 = vpop.permute.xlu0 %669
      %v672 = vlaneseq
      %v673 = vshrl.u32 %v672, 7
      %v674 = vsub.s32 3, %v673
      %v675 = vrot.slane %v545, %v674
      %v676 = vmul.f32 %v662, %v675
      %v677 = vmul.f32 %v666, %v675
      %v678 = vmul.f32 %v670, %v675
      %v679 = vadd.f32 %v645, %v676
      %v680 = vadd.f32 %v646, %v677
      %v681 = vadd.f32 %v647, %v678
      %682 = vset.pattern.permute.xlu0 8
      %683 = vperm.xlu0 %682, %v542
      %v684 = vpop.permute.xlu0 %683
      %686 = vset.pattern.permute.xlu0 8
      %687 = vperm.xlu0 %686, %v543
      %v688 = vpop.permute.xlu0 %687
      %v690 = vmul.f32 %v684, %v675
      %v691 = vmul.f32 %v688, %v675
      %v692 = vadd.f32 %v658, %v690
      %v693 = vadd.f32 %v659, %v691
      %694 = vset.pattern.permute.xlu0 4
      %695 = vperm.xlu0 %694, %v542
      %v696 = vpop.permute.xlu0 %695
      %698 = vset.pattern.permute.xlu0 4
      %699 = vperm.xlu0 %698, %v543
      %v700 = vpop.permute.xlu0 %699
      %702 = vset.pattern.permute.xlu0 4
      %703 = vperm.xlu0 %702, %v544
      %v704 = vpop.permute.xlu0 %703
      %v706 = vlaneseq
      %v707 = vshrl.u32 %v706, 7
      %v708 = vsub.s32 4, %v707
      %v709 = vrot.slane %v545, %v708
      %v710 = vmul.f32 %v696, %v709
      %v711 = vmul.f32 %v700, %v709
      %v712 = vmul.f32 %v704, %v709
      %v713 = vadd.f32 %v679, %v710
      %v714 = vadd.f32 %v680, %v711
      %v715 = vadd.f32 %v681, %v712
      %716 = vset.pattern.permute.xlu0 9
      %717 = vperm.xlu0 %716, %v542
      %v718 = vpop.permute.xlu0 %717
      %720 = vset.pattern.permute.xlu0 9
      %721 = vperm.xlu0 %720, %v543
      %v722 = vpop.permute.xlu0 %721
      %v724 = vmul.f32 %v718, %v709
      %v725 = vmul.f32 %v722, %v709
      %v726 = vadd.f32 %v692, %v724
      %v727 = vadd.f32 %v693, %v725
      %728 = vset.pattern.permute.xlu0 5
      %729 = vperm.xlu0 %728, %v544
      %v730 = vpop.permute.xlu0 %729
      %v732 = vlaneseq
      %v733 = vshrl.u32 %v732, 7
      %v734 = vsub.s32 5, %v733
      %v735 = vrot.slane %v545, %v734
      %v736 = vmul.f32 %v582, %v735
      %v737 = vmul.f32 %v586, %v735
      %v738 = vmul.f32 %v730, %v735
      %v739 = vadd.f32 %v713, %v736
      %v740 = vadd.f32 %v714, %v737
      %v741 = vadd.f32 %v715, %v738
      %v742 = vmul.f32 %v558, %v735
      %v743 = vmul.f32 %v563, %v735
      %v744 = vmul.f32 %v568, %v735
      %vm748 = vcmask 1046528
      %v749 = vrot.slane %v742, 1
      %v750 = vrot.slane %v743, 1
      %v751 = vsel %vm748, %v749, %v750
      %v752 = vrot.slane %v744, 1
      %v753 = vsel %vm748, %v750, %v752
      %v756 = vadd.f32 %v726, %v751
      %v757 = vadd.f32 %v727, %v753
      %758 = vset.pattern.permute.xlu0 6
      %759 = vperm.xlu0 %758, %v544
      %v760 = vpop.permute.xlu0 %759
      %v762 = vlaneseq
      %v763 = vshrl.u32 %v762, 7
      %v764 = vsub.s32 6, %v763
      %v765 = vrot.slane %v545, %v764
      %v766 = vmul.f32 %v616, %v765
      %v767 = vmul.f32 %v620, %v765
      %v768 = vmul.f32 %v760, %v765
      %v769 = vadd.f32 %v739, %v766
      %v770 = vadd.f32 %v740, %v767
      %v771 = vadd.f32 %v741, %v768
      %v772 = vmul.f32 %v594, %v765
      %v773 = vmul.f32 %v598, %v765
      %v774 = vmul.f32 %v602, %v765
      %v778 = vrot.slane %v772, 1
      %v779 = vrot.slane %v773, 1
      %v780 = vsel %vm748, %v778, %v779
      %v781 = vrot.slane %v774, 1
      %v782 = vsel %vm748, %v779, %v781
      %v785 = vadd.f32 %v756, %v780
      %v786 = vadd.f32 %v757, %v782
      %787 = vset.pattern.permute.xlu0 7
      %788 = vperm.xlu0 %787, %v544
      %v789 = vpop.permute.xlu0 %788
      %v791 = vlaneseq
      %v792 = vshrl.u32 %v791, 7
      %v793 = vsub.s32 7, %v792
      %v794 = vrot.slane %v545, %v793
      %v795 = vmul.f32 %v650, %v794
      %v796 = vmul.f32 %v654, %v794
      %v797 = vmul.f32 %v789, %v794
      %v798 = vadd.f32 %v769, %v795
      %v799 = vadd.f32 %v770, %v796
      %v800 = vadd.f32 %v771, %v797
      %v801 = vmul.f32 %v628, %v794
      %v802 = vmul.f32 %v632, %v794
      %v803 = vmul.f32 %v636, %v794
      %v807 = vrot.slane %v801, 1
      %v808 = vrot.slane %v802, 1
      %v809 = vsel %vm748, %v807, %v808
      %v810 = vrot.slane %v803, 1
      %v811 = vsel %vm748, %v808, %v810
      %v814 = vadd.f32 %v785, %v809
      %v815 = vadd.f32 %v786, %v811
      %816 = vset.pattern.permute.xlu0 8
      %817 = vperm.xlu0 %816, %v544
      %v818 = vpop.permute.xlu0 %817
      %v820 = vlaneseq
      %v821 = vshrl.u32 %v820, 7
      %v822 = vsub.s32 0, %v821
      %v823 = vrot.slane %v546, %v822
      %v824 = vmul.f32 %v684, %v823
      %v825 = vmul.f32 %v688, %v823
      %v826 = vmul.f32 %v818, %v823
      %v827 = vadd.f32 %v798, %v824
      %v828 = vadd.f32 %v799, %v825
      %v829 = vadd.f32 %v800, %v826
      %v830 = vmul.f32 %v662, %v823
      %v831 = vmul.f32 %v666, %v823
      %v832 = vmul.f32 %v670, %v823
      %v836 = vrot.slane %v830, 1
      %v837 = vrot.slane %v831, 1
      %v838 = vsel %vm748, %v836, %v837
      %v839 = vrot.slane %v832, 1
      %v840 = vsel %vm748, %v837, %v839
      %v843 = vadd.f32 %v814, %v838
      %v844 = vadd.f32 %v815, %v840
      %845 = vset.pattern.permute.xlu0 9
      %846 = vperm.xlu0 %845, %v544
      %v847 = vpop.permute.xlu0 %846
      %v849 = vlaneseq
      %v850 = vshrl.u32 %v849, 7
      %v851 = vsub.s32 1, %v850
      %v852 = vrot.slane %v546, %v851
      %v853 = vmul.f32 %v718, %v852
      %v854 = vmul.f32 %v722, %v852
      %v855 = vmul.f32 %v847, %v852
      %v856 = vadd.f32 %v827, %v853
      %v857 = vadd.f32 %v828, %v854
      %v858 = vadd.f32 %v829, %v855
      %v859 = vmul.f32 %v696, %v852
      %v860 = vmul.f32 %v700, %v852
      %v861 = vmul.f32 %v704, %v852
      %v865 = vrot.slane %v859, 1
      %v866 = vrot.slane %v860, 1
      %v867 = vsel %vm748, %v865, %v866
      %v868 = vrot.slane %v861, 1
      %v869 = vsel %vm748, %v866, %v868
      %v872 = vadd.f32 %v843, %v867
      %v873 = vadd.f32 %v844, %v869
      %vm874 = vcmask 130048
      %v875 = vsel %vm874, %v856, 0.0
      %v876 = vsel %vm874, %v857, 0.0
      %v877 = vadd.f32 %v875, %v876
      %vm878 = vcmask 122880
      %v879 = vsel %vm878, %v858, 0.0
      %v880 = vadd.f32 %v877, %v879
      %v881 = vrot.slane %v880, 4
      %v882 = vadd.f32 %v880, %v881
      %v883 = vrot.slane %v882, 2
      %v884 = vadd.f32 %v882, %v883
      %v885 = vrot.slane %v884, 1
      %v886 = vadd.f32 %v884, %v885
      %v887 = vsel %vm874, %v872, 0.0
      %v888 = vsel %vm874, %v873, 0.0
      %v889 = vadd.f32 %v887, %v888
      %v890 = vrot.slane %v889, 4
      %v891 = vadd.f32 %v889, %v890
      %v892 = vrot.slane %v891, 2
      %v893 = vadd.f32 %v891, %v892
      %v894 = vrot.slane %v893, 1
      %v895 = vadd.f32 %v893, %v894
      %v896 = vadd.f32 %v886, %v895
      %v897 = vrcp.pop 33.0
      %v898 = vmul.f32 %v896, %v897
      %v899 = vmul.f32 %v856, %v856
      %v900 = vmul.f32 %v857, %v857
      %v901 = vmul.f32 %v858, %v858
      %v902 = vsel %vm874, %v899, 0.0
      %v903 = vsel %vm874, %v900, 0.0
      %v904 = vadd.f32 %v902, %v903
      %v905 = vsel %vm878, %v901, 0.0
      %v906 = vadd.f32 %v904, %v905
      %v907 = vrot.slane %v906, 4
      %v908 = vadd.f32 %v906, %v907
      %v909 = vrot.slane %v908, 2
      %v910 = vadd.f32 %v908, %v909
      %v911 = vrot.slane %v910, 1
      %v912 = vadd.f32 %v910, %v911
      %v913 = vmul.f32 %v872, %v872
      %v914 = vmul.f32 %v873, %v873
      %v915 = vsel %vm874, %v913, 0.0
      %v916 = vsel %vm874, %v914, 0.0
      %v917 = vadd.f32 %v915, %v916
      %v918 = vrot.slane %v917, 4
      %v919 = vadd.f32 %v917, %v918
      %v920 = vrot.slane %v919, 2
      %v921 = vadd.f32 %v919, %v920
      %v922 = vrot.slane %v921, 1
      %v923 = vadd.f32 %v921, %v922
      %v924 = vadd.f32 %v912, %v923
      %v925 = vmul.f32 %v924, %v897
      %v926 = vmul.f32 %v898, %v898
      %v927 = vsub.f32 %v925, %v926
      %v928 = vadd.f32 %v927, 1e-05
      %v929 = vrsqrt.pop %v928
      %v930 = vld [vmem:[%s4] sm:$0x1]
      %v931 = vld [vmem:[%s5] sm:$0x1]
      %v932 = vsub.f32 %v856, %v898
      %v933 = vsub.f32 %v857, %v898
      %v934 = vsub.f32 %v858, %v898
      %v935 = vmul.f32 %v932, %v929
      %v936 = vmul.f32 %v933, %v929
      %v937 = vmul.f32 %v934, %v929
      %v939 = vlaneseq
      %v940 = vshrl.u32 %v939, 7
      %v941 = vsub.s32 0, %v940
      %v942 = vrot.slane %v930, %v941
      %v944 = vmul.f32 %v935, %v942
      %v945 = vmul.f32 %v936, %v942
      %v946 = vmul.f32 %v937, %v942
      %v948 = vlaneseq
      %v949 = vshrl.u32 %v948, 7
      %v950 = vsub.s32 0, %v949
      %v951 = vrot.slane %v931, %v950
      %v953 = vadd.f32 %v944, %v951
      %v954 = vadd.f32 %v945, %v951
      %v955 = vadd.f32 %v946, %v951
      %v956 = vmul.f32 %v953, 0.5
      %v957 = vmul.f32 %v954, 0.5
      %v958 = vmul.f32 %v955, 0.5
      %v959 = vmul.f32 %v953, 0.70710677
      %v960 = vmul.f32 %v954, 0.70710677
      %v961 = vmul.f32 %v955, 0.70710677
      %v962 = verf.f32.pop %v959
      %v963 = verf.f32.pop %v960
      %v964 = verf.f32.pop %v961
      %v965 = vadd.f32 %v962, 1.0
      %v966 = vadd.f32 %v963, 1.0
      %v967 = vadd.f32 %v964, 1.0
      %v968 = vmul.f32 %v956, %v965
      %v969 = vmul.f32 %v957, %v966
      %v970 = vmul.f32 %v958, %v967
      %v971 = vsub.f32 %v872, %v898
      %v972 = vsub.f32 %v873, %v898
      %v973 = vmul.f32 %v971, %v929
      %v974 = vmul.f32 %v972, %v929
      %v975 = vmul.f32 %v973, %v942
      %v976 = vmul.f32 %v974, %v942
      %v977 = vadd.f32 %v975, %v951
      %v978 = vadd.f32 %v976, %v951
      %v979 = vmul.f32 %v977, 0.5
      %v980 = vmul.f32 %v978, 0.5
      %v981 = vmul.f32 %v977, 0.70710677
      %v982 = vmul.f32 %v978, 0.70710677
      %v983 = verf.f32.pop %v981
      %v984 = verf.f32.pop %v982
      %v985 = vadd.f32 %v983, 1.0
      %v986 = vadd.f32 %v984, 1.0
      %v987 = vmul.f32 %v979, %v985
      %v988 = vmul.f32 %v980, %v986
      %v989 = vld [vmem:[%s6] sm:$0xff]
      %v990 = vld [vmem:[%s6 + $0x8] sm:$0xff]
      %s991 = scalar_lea.vmem %s6, 16
      %v992 = vld [vmem:[%s991] sm:$0xff]
      %v993 = vld [vmem:[%s991 + $0x8] sm:$0xff]
      %v995 = vsel %vm874, %v987, 0
      %v998 = vsel %vm874, %v988, 0
      %1000 = vmatprep.subr.mxu0 0.0
      %1001 = vmatpush1.msra.mxu0 %v992
      %1002 = vmatprep.subr.mxu0 0.0
      %1003 = vmatpush1.msra.mxu0 %v993
      %1004 = vmatprep.subr.mxu0 0.0
      %1005 = vmatpush1.msra.mxu0 0.0
      %1006 = vmatprep.subr.mxu0 0.0
      %1007 = vmatpush1.msra.mxu0 0.0
      %1008 = vmatprep.subr.mxu0 0.0
      %1009 = vmatpush1.msra.mxu0 0.0
      %1010 = vmatprep.subr.mxu0 0.0
      %1011 = vmatpush1.msra.mxu0 0.0
      %1012 = vmatprep.subr.mxu0 0.0
      %1013 = vmatpush1.msra.mxu0 0.0
      %1014 = vmatprep.subr.mxu0 0.0
      %1015 = vmatpush1.msra.mxu0 0.0
      %1016 = vmatprep.subr.mxu0 0.0
      %1017 = vmatpush1.msra.mxu0 0.0
      %1018 = vmatprep.subr.mxu0 0.0
      %1019 = vmatpush1.msra.mxu0 0.0
      %1020 = vmatprep.subr.mxu0 0.0
      %1021 = vmatpush1.msra.mxu0 0.0
      %1022 = vmatprep.subr.mxu0 0.0
      %1023 = vmatpush1.msra.mxu0 0.0
      %1024 = vmatprep.subr.mxu0 0.0
      %1025 = vmatpush1.msra.mxu0 0.0
      %1026 = vmatprep.subr.mxu0 0.0
      %1027 = vmatpush1.msra.mxu0 0.0
      %1028 = vmatprep.subr.mxu0 0.0
      %1029 = vmatpush1.msra.mxu0 0.0
      %1030 = vmatprep.subr.mxu0 0.0
      %1031 = vmatpush1.msra.mxu0 0.0
      %1032 = vmatprep.subr.mxu0 0.0
      %1033 = vmatpush1.msra.mxu0 0.0
      %1034 = vmatprep.subr.mxu0 0.0
      %1035 = vmatpush1.msra.mxu0 0.0
      %1036 = vmatprep.subr.mxu0 0.0
      %1037 = vmatpush1.msra.mxu0 0.0
      %1038 = vmatprep.subr.mxu0 0.0
      %1039 = vmatpush1.msra.mxu0 0.0
      %1040 = vmatprep.subr.mxu0 0.0
      %1041 = vmatpush1.msra.mxu0 0.0
      %1042 = vmatprep.subr.mxu0 0.0
      %1043 = vmatpush1.msra.mxu0 0.0
      %1044 = vmatprep.subr.mxu0 0.0
      %1045 = vmatpush1.msra.mxu0 0.0
      %1046 = vmatprep.subr.mxu0 0.0
      %1047 = vmatpush1.msra.mxu0 0.0
      %1048 = vmatprep.subr.mxu0 0.0
      %1049 = vmatpush1.msra.mxu0 0.0
      %1050 = vmatprep.subr.mxu0 0.0
      %1051 = vmatpush1.msra.mxu0 0.0
      %1052 = vmatprep.subr.mxu0 0.0
      %1053 = vmatpush1.msra.mxu0 0.0
      %1054 = vmatprep.subr.mxu0 0.0
      %1055 = vmatpush1.msra.mxu0 0.0
      %1056 = vmatprep.subr.mxu0 0.0
      %1057 = vmatpush1.msra.mxu0 0.0
      %1058 = vmatprep.subr.mxu0 0.0
      %1059 = vmatpush1.msra.mxu0 0.0
      %1060 = vmatprep.subr.mxu0 0.0
      %1061 = vmatpush1.msra.mxu0 0.0
      %1062 = vmatprep.subr.mxu0 0.0
      %1063 = vmatpush1.msra.mxu0 0.0
      %1064 = vmatprep.mubr.f32.mxu0 0.0
      %1065 = vmatmul.mubr.f32.gmra.mrb[0].mxu0 %v995
      %v1066 = vpop.f32.mrb[0].mxu0
      %v1067 = vadd.f32 0.0, %v1066
      %v1068 = vpop.f32.mrb[0].mxu0
      %1069 = vmatprep.mubr.f32.mxu0 0.0
      %1070 = vmatmul.mubr.f32.gmra.mrb[0].mxu0 %v998
      %v1071 = vpop.f32.mrb[0].mxu0
      %v1072 = vadd.f32 0.0, %v1071
      %v1073 = vpop.f32.mrb[0].mxu0
      %1074 = vdwg.mxu0
      %v1076 = vsel %vm874, %v968, 0
      %v1079 = vsel %vm874, %v969, 0
      %1081 = vmatprep.subr.mxu0 0.0
      %1082 = vmatpush1.msra.mxu0 %v989
      %1083 = vmatprep.subr.mxu0 0.0
      %1084 = vmatpush1.msra.mxu0 %v990
      %1085 = vmatprep.subr.mxu0 0.0
      %1086 = vmatpush1.msra.mxu0 0.0
      %1087 = vmatprep.subr.mxu0 0.0
      %1088 = vmatpush1.msra.mxu0 0.0
      %1089 = vmatprep.subr.mxu0 0.0
      %1090 = vmatpush1.msra.mxu0 0.0
      %1091 = vmatprep.subr.mxu0 0.0
      %1092 = vmatpush1.msra.mxu0 0.0
      %1093 = vmatprep.subr.mxu0 0.0
      %1094 = vmatpush1.msra.mxu0 0.0
      %1095 = vmatprep.subr.mxu0 0.0
      %1096 = vmatpush1.msra.mxu0 0.0
      %1097 = vmatprep.subr.mxu0 0.0
      %1098 = vmatpush1.msra.mxu0 0.0
      %1099 = vmatprep.subr.mxu0 0.0
      %1100 = vmatpush1.msra.mxu0 0.0
      %1101 = vmatprep.subr.mxu0 0.0
      %1102 = vmatpush1.msra.mxu0 0.0
      %1103 = vmatprep.subr.mxu0 0.0
      %1104 = vmatpush1.msra.mxu0 0.0
      %1105 = vmatprep.subr.mxu0 0.0
      %1106 = vmatpush1.msra.mxu0 0.0
      %1107 = vmatprep.subr.mxu0 0.0
      %1108 = vmatpush1.msra.mxu0 0.0
      %1109 = vmatprep.subr.mxu0 0.0
      %1110 = vmatpush1.msra.mxu0 0.0
      %1111 = vmatprep.subr.mxu0 0.0
      %1112 = vmatpush1.msra.mxu0 0.0
      %1113 = vmatprep.subr.mxu0 0.0
      %1114 = vmatpush1.msra.mxu0 0.0
      %1115 = vmatprep.subr.mxu0 0.0
      %1116 = vmatpush1.msra.mxu0 0.0
      %1117 = vmatprep.subr.mxu0 0.0
      %1118 = vmatpush1.msra.mxu0 0.0
      %1119 = vmatprep.subr.mxu0 0.0
      %1120 = vmatpush1.msra.mxu0 0.0
      %1121 = vmatprep.subr.mxu0 0.0
      %1122 = vmatpush1.msra.mxu0 0.0
      %1123 = vmatprep.subr.mxu0 0.0
      %1124 = vmatpush1.msra.mxu0 0.0
      %1125 = vmatprep.subr.mxu0 0.0
      %1126 = vmatpush1.msra.mxu0 0.0
      %1127 = vmatprep.subr.mxu0 0.0
      %1128 = vmatpush1.msra.mxu0 0.0
      %1129 = vmatprep.subr.mxu0 0.0
      %1130 = vmatpush1.msra.mxu0 0.0
      %1131 = vmatprep.subr.mxu0 0.0
      %1132 = vmatpush1.msra.mxu0 0.0
      %1133 = vmatprep.subr.mxu0 0.0
      %1134 = vmatpush1.msra.mxu0 0.0
      %1135 = vmatprep.subr.mxu0 0.0
      %1136 = vmatpush1.msra.mxu0 0.0
      %1137 = vmatprep.subr.mxu0 0.0
      %1138 = vmatpush1.msra.mxu0 0.0
      %1139 = vmatprep.subr.mxu0 0.0
      %1140 = vmatpush1.msra.mxu0 0.0
      %1141 = vmatprep.subr.mxu0 0.0
      %1142 = vmatpush1.msra.mxu0 0.0
      %1143 = vmatprep.subr.mxu0 0.0
      %1144 = vmatpush1.msra.mxu0 0.0
      %1145 = vmatprep.mubr.f32.mxu0 0.0
      %1146 = vmatmul.mubr.f32.gmra.mrb[0].mxu0 %v1076
      %v1147 = vpop.f32.mrb[0].mxu0
      %v1148 = vadd.f32 %v1067, %v1147
      %v1149 = vpop.f32.mrb[0].mxu0
      %1150 = vmatprep.mubr.f32.mxu0 0.0
      %1151 = vmatmul.mubr.f32.gmra.mrb[0].mxu0 %v1079
      %v1152 = vpop.f32.mrb[0].mxu0
      %v1153 = vadd.f32 %v1072, %v1152
      %v1154 = vpop.f32.mrb[0].mxu0
      %1155 = vdwg.mxu0
      %s1156 = scalar_lea.vmem %s6, 32
      %v1157 = vld [vmem:[%s1156] sm:$0xff]
      %v1158 = vld [vmem:[%s1156 + $0x8] sm:$0xff]
      %v1160 = vrot.slane %v968, 1
      %v1161 = vrot.slane %v969, 1
      %v1162 = vsel %vm748, %v1160, %v1161
      %v1163 = vrot.slane %v970, 1
      %v1164 = vsel %vm748, %v1161, %v1163
      %v1165 = vsel %vm874, %v1162, 0
      %v1167 = vsel %vm874, %v1164, 0
      %1169 = vmatprep.subr.mxu0 0.0
      %1170 = vmatpush1.msra.mxu0 %v1157
      %1171 = vmatprep.subr.mxu0 0.0
      %1172 = vmatpush1.msra.mxu0 %v1158
      %1173 = vmatprep.subr.mxu0 0.0
      %1174 = vmatpush1.msra.mxu0 0.0
      %1175 = vmatprep.subr.mxu0 0.0
      %1176 = vmatpush1.msra.mxu0 0.0
      %1177 = vmatprep.subr.mxu0 0.0
      %1178 = vmatpush1.msra.mxu0 0.0
      %1179 = vmatprep.subr.mxu0 0.0
      %1180 = vmatpush1.msra.mxu0 0.0
      %1181 = vmatprep.subr.mxu0 0.0
      %1182 = vmatpush1.msra.mxu0 0.0
      %1183 = vmatprep.subr.mxu0 0.0
      %1184 = vmatpush1.msra.mxu0 0.0
      %1185 = vmatprep.subr.mxu0 0.0
      %1186 = vmatpush1.msra.mxu0 0.0
      %1187 = vmatprep.subr.mxu0 0.0
      %1188 = vmatpush1.msra.mxu0 0.0
      %1189 = vmatprep.subr.mxu0 0.0
      %1190 = vmatpush1.msra.mxu0 0.0
      %1191 = vmatprep.subr.mxu0 0.0
      %1192 = vmatpush1.msra.mxu0 0.0
      %1193 = vmatprep.subr.mxu0 0.0
      %1194 = vmatpush1.msra.mxu0 0.0
      %1195 = vmatprep.subr.mxu0 0.0
      %1196 = vmatpush1.msra.mxu0 0.0
      %1197 = vmatprep.subr.mxu0 0.0
      %1198 = vmatpush1.msra.mxu0 0.0
      %1199 = vmatprep.subr.mxu0 0.0
      %1200 = vmatpush1.msra.mxu0 0.0
      %1201 = vmatprep.subr.mxu0 0.0
      %1202 = vmatpush1.msra.mxu0 0.0
      %1203 = vmatprep.subr.mxu0 0.0
      %1204 = vmatpush1.msra.mxu0 0.0
      %1205 = vmatprep.subr.mxu0 0.0
      %1206 = vmatpush1.msra.mxu0 0.0
      %1207 = vmatprep.subr.mxu0 0.0
      %1208 = vmatpush1.msra.mxu0 0.0
      %1209 = vmatprep.subr.mxu0 0.0
      %1210 = vmatpush1.msra.mxu0 0.0
      %1211 = vmatprep.subr.mxu0 0.0
      %1212 = vmatpush1.msra.mxu0 0.0
      %1213 = vmatprep.subr.mxu0 0.0
      %1214 = vmatpush1.msra.mxu0 0.0
      %1215 = vmatprep.subr.mxu0 0.0
      %1216 = vmatpush1.msra.mxu0 0.0
      %1217 = vmatprep.subr.mxu0 0.0
      %1218 = vmatpush1.msra.mxu0 0.0
      %1219 = vmatprep.subr.mxu0 0.0
      %1220 = vmatpush1.msra.mxu0 0.0
      %1221 = vmatprep.subr.mxu0 0.0
      %1222 = vmatpush1.msra.mxu0 0.0
      %1223 = vmatprep.subr.mxu0 0.0
      %1224 = vmatpush1.msra.mxu0 0.0
      %1225 = vmatprep.subr.mxu0 0.0
      %1226 = vmatpush1.msra.mxu0 0.0
      %1227 = vmatprep.subr.mxu0 0.0
      %1228 = vmatpush1.msra.mxu0 0.0
      %1229 = vmatprep.subr.mxu0 0.0
      %1230 = vmatpush1.msra.mxu0 0.0
      %1231 = vmatprep.subr.mxu0 0.0
      %1232 = vmatpush1.msra.mxu0 0.0
      %1233 = vmatprep.mubr.f32.mxu0 0.0
      %1234 = vmatmul.mubr.f32.gmra.mrb[0].mxu0 %v1165
      %v1235 = vpop.f32.mrb[0].mxu0
      %v1236 = vadd.f32 0.0, %v1235
      %v1237 = vpop.f32.mrb[0].mxu0
      %1238 = vmatprep.mubr.f32.mxu0 0.0
      %1239 = vmatmul.mubr.f32.gmra.mrb[0].mxu0 %v1167
      %v1240 = vpop.f32.mrb[0].mxu0
      %v1241 = vadd.f32 0.0, %v1240
      %v1242 = vpop.f32.mrb[0].mxu0
      %1243 = vdwg.mxu0
      %v1244 = vadd.f32 %v1148, %v1236
      %v1245 = vadd.f32 %v1153, %v1241
      %v1246 = vld [vmem:[%s7] sm:$0x1]
      %v1248 = vlaneseq
      %v1249 = vshrl.u32 %v1248, 7
      %v1250 = vsub.s32 0, %v1249
      %v1251 = vrot.slane %v1246, %v1250
      %v1253 = vadd.f32 %v1244, %v1251
      %v1254 = vadd.f32 %v1245, %v1251
      %v1255 = vmul.f32 %v1253, 0.5
      %v1256 = vmul.f32 %v1254, 0.5
      %v1257 = vmul.f32 %v1253, 0.70710677
      %v1258 = vmul.f32 %v1254, 0.70710677
      %v1259 = verf.f32.pop %v1257
      %v1260 = verf.f32.pop %v1258
      %v1261 = vadd.f32 %v1259, 1.0
      %v1262 = vadd.f32 %v1260, 1.0
      %v1263 = vmul.f32 %v1255, %v1261
      %v1264 = vmul.f32 %v1256, %v1262
      %v1265 = vld [vmem:[%s8] sm:$0x1]
      %v1266 = vld [vmem:[%s9] sm:$0x1]
      %v1267 = vsel %vm874, %v1263, 0.0
      %1268 = vadd.xlane.f32.xlu0 %v1267
      %v1269 = vpop.xlane.xlu0 %1268
      %v1270 = vsel %vm874, %v1264, 0.0
      %1271 = vadd.xlane.f32.xlu0 %v1270
      %v1272 = vpop.xlane.xlu0 %1271
      %v1273 = vrcp.pop 16.0
      %v1274 = vmul.f32 %v1269, %v1273
      %v1275 = vmul.f32 %v1272, %v1273
      %v1276 = vsub.f32 %v1263, %v1274
      %v1277 = vsub.f32 %v1264, %v1275
      %v1278 = vmul.f32 %v1276, %v1276
      %v1279 = vmul.f32 %v1277, %v1277
      %v1280 = vsel %vm874, %v1278, 0.0
      %1281 = vadd.xlane.f32.xlu0 %v1280
      %v1282 = vpop.xlane.xlu0 %1281
      %v1283 = vsel %vm874, %v1279, 0.0
      %1284 = vadd.xlane.f32.xlu0 %v1283
      %v1285 = vpop.xlane.xlu0 %1284
      %v1286 = vmul.f32 %v1282, %v1273
      %v1287 = vmul.f32 %v1285, %v1273
      %v1288 = vadd.f32 %v1286, 1e-05
      %v1289 = vadd.f32 %v1287, 1e-05
      %v1290 = vrsqrt.pop %v1288
      %v1291 = vrsqrt.pop %v1289
      %v1292 = vmul.f32 %v1276, %v1290
      %v1293 = vmul.f32 %v1277, %v1291
      %v1295 = vlaneseq
      %v1296 = vshrl.u32 %v1295, 7
      %v1297 = vsub.s32 0, %v1296
      %v1298 = vrot.slane %v1265, %v1297
      %v1300 = vmul.f32 %v1292, %v1298
      %v1301 = vmul.f32 %v1293, %v1298
      %v1303 = vlaneseq
      %v1304 = vshrl.u32 %v1303, 7
      %v1305 = vsub.s32 0, %v1304
      %v1306 = vrot.slane %v1266, %v1305
      %v1308 = vadd.f32 %v1300, %v1306
      %v1309 = vadd.f32 %v1301, %v1306
      %v1310 = vld [vmem:[%s10] sm:$0xff]
      %v1311 = vld [vmem:[%s10 + $0x8] sm:$0xff]
      %v1312 = vld [vmem:[%s11] sm:$0x1]
      %v1314 = vlaneseq
      %v1315 = vshrl.u32 %v1314, 7
      %v1316 = vsub.s32 0, %v1315
      %v1317 = vrot.slane %v1312, %v1316
      %v1320 = vsel %vm874, %v1308, 0
      %v1323 = vsel %vm874, %v1309, 0
      %1325 = vmatprep.subr.mxu0 0.0
      %1326 = vmatpush1.msra.mxu0 %v1310
      %1327 = vmatprep.subr.mxu0 0.0
      %1328 = vmatpush1.msra.mxu0 %v1311
      %1329 = vmatprep.subr.mxu0 0.0
      %1330 = vmatpush1.msra.mxu0 0.0
      %1331 = vmatprep.subr.mxu0 0.0
      %1332 = vmatpush1.msra.mxu0 0.0
      %1333 = vmatprep.subr.mxu0 0.0
      %1334 = vmatpush1.msra.mxu0 0.0
      %1335 = vmatprep.subr.mxu0 0.0
      %1336 = vmatpush1.msra.mxu0 0.0
      %1337 = vmatprep.subr.mxu0 0.0
      %1338 = vmatpush1.msra.mxu0 0.0
      %1339 = vmatprep.subr.mxu0 0.0
      %1340 = vmatpush1.msra.mxu0 0.0
      %1341 = vmatprep.subr.mxu0 0.0
      %1342 = vmatpush1.msra.mxu0 0.0
      %1343 = vmatprep.subr.mxu0 0.0
      %1344 = vmatpush1.msra.mxu0 0.0
      %1345 = vmatprep.subr.mxu0 0.0
      %1346 = vmatpush1.msra.mxu0 0.0
      %1347 = vmatprep.subr.mxu0 0.0
      %1348 = vmatpush1.msra.mxu0 0.0
      %1349 = vmatprep.subr.mxu0 0.0
      %1350 = vmatpush1.msra.mxu0 0.0
      %1351 = vmatprep.subr.mxu0 0.0
      %1352 = vmatpush1.msra.mxu0 0.0
      %1353 = vmatprep.subr.mxu0 0.0
      %1354 = vmatpush1.msra.mxu0 0.0
      %1355 = vmatprep.subr.mxu0 0.0
      %1356 = vmatpush1.msra.mxu0 0.0
      %1357 = vmatprep.subr.mxu0 0.0
      %1358 = vmatpush1.msra.mxu0 0.0
      %1359 = vmatprep.subr.mxu0 0.0
      %1360 = vmatpush1.msra.mxu0 0.0
      %1361 = vmatprep.subr.mxu0 0.0
      %1362 = vmatpush1.msra.mxu0 0.0
      %1363 = vmatprep.subr.mxu0 0.0
      %1364 = vmatpush1.msra.mxu0 0.0
      %1365 = vmatprep.subr.mxu0 0.0
      %1366 = vmatpush1.msra.mxu0 0.0
      %1367 = vmatprep.subr.mxu0 0.0
      %1368 = vmatpush1.msra.mxu0 0.0
      %1369 = vmatprep.subr.mxu0 0.0
      %1370 = vmatpush1.msra.mxu0 0.0
      %1371 = vmatprep.subr.mxu0 0.0
      %1372 = vmatpush1.msra.mxu0 0.0
      %1373 = vmatprep.subr.mxu0 0.0
      %1374 = vmatpush1.msra.mxu0 0.0
      %1375 = vmatprep.subr.mxu0 0.0
      %1376 = vmatpush1.msra.mxu0 0.0
      %1377 = vmatprep.subr.mxu0 0.0
      %1378 = vmatpush1.msra.mxu0 0.0
      %1379 = vmatprep.subr.mxu0 0.0
      %1380 = vmatpush1.msra.mxu0 0.0
      %1381 = vmatprep.subr.mxu0 0.0
      %1382 = vmatpush1.msra.mxu0 0.0
      %1383 = vmatprep.subr.mxu0 0.0
      %1384 = vmatpush1.msra.mxu0 0.0
      %1385 = vmatprep.subr.mxu0 0.0
      %1386 = vmatpush1.msra.mxu0 0.0
      %1387 = vmatprep.subr.mxu0 0.0
      %1388 = vmatpush1.msra.mxu0 0.0
      %1389 = vmatprep.mubr.f32.mxu0 0.0
      %1390 = vmatmul.mubr.f32.gmra.mrb[0].mxu0 %v1320
      %v1391 = vpop.f32.mrb[0].mxu0
      %v1392 = vadd.f32 %v1317, %v1391
      %v1393 = vpop.f32.mrb[0].mxu0
      %1394 = vmatprep.mubr.f32.mxu0 0.0
      %1395 = vmatmul.mubr.f32.gmra.mrb[0].mxu0 %v1323
      %v1396 = vpop.f32.mrb[0].mxu0
      %v1397 = vadd.f32 %v1317, %v1396
      %v1398 = vpop.f32.mrb[0].mxu0
      %1399 = vdwg.mxu0
      %v1400 = vld [vmem:[%s536] sm:$0xff]
      %v1401 = vld [vmem:[%s536 + $0x8] sm:$0xff]
      %1403 = vset.pattern.permute.xlu0 0
      %1404 = vperm.xlu0 %1403, %v1400
      %v1405 = vpop.permute.xlu0 %1404
      %1408 = vset.pattern.permute.xlu0 0
      %1409 = vperm.xlu0 %1408, %v1401
      %v1410 = vpop.permute.xlu0 %1409
      %v1412 = vmul.f32 %v1392, %v1405
      %v1413 = vmul.f32 %v1397, %v1410
      %v1414 = vrot.slane %v1412, 7
      %v1415 = vrot.slane %v1413, 7
      %v1416 = vlaneseq
      %v1417 = vshrl.u32 %v1416, 7
      %vm1418 = vcmp.lt.s32.totalorder %v1417, 1
      %v1419 = vsel %vm1418, %v1414, %v1415
      %v1420 = vsel %vm1418, %v1415, %v1414
      %v1421 = vrot.slane %v1412, 1
      %v1422 = vrot.slane %v1413, 1
      %vm1423 = vcmp.lt.s32.totalorder %v1417, 7
      %v1424 = vsel %vm1423, %v1421, %v1422
      %v1425 = vsel %vm1423, %v1422, %v1421
      %v1426 = vadd.s32 %v1417, 8
      %vm1427 = vcmp.eq.s32.totalorder %v1417, 0
      %vm1428 = vcmp.eq.s32.totalorder %v1426, 0
      %v1429 = vsel %vm1427, 1, 0
      %v1430 = vsel %vm1428, 1, 0
      %vm1431 = vcmp.eq.s32.totalorder %v1429, 1
      %vm1432 = vcmp.eq.s32.totalorder %v1430, 1
      %v1433 = vsel %vm1431, 0.0, %v1420
      %v1434 = vsel %vm1432, 0.0, %v1419
      %vm1435 = vcmp.eq.s32.totalorder %v1417, 15
      %vm1436 = vcmp.eq.s32.totalorder %v1426, 15
      %v1437 = vsel %vm1435, 1, 0
      %v1438 = vsel %vm1436, 1, 0
      %vm1439 = vcmp.eq.s32.totalorder %v1437, 1
      %vm1440 = vcmp.eq.s32.totalorder %v1438, 1
      %v1441 = vsel %vm1439, 0.0, %v1424
      %v1442 = vsel %vm1440, 0.0, %v1425
      %1445 = vrot.lane.b32.xlu0 %v1412, 32
      %v1446 = vpop.permute.xlu0 %1445
      %1447 = vrot.lane.b32.xlu0 %v1413, 32
      %v1448 = vpop.permute.xlu0 %1447
      %1453 = vrot.lane.b32.xlu0 %v1441, 64
      %v1454 = vpop.permute.xlu0 %1453
      %1455 = vrot.lane.b32.xlu0 %v1442, 64
      %v1456 = vpop.permute.xlu0 %1455
      %vm1459 = vcmask 261120
      %v1460 = vsel %vm1459, %v1433, %v1446
      %v1461 = vsel %vm1459, %v1434, %v1448
      %vm1462 = vcmask 523264
      %v1463 = vsel %vm1462, %v1460, %v1454
      %v1464 = vsel %vm1462, %v1461, %v1456
      %v1465 = vld [vmem:[%s12] sm:$0xff]
      %v1466 = vld [vmem:[%s12 + $0x8] sm:$0xff]
      %v1467 = vld [vmem:[%s12 + $0x10] sm:$0xff]
      %v1468 = vld [vmem:[%s12 + $0x18] sm:$0xff]
      %v1469 = vld [vmem:[%s12 + $0x20] sm:$0xff]
      %v1470 = vld [vmem:[%s12 + $0x28] sm:$0xff]
      %v1471 = vld [vmem:[%s12 + $0x30] sm:$0xff]
      %v1472 = vld [vmem:[%s12 + $0x38] sm:$0xff]
      %v1473 = vld [vmem:[%s12 + $0x40] sm:$0xff]
      %v1474 = vld [vmem:[%s12 + $0x48] sm:$0xff]
      %v1475 = vld [vmem:[%s12 + $0x50] sm:$0xff]
      %v1476 = vld [vmem:[%s12 + $0x58] sm:$0xff]
      %v1477 = vld [vmem:[%s13] sm:$0x1]
      %v1479 = vlaneseq
      %v1480 = vshrl.u32 %v1479, 7
      %v1481 = vsub.s32 0, %v1480
      %v1482 = vrot.slane %v1477, %v1481
      %vm1484 = vcmask 785408
      %v1486 = vsel %vm1484, %v1463, 0
      %v1489 = vsel %vm1484, %v1464, 0
      %1491 = vmatprep.subr.mxu0 0.0
      %1492 = vmatpush1.msra.mxu0 %v1465
      %1493 = vmatprep.subr.mxu0 0.0
      %1494 = vmatpush1.msra.mxu0 %v1466
      %1495 = vmatprep.subr.mxu0 0.0
      %1496 = vmatpush1.msra.mxu0 %v1467
      %1497 = vmatprep.subr.mxu0 0.0
      %1498 = vmatpush1.msra.mxu0 %v1468
      %1499 = vmatprep.subr.mxu0 0.0
      %1500 = vmatpush1.msra.mxu0 %v1469
      %1501 = vmatprep.subr.mxu0 0.0
      %1502 = vmatpush1.msra.mxu0 %v1470
      %1503 = vmatprep.subr.mxu0 0.0
      %1504 = vmatpush1.msra.mxu0 %v1471
      %1505 = vmatprep.subr.mxu0 0.0
      %1506 = vmatpush1.msra.mxu0 %v1472
      %1507 = vmatprep.subr.mxu0 0.0
      %1508 = vmatpush1.msra.mxu0 %v1473
      %1509 = vmatprep.subr.mxu0 0.0
      %1510 = vmatpush1.msra.mxu0 %v1474
      %1511 = vmatprep.subr.mxu0 0.0
      %1512 = vmatpush1.msra.mxu0 %v1475
      %1513 = vmatprep.subr.mxu0 0.0
      %1514 = vmatpush1.msra.mxu0 %v1476
      %1515 = vmatprep.subr.mxu0 0.0
      %1516 = vmatpush1.msra.mxu0 0.0
      %1517 = vmatprep.subr.mxu0 0.0
      %1518 = vmatpush1.msra.mxu0 0.0
      %1519 = vmatprep.subr.mxu0 0.0
      %1520 = vmatpush1.msra.mxu0 0.0
      %1521 = vmatprep.subr.mxu0 0.0
      %1522 = vmatpush1.msra.mxu0 0.0
      %1523 = vmatprep.subr.mxu0 0.0
      %1524 = vmatpush1.msra.mxu0 0.0
      %1525 = vmatprep.subr.mxu0 0.0
      %1526 = vmatpush1.msra.mxu0 0.0
      %1527 = vmatprep.subr.mxu0 0.0
      %1528 = vmatpush1.msra.mxu0 0.0
      %1529 = vmatprep.subr.mxu0 0.0
      %1530 = vmatpush1.msra.mxu0 0.0
      %1531 = vmatprep.subr.mxu0 0.0
      %1532 = vmatpush1.msra.mxu0 0.0
      %1533 = vmatprep.subr.mxu0 0.0
      %1534 = vmatpush1.msra.mxu0 0.0
      %1535 = vmatprep.subr.mxu0 0.0
      %1536 = vmatpush1.msra.mxu0 0.0
      %1537 = vmatprep.subr.mxu0 0.0
      %1538 = vmatpush1.msra.mxu0 0.0
      %1539 = vmatprep.subr.mxu0 0.0
      %1540 = vmatpush1.msra.mxu0 0.0
      %1541 = vmatprep.subr.mxu0 0.0
      %1542 = vmatpush1.msra.mxu0 0.0
      %1543 = vmatprep.subr.mxu0 0.0
      %1544 = vmatpush1.msra.mxu0 0.0
      %1545 = vmatprep.subr.mxu0 0.0
      %1546 = vmatpush1.msra.mxu0 0.0
      %1547 = vmatprep.subr.mxu0 0.0
      %1548 = vmatpush1.msra.mxu0 0.0
      %1549 = vmatprep.subr.mxu0 0.0
      %1550 = vmatpush1.msra.mxu0 0.0
      %1551 = vmatprep.subr.mxu0 0.0
      %1552 = vmatpush1.msra.mxu0 0.0
      %1553 = vmatprep.subr.mxu0 0.0
      %1554 = vmatpush1.msra.mxu0 0.0
      %1555 = vmatprep.mubr.f32.mxu0 0.0
      %1556 = vmatmul.mubr.f32.gmra.mrb[0].mxu0 %v1486
      %v1557 = vpop.f32.mrb[0].mxu0
      %v1558 = vadd.f32 %v1482, %v1557
      %v1559 = vpop.f32.mrb[0].mxu0
      %1560 = vmatprep.mubr.f32.mxu0 0.0
      %1561 = vmatmul.mubr.f32.gmra.mrb[0].mxu0 %v1489
      %v1562 = vpop.f32.mrb[0].mxu0
      %v1563 = vadd.f32 %v1482, %v1562
      %v1564 = vpop.f32.mrb[0].mxu0
      %1565 = vdwg.mxu0
      %v1566 = vmul.f32 %v1558, 0.5
      %v1567 = vmul.f32 %v1563, 0.5
      %v1568 = vmul.f32 %v1558, 0.70710677
      %v1569 = vmul.f32 %v1563, 0.70710677
      %v1570 = verf.f32.pop %v1568
      %v1571 = verf.f32.pop %v1569
      %v1572 = vadd.f32 %v1570, 1.0
      %v1573 = vadd.f32 %v1571, 1.0
      %v1574 = vmul.f32 %v1566, %v1572
      %v1575 = vmul.f32 %v1567, %v1573
      %v1576 = vadd.f32 %v1412, %v1574
      %v1577 = vadd.f32 %v1413, %v1575
      %v1578 = vld [vmem:[%s14] sm:$0x1]
      %v1579 = vld [vmem:[%s15] sm:$0x1]
      %v1580 = vsel %vm1459, %v1576, 0.0
      %1581 = vadd.xlane.f32.xlu0 %v1580
      %v1582 = vpop.xlane.xlu0 %1581
      %v1583 = vsel %vm1459, %v1577, 0.0
      %1584 = vadd.xlane.f32.xlu0 %v1583
      %v1585 = vpop.xlane.xlu0 %1584
      %v1586 = vrcp.pop 32.0
      %v1587 = vmul.f32 %v1582, %v1586
      %v1588 = vmul.f32 %v1585, %v1586
      %v1589 = vsub.f32 %v1576, %v1587
      %v1590 = vsub.f32 %v1577, %v1588
      %v1591 = vmul.f32 %v1589, %v1589
      %v1592 = vmul.f32 %v1590, %v1590
      %v1593 = vsel %vm1459, %v1591, 0.0
      %1594 = vadd.xlane.f32.xlu0 %v1593
      %v1595 = vpop.xlane.xlu0 %1594
      %v1596 = vsel %vm1459, %v1592, 0.0
      %1597 = vadd.xlane.f32.xlu0 %v1596
      %v1598 = vpop.xlane.xlu0 %1597
      %v1599 = vmul.f32 %v1595, %v1586
      %v1600 = vmul.f32 %v1598, %v1586
      %v1601 = vadd.f32 %v1599, 1e-05
      %v1602 = vadd.f32 %v1600, 1e-05
      %v1603 = vrsqrt.pop %v1601
      %v1604 = vrsqrt.pop %v1602
      %v1605 = vmul.f32 %v1589, %v1603
      %v1606 = vmul.f32 %v1590, %v1604
      %v1608 = vlaneseq
      %v1609 = vshrl.u32 %v1608, 7
      %v1610 = vsub.s32 0, %v1609
      %v1611 = vrot.slane %v1578, %v1610
      %v1613 = vmul.f32 %v1605, %v1611
      %v1614 = vmul.f32 %v1606, %v1611
      %v1616 = vlaneseq
      %v1617 = vshrl.u32 %v1616, 7
      %v1618 = vsub.s32 0, %v1617
      %v1619 = vrot.slane %v1579, %v1618
      %v1621 = vadd.f32 %v1613, %v1619
      %v1622 = vadd.f32 %v1614, %v1619
      %1623 = vst.msk [vmem:[%s541] sm:$0xff] %vm1459, %v1621
      %1624 = vst.msk [vmem:[%s541 + $0x8] sm:$0xff] %vm1459, %v1622
      %p1625 = scmp.lt.s32.totalorder %s27, 1
      %s1626 = scalar_select %p1625, %s27, 1
      %s1627 = smul.addr %s1626, 2
      %s1628 = smul.addr %s1627, 8
      %s1629 = scalar_lea.vmem %s16, %s1628
      // Predicated region
      $region85: #{hf_wav2vec2_for_ctc_forward.2} parent=83 // pred_check
        %p1630 = pneg %p391
      $region86: #{hf_wav2vec2_for_ctc_forward.2} parent=83 // pred_check_branch
        %1632 = sbr.rel (%p1630) target = $region88
      $region87: #{hf_wav2vec2_for_ctc_forward.2} parent=83 // pred_region
        _
      $region88: #{hf_wav2vec2_for_ctc_forward.2} parent=83 // pred_fallthru
        _
    $region84: #{hf_wav2vec2_for_ctc_forward.2} parent=5 // pred_fallthru
      _
    %p1633 = scmp.le.s32.totalorder 2, %s22
    // Predicated region
    $region89: #{hf_wav2vec2_for_ctc_forward.2} parent=5 // pred_check
      %p1634 = pneg %p1633
    $region90: #{hf_wav2vec2_for_ctc_forward.2} parent=5 // pred_check_branch
      %1636 = sbr.rel (%p1634) target = $region92
    $region91: #{hf_wav2vec2_for_ctc_forward.2} parent=5 // pred_region
      %s1637 = ssub.s32 %s22, 2
      // Predicated region
      $region93: #{hf_wav2vec2_for_ctc_forward.2} parent=91 // pred_check
        %p1638 = pneg %p397
      $region94: #{hf_wav2vec2_for_ctc_forward.2} parent=91 // pred_check_branch
        %1640 = sbr.rel (%p1638) target = $region96
      $region95: #{hf_wav2vec2_for_ctc_forward.2} parent=91 // pred_region
        %p1641 = scmp.lt.s32.totalorder %s28, 1
        %s1642 = scalar_select %p1641, %s28, 1
        %s1643 = smul.addr %s1642, 2
        %s1644 = smul.addr %s1643, 8
        %s1645 = scalar_lea.vmem %s16, %s1644
      $region96: #{hf_wav2vec2_for_ctc_forward.2} parent=91 // pred_fallthru
        _
    $region92: #{hf_wav2vec2_for_ctc_forward.2} parent=5 // pred_fallthru
      _
  $region6: #{hf_wav2vec2_for_ctc_forward.2} parent=0 // loop_footer
    %s26 = sadd.s32 1, %s22
  $region7: #{hf_wav2vec2_for_ctc_forward.2} parent=0 // loop_footer_branch
    %21 = sbr.rel target = $region3
  $region8: #{hf_wav2vec2_for_ctc_forward.2} parent=0 // loop_exit
    _

// kernel: hf_wav2vec2_for_ctc_forward.3
$region0: #{hf_wav2vec2_for_ctc_forward.3}
  #allocation0 [shape = 'u32[]', space=smem, size = 0x4, offset = 0x4, fixed_abs, tag = 'smem constant byte address 0x4 - core index']
  #allocation1 [shape = 'u32[144,128]{1,0:T(1,128)}', space=vmem, size = 0x12000, scoped, tag = 'internal scratch']
  #allocation2 [shape = 'f32[32,32]{1,0:T(8,128)}', space=vmem, size = 0x4000, scoped, tag = 'scratch operand']
  %s0 = inlined_call_operand.vmem [shape: f32[2,16,32], index: 0, kind: input, shape index: {}]
  %s1 = inlined_call_operand.vmem [shape: f32[2,1,16], index: 1, kind: input, shape index: {}]
  %s2 = inlined_call_operand.vmem [shape: bf16[2,4,32,8], index: 2, kind: input, shape index: {}]
  %s3 = inlined_call_operand.vmem [shape: bf16[2,4,32,8], index: 3, kind: input, shape index: {}]
  %s4 = inlined_call_operand.vmem [shape: bf16[2,4,32,8], index: 4, kind: input, shape index: {}]
  %s5 = inlined_call_operand.vmem [shape: f32[2,4,1,8], index: 5, kind: input, shape index: {}]
  %s6 = inlined_call_operand.vmem [shape: f32[2,4,1,8], index: 6, kind: input, shape index: {}]
  %s7 = inlined_call_operand.vmem [shape: f32[2,4,1,8], index: 7, kind: input, shape index: {}]
  %s8 = inlined_call_operand.vmem [shape: bf16[2,4,8,32], index: 8, kind: input, shape index: {}]
  %s9 = inlined_call_operand.vmem [shape: f32[2,1,32], index: 9, kind: input, shape index: {}]
  %s10 = inlined_call_operand.vmem [shape: f32[2,1,32], index: 10, kind: input, shape index: {}]
  %s11 = inlined_call_operand.vmem [shape: f32[2,1,32], index: 11, kind: input, shape index: {}]
  %s12 = inlined_call_operand.vmem [shape: bf16[2,32,128], index: 12, kind: input, shape index: {}]
  %s13 = inlined_call_operand.vmem [shape: f32[2,1,128], index: 13, kind: input, shape index: {}]
  %s14 = inlined_call_operand.vmem [shape: bf16[2,128,32], index: 14, kind: input, shape index: {}]
  %s15 = inlined_call_operand.vmem [shape: f32[2,1,32], index: 15, kind: input, shape index: {}]
  %s16 = inlined_call_operand.vmem [shape: f32[2,1,32], index: 16, kind: input, shape index: {}]
  %s17 = inlined_call_operand.vmem [shape: f32[2,1,32], index: 17, kind: input, shape index: {}]
  %s18 = inlined_call_operand.vmem [shape: bf16[32,128], index: 18, kind: input, shape index: {}]
  %s19 = inlined_call_operand.vmem [shape: f32[1,128], index: 19, kind: input, shape index: {}]
  %s20 = inlined_call_operand.hbm [shape: f32[2,16,32], index: 20, kind: output, shape index: {0}]
  %s21 = inlined_call_operand.hbm [shape: f32[2,16,128], index: 21, kind: output, shape index: {1}]
  %22 = xla_tuple %s20, %s21
  %s23 = sld [smem:[#allocation0]]
  $region129: #{hf_wav2vec2_for_ctc_forward.3} parent=0
    _
  %s25 = ssub.s32 1, %s23
  %s26 = scalar_select 0, %s25, %s23
  $region1: #{hf_wav2vec2_for_ctc_forward.3} parent=0
    #allocation3 [shape = 'u8[16384]{0}', space=vmem, size = 0x4000, scoped, tag = 'output window, operand 0, single buffered']
    #allocation4 [shape = 's32[2]{0}', space=sflag, size = 0x8, scoped, tag = 'scoped memory for hf_wav2vec2_for_ctc_forward.3']
    #allocation5 [shape = 'u8[16384]{0}', space=vmem, size = 0x4000, scoped, tag = 'output window, operand 1, single buffered']
    #allocation6 [shape = 's32[1]{0}', space=sflag, size = 0x4, scoped, tag = 'scoped memory for hf_wav2vec2_for_ctc_forward.3']
    %27 = vsyncpa [#allocation4], 0
    %28 = vsyncpa [#allocation6], 0
    loop: start=0, step=1, limit=4
    $region2: #{hf_wav2vec2_for_ctc_forward.3} parent=1 // loop_pre_header
      _
    $region3: #{hf_wav2vec2_for_ctc_forward.3} parent=1 // loop_header
      %s30 = sphi 0, %s34
      %p31 = scmp.ge.s32.totalorder %s30, 4
      %s37 = sphi 0, %s49
      %s38 = sphi 0, %s45
      %s39 = sphi 0, %s37
      %s40 = sphi 0, %s38
      %s41 = sphi 0, %s39
      %s42 = sphi 0, %s40
      %s52 = sphi 0, %s54
      %s55 = sphi 0, %s52
      %s56 = sphi 0, %s55
      %s72 = sphi 0, %s56
      %s78 = sphi 0, %s80
      %s81 = sphi 0, %s78
      %s82 = sphi 0, %s81
      %s98 = sphi 0, %s82
      %s104 = sphi 0, %s106
      %s107 = sphi 0, %s104
      %s108 = sphi 0, %s107
      %s124 = sphi 0, %s108
      %s130 = sphi 0, %s132
      %s133 = sphi 0, %s130
      %s134 = sphi 0, %s133
      %s150 = sphi 0, %s134
      %s156 = sphi 0, %s158
      %s159 = sphi 0, %s156
      %s160 = sphi 0, %s159
      %s176 = sphi 0, %s160
      %s182 = sphi 0, %s184
      %s185 = sphi 0, %s182
      %s186 = sphi 0, %s185
      %s202 = sphi 0, %s186
      %s208 = sphi 0, %s210
      %s211 = sphi 0, %s208
      %s212 = sphi 0, %s211
      %s228 = sphi 0, %s212
      %s234 = sphi 0, %s236
      %s237 = sphi 0, %s234
      %s238 = sphi 0, %s237
      %s254 = sphi 0, %s238
      %s260 = sphi 0, %s262
      %s263 = sphi 0, %s260
      %s264 = sphi 0, %s263
      %s280 = sphi 0, %s264
      %s286 = sphi 0, %s288
      %s289 = sphi 0, %s286
      %s290 = sphi 0, %s289
      %s306 = sphi 0, %s290
      %s312 = sphi 0, %s314
      %s315 = sphi 0, %s312
      %s316 = sphi 0, %s315
      %s332 = sphi 0, %s316
      %s338 = sphi 0, %s340
      %s341 = sphi 0, %s338
      %s342 = sphi 0, %s341
      %s358 = sphi 0, %s342
      %s364 = sphi 0, %s366
      %s367 = sphi 0, %s364
      %s368 = sphi 0, %s367
      %s384 = sphi 0, %s368
      %s390 = sphi 0, %s392
      %s393 = sphi 0, %s390
      %s394 = sphi 0, %s393
      %s410 = sphi 0, %s394
      %s416 = sphi 0, %s418
      %s419 = sphi 0, %s416
      %s420 = sphi 0, %s419
      %s436 = sphi 0, %s420
      %s442 = sphi 0, %s444
      %s445 = sphi 0, %s442
      %s446 = sphi 0, %s445
      %s462 = sphi 0, %s446
      %s468 = sphi 0, %s470
      %s471 = sphi 0, %s468
      %s472 = sphi 0, %s471
      %s488 = sphi 0, %s472
      %s494 = sphi 0, %s496
      %s497 = sphi 0, %s494
      %s498 = sphi 0, %s497
      %s514 = sphi 0, %s498
      %s518 = sphi 0, %s518
      %s520 = sphi 0, %s518
      %s521 = sphi 0, %s520
      %s535 = sphi 0, %s521
      %s539 = sphi 0, %s539
      %s541 = sphi 0, %s539
      %s542 = sphi 0, %s541
      %s556 = sphi 0, %s542
      %s562 = sphi 0, %s564
      %s565 = sphi 0, %s562
      %s566 = sphi 0, %s565
      %s582 = sphi 0, %s566
      %s588 = sphi 0, %s590
      %s591 = sphi 0, %s588
      %s592 = sphi 0, %s591
      %s608 = sphi 0, %s592
    $region4: #{hf_wav2vec2_for_ctc_forward.3} parent=1 // loop_header_branch
      %33 = sbr.rel (%p31) target = $region8
    $region5: #{hf_wav2vec2_for_ctc_forward.3} parent=1 // loop_body
      %s35 = ssub.s32 %s30, 1
      %s36 = ssub.s32 %s30, 2
      %s43 = sadd.s32 1, %s38
      %p44 = scmp.ge.s32.totalorder %s43, 2
      %s45 = scalar_select %p44, 0, %s43
      %s46 = sadd.s32 1, %s37
      %s47 = scalar_select %p44, %s46, %s37
      %p48 = scmp.ge.s32.totalorder %s47, 1
      %s49 = scalar_select %p48, 0, %s47
      %s50 = ssub.s32 %s37, %s49
      %p51 = scmp.eq.s32.totalorder %s50, 0
      %s53 = sadd.s32 %s52, 1
      %s54 = scalar_select %p51, %s52, %s53
      %p57 = pneg %p51
      %p58 = scmp.eq.s32.totalorder %s30, 1
      %p59 = por %p57, %p58
      %p60 = scmp.ne.s32.totalorder %s52, %s55
      %p61 = scmp.eq.s32.totalorder %s30, 0
      %p62 = por %p60, %p61
      %p63 = scmp.ne.s32.totalorder %s52, %s55
      %p64 = scmp.eq.s32.totalorder %s35, 1
      %p65 = por %p63, %p64
      %p66 = scmp.ne.s32.totalorder %s55, %s56
      %p67 = scmp.eq.s32.totalorder %s35, 0
      %p68 = por %p66, %p67
      %p69 = scmp.ne.s32.totalorder %s55, %s56
      %p70 = scmp.eq.s32.totalorder %s36, 1
      %p71 = por %p69, %p70
      %p73 = scmp.ne.s32.totalorder %s56, %s72
      %p74 = scmp.eq.s32.totalorder %s36, 0
      %p75 = por %p73, %p74
      %s76 = ssub.s32 %s37, %s49
      %p77 = scmp.eq.s32.totalorder %s76, 0
      %s79 = sadd.s32 %s78, 1
      %s80 = scalar_select %p77, %s78, %s79
      %p83 = pneg %p77
      %p84 = scmp.eq.s32.totalorder %s30, 1
      %p85 = por %p83, %p84
      %p86 = scmp.ne.s32.totalorder %s78, %s81
      %p87 = scmp.eq.s32.totalorder %s30, 0
      %p88 = por %p86, %p87
      %p89 = scmp.ne.s32.totalorder %s78, %s81
      %p90 = scmp.eq.s32.totalorder %s35, 1
      %p91 = por %p89, %p90
      %p92 = scmp.ne.s32.totalorder %s81, %s82
      %p93 = scmp.eq.s32.totalorder %s35, 0
      %p94 = por %p92, %p93
      %p95 = scmp.ne.s32.totalorder %s81, %s82
      %p96 = scmp.eq.s32.totalorder %s36, 1
      %p97 = por %p95, %p96
      %p99 = scmp.ne.s32.totalorder %s82, %s98
      %p100 = scmp.eq.s32.totalorder %s36, 0
      %p101 = por %p99, %p100
      %s102 = ssub.s32 %s38, %s45
      %p103 = scmp.eq.s32.totalorder %s102, 0
      %s105 = sadd.s32 %s104, 1
      %s106 = scalar_select %p103, %s104, %s105
      %p109 = pneg %p103
      %p110 = scmp.eq.s32.totalorder %s30, 1
      %p111 = por %p109, %p110
      %p112 = scmp.ne.s32.totalorder %s104, %s107
      %p113 = scmp.eq.s32.totalorder %s30, 0
      %p114 = por %p112, %p113
      %p115 = scmp.ne.s32.totalorder %s104, %s107
      %p116 = scmp.eq.s32.totalorder %s35, 1
      %p117 = por %p115, %p116
      %p118 = scmp.ne.s32.totalorder %s107, %s108
      %p119 = scmp.eq.s32.totalorder %s35, 0
      %p120 = por %p118, %p119
      %p121 = scmp.ne.s32.totalorder %s107, %s108
      %p122 = scmp.eq.s32.totalorder %s36, 1
      %p123 = por %p121, %p122
      %p125 = scmp.ne.s32.totalorder %s108, %s124
      %p126 = scmp.eq.s32.totalorder %s36, 0
      %p127 = por %p125, %p126
      %s128 = ssub.s32 %s38, %s45
      %p129 = scmp.eq.s32.totalorder %s128, 0
      %s131 = sadd.s32 %s130, 1
      %s132 = scalar_select %p129, %s130, %s131
      %p135 = pneg %p129
      %p136 = scmp.eq.s32.totalorder %s30, 1
      %p137 = por %p135, %p136
      %p138 = scmp.ne.s32.totalorder %s130, %s133
      %p139 = scmp.eq.s32.totalorder %s30, 0
      %p140 = por %p138, %p139
      %p141 = scmp.ne.s32.totalorder %s130, %s133
      %p142 = scmp.eq.s32.totalorder %s35, 1
      %p143 = por %p141, %p142
      %p144 = scmp.ne.s32.totalorder %s133, %s134
      %p145 = scmp.eq.s32.totalorder %s35, 0
      %p146 = por %p144, %p145
      %p147 = scmp.ne.s32.totalorder %s133, %s134
      %p148 = scmp.eq.s32.totalorder %s36, 1
      %p149 = por %p147, %p148
      %p151 = scmp.ne.s32.totalorder %s134, %s150
      %p152 = scmp.eq.s32.totalorder %s36, 0
      %p153 = por %p151, %p152
      %s154 = ssub.s32 %s38, %s45
      %p155 = scmp.eq.s32.totalorder %s154, 0
      %s157 = sadd.s32 %s156, 1
      %s158 = scalar_select %p155, %s156, %s157
      %p161 = pneg %p155
      %p162 = scmp.eq.s32.totalorder %s30, 1
      %p163 = por %p161, %p162
      %p164 = scmp.ne.s32.totalorder %s156, %s159
      %p165 = scmp.eq.s32.totalorder %s30, 0
      %p166 = por %p164, %p165
      %p167 = scmp.ne.s32.totalorder %s156, %s159
      %p168 = scmp.eq.s32.totalorder %s35, 1
      %p169 = por %p167, %p168
      %p170 = scmp.ne.s32.totalorder %s159, %s160
      %p171 = scmp.eq.s32.totalorder %s35, 0
      %p172 = por %p170, %p171
      %p173 = scmp.ne.s32.totalorder %s159, %s160
      %p174 = scmp.eq.s32.totalorder %s36, 1
      %p175 = por %p173, %p174
      %p177 = scmp.ne.s32.totalorder %s160, %s176
      %p178 = scmp.eq.s32.totalorder %s36, 0
      %p179 = por %p177, %p178
      %s180 = ssub.s32 %s38, %s45
      %p181 = scmp.eq.s32.totalorder %s180, 0
      %s183 = sadd.s32 %s182, 1
      %s184 = scalar_select %p181, %s182, %s183
      %p187 = pneg %p181
      %p188 = scmp.eq.s32.totalorder %s30, 1
      %p189 = por %p187, %p188
      %p190 = scmp.ne.s32.totalorder %s182, %s185
      %p191 = scmp.eq.s32.totalorder %s30, 0
      %p192 = por %p190, %p191
      %p193 = scmp.ne.s32.totalorder %s182, %s185
      %p194 = scmp.eq.s32.totalorder %s35, 1
      %p195 = por %p193, %p194
      %p196 = scmp.ne.s32.totalorder %s185, %s186
      %p197 = scmp.eq.s32.totalorder %s35, 0
      %p198 = por %p196, %p197
      %p199 = scmp.ne.s32.totalorder %s185, %s186
      %p200 = scmp.eq.s32.totalorder %s36, 1
      %p201 = por %p199, %p200
      %p203 = scmp.ne.s32.totalorder %s186, %s202
      %p204 = scmp.eq.s32.totalorder %s36, 0
      %p205 = por %p203, %p204
      %s206 = ssub.s32 %s38, %s45
      %p207 = scmp.eq.s32.totalorder %s206, 0
      %s209 = sadd.s32 %s208, 1
      %s210 = scalar_select %p207, %s208, %s209
      %p213 = pneg %p207
      %p214 = scmp.eq.s32.totalorder %s30, 1
      %p215 = por %p213, %p214
      %p216 = scmp.ne.s32.totalorder %s208, %s211
      %p217 = scmp.eq.s32.totalorder %s30, 0
      %p218 = por %p216, %p217
      %p219 = scmp.ne.s32.totalorder %s208, %s211
      %p220 = scmp.eq.s32.totalorder %s35, 1
      %p221 = por %p219, %p220
      %p222 = scmp.ne.s32.totalorder %s211, %s212
      %p223 = scmp.eq.s32.totalorder %s35, 0
      %p224 = por %p222, %p223
      %p225 = scmp.ne.s32.totalorder %s211, %s212
      %p226 = scmp.eq.s32.totalorder %s36, 1
      %p227 = por %p225, %p226
      %p229 = scmp.ne.s32.totalorder %s212, %s228
      %p230 = scmp.eq.s32.totalorder %s36, 0
      %p231 = por %p229, %p230
      %s232 = ssub.s32 %s38, %s45
      %p233 = scmp.eq.s32.totalorder %s232, 0
      %s235 = sadd.s32 %s234, 1
      %s236 = scalar_select %p233, %s234, %s235
      %p239 = pneg %p233
      %p240 = scmp.eq.s32.totalorder %s30, 1
      %p241 = por %p239, %p240
      %p242 = scmp.ne.s32.totalorder %s234, %s237
      %p243 = scmp.eq.s32.totalorder %s30, 0
      %p244 = por %p242, %p243
      %p245 = scmp.ne.s32.totalorder %s234, %s237
      %p246 = scmp.eq.s32.totalorder %s35, 1
      %p247 = por %p245, %p246
      %p248 = scmp.ne.s32.totalorder %s237, %s238
      %p249 = scmp.eq.s32.totalorder %s35, 0
      %p250 = por %p248, %p249
      %p251 = scmp.ne.s32.totalorder %s237, %s238
      %p252 = scmp.eq.s32.totalorder %s36, 1
      %p253 = por %p251, %p252
      %p255 = scmp.ne.s32.totalorder %s238, %s254
      %p256 = scmp.eq.s32.totalorder %s36, 0
      %p257 = por %p255, %p256
      %s258 = ssub.s32 %s38, %s45
      %p259 = scmp.eq.s32.totalorder %s258, 0
      %s261 = sadd.s32 %s260, 1
      %s262 = scalar_select %p259, %s260, %s261
      %p265 = pneg %p259
      %p266 = scmp.eq.s32.totalorder %s30, 1
      %p267 = por %p265, %p266
      %p268 = scmp.ne.s32.totalorder %s260, %s263
      %p269 = scmp.eq.s32.totalorder %s30, 0
      %p270 = por %p268, %p269
      %p271 = scmp.ne.s32.totalorder %s260, %s263
      %p272 = scmp.eq.s32.totalorder %s35, 1
      %p273 = por %p271, %p272
      %p274 = scmp.ne.s32.totalorder %s263, %s264
      %p275 = scmp.eq.s32.totalorder %s35, 0
      %p276 = por %p274, %p275
      %p277 = scmp.ne.s32.totalorder %s263, %s264
      %p278 = scmp.eq.s32.totalorder %s36, 1
      %p279 = por %p277, %p278
      %p281 = scmp.ne.s32.totalorder %s264, %s280
      %p282 = scmp.eq.s32.totalorder %s36, 0
      %p283 = por %p281, %p282
      %s284 = ssub.s32 %s38, %s45
      %p285 = scmp.eq.s32.totalorder %s284, 0
      %s287 = sadd.s32 %s286, 1
      %s288 = scalar_select %p285, %s286, %s287
      %p291 = pneg %p285
      %p292 = scmp.eq.s32.totalorder %s30, 1
      %p293 = por %p291, %p292
      %p294 = scmp.ne.s32.totalorder %s286, %s289
      %p295 = scmp.eq.s32.totalorder %s30, 0
      %p296 = por %p294, %p295
      %p297 = scmp.ne.s32.totalorder %s286, %s289
      %p298 = scmp.eq.s32.totalorder %s35, 1
      %p299 = por %p297, %p298
      %p300 = scmp.ne.s32.totalorder %s289, %s290
      %p301 = scmp.eq.s32.totalorder %s35, 0
      %p302 = por %p300, %p301
      %p303 = scmp.ne.s32.totalorder %s289, %s290
      %p304 = scmp.eq.s32.totalorder %s36, 1
      %p305 = por %p303, %p304
      %p307 = scmp.ne.s32.totalorder %s290, %s306
      %p308 = scmp.eq.s32.totalorder %s36, 0
      %p309 = por %p307, %p308
      %s310 = ssub.s32 %s38, %s45
      %p311 = scmp.eq.s32.totalorder %s310, 0
      %s313 = sadd.s32 %s312, 1
      %s314 = scalar_select %p311, %s312, %s313
      %p317 = pneg %p311
      %p318 = scmp.eq.s32.totalorder %s30, 1
      %p319 = por %p317, %p318
      %p320 = scmp.ne.s32.totalorder %s312, %s315
      %p321 = scmp.eq.s32.totalorder %s30, 0
      %p322 = por %p320, %p321
      %p323 = scmp.ne.s32.totalorder %s312, %s315
      %p324 = scmp.eq.s32.totalorder %s35, 1
      %p325 = por %p323, %p324
      %p326 = scmp.ne.s32.totalorder %s315, %s316
      %p327 = scmp.eq.s32.totalorder %s35, 0
      %p328 = por %p326, %p327
      %p329 = scmp.ne.s32.totalorder %s315, %s316
      %p330 = scmp.eq.s32.totalorder %s36, 1
      %p331 = por %p329, %p330
      %p333 = scmp.ne.s32.totalorder %s316, %s332
      %p334 = scmp.eq.s32.totalorder %s36, 0
      %p335 = por %p333, %p334
      %s336 = ssub.s32 %s38, %s45
      %p337 = scmp.eq.s32.totalorder %s336, 0
      %s339 = sadd.s32 %s338, 1
      %s340 = scalar_select %p337, %s338, %s339
      %p343 = pneg %p337
      %p344 = scmp.eq.s32.totalorder %s30, 1
      %p345 = por %p343, %p344
      %p346 = scmp.ne.s32.totalorder %s338, %s341
      %p347 = scmp.eq.s32.totalorder %s30, 0
      %p348 = por %p346, %p347
      %p349 = scmp.ne.s32.totalorder %s338, %s341
      %p350 = scmp.eq.s32.totalorder %s35, 1
      %p351 = por %p349, %p350
      %p352 = scmp.ne.s32.totalorder %s341, %s342
      %p353 = scmp.eq.s32.totalorder %s35, 0
      %p354 = por %p352, %p353
      %p355 = scmp.ne.s32.totalorder %s341, %s342
      %p356 = scmp.eq.s32.totalorder %s36, 1
      %p357 = por %p355, %p356
      %p359 = scmp.ne.s32.totalorder %s342, %s358
      %p360 = scmp.eq.s32.totalorder %s36, 0
      %p361 = por %p359, %p360
      %s362 = ssub.s32 %s38, %s45
      %p363 = scmp.eq.s32.totalorder %s362, 0
      %s365 = sadd.s32 %s364, 1
      %s366 = scalar_select %p363, %s364, %s365
      %p369 = pneg %p363
      %p370 = scmp.eq.s32.totalorder %s30, 1
      %p371 = por %p369, %p370
      %p372 = scmp.ne.s32.totalorder %s364, %s367
      %p373 = scmp.eq.s32.totalorder %s30, 0
      %p374 = por %p372, %p373
      %p375 = scmp.ne.s32.totalorder %s364, %s367
      %p376 = scmp.eq.s32.totalorder %s35, 1
      %p377 = por %p375, %p376
      %p378 = scmp.ne.s32.totalorder %s367, %s368
      %p379 = scmp.eq.s32.totalorder %s35, 0
      %p380 = por %p378, %p379
      %p381 = scmp.ne.s32.totalorder %s367, %s368
      %p382 = scmp.eq.s32.totalorder %s36, 1
      %p383 = por %p381, %p382
      %p385 = scmp.ne.s32.totalorder %s368, %s384
      %p386 = scmp.eq.s32.totalorder %s36, 0
      %p387 = por %p385, %p386
      %s388 = ssub.s32 %s38, %s45
      %p389 = scmp.eq.s32.totalorder %s388, 0
      %s391 = sadd.s32 %s390, 1
      %s392 = scalar_select %p389, %s390, %s391
      %p395 = pneg %p389
      %p396 = scmp.eq.s32.totalorder %s30, 1
      %p397 = por %p395, %p396
      %p398 = scmp.ne.s32.totalorder %s390, %s393
      %p399 = scmp.eq.s32.totalorder %s30, 0
      %p400 = por %p398, %p399
      %p401 = scmp.ne.s32.totalorder %s390, %s393
      %p402 = scmp.eq.s32.totalorder %s35, 1
      %p403 = por %p401, %p402
      %p404 = scmp.ne.s32.totalorder %s393, %s394
      %p405 = scmp.eq.s32.totalorder %s35, 0
      %p406 = por %p404, %p405
      %p407 = scmp.ne.s32.totalorder %s393, %s394
      %p408 = scmp.eq.s32.totalorder %s36, 1
      %p409 = por %p407, %p408
      %p411 = scmp.ne.s32.totalorder %s394, %s410
      %p412 = scmp.eq.s32.totalorder %s36, 0
      %p413 = por %p411, %p412
      %s414 = ssub.s32 %s38, %s45
      %p415 = scmp.eq.s32.totalorder %s414, 0
      %s417 = sadd.s32 %s416, 1
      %s418 = scalar_select %p415, %s416, %s417
      %p421 = pneg %p415
      %p422 = scmp.eq.s32.totalorder %s30, 1
      %p423 = por %p421, %p422
      %p424 = scmp.ne.s32.totalorder %s416, %s419
      %p425 = scmp.eq.s32.totalorder %s30, 0
      %p426 = por %p424, %p425
      %p427 = scmp.ne.s32.totalorder %s416, %s419
      %p428 = scmp.eq.s32.totalorder %s35, 1
      %p429 = por %p427, %p428
      %p430 = scmp.ne.s32.totalorder %s419, %s420
      %p431 = scmp.eq.s32.totalorder %s35, 0
      %p432 = por %p430, %p431
      %p433 = scmp.ne.s32.totalorder %s419, %s420
      %p434 = scmp.eq.s32.totalorder %s36, 1
      %p435 = por %p433, %p434
      %p437 = scmp.ne.s32.totalorder %s420, %s436
      %p438 = scmp.eq.s32.totalorder %s36, 0
      %p439 = por %p437, %p438
      %s440 = ssub.s32 %s38, %s45
      %p441 = scmp.eq.s32.totalorder %s440, 0
      %s443 = sadd.s32 %s442, 1
      %s444 = scalar_select %p441, %s442, %s443
      %p447 = pneg %p441
      %p448 = scmp.eq.s32.totalorder %s30, 1
      %p449 = por %p447, %p448
      %p450 = scmp.ne.s32.totalorder %s442, %s445
      %p451 = scmp.eq.s32.totalorder %s30, 0
      %p452 = por %p450, %p451
      %p453 = scmp.ne.s32.totalorder %s442, %s445
      %p454 = scmp.eq.s32.totalorder %s35, 1
      %p455 = por %p453, %p454
      %p456 = scmp.ne.s32.totalorder %s445, %s446
      %p457 = scmp.eq.s32.totalorder %s35, 0
      %p458 = por %p456, %p457
      %p459 = scmp.ne.s32.totalorder %s445, %s446
      %p460 = scmp.eq.s32.totalorder %s36, 1
      %p461 = por %p459, %p460
      %p463 = scmp.ne.s32.totalorder %s446, %s462
      %p464 = scmp.eq.s32.totalorder %s36, 0
      %p465 = por %p463, %p464
      %s466 = ssub.s32 %s38, %s45
      %p467 = scmp.eq.s32.totalorder %s466, 0
      %s469 = sadd.s32 %s468, 1
      %s470 = scalar_select %p467, %s468, %s469
      %p473 = pneg %p467
      %p474 = scmp.eq.s32.totalorder %s30, 1
      %p475 = por %p473, %p474
      %p476 = scmp.ne.s32.totalorder %s468, %s471
      %p477 = scmp.eq.s32.totalorder %s30, 0
      %p478 = por %p476, %p477
      %p479 = scmp.ne.s32.totalorder %s468, %s471
      %p480 = scmp.eq.s32.totalorder %s35, 1
      %p481 = por %p479, %p480
      %p482 = scmp.ne.s32.totalorder %s471, %s472
      %p483 = scmp.eq.s32.totalorder %s35, 0
      %p484 = por %p482, %p483
      %p485 = scmp.ne.s32.totalorder %s471, %s472
      %p486 = scmp.eq.s32.totalorder %s36, 1
      %p487 = por %p485, %p486
      %p489 = scmp.ne.s32.totalorder %s472, %s488
      %p490 = scmp.eq.s32.totalorder %s36, 0
      %p491 = por %p489, %p490
      %s492 = ssub.s32 %s38, %s45
      %p493 = scmp.eq.s32.totalorder %s492, 0
      %s495 = sadd.s32 %s494, 1
      %s496 = scalar_select %p493, %s494, %s495
      %p499 = pneg %p493
      %p500 = scmp.eq.s32.totalorder %s30, 1
      %p501 = por %p499, %p500
      %p502 = scmp.ne.s32.totalorder %s494, %s497
      %p503 = scmp.eq.s32.totalorder %s30, 0
      %p504 = por %p502, %p503
      %p505 = scmp.ne.s32.totalorder %s494, %s497
      %p506 = scmp.eq.s32.totalorder %s35, 1
      %p507 = por %p505, %p506
      %p508 = scmp.ne.s32.totalorder %s497, %s498
      %p509 = scmp.eq.s32.totalorder %s35, 0
      %p510 = por %p508, %p509
      %p511 = scmp.ne.s32.totalorder %s497, %s498
      %p512 = scmp.eq.s32.totalorder %s36, 1
      %p513 = por %p511, %p512
      %p515 = scmp.ne.s32.totalorder %s498, %s514
      %p516 = scmp.eq.s32.totalorder %s36, 0
      %p517 = por %p515, %p516
      %s519 = sadd.s32 %s518, 1
      %p522 = scmp.eq.s32.totalorder %s30, 1
      %p523 = scmp.ne.s32.totalorder %s518, %s520
      %p524 = scmp.eq.s32.totalorder %s30, 0
      %p525 = por %p523, %p524
      %p526 = scmp.ne.s32.totalorder %s518, %s520
      %p527 = scmp.eq.s32.totalorder %s35, 1
      %p528 = por %p526, %p527
      %p529 = scmp.ne.s32.totalorder %s520, %s521
      %p530 = scmp.eq.s32.totalorder %s35, 0
      %p531 = por %p529, %p530
      %p532 = scmp.ne.s32.totalorder %s520, %s521
      %p533 = scmp.eq.s32.totalorder %s36, 1
      %p534 = por %p532, %p533
      %p536 = scmp.ne.s32.totalorder %s521, %s535
      %p537 = scmp.eq.s32.totalorder %s36, 0
      %p538 = por %p536, %p537
      %s540 = sadd.s32 %s539, 1
      %p543 = scmp.eq.s32.totalorder %s30, 1
      %p544 = scmp.ne.s32.totalorder %s539, %s541
      %p545 = scmp.eq.s32.totalorder %s30, 0
      %p546 = por %p544, %p545
      %p547 = scmp.ne.s32.totalorder %s539, %s541
      %p548 = scmp.eq.s32.totalorder %s35, 1
      %p549 = por %p547, %p548
      %p550 = scmp.ne.s32.totalorder %s541, %s542
      %p551 = scmp.eq.s32.totalorder %s35, 0
      %p552 = por %p550, %p551
      %p553 = scmp.ne.s32.totalorder %s541, %s542
      %p554 = scmp.eq.s32.totalorder %s36, 1
      %p555 = por %p553, %p554
      %p557 = scmp.ne.s32.totalorder %s542, %s556
      %p558 = scmp.eq.s32.totalorder %s36, 0
      %p559 = por %p557, %p558
      %s560 = ssub.s32 %s37, %s49
      %p561 = scmp.eq.s32.totalorder %s560, 0
      %s563 = sadd.s32 %s562, 1
      %s564 = scalar_select %p561, %s562, %s563
      %p567 = pneg %p561
      %p568 = scmp.eq.s32.totalorder %s30, 1
      %p569 = por %p567, %p568
      %p570 = scmp.ne.s32.totalorder %s562, %s565
      %p571 = scmp.eq.s32.totalorder %s30, 0
      %p572 = por %p570, %p571
      %p573 = scmp.ne.s32.totalorder %s562, %s565
      %p574 = scmp.eq.s32.totalorder %s35, 1
      %p575 = por %p573, %p574
      %p576 = scmp.ne.s32.totalorder %s565, %s566
      %p577 = scmp.eq.s32.totalorder %s35, 0
      %p578 = por %p576, %p577
      %p579 = scmp.ne.s32.totalorder %s565, %s566
      %p580 = scmp.eq.s32.totalorder %s36, 1
      %p581 = por %p579, %p580
      %p583 = scmp.ne.s32.totalorder %s566, %s582
      %p584 = scmp.eq.s32.totalorder %s36, 0
      %p585 = por %p583, %p584
      %s586 = ssub.s32 %s37, %s49
      %p587 = scmp.eq.s32.totalorder %s586, 0
      %s589 = sadd.s32 %s588, 1
      %s590 = scalar_select %p587, %s588, %s589
      %p593 = pneg %p587
      %p594 = scmp.eq.s32.totalorder %s30, 1
      %p595 = por %p593, %p594
      %p596 = scmp.ne.s32.totalorder %s588, %s591
      %p597 = scmp.eq.s32.totalorder %s30, 0
      %p598 = por %p596, %p597
      %p599 = scmp.ne.s32.totalorder %s588, %s591
      %p600 = scmp.eq.s32.totalorder %s35, 1
      %p601 = por %p599, %p600
      %p602 = scmp.ne.s32.totalorder %s591, %s592
      %p603 = scmp.eq.s32.totalorder %s35, 0
      %p604 = por %p602, %p603
      %p605 = scmp.ne.s32.totalorder %s591, %s592
      %p606 = scmp.eq.s32.totalorder %s36, 1
      %p607 = por %p605, %p606
      %p609 = scmp.ne.s32.totalorder %s592, %s608
      %p610 = scmp.eq.s32.totalorder %s36, 0
      %p611 = por %p609, %p610
      %p612 = scmp.le.s32.totalorder 1, %s30
      %p613 = scmp.lt.s32.totalorder %s30, 3
      %p614 = pnand %p612, %p613
      %p615 = pneg %p614
      // Predicated region
      $region9: #{hf_wav2vec2_for_ctc_forward.3} parent=5 // pred_check
        _
      $region10: #{hf_wav2vec2_for_ctc_forward.3} parent=5 // pred_check_branch
        %617 = sbr.rel (%p614) target = $region12
      $region11: #{hf_wav2vec2_for_ctc_forward.3} parent=5 // pred_region
        %s618 = ssub.s32 %s30, 1
        // Predicated region
        $region13: #{hf_wav2vec2_for_ctc_forward.3} parent=11 // pred_check
          %p619 = pneg %p68
        $region14: #{hf_wav2vec2_for_ctc_forward.3} parent=11 // pred_check_branch
          %621 = sbr.rel (%p619) target = $region16
        $region15: #{hf_wav2vec2_for_ctc_forward.3} parent=11 // pred_region
          %s622 = smul.u32 2, %s39
          %p623 = scmp.lt.s32.totalorder %s622, 1
          %s624 = scalar_select %p623, %s622, 1
          %s625 = smul.addr %s624, 2
          %s626 = smul.addr %s625, 8
          %s627 = scalar_lea.vmem %s0, %s626
          %s628 = smul.u32 2, %s39
        $region16: #{hf_wav2vec2_for_ctc_forward.3} parent=11 // pred_fallthru
          _
        // Predicated region
        $region17: #{hf_wav2vec2_for_ctc_forward.3} parent=11 // pred_check
          %p629 = pneg %p94
        $region18: #{hf_wav2vec2_for_ctc_forward.3} parent=11 // pred_check_branch
          %631 = sbr.rel (%p629) target = $region20
        $region19: #{hf_wav2vec2_for_ctc_forward.3} parent=11 // pred_region
          %s632 = smul.u32 2, %s39
          %p633 = scmp.lt.s32.totalorder %s632, 1
          %s634 = scalar_select %p633, %s632, 1
          %s635 = scalar_lea.vmem %s1, %s634
          %s636 = smul.u32 2, %s39
        $region20: #{hf_wav2vec2_for_ctc_forward.3} parent=11 // pred_fallthru
          _
        // Predicated region
        $region21: #{hf_wav2vec2_for_ctc_forward.3} parent=11 // pred_check
          %p637 = pneg %p531
        $region22: #{hf_wav2vec2_for_ctc_forward.3} parent=11 // pred_check_branch
          %639 = sbr.rel (%p637) target = $region24
        $region23: #{hf_wav2vec2_for_ctc_forward.3} parent=11 // pred_region
          _
        $region24: #{hf_wav2vec2_for_ctc_forward.3} parent=11 // pred_fallthru
          _
        // Predicated region
        $region25: #{hf_wav2vec2_for_ctc_forward.3} parent=11 // pred_check
          %p640 = pneg %p552
        $region26: #{hf_wav2vec2_for_ctc_forward.3} parent=11 // pred_check_branch
          %642 = sbr.rel (%p640) target = $region28
        $region27: #{hf_wav2vec2_for_ctc_forward.3} parent=11 // pred_region
          _
        $region28: #{hf_wav2vec2_for_ctc_forward.3} parent=11 // pred_fallthru
          _
      $region12: #{hf_wav2vec2_for_ctc_forward.3} parent=5 // pred_fallthru
        _
      %p643 = scmp.lt.s32.totalorder %s30, 2
      // Predicated region
      $region29: #{hf_wav2vec2_for_ctc_forward.3} parent=5 // pred_check
        %p644 = pneg %p643
      $region30: #{hf_wav2vec2_for_ctc_forward.3} parent=5 // pred_check_branch
        %646 = sbr.rel (%p644) target = $region32
      $region31: #{hf_wav2vec2_for_ctc_forward.3} parent=5 // pred_region
        // Predicated region
        $region33: #{hf_wav2vec2_for_ctc_forward.3} parent=31 // pred_check
          %p647 = pneg %p114
        $region34: #{hf_wav2vec2_for_ctc_forward.3} parent=31 // pred_check_branch
          %649 = sbr.rel (%p647) target = $region36
        $region35: #{hf_wav2vec2_for_ctc_forward.3} parent=31 // pred_region
          %p650 = scmp.lt.s32.totalorder %s38, 1
          %s651 = scalar_select %p650, %s38, 1
          %s652 = smul.addr %s651, 16
          %s653 = smul.addr %s652, 4
          %s654 = scalar_lea.vmem %s2, %s653
        $region36: #{hf_wav2vec2_for_ctc_forward.3} parent=31 // pred_fallthru
          _
        // Predicated region
        $region37: #{hf_wav2vec2_for_ctc_forward.3} parent=31 // pred_check
          %p655 = pneg %p140
        $region38: #{hf_wav2vec2_for_ctc_forward.3} parent=31 // pred_check_branch
          %657 = sbr.rel (%p655) target = $region40
        $region39: #{hf_wav2vec2_for_ctc_forward.3} parent=31 // pred_region
          %p658 = scmp.lt.s32.totalorder %s38, 1
          %s659 = scalar_select %p658, %s38, 1
          %s660 = smul.addr %s659, 16
          %s661 = smul.addr %s660, 4
          %s662 = scalar_lea.vmem %s3, %s661
        $region40: #{hf_wav2vec2_for_ctc_forward.3} parent=31 // pred_fallthru
          _
        // Predicated region
        $region41: #{hf_wav2vec2_for_ctc_forward.3} parent=31 // pred_check
          %p663 = pneg %p166
        $region42: #{hf_wav2vec2_for_ctc_forward.3} parent=31 // pred_check_branch
          %665 = sbr.rel (%p663) target = $region44
        $region43: #{hf_wav2vec2_for_ctc_forward.3} parent=31 // pred_region
          %p666 = scmp.lt.s32.totalorder %s38, 1
          %s667 = scalar_select %p666, %s38, 1
          %s668 = smul.addr %s667, 16
          %s669 = smul.addr %s668, 4
          %s670 = scalar_lea.vmem %s4, %s669
        $region44: #{hf_wav2vec2_for_ctc_forward.3} parent=31 // pred_fallthru
          _
        // Predicated region
        $region45: #{hf_wav2vec2_for_ctc_forward.3} parent=31 // pred_check
          %p671 = pneg %p192
        $region46: #{hf_wav2vec2_for_ctc_forward.3} parent=31 // pred_check_branch
          %673 = sbr.rel (%p671) target = $region48
        $region47: #{hf_wav2vec2_for_ctc_forward.3} parent=31 // pred_region
          %p674 = scmp.lt.s32.totalorder %s38, 1
          %s675 = scalar_select %p674, %s38, 1
          %s676 = smul.addr %s675, 4
          %s677 = scalar_lea.vmem %s5, %s676
        $region48: #{hf_wav2vec2_for_ctc_forward.3} parent=31 // pred_fallthru
          _
        // Predicated region
        $region49: #{hf_wav2vec2_for_ctc_forward.3} parent=31 // pred_check
          %p678 = pneg %p218
        $region50: #{hf_wav2vec2_for_ctc_forward.3} parent=31 // pred_check_branch
          %680 = sbr.rel (%p678) target = $region52
        $region51: #{hf_wav2vec2_for_ctc_forward.3} parent=31 // pred_region
          %p681 = scmp.lt.s32.totalorder %s38, 1
          %s682 = scalar_select %p681, %s38, 1
          %s683 = smul.addr %s682, 4
          %s684 = scalar_lea.vmem %s6, %s683
        $region52: #{hf_wav2vec2_for_ctc_forward.3} parent=31 // pred_fallthru
          _
        // Predicated region
        $region53: #{hf_wav2vec2_for_ctc_forward.3} parent=31 // pred_check
          %p685 = pneg %p244
        $region54: #{hf_wav2vec2_for_ctc_forward.3} parent=31 // pred_check_branch
          %687 = sbr.rel (%p685) target = $region56
        $region55: #{hf_wav2vec2_for_ctc_forward.3} parent=31 // pred_region
          %p688 = scmp.lt.s32.totalorder %s38, 1
          %s689 = scalar_select %p688, %s38, 1
          %s690 = smul.addr %s689, 4
          %s691 = scalar_lea.vmem %s7, %s690
        $region56: #{hf_wav2vec2_for_ctc_forward.3} parent=31 // pred_fallthru
          _
        // Predicated region
        $region57: #{hf_wav2vec2_for_ctc_forward.3} parent=31 // pred_check
          %p692 = pneg %p270
        $region58: #{hf_wav2vec2_for_ctc_forward.3} parent=31 // pred_check_branch
          %694 = sbr.rel (%p692) target = $region60
        $region59: #{hf_wav2vec2_for_ctc_forward.3} parent=31 // pred_region
          %p695 = scmp.lt.s32.totalorder %s38, 1
          %s696 = scalar_select %p695, %s38, 1
          %s697 = smul.addr %s696, 4
          %s698 = smul.addr %s697, 4
          %s699 = scalar_lea.vmem %s8, %s698
        $region60: #{hf_wav2vec2_for_ctc_forward.3} parent=31 // pred_fallthru
          _
        // Predicated region
        $region61: #{hf_wav2vec2_for_ctc_forward.3} parent=31 // pred_check
          %p700 = pneg %p296
        $region62: #{hf_wav2vec2_for_ctc_forward.3} parent=31 // pred_check_branch
          %702 = sbr.rel (%p700) target = $region64
        $region63: #{hf_wav2vec2_for_ctc_forward.3} parent=31 // pred_region
          %p703 = scmp.lt.s32.totalorder %s38, 1
          %s704 = scalar_select %p703, %s38, 1
          %s705 = scalar_lea.vmem %s9, %s704
        $region64: #{hf_wav2vec2_for_ctc_forward.3} parent=31 // pred_fallthru
          _
        // Predicated region
        $region65: #{hf_wav2vec2_for_ctc_forward.3} parent=31 // pred_check
          %p706 = pneg %p322
        $region66: #{hf_wav2vec2_for_ctc_forward.3} parent=31 // pred_check_branch
          %708 = sbr.rel (%p706) target = $region68
        $region67: #{hf_wav2vec2_for_ctc_forward.3} parent=31 // pred_region
          %p709 = scmp.lt.s32.totalorder %s38, 1
          %s710 = scalar_select %p709, %s38, 1
          %s711 = scalar_lea.vmem %s10, %s710
        $region68: #{hf_wav2vec2_for_ctc_forward.3} parent=31 // pred_fallthru
          _
        // Predicated region
        $region69: #{hf_wav2vec2_for_ctc_forward.3} parent=31 // pred_check
          %p712 = pneg %p348
        $region70: #{hf_wav2vec2_for_ctc_forward.3} parent=31 // pred_check_branch
          %714 = sbr.rel (%p712) target = $region72
        $region71: #{hf_wav2vec2_for_ctc_forward.3} parent=31 // pred_region
          %p715 = scmp.lt.s32.totalorder %s38, 1
          %s716 = scalar_select %p715, %s38, 1
          %s717 = scalar_lea.vmem %s11, %s716
        $region72: #{hf_wav2vec2_for_ctc_forward.3} parent=31 // pred_fallthru
          _
        // Predicated region
        $region73: #{hf_wav2vec2_for_ctc_forward.3} parent=31 // pred_check
          %p718 = pneg %p374
        $region74: #{hf_wav2vec2_for_ctc_forward.3} parent=31 // pred_check_branch
          %720 = sbr.rel (%p718) target = $region76
        $region75: #{hf_wav2vec2_for_ctc_forward.3} parent=31 // pred_region
          %p721 = scmp.lt.s32.totalorder %s38, 1
          %s722 = scalar_select %p721, %s38, 1
          %s723 = smul.addr %s722, 4
          %s724 = smul.addr %s723, 4
          %s725 = scalar_lea.vmem %s12, %s724
        $region76: #{hf_wav2vec2_for_ctc_forward.3} parent=31 // pred_fallthru
          _
        // Predicated region
        $region77: #{hf_wav2vec2_for_ctc_forward.3} parent=31 // pred_check
          %p726 = pneg %p400
        $region78: #{hf_wav2vec2_for_ctc_forward.3} parent=31 // pred_check_branch
          %728 = sbr.rel (%p726) target = $region80
        $region79: #{hf_wav2vec2_for_ctc_forward.3} parent=31 // pred_region
          %p729 = scmp.lt.s32.totalorder %s38, 1
          %s730 = scalar_select %p729, %s38, 1
          %s731 = scalar_lea.vmem %s13, %s730
        $region80: #{hf_wav2vec2_for_ctc_forward.3} parent=31 // pred_fallthru
          _
        // Predicated region
        $region81: #{hf_wav2vec2_for_ctc_forward.3} parent=31 // pred_check
          %p732 = pneg %p426
        $region82: #{hf_wav2vec2_for_ctc_forward.3} parent=31 // pred_check_branch
          %734 = sbr.rel (%p732) target = $region84
        $region83: #{hf_wav2vec2_for_ctc_forward.3} parent=31 // pred_region
          %p735 = scmp.lt.s32.totalorder %s38, 1
          %s736 = scalar_select %p735, %s38, 1
          %s737 = smul.addr %s736, 16
          %s738 = smul.addr %s737, 4
          %s739 = scalar_lea.vmem %s14, %s738
        $region84: #{hf_wav2vec2_for_ctc_forward.3} parent=31 // pred_fallthru
          _
        // Predicated region
        $region85: #{hf_wav2vec2_for_ctc_forward.3} parent=31 // pred_check
          %p740 = pneg %p452
        $region86: #{hf_wav2vec2_for_ctc_forward.3} parent=31 // pred_check_branch
          %742 = sbr.rel (%p740) target = $region88
        $region87: #{hf_wav2vec2_for_ctc_forward.3} parent=31 // pred_region
          %p743 = scmp.lt.s32.totalorder %s38, 1
          %s744 = scalar_select %p743, %s38, 1
          %s745 = scalar_lea.vmem %s15, %s744
        $region88: #{hf_wav2vec2_for_ctc_forward.3} parent=31 // pred_fallthru
          _
        // Predicated region
        $region89: #{hf_wav2vec2_for_ctc_forward.3} parent=31 // pred_check
          %p746 = pneg %p478
        $region90: #{hf_wav2vec2_for_ctc_forward.3} parent=31 // pred_check_branch
          %748 = sbr.rel (%p746) target = $region92
        $region91: #{hf_wav2vec2_for_ctc_forward.3} parent=31 // pred_region
          %p749 = scmp.lt.s32.totalorder %s38, 1
          %s750 = scalar_select %p749, %s38, 1
          %s751 = scalar_lea.vmem %s16, %s750
        $region92: #{hf_wav2vec2_for_ctc_forward.3} parent=31 // pred_fallthru
          _
        // Predicated region
        $region93: #{hf_wav2vec2_for_ctc_forward.3} parent=31 // pred_check
          %p752 = pneg %p504
        $region94: #{hf_wav2vec2_for_ctc_forward.3} parent=31 // pred_check_branch
          %754 = sbr.rel (%p752) target = $region96
        $region95: #{hf_wav2vec2_for_ctc_forward.3} parent=31 // pred_region
          %p755 = scmp.lt.s32.totalorder %s38, 1
          %s756 = scalar_select %p755, %s38, 1
          %s757 = scalar_lea.vmem %s17, %s756
        $region96: #{hf_wav2vec2_for_ctc_forward.3} parent=31 // pred_fallthru
          _
      $region32: #{hf_wav2vec2_for_ctc_forward.3} parent=5 // pred_fallthru
        _
      %p758 = scmp.le.s32.totalorder 1, %s30
      %p759 = scmp.lt.s32.totalorder %s30, 3
      %p760 = pnand %p758, %p759
      %p761 = pneg %p760
      // Predicated region
      $region97: #{hf_wav2vec2_for_ctc_forward.3} parent=5 // pred_check
        _
      $region98: #{hf_wav2vec2_for_ctc_forward.3} parent=5 // pred_check_branch
        %763 = sbr.rel (%p760) target = $region100
      $region99: #{hf_wav2vec2_for_ctc_forward.3} parent=5 // pred_region
        %s764 = ssub.s32 %s30, 1
        %s765 = smul.u32 2, %s39
        %p766 = scmp.lt.s32.totalorder %s765, 1
        %s767 = scalar_select %p766, %s765, 1
        %s768 = smul.addr %s767, 2
        %s769 = smul.addr %s768, 8
        %s770 = scalar_lea.vmem %s0, %s769
        %p771 = pneg %p68
        %p772 = pneg %p65
        %s773 = smul.u32 2, %s39
        %p774 = scmp.lt.s32.totalorder %s773, 1
        %s775 = scalar_select %p774, %s773, 1
        %s776 = scalar_lea.vmem %s1, %s775
        %p777 = pneg %p94
        %p778 = pneg %p91
        %p779 = scmp.lt.s32.totalorder %s40, 1
        %s780 = scalar_select %p779, %s40, 1
        %s781 = smul.addr %s780, 16
        %s782 = smul.addr %s781, 4
        %s783 = scalar_lea.vmem %s2, %s782
        %p784 = pneg %p120
        %p785 = pneg %p117
        %p786 = scmp.lt.s32.totalorder %s40, 1
        %s787 = scalar_select %p786, %s40, 1
        %s788 = smul.addr %s787, 16
        %s789 = smul.addr %s788, 4
        %s790 = scalar_lea.vmem %s3, %s789
        %p791 = pneg %p146
        %p792 = pneg %p143
        %p793 = scmp.lt.s32.totalorder %s40, 1
        %s794 = scalar_select %p793, %s40, 1
        %s795 = smul.addr %s794, 16
        %s796 = smul.addr %s795, 4
        %s797 = scalar_lea.vmem %s4, %s796
        %p798 = pneg %p172
        %p799 = pneg %p169
        %p800 = scmp.lt.s32.totalorder %s40, 1
        %s801 = scalar_select %p800, %s40, 1
        %s802 = smul.addr %s801, 4
        %s803 = scalar_lea.vmem %s5, %s802
        %p804 = pneg %p198
        %p805 = pneg %p195
        %p806 = scmp.lt.s32.totalorder %s40, 1
        %s807 = scalar_select %p806, %s40, 1
        %s808 = smul.addr %s807, 4
        %s809 = scalar_lea.vmem %s6, %s808
        %p810 = pneg %p224
        %p811 = pneg %p221
        %p812 = scmp.lt.s32.totalorder %s40, 1
        %s813 = scalar_select %p812, %s40, 1
        %s814 = smul.addr %s813, 4
        %s815 = scalar_lea.vmem %s7, %s814
        %p816 = pneg %p250
        %p817 = pneg %p247
        %p818 = scmp.lt.s32.totalorder %s40, 1
        %s819 = scalar_select %p818, %s40, 1
        %s820 = smul.addr %s819, 4
        %s821 = smul.addr %s820, 4
        %s822 = scalar_lea.vmem %s8, %s821
        %p823 = pneg %p276
        %p824 = pneg %p273
        %p825 = scmp.lt.s32.totalorder %s40, 1
        %s826 = scalar_select %p825, %s40, 1
        %s827 = scalar_lea.vmem %s9, %s826
        %p828 = pneg %p302
        %p829 = pneg %p299
        %p830 = scmp.lt.s32.totalorder %s40, 1
        %s831 = scalar_select %p830, %s40, 1
        %s832 = scalar_lea.vmem %s10, %s831
        %p833 = pneg %p328
        %p834 = pneg %p325
        %p835 = scmp.lt.s32.totalorder %s40, 1
        %s836 = scalar_select %p835, %s40, 1
        %s837 = scalar_lea.vmem %s11, %s836
        %p838 = pneg %p354
        %p839 = pneg %p351
        %p840 = scmp.lt.s32.totalorder %s40, 1
        %s841 = scalar_select %p840, %s40, 1
        %s842 = smul.addr %s841, 4
        %s843 = smul.addr %s842, 4
        %s844 = scalar_lea.vmem %s12, %s843
        %p845 = pneg %p380
        %p846 = pneg %p377
        %p847 = scmp.lt.s32.totalorder %s40, 1
        %s848 = scalar_select %p847, %s40, 1
        %s849 = scalar_lea.vmem %s13, %s848
        %p850 = pneg %p406
        %p851 = pneg %p403
        %p852 = scmp.lt.s32.totalorder %s40, 1
        %s853 = scalar_select %p852, %s40, 1
        %s854 = smul.addr %s853, 16
        %s855 = smul.addr %s854, 4
        %s856 = scalar_lea.vmem %s14, %s855
        %p857 = pneg %p432
        %p858 = pneg %p429
        %p859 = scmp.lt.s32.totalorder %s40, 1
        %s860 = scalar_select %p859, %s40, 1
        %s861 = scalar_lea.vmem %s15, %s860
        %p862 = pneg %p458
        %p863 = pneg %p455
        %p864 = scmp.lt.s32.totalorder %s40, 1
        %s865 = scalar_select %p864, %s40, 1
        %s866 = scalar_lea.vmem %s16, %s865
        %p867 = pneg %p484
        %p868 = pneg %p481
        %p869 = scmp.lt.s32.totalorder %s40, 1
        %s870 = scalar_select %p869, %s40, 1
        %s871 = scalar_lea.vmem %s17, %s870
        %p872 = pneg %p510
        %p873 = pneg %p507
        %p874 = pneg %p531
        %p875 = pneg %p528
        %p876 = pneg %p552
        %p877 = pneg %p549
        %p878 = pneg %p578
        %p879 = pneg %p575
        %p880 = pneg %p604
        %p881 = pneg %p601
        %s882 = smul.u32 2, %s39
        %p883 = scmp.lt.s32.totalorder %s882, 1
        %s884 = scalar_select %p883, %s882, 1
        %s885 = smul.addr %s884, 2
        %s886 = smul.addr %s885, 8
        %s887 = scalar_lea.vmem %s0, %s886
        %s888 = smul.u32 2, %s39
        %s889 = smul.u32 2, %s39
        %p890 = scmp.lt.s32.totalorder %s889, 1
        %s891 = scalar_select %p890, %s889, 1
        %s892 = scalar_lea.vmem %s1, %s891
        %s893 = smul.u32 2, %s39
        %p894 = scmp.lt.s32.totalorder %s40, 1
        %s895 = scalar_select %p894, %s40, 1
        %s896 = smul.addr %s895, 16
        %s897 = smul.addr %s896, 4
        %s898 = scalar_lea.vmem %s2, %s897
        %p899 = scmp.lt.s32.totalorder %s40, 1
        %s900 = scalar_select %p899, %s40, 1
        %s901 = smul.addr %s900, 16
        %s902 = smul.addr %s901, 4
        %s903 = scalar_lea.vmem %s3, %s902
        %p904 = scmp.lt.s32.totalorder %s40, 1
        %s905 = scalar_select %p904, %s40, 1
        %s906 = smul.addr %s905, 16
        %s907 = smul.addr %s906, 4
        %s908 = scalar_lea.vmem %s4, %s907
        %p909 = scmp.lt.s32.totalorder %s40, 1
        %s910 = scalar_select %p909, %s40, 1
        %s911 = smul.addr %s910, 4
        %s912 = scalar_lea.vmem %s5, %s911
        %p913 = scmp.lt.s32.totalorder %s40, 1
        %s914 = scalar_select %p913, %s40, 1
        %s915 = smul.addr %s914, 4
        %s916 = scalar_lea.vmem %s6, %s915
        %p917 = scmp.lt.s32.totalorder %s40, 1
        %s918 = scalar_select %p917, %s40, 1
        %s919 = smul.addr %s918, 4
        %s920 = scalar_lea.vmem %s7, %s919
        %p921 = scmp.lt.s32.totalorder %s40, 1
        %s922 = scalar_select %p921, %s40, 1
        %s923 = smul.addr %s922, 4
        %s924 = smul.addr %s923, 4
        %s925 = scalar_lea.vmem %s8, %s924
        %p926 = scmp.lt.s32.totalorder %s40, 1
        %s927 = scalar_select %p926, %s40, 1
        %s928 = scalar_lea.vmem %s9, %s927
        %p929 = scmp.lt.s32.totalorder %s40, 1
        %s930 = scalar_select %p929, %s40, 1
        %s931 = scalar_lea.vmem %s10, %s930
        %p932 = scmp.lt.s32.totalorder %s40, 1
        %s933 = scalar_select %p932, %s40, 1
        %s934 = scalar_lea.vmem %s11, %s933
        %p935 = scmp.lt.s32.totalorder %s40, 1
        %s936 = scalar_select %p935, %s40, 1
        %s937 = smul.addr %s936, 4
        %s938 = smul.addr %s937, 4
        %s939 = scalar_lea.vmem %s12, %s938
        %p940 = scmp.lt.s32.totalorder %s40, 1
        %s941 = scalar_select %p940, %s40, 1
        %s942 = scalar_lea.vmem %s13, %s941
        %p943 = scmp.lt.s32.totalorder %s40, 1
        %s944 = scalar_select %p943, %s40, 1
        %s945 = smul.addr %s944, 16
        %s946 = smul.addr %s945, 4
        %s947 = scalar_lea.vmem %s14, %s946
        %p948 = scmp.lt.s32.totalorder %s40, 1
        %s949 = scalar_select %p948, %s40, 1
        %s950 = scalar_lea.vmem %s15, %s949
        %p951 = scmp.lt.s32.totalorder %s40, 1
        %s952 = scalar_select %p951, %s40, 1
        %s953 = scalar_lea.vmem %s16, %s952
        %p954 = scmp.lt.s32.totalorder %s40, 1
        %s955 = scalar_select %p954, %s40, 1
        %s956 = scalar_lea.vmem %s17, %s955
        %s957 = smul.u32 2, %s39
        %s958 = smul.u32 2, %s39
        %p960 = scmp.eq.s32.totalorder %s40, 0
        // Predicated region
        $region101: #{hf_wav2vec2_for_ctc_forward.3} parent=99 // pred_check
          %p961 = pneg %p960
        $region102: #{hf_wav2vec2_for_ctc_forward.3} parent=99 // pred_check_branch
          %963 = sbr.rel (%p961) target = $region104
        $region103: #{hf_wav2vec2_for_ctc_forward.3} parent=99 // pred_region
          %v964 = vld [vmem:[%s887] sm:$0xff]
          %v965 = vld [vmem:[%s887 + $0x8] sm:$0xff]
          %v966 = vld [vmem:[%s887 + $0x10] sm:$0xff]
          %v967 = vld [vmem:[%s887 + $0x18] sm:$0xff]
          %vm968 = vcmask 261120
          %969 = vst.msk [vmem:[#allocation2] sm:$0xff] %vm968, %v964
          %970 = vst.msk [vmem:[#allocation2 + $0x8] sm:$0xff] %vm968, %v965
          %971 = vst.msk [vmem:[#allocation2 + $0x10] sm:$0xff] %vm968, %v966
          %972 = vst.msk [vmem:[#allocation2 + $0x18] sm:$0xff] %vm968, %v967
        $region104: #{hf_wav2vec2_for_ctc_forward.3} parent=99 // pred_fallthru
          _
        %v973 = vld [vmem:[#allocation2] sm:$0xff]
        %v974 = vld [vmem:[#allocation2 + $0x8] sm:$0xff]
        %v975 = vld [vmem:[#allocation2 + $0x10] sm:$0xff]
        %v976 = vld [vmem:[#allocation2 + $0x18] sm:$0xff]
        %v977 = vpack.c.bf16 %v974, %v973
        %v978 = vpack.c.bf16 %v976, %v975
        %v979 = vld [vmem:[%s892] sm:$0x1]
        %v980 = vld [vmem:[%s892 + $0x1] sm:$0x1]
        %vm981 = vcmp.gt.f32.partialorder %v979, 0.5
        %vm982 = vcmp.gt.f32.partialorder %v980, 0.5
        %v983 = vsel %vm981, 0.0, -1e+09
        %v984 = vsel %vm982, 0.0, -1e+09
        %v985 = vld [vmem:[%s898] sm:$0xf]
        %v986 = vld [vmem:[%s898 + $0x4] sm:$0xf]
        %v987 = vld [vmem:[%s898 + $0x8] sm:$0xf]
        %v988 = vld [vmem:[%s898 + $0xc] sm:$0xf]
        %v989 = vld [vmem:[%s912] sm:$0x1]
        %v991 = vlaneseq
        %v992 = vshrl.u32 %v991, 7
        %v993 = vsub.s32 0, %v992
        %v994 = vrot.slane %v989, %v993
        %v1000 = vunpack.c.l.b16 %v985
        %v1001 = vunpack.c.l.b16 %v986
        %v1002 = vunpack.c.l.b16 %v987
        %v1003 = vunpack.c.l.b16 %v988
        %v1004 = vpack.c.b16 %v1001, %v1000
        %v1005 = vpack.c.b16 %v1003, %v1002
        %vm1008 = vcmask 261120
        %v1010 = vsel %vm1008, %v977, 0
        %v1013 = vsel %vm1008, %v978, 0
        %1015 = vmatprep.subr.bf16.mxu0 0
        %1016 = vmatpush1.bf16.msra.mxu0 %v1004
        %1017 = vmatprep.subr.bf16.mxu0 0
        %1018 = vmatpush1.bf16.msra.mxu0 %v1005
        %1019 = vmatprep.subr.bf16.mxu0 0
        %1020 = vmatpush1.bf16.msra.mxu0 0
        %1021 = vmatprep.subr.bf16.mxu0 0
        %1022 = vmatpush1.bf16.msra.mxu0 0
        %1023 = vmatprep.subr.bf16.mxu0 0
        %1024 = vmatpush1.bf16.msra.mxu0 0
        %1025 = vmatprep.subr.bf16.mxu0 0
        %1026 = vmatpush1.bf16.msra.mxu0 0
        %1027 = vmatprep.subr.bf16.mxu0 0
        %1028 = vmatpush1.bf16.msra.mxu0 0
        %1029 = vmatprep.subr.bf16.mxu0 0
        %1030 = vmatpush1.bf16.msra.mxu0 0
        %1031 = vmatprep.subr.bf16.mxu0 0
        %1032 = vmatpush1.bf16.msra.mxu0 0
        %1033 = vmatprep.subr.bf16.mxu0 0
        %1034 = vmatpush1.bf16.msra.mxu0 0
        %1035 = vmatprep.subr.bf16.mxu0 0
        %1036 = vmatpush1.bf16.msra.mxu0 0
        %1037 = vmatprep.subr.bf16.mxu0 0
        %1038 = vmatpush1.bf16.msra.mxu0 0
        %1039 = vmatprep.subr.bf16.mxu0 0
        %1040 = vmatpush1.bf16.msra.mxu0 0
        %1041 = vmatprep.subr.bf16.mxu0 0
        %1042 = vmatpush1.bf16.msra.mxu0 0
        %1043 = vmatprep.subr.bf16.mxu0 0
        %1044 = vmatpush1.bf16.msra.mxu0 0
        %1045 = vmatprep.subr.bf16.mxu0 0
        %1046 = vmatpush1.bf16.msra.mxu0 0
        %1047 = vmatprep.mubr.bf16.mxu0 0
        %1048 = vmatmul.mubr.bf16.gmra.mrb[0].mxu0 %v1010
        %v1049 = vpop.f32.mrb[0].mxu0
        %v1050 = vadd.f32 %v994, %v1049
        %v1051 = vpop.f32.mrb[0].mxu0
        %v1052 = vpop.f32.mrb[0].mxu0
        %v1053 = vadd.f32 %v994, %v1052
        %v1054 = vpop.f32.mrb[0].mxu0
        %1055 = vmatprep.mubr.bf16.mxu0 0
        %1056 = vmatmul.mubr.bf16.gmra.mrb[0].mxu0 %v1013
        %v1057 = vpop.f32.mrb[0].mxu0
        %v1058 = vadd.f32 %v994, %v1057
        %v1059 = vpop.f32.mrb[0].mxu0
        %v1060 = vpop.f32.mrb[0].mxu0
        %v1061 = vadd.f32 %v994, %v1060
        %v1062 = vpop.f32.mrb[0].mxu0
        %1063 = vdwg.mxu0
        %v1064 = vld [vmem:[%s903] sm:$0xf]
        %v1065 = vld [vmem:[%s903 + $0x4] sm:$0xf]
        %v1066 = vld [vmem:[%s903 + $0x8] sm:$0xf]
        %v1067 = vld [vmem:[%s903 + $0xc] sm:$0xf]
        %v1068 = vld [vmem:[%s916] sm:$0x1]
        %v1070 = vlaneseq
        %v1071 = vshrl.u32 %v1070, 7
        %v1072 = vsub.s32 0, %v1071
        %v1073 = vrot.slane %v1068, %v1072
        %v1079 = vunpack.c.l.b16 %v1064
        %v1080 = vunpack.c.l.b16 %v1065
        %v1081 = vunpack.c.l.b16 %v1066
        %v1082 = vunpack.c.l.b16 %v1067
        %v1083 = vpack.c.b16 %v1080, %v1079
        %v1084 = vpack.c.b16 %v1082, %v1081
        %1087 = vmatprep.subr.bf16.mxu0 0
        %1088 = vmatpush1.bf16.msra.mxu0 %v1083
        %1089 = vmatprep.subr.bf16.mxu0 0
        %1090 = vmatpush1.bf16.msra.mxu0 %v1084
        %1091 = vmatprep.subr.bf16.mxu0 0
        %1092 = vmatpush1.bf16.msra.mxu0 0
        %1093 = vmatprep.subr.bf16.mxu0 0
        %1094 = vmatpush1.bf16.msra.mxu0 0
        %1095 = vmatprep.subr.bf16.mxu0 0
        %1096 = vmatpush1.bf16.msra.mxu0 0
        %1097 = vmatprep.subr.bf16.mxu0 0
        %1098 = vmatpush1.bf16.msra.mxu0 0
        %1099 = vmatprep.subr.bf16.mxu0 0
        %1100 = vmatpush1.bf16.msra.mxu0 0
        %1101 = vmatprep.subr.bf16.mxu0 0
        %1102 = vmatpush1.bf16.msra.mxu0 0
        %1103 = vmatprep.subr.bf16.mxu0 0
        %1104 = vmatpush1.bf16.msra.mxu0 0
        %1105 = vmatprep.subr.bf16.mxu0 0
        %1106 = vmatpush1.bf16.msra.mxu0 0
        %1107 = vmatprep.subr.bf16.mxu0 0
        %1108 = vmatpush1.bf16.msra.mxu0 0
        %1109 = vmatprep.subr.bf16.mxu0 0
        %1110 = vmatpush1.bf16.msra.mxu0 0
        %1111 = vmatprep.subr.bf16.mxu0 0
        %1112 = vmatpush1.bf16.msra.mxu0 0
        %1113 = vmatprep.subr.bf16.mxu0 0
        %1114 = vmatpush1.bf16.msra.mxu0 0
        %1115 = vmatprep.subr.bf16.mxu0 0
        %1116 = vmatpush1.bf16.msra.mxu0 0
        %1117 = vmatprep.subr.bf16.mxu0 0
        %1118 = vmatpush1.bf16.msra.mxu0 0
        %1119 = vmatprep.mubr.bf16.mxu0 0
        %1120 = vmatmul.mubr.bf16.gmra.mrb[0].mxu0 %v1010
        %v1121 = vpop.f32.mrb[0].mxu0
        %v1122 = vadd.f32 %v1073, %v1121
        %v1123 = vpop.f32.mrb[0].mxu0
        %v1124 = vpop.f32.mrb[0].mxu0
        %v1125 = vadd.f32 %v1073, %v1124
        %v1126 = vpop.f32.mrb[0].mxu0
        %1127 = vmatprep.mubr.bf16.mxu0 0
        %1128 = vmatmul.mubr.bf16.gmra.mrb[0].mxu0 %v1013
        %v1129 = vpop.f32.mrb[0].mxu0
        %v1130 = vadd.f32 %v1073, %v1129
        %v1131 = vpop.f32.mrb[0].mxu0
        %v1132 = vpop.f32.mrb[0].mxu0
        %v1133 = vadd.f32 %v1073, %v1132
        %v1134 = vpop.f32.mrb[0].mxu0
        %1135 = vdwg.mxu0
        %v1136 = vld [vmem:[%s908] sm:$0xf]
        %v1137 = vld [vmem:[%s908 + $0x4] sm:$0xf]
        %v1138 = vld [vmem:[%s908 + $0x8] sm:$0xf]
        %v1139 = vld [vmem:[%s908 + $0xc] sm:$0xf]
        %v1140 = vld [vmem:[%s920] sm:$0x1]
        %v1142 = vlaneseq
        %v1143 = vshrl.u32 %v1142, 7
        %v1144 = vsub.s32 0, %v1143
        %v1145 = vrot.slane %v1140, %v1144
        %v1151 = vunpack.c.l.b16 %v1136
        %v1152 = vunpack.c.l.b16 %v1137
        %v1153 = vunpack.c.l.b16 %v1138
        %v1154 = vunpack.c.l.b16 %v1139
        %v1155 = vpack.c.b16 %v1152, %v1151
        %v1156 = vpack.c.b16 %v1154, %v1153
        %1159 = vmatprep.subr.bf16.mxu0 0
        %1160 = vmatpush1.bf16.msra.mxu0 %v1155
        %1161 = vmatprep.subr.bf16.mxu0 0
        %1162 = vmatpush1.bf16.msra.mxu0 %v1156
        %1163 = vmatprep.subr.bf16.mxu0 0
        %1164 = vmatpush1.bf16.msra.mxu0 0
        %1165 = vmatprep.subr.bf16.mxu0 0
        %1166 = vmatpush1.bf16.msra.mxu0 0
        %1167 = vmatprep.subr.bf16.mxu0 0
        %1168 = vmatpush1.bf16.msra.mxu0 0
        %1169 = vmatprep.subr.bf16.mxu0 0
        %1170 = vmatpush1.bf16.msra.mxu0 0
        %1171 = vmatprep.subr.bf16.mxu0 0
        %1172 = vmatpush1.bf16.msra.mxu0 0
        %1173 = vmatprep.subr.bf16.mxu0 0
        %1174 = vmatpush1.bf16.msra.mxu0 0
        %1175 = vmatprep.subr.bf16.mxu0 0
        %1176 = vmatpush1.bf16.msra.mxu0 0
        %1177 = vmatprep.subr.bf16.mxu0 0
        %1178 = vmatpush1.bf16.msra.mxu0 0
        %1179 = vmatprep.subr.bf16.mxu0 0
        %1180 = vmatpush1.bf16.msra.mxu0 0
        %1181 = vmatprep.subr.bf16.mxu0 0
        %1182 = vmatpush1.bf16.msra.mxu0 0
        %1183 = vmatprep.subr.bf16.mxu0 0
        %1184 = vmatpush1.bf16.msra.mxu0 0
        %1185 = vmatprep.subr.bf16.mxu0 0
        %1186 = vmatpush1.bf16.msra.mxu0 0
        %1187 = vmatprep.subr.bf16.mxu0 0
        %1188 = vmatpush1.bf16.msra.mxu0 0
        %1189 = vmatprep.subr.bf16.mxu0 0
        %1190 = vmatpush1.bf16.msra.mxu0 0
        %1191 = vmatprep.mubr.bf16.mxu0 0
        %1192 = vmatmul.mubr.bf16.gmra.mrb[0].mxu0 %v1010
        %v1193 = vpop.f32.mrb[0].mxu0
        %v1194 = vadd.f32 %v1145, %v1193
        %v1195 = vpop.f32.mrb[0].mxu0
        %v1196 = vpop.f32.mrb[0].mxu0
        %v1197 = vadd.f32 %v1145, %v1196
        %v1198 = vpop.f32.mrb[0].mxu0
        %1199 = vmatprep.mubr.bf16.mxu0 0
        %1200 = vmatmul.mubr.bf16.gmra.mrb[0].mxu0 %v1013
        %v1201 = vpop.f32.mrb[0].mxu0
        %v1202 = vadd.f32 %v1145, %v1201
        %v1203 = vpop.f32.mrb[0].mxu0
        %v1204 = vpop.f32.mrb[0].mxu0
        %v1205 = vadd.f32 %v1145, %v1204
        %v1206 = vpop.f32.mrb[0].mxu0
        %1207 = vdwg.mxu0
        %vm1208 = vcmask 64512
        %v1210 = vsel %vm1208, %v1050, 0
        %v1213 = vsel %vm1208, %v1053, 0
        %v1216 = vsel %vm1208, %v1122, 0
        %v1219 = vsel %vm1208, %v1125, 0
        %1221 = vmatprep.subr.mxu0 0.0
        %1222 = vmatpush1.xpose.msra.mxu0 %v1216
        %1223 = vmatprep.subr.mxu0 0.0
        %1224 = vmatpush1.xpose.msra.mxu0 %v1219
        %1225 = vmatprep.subr.mxu0 0.0
        %1226 = vmatpush1.xpose.msra.mxu0 0.0
        %1227 = vmatprep.subr.mxu0 0.0
        %1228 = vmatpush1.xpose.msra.mxu0 0.0
        %1229 = vmatprep.subr.mxu0 0.0
        %1230 = vmatpush1.xpose.msra.mxu0 0.0
        %1231 = vmatprep.subr.mxu0 0.0
        %1232 = vmatpush1.xpose.msra.mxu0 0.0
        %1233 = vmatprep.subr.mxu0 0.0
        %1234 = vmatpush1.xpose.msra.mxu0 0.0
        %1235 = vmatprep.subr.mxu0 0.0
        %1236 = vmatpush1.xpose.msra.mxu0 0.0
        %1237 = vmatprep.subr.mxu0 0.0
        %1238 = vmatpush1.xpose.msra.mxu0 0.0
        %1239 = vmatprep.subr.mxu0 0.0
        %1240 = vmatpush1.xpose.msra.mxu0 0.0
        %1241 = vmatprep.subr.mxu0 0.0
        %1242 = vmatpush1.xpose.msra.mxu0 0.0
        %1243 = vmatprep.subr.mxu0 0.0
        %1244 = vmatpush1.xpose.msra.mxu0 0.0
        %1245 = vmatprep.subr.mxu0 0.0
        %1246 = vmatpush1.xpose.msra.mxu0 0.0
        %1247 = vmatprep.subr.mxu0 0.0
        %1248 = vmatpush1.xpose.msra.mxu0 0.0
        %1249 = vmatprep.subr.mxu0 0.0
        %1250 = vmatpush1.xpose.msra.mxu0 0.0
        %1251 = vmatprep.subr.mxu0 0.0
        %1252 = vmatpush1.xpose.msra.mxu0 0.0
        %1253 = vmatprep.subr.mxu0 0.0
        %1254 = vmatpush1.xpose.msra.mxu0 0.0
        %1255 = vmatprep.subr.mxu0 0.0
        %1256 = vmatpush1.xpose.msra.mxu0 0.0
        %1257 = vmatprep.subr.mxu0 0.0
        %1258 = vmatpush1.xpose.msra.mxu0 0.0
        %1259 = vmatprep.subr.mxu0 0.0
        %1260 = vmatpush1.xpose.msra.mxu0 0.0
        %1261 = vmatprep.subr.mxu0 0.0
        %1262 = vmatpush1.xpose.msra.mxu0 0.0
        %1263 = vmatprep.subr.mxu0 0.0
        %1264 = vmatpush1.xpose.msra.mxu0 0.0
        %1265 = vmatprep.subr.mxu0 0.0
        %1266 = vmatpush1.xpose.msra.mxu0 0.0
        %1267 = vmatprep.subr.mxu0 0.0
        %1268 = vmatpush1.xpose.msra.mxu0 0.0
        %1269 = vmatprep.subr.mxu0 0.0
        %1270 = vmatpush1.xpose.msra.mxu0 0.0
        %1271 = vmatprep.subr.mxu0 0.0
        %1272 = vmatpush1.xpose.msra.mxu0 0.0
        %1273 = vmatprep.subr.mxu0 0.0
        %1274 = vmatpush1.xpose.msra.mxu0 0.0
        %1275 = vmatprep.subr.mxu0 0.0
        %1276 = vmatpush1.xpose.msra.mxu0 0.0
        %1277 = vmatprep.subr.mxu0 0.0
        %1278 = vmatpush1.xpose.msra.mxu0 0.0
        %1279 = vmatprep.subr.mxu0 0.0
        %1280 = vmatpush1.xpose.msra.mxu0 0.0
        %1281 = vmatprep.subr.mxu0 0.0
        %1282 = vmatpush1.xpose.msra.mxu0 0.0
        %1283 = vmatprep.subr.mxu0 0.0
        %1284 = vmatpush1.xpose.msra.mxu0 0.0
        %1285 = vmatprep.mubr.f32.mxu0 0.0
        %1286 = vmatmul.mubr.f32.gmra.mrb[0].mxu0 %v1210
        %v1287 = vpop.f32.mrb[0].mxu0
        %v1288 = vadd.f32 0.0, %v1287
        %v1289 = vpop.f32.mrb[0].mxu0
        %1290 = vmatprep.mubr.f32.mxu0 0.0
        %1291 = vmatmul.mubr.f32.gmra.mrb[0].mxu0 %v1213
        %v1292 = vpop.f32.mrb[0].mxu0
        %v1293 = vadd.f32 0.0, %v1292
        %v1294 = vpop.f32.mrb[0].mxu0
        %1295 = vdwg.mxu0
        %v1297 = vsel %vm1208, %v1058, 0
        %v1300 = vsel %vm1208, %v1061, 0
        %v1303 = vsel %vm1208, %v1130, 0
        %v1306 = vsel %vm1208, %v1133, 0
        %1308 = vmatprep.subr.mxu0 0.0
        %1309 = vmatpush1.xpose.msra.mxu0 %v1303
        %1310 = vmatprep.subr.mxu0 0.0
        %1311 = vmatpush1.xpose.msra.mxu0 %v1306
        %1312 = vmatprep.subr.mxu0 0.0
        %1313 = vmatpush1.xpose.msra.mxu0 0.0
        %1314 = vmatprep.subr.mxu0 0.0
        %1315 = vmatpush1.xpose.msra.mxu0 0.0
        %1316 = vmatprep.subr.mxu0 0.0
        %1317 = vmatpush1.xpose.msra.mxu0 0.0
        %1318 = vmatprep.subr.mxu0 0.0
        %1319 = vmatpush1.xpose.msra.mxu0 0.0
        %1320 = vmatprep.subr.mxu0 0.0
        %1321 = vmatpush1.xpose.msra.mxu0 0.0
        %1322 = vmatprep.subr.mxu0 0.0
        %1323 = vmatpush1.xpose.msra.mxu0 0.0
        %1324 = vmatprep.subr.mxu0 0.0
        %1325 = vmatpush1.xpose.msra.mxu0 0.0
        %1326 = vmatprep.subr.mxu0 0.0
        %1327 = vmatpush1.xpose.msra.mxu0 0.0
        %1328 = vmatprep.subr.mxu0 0.0
        %1329 = vmatpush1.xpose.msra.mxu0 0.0
        %1330 = vmatprep.subr.mxu0 0.0
        %1331 = vmatpush1.xpose.msra.mxu0 0.0
        %1332 = vmatprep.subr.mxu0 0.0
        %1333 = vmatpush1.xpose.msra.mxu0 0.0
        %1334 = vmatprep.subr.mxu0 0.0
        %1335 = vmatpush1.xpose.msra.mxu0 0.0
        %1336 = vmatprep.subr.mxu0 0.0
        %1337 = vmatpush1.xpose.msra.mxu0 0.0
        %1338 = vmatprep.subr.mxu0 0.0
        %1339 = vmatpush1.xpose.msra.mxu0 0.0
        %1340 = vmatprep.subr.mxu0 0.0
        %1341 = vmatpush1.xpose.msra.mxu0 0.0
        %1342 = vmatprep.subr.mxu0 0.0
        %1343 = vmatpush1.xpose.msra.mxu0 0.0
        %1344 = vmatprep.subr.mxu0 0.0
        %1345 = vmatpush1.xpose.msra.mxu0 0.0
        %1346 = vmatprep.subr.mxu0 0.0
        %1347 = vmatpush1.xpose.msra.mxu0 0.0
        %1348 = vmatprep.subr.mxu0 0.0
        %1349 = vmatpush1.xpose.msra.mxu0 0.0
        %1350 = vmatprep.subr.mxu0 0.0
        %1351 = vmatpush1.xpose.msra.mxu0 0.0
        %1352 = vmatprep.subr.mxu0 0.0
        %1353 = vmatpush1.xpose.msra.mxu0 0.0
        %1354 = vmatprep.subr.mxu0 0.0
        %1355 = vmatpush1.xpose.msra.mxu0 0.0
        %1356 = vmatprep.subr.mxu0 0.0
        %1357 = vmatpush1.xpose.msra.mxu0 0.0
        %1358 = vmatprep.subr.mxu0 0.0
        %1359 = vmatpush1.xpose.msra.mxu0 0.0
        %1360 = vmatprep.subr.mxu0 0.0
        %1361 = vmatpush1.xpose.msra.mxu0 0.0
        %1362 = vmatprep.subr.mxu0 0.0
        %1363 = vmatpush1.xpose.msra.mxu0 0.0
        %1364 = vmatprep.subr.mxu0 0.0
        %1365 = vmatpush1.xpose.msra.mxu0 0.0
        %1366 = vmatprep.subr.mxu0 0.0
        %1367 = vmatpush1.xpose.msra.mxu0 0.0
        %1368 = vmatprep.subr.mxu0 0.0
        %1369 = vmatpush1.xpose.msra.mxu0 0.0
        %1370 = vmatprep.subr.mxu0 0.0
        %1371 = vmatpush1.xpose.msra.mxu0 0.0
        %1372 = vmatprep.mubr.f32.mxu0 0.0
        %1373 = vmatmul.mubr.f32.gmra.mrb[0].mxu0 %v1297
        %v1374 = vpop.f32.mrb[0].mxu0
        %v1375 = vadd.f32 0.0, %v1374
        %v1376 = vpop.f32.mrb[0].mxu0
        %1377 = vmatprep.mubr.f32.mxu0 0.0
        %1378 = vmatmul.mubr.f32.gmra.mrb[0].mxu0 %v1300
        %v1379 = vpop.f32.mrb[0].mxu0
        %v1380 = vadd.f32 0.0, %v1379
        %v1381 = vpop.f32.mrb[0].mxu0
        %1382 = vdwg.mxu0
        %v1383 = vmul.f32 %v1288, 0.35355338
        %v1384 = vmul.f32 %v1293, 0.35355338
        %v1385 = vmul.f32 %v1375, 0.35355338
        %v1386 = vmul.f32 %v1380, 0.35355338
        %v1389 = vlaneseq
        %v1390 = vshrl.u32 %v1389, 7
        %v1391 = vsub.s32 0, %v1390
        %v1392 = vrot.slane %v983, %v1391
        %v1393 = vlaneseq
        %v1394 = vshrl.u32 %v1393, 7
        %v1395 = vsub.s32 0, %v1394
        %v1396 = vrot.slane %v984, %v1395
        %v1399 = vadd.f32 %v1383, %v1392
        %v1400 = vadd.f32 %v1384, %v1392
        %v1401 = vadd.f32 %v1385, %v1396
        %v1402 = vadd.f32 %v1386, %v1396
        %vm1403 = vcmask 130048
        %v1404 = vsel %vm1403, %v1399, -inf
        %1405 = vmax.xlane.f32.xlu0 %v1404
        %v1406 = vpop.xlane.xlu0 %1405
        %v1407 = vsel %vm1403, %v1400, -inf
        %1408 = vmax.xlane.f32.xlu0 %v1407
        %v1409 = vpop.xlane.xlu0 %1408
        %v1410 = vsel %vm1403, %v1401, -inf
        %1411 = vmax.xlane.f32.xlu0 %v1410
        %v1412 = vpop.xlane.xlu0 %1411
        %v1413 = vsel %vm1403, %v1402, -inf
        %1414 = vmax.xlane.f32.xlu0 %v1413
        %v1415 = vpop.xlane.xlu0 %1414
        %v1416 = vsub.f32 %v1399, %v1406
        %v1417 = vsub.f32 %v1400, %v1409
        %v1418 = vsub.f32 %v1401, %v1412
        %v1419 = vsub.f32 %v1402, %v1415
        %v1420 = vmul.f32 %v1416, 1.442695
        %v1421 = vpow.pop %v1420
        %v1422 = vmul.f32 %v1417, 1.442695
        %v1423 = vpow.pop %v1422
        %v1424 = vmul.f32 %v1418, 1.442695
        %v1425 = vpow.pop %v1424
        %v1426 = vmul.f32 %v1419, 1.442695
        %v1427 = vpow.pop %v1426
        %v1428 = vsel %vm1403, %v1421, 0.0
        %1429 = vadd.xlane.f32.xlu0 %v1428
        %v1430 = vpop.xlane.xlu0 %1429
        %v1431 = vsel %vm1403, %v1423, 0.0
        %1432 = vadd.xlane.f32.xlu0 %v1431
        %v1433 = vpop.xlane.xlu0 %1432
        %v1434 = vsel %vm1403, %v1425, 0.0
        %1435 = vadd.xlane.f32.xlu0 %v1434
        %v1436 = vpop.xlane.xlu0 %1435
        %v1437 = vsel %vm1403, %v1427, 0.0
        %1438 = vadd.xlane.f32.xlu0 %v1437
        %v1439 = vpop.xlane.xlu0 %1438
        %v1440 = vrcp.pop %v1430
        %v1441 = vrcp.pop %v1433
        %v1442 = vrcp.pop %v1436
        %v1443 = vrcp.pop %v1439
        %v1444 = vmul.f32 %v1421, %v1440
        %v1445 = vmul.f32 %v1423, %v1441
        %v1446 = vmul.f32 %v1425, %v1442
        %v1447 = vmul.f32 %v1427, %v1443
        %v1449 = vsel %vm1403, %v1444, 0
        %v1452 = vsel %vm1403, %v1445, 0
        %1454 = vmatprep.subr.mxu0 0.0
        %1455 = vmatpush1.msra.mxu0 %v1194
        %1456 = vmatprep.subr.mxu0 0.0
        %1457 = vmatpush1.msra.mxu0 %v1197
        %1458 = vmatprep.subr.mxu0 0.0
        %1459 = vmatpush1.msra.mxu0 0.0
        %1460 = vmatprep.subr.mxu0 0.0
        %1461 = vmatpush1.msra.mxu0 0.0
        %1462 = vmatprep.subr.mxu0 0.0
        %1463 = vmatpush1.msra.mxu0 0.0
        %1464 = vmatprep.subr.mxu0 0.0
        %1465 = vmatpush1.msra.mxu0 0.0
        %1466 = vmatprep.subr.mxu0 0.0
        %1467 = vmatpush1.msra.mxu0 0.0
        %1468 = vmatprep.subr.mxu0 0.0
        %1469 = vmatpush1.msra.mxu0 0.0
        %1470 = vmatprep.subr.mxu0 0.0
        %1471 = vmatpush1.msra.mxu0 0.0
        %1472 = vmatprep.subr.mxu0 0.0
        %1473 = vmatpush1.msra.mxu0 0.0
        %1474 = vmatprep.subr.mxu0 0.0
        %1475 = vmatpush1.msra.mxu0 0.0
        %1476 = vmatprep.subr.mxu0 0.0
        %1477 = vmatpush1.msra.mxu0 0.0
        %1478 = vmatprep.subr.mxu0 0.0
        %1479 = vmatpush1.msra.mxu0 0.0
        %1480 = vmatprep.subr.mxu0 0.0
        %1481 = vmatpush1.msra.mxu0 0.0
        %1482 = vmatprep.subr.mxu0 0.0
        %1483 = vmatpush1.msra.mxu0 0.0
        %1484 = vmatprep.subr.mxu0 0.0
        %1485 = vmatpush1.msra.mxu0 0.0
        %1486 = vmatprep.subr.mxu0 0.0
        %1487 = vmatpush1.msra.mxu0 0.0
        %1488 = vmatprep.subr.mxu0 0.0
        %1489 = vmatpush1.msra.mxu0 0.0
        %1490 = vmatprep.subr.mxu0 0.0
        %1491 = vmatpush1.msra.mxu0 0.0
        %1492 = vmatprep.subr.mxu0 0.0
        %1493 = vmatpush1.msra.mxu0 0.0
        %1494 = vmatprep.subr.mxu0 0.0
        %1495 = vmatpush1.msra.mxu0 0.0
        %1496 = vmatprep.subr.mxu0 0.0
        %1497 = vmatpush1.msra.mxu0 0.0
        %1498 = vmatprep.subr.mxu0 0.0
        %1499 = vmatpush1.msra.mxu0 0.0
        %1500 = vmatprep.subr.mxu0 0.0
        %1501 = vmatpush1.msra.mxu0 0.0
        %1502 = vmatprep.subr.mxu0 0.0
        %1503 = vmatpush1.msra.mxu0 0.0
        %1504 = vmatprep.subr.mxu0 0.0
        %1505 = vmatpush1.msra.mxu0 0.0
        %1506 = vmatprep.subr.mxu0 0.0
        %1507 = vmatpush1.msra.mxu0 0.0
        %1508 = vmatprep.subr.mxu0 0.0
        %1509 = vmatpush1.msra.mxu0 0.0
        %1510 = vmatprep.subr.mxu0 0.0
        %1511 = vmatpush1.msra.mxu0 0.0
        %1512 = vmatprep.subr.mxu0 0.0
        %1513 = vmatpush1.msra.mxu0 0.0
        %1514 = vmatprep.subr.mxu0 0.0
        %1515 = vmatpush1.msra.mxu0 0.0
        %1516 = vmatprep.subr.mxu0 0.0
        %1517 = vmatpush1.msra.mxu0 0.0
        %1518 = vmatprep.mubr.f32.mxu0 0.0
        %1519 = vmatmul.mubr.f32.gmra.mrb[0].mxu0 %v1449
        %v1520 = vpop.f32.mrb[0].mxu0
        %v1521 = vadd.f32 0.0, %v1520
        %v1522 = vpop.f32.mrb[0].mxu0
        %1523 = vmatprep.mubr.f32.mxu0 0.0
        %1524 = vmatmul.mubr.f32.gmra.mrb[0].mxu0 %v1452
        %v1525 = vpop.f32.mrb[0].mxu0
        %v1526 = vadd.f32 0.0, %v1525
        %v1527 = vpop.f32.mrb[0].mxu0
        %1528 = vdwg.mxu0
        %v1530 = vsel %vm1403, %v1446, 0
        %v1533 = vsel %vm1403, %v1447, 0
        %1535 = vmatprep.subr.mxu0 0.0
        %1536 = vmatpush1.msra.mxu0 %v1202
        %1537 = vmatprep.subr.mxu0 0.0
        %1538 = vmatpush1.msra.mxu0 %v1205
        %1539 = vmatprep.subr.mxu0 0.0
        %1540 = vmatpush1.msra.mxu0 0.0
        %1541 = vmatprep.subr.mxu0 0.0
        %1542 = vmatpush1.msra.mxu0 0.0
        %1543 = vmatprep.subr.mxu0 0.0
        %1544 = vmatpush1.msra.mxu0 0.0
        %1545 = vmatprep.subr.mxu0 0.0
        %1546 = vmatpush1.msra.mxu0 0.0
        %1547 = vmatprep.subr.mxu0 0.0
        %1548 = vmatpush1.msra.mxu0 0.0
        %1549 = vmatprep.subr.mxu0 0.0
        %1550 = vmatpush1.msra.mxu0 0.0
        %1551 = vmatprep.subr.mxu0 0.0
        %1552 = vmatpush1.msra.mxu0 0.0
        %1553 = vmatprep.subr.mxu0 0.0
        %1554 = vmatpush1.msra.mxu0 0.0
        %1555 = vmatprep.subr.mxu0 0.0
        %1556 = vmatpush1.msra.mxu0 0.0
        %1557 = vmatprep.subr.mxu0 0.0
        %1558 = vmatpush1.msra.mxu0 0.0
        %1559 = vmatprep.subr.mxu0 0.0
        %1560 = vmatpush1.msra.mxu0 0.0
        %1561 = vmatprep.subr.mxu0 0.0
        %1562 = vmatpush1.msra.mxu0 0.0
        %1563 = vmatprep.subr.mxu0 0.0
        %1564 = vmatpush1.msra.mxu0 0.0
        %1565 = vmatprep.subr.mxu0 0.0
        %1566 = vmatpush1.msra.mxu0 0.0
        %1567 = vmatprep.subr.mxu0 0.0
        %1568 = vmatpush1.msra.mxu0 0.0
        %1569 = vmatprep.subr.mxu0 0.0
        %1570 = vmatpush1.msra.mxu0 0.0
        %1571 = vmatprep.subr.mxu0 0.0
        %1572 = vmatpush1.msra.mxu0 0.0
        %1573 = vmatprep.subr.mxu0 0.0
        %1574 = vmatpush1.msra.mxu0 0.0
        %1575 = vmatprep.subr.mxu0 0.0
        %1576 = vmatpush1.msra.mxu0 0.0
        %1577 = vmatprep.subr.mxu0 0.0
        %1578 = vmatpush1.msra.mxu0 0.0
        %1579 = vmatprep.subr.mxu0 0.0
        %1580 = vmatpush1.msra.mxu0 0.0
        %1581 = vmatprep.subr.mxu0 0.0
        %1582 = vmatpush1.msra.mxu0 0.0
        %1583 = vmatprep.subr.mxu0 0.0
        %1584 = vmatpush1.msra.mxu0 0.0
        %1585 = vmatprep.subr.mxu0 0.0
        %1586 = vmatpush1.msra.mxu0 0.0
        %1587 = vmatprep.subr.mxu0 0.0
        %1588 = vmatpush1.msra.mxu0 0.0
        %1589 = vmatprep.subr.mxu0 0.0
        %1590 = vmatpush1.msra.mxu0 0.0
        %1591 = vmatprep.subr.mxu0 0.0
        %1592 = vmatpush1.msra.mxu0 0.0
        %1593 = vmatprep.subr.mxu0 0.0
        %1594 = vmatpush1.msra.mxu0 0.0
        %1595 = vmatprep.subr.mxu0 0.0
        %1596 = vmatpush1.msra.mxu0 0.0
        %1597 = vmatprep.subr.mxu0 0.0
        %1598 = vmatpush1.msra.mxu0 0.0
        %1599 = vmatprep.mubr.f32.mxu0 0.0
        %1600 = vmatmul.mubr.f32.gmra.mrb[0].mxu0 %v1530
        %v1601 = vpop.f32.mrb[0].mxu0
        %v1602 = vadd.f32 0.0, %v1601
        %v1603 = vpop.f32.mrb[0].mxu0
        %1604 = vmatprep.mubr.f32.mxu0 0.0
        %1605 = vmatmul.mubr.f32.gmra.mrb[0].mxu0 %v1533
        %v1606 = vpop.f32.mrb[0].mxu0
        %v1607 = vadd.f32 0.0, %v1606
        %v1608 = vpop.f32.mrb[0].mxu0
        %1609 = vdwg.mxu0
        %v1610 = vpack.c.bf16 %v1526, %v1521
        %v1611 = vpack.c.bf16 %v1607, %v1602
        %v1612 = vld [vmem:[%s925] sm:$0xf]
        %s1613 = scalar_lea.vmem %s898, 16
        %v1614 = vld [vmem:[%s1613] sm:$0xf]
        %v1615 = vld [vmem:[%s1613 + $0x4] sm:$0xf]
        %v1616 = vld [vmem:[%s1613 + $0x8] sm:$0xf]
        %v1617 = vld [vmem:[%s1613 + $0xc] sm:$0xf]
        %s1618 = scalar_lea.vmem %s912, 1
        %v1619 = vld [vmem:[%s1618] sm:$0x1]
        %v1621 = vlaneseq
        %v1622 = vshrl.u32 %v1621, 7
        %v1623 = vsub.s32 0, %v1622
        %v1624 = vrot.slane %v1619, %v1623
        %v1630 = vunpack.c.l.b16 %v1614
        %v1631 = vunpack.c.l.b16 %v1615
        %v1632 = vunpack.c.l.b16 %v1616
        %v1633 = vunpack.c.l.b16 %v1617
        %v1634 = vpack.c.b16 %v1631, %v1630
        %v1635 = vpack.c.b16 %v1633, %v1632
        %1638 = vmatprep.subr.bf16.mxu0 0
        %1639 = vmatpush1.bf16.msra.mxu0 %v1634
        %1640 = vmatprep.subr.bf16.mxu0 0
        %1641 = vmatpush1.bf16.msra.mxu0 %v1635
        %1642 = vmatprep.subr.bf16.mxu0 0
        %1643 = vmatpush1.bf16.msra.mxu0 0
        %1644 = vmatprep.subr.bf16.mxu0 0
        %1645 = vmatpush1.bf16.msra.mxu0 0
        %1646 = vmatprep.subr.bf16.mxu0 0
        %1647 = vmatpush1.bf16.msra.mxu0 0
        %1648 = vmatprep.subr.bf16.mxu0 0
        %1649 = vmatpush1.bf16.msra.mxu0 0
        %1650 = vmatprep.subr.bf16.mxu0 0
        %1651 = vmatpush1.bf16.msra.mxu0 0
        %1652 = vmatprep.subr.bf16.mxu0 0
        %1653 = vmatpush1.bf16.msra.mxu0 0
        %1654 = vmatprep.subr.bf16.mxu0 0
        %1655 = vmatpush1.bf16.msra.mxu0 0
        %1656 = vmatprep.subr.bf16.mxu0 0
        %1657 = vmatpush1.bf16.msra.mxu0 0
        %1658 = vmatprep.subr.bf16.mxu0 0
        %1659 = vmatpush1.bf16.msra.mxu0 0
        %1660 = vmatprep.subr.bf16.mxu0 0
        %1661 = vmatpush1.bf16.msra.mxu0 0
        %1662 = vmatprep.subr.bf16.mxu0 0
        %1663 = vmatpush1.bf16.msra.mxu0 0
        %1664 = vmatprep.subr.bf16.mxu0 0
        %1665 = vmatpush1.bf16.msra.mxu0 0
        %1666 = vmatprep.subr.bf16.mxu0 0
        %1667 = vmatpush1.bf16.msra.mxu0 0
        %1668 = vmatprep.subr.bf16.mxu0 0
        %1669 = vmatpush1.bf16.msra.mxu0 0
        %1670 = vmatprep.mubr.bf16.mxu0 0
        %1671 = vmatmul.mubr.bf16.gmra.mrb[0].mxu0 %v1010
        %v1672 = vpop.f32.mrb[0].mxu0
        %v1673 = vadd.f32 %v1624, %v1672
        %v1674 = vpop.f32.mrb[0].mxu0
        %v1675 = vpop.f32.mrb[0].mxu0
        %v1676 = vadd.f32 %v1624, %v1675
        %v1677 = vpop.f32.mrb[0].mxu0
        %1678 = vmatprep.mubr.bf16.mxu0 0
        %1679 = vmatmul.mubr.bf16.gmra.mrb[0].mxu0 %v1013
        %v1680 = vpop.f32.mrb[0].mxu0
        %v1681 = vadd.f32 %v1624, %v1680
        %v1682 = vpop.f32.mrb[0].mxu0
        %v1683 = vpop.f32.mrb[0].mxu0
        %v1684 = vadd.f32 %v1624, %v1683
        %v1685 = vpop.f32.mrb[0].mxu0
        %1686 = vdwg.mxu0
        %s1687 = scalar_lea.vmem %s903, 16
        %v1688 = vld [vmem:[%s1687] sm:$0xf]
        %v1689 = vld [vmem:[%s1687 + $0x4] sm:$0xf]
        %v1690 = vld [vmem:[%s1687 + $0x8] sm:$0xf]
        %v1691 = vld [vmem:[%s1687 + $0xc] sm:$0xf]
        %s1692 = scalar_lea.vmem %s916, 1
        %v1693 = vld [vmem:[%s1692] sm:$0x1]
        %v1695 = vlaneseq
        %v1696 = vshrl.u32 %v1695, 7
        %v1697 = vsub.s32 0, %v1696
        %v1698 = vrot.slane %v1693, %v1697
        %v1704 = vunpack.c.l.b16 %v1688
        %v1705 = vunpack.c.l.b16 %v1689
        %v1706 = vunpack.c.l.b16 %v1690
        %v1707 = vunpack.c.l.b16 %v1691
        %v1708 = vpack.c.b16 %v1705, %v1704
        %v1709 = vpack.c.b16 %v1707, %v1706
        %1712 = vmatprep.subr.bf16.mxu0 0
        %1713 = vmatpush1.bf16.msra.mxu0 %v1708
        %1714 = vmatprep.subr.bf16.mxu0 0
        %1715 = vmatpush1.bf16.msra.mxu0 %v1709
        %1716 = vmatprep.subr.bf16.mxu0 0
        %1717 = vmatpush1.bf16.msra.mxu0 0
        %1718 = vmatprep.subr.bf16.mxu0 0
        %1719 = vmatpush1.bf16.msra.mxu0 0
        %1720 = vmatprep.subr.bf16.mxu0 0
        %1721 = vmatpush1.bf16.msra.mxu0 0
        %1722 = vmatprep.subr.bf16.mxu0 0
        %1723 = vmatpush1.bf16.msra.mxu0 0
        %1724 = vmatprep.subr.bf16.mxu0 0
        %1725 = vmatpush1.bf16.msra.mxu0 0
        %1726 = vmatprep.subr.bf16.mxu0 0
        %1727 = vmatpush1.bf16.msra.mxu0 0
        %1728 = vmatprep.subr.bf16.mxu0 0
        %1729 = vmatpush1.bf16.msra.mxu0 0
        %1730 = vmatprep.subr.bf16.mxu0 0
        %1731 = vmatpush1.bf16.msra.mxu0 0
        %1732 = vmatprep.subr.bf16.mxu0 0
        %1733 = vmatpush1.bf16.msra.mxu0 0
        %1734 = vmatprep.subr.bf16.mxu0 0
        %1735 = vmatpush1.bf16.msra.mxu0 0
        %1736 = vmatprep.subr.bf16.mxu0 0
        %1737 = vmatpush1.bf16.msra.mxu0 0
        %1738 = vmatprep.subr.bf16.mxu0 0
        %1739 = vmatpush1.bf16.msra.mxu0 0
        %1740 = vmatprep.subr.bf16.mxu0 0
        %1741 = vmatpush1.bf16.msra.mxu0 0
        %1742 = vmatprep.subr.bf16.mxu0 0
        %1743 = vmatpush1.bf16.msra.mxu0 0
        %1744 = vmatprep.mubr.bf16.mxu0 0
        %1745 = vmatmul.mubr.bf16.gmra.mrb[0].mxu0 %v1010
        %v1746 = vpop.f32.mrb[0].mxu0
        %v1747 = vadd.f32 %v1698, %v1746
        %v1748 = vpop.f32.mrb[0].mxu0
        %v1749 = vpop.f32.mrb[0].mxu0
        %v1750 = vadd.f32 %v1698, %v1749
        %v1751 = vpop.f32.mrb[0].mxu0
        %1752 = vmatprep.mubr.bf16.mxu0 0
        %1753 = vmatmul.mubr.bf16.gmra.mrb[0].mxu0 %v1013
        %v1754 = vpop.f32.mrb[0].mxu0
        %v1755 = vadd.f32 %v1698, %v1754
        %v1756 = vpop.f32.mrb[0].mxu0
        %v1757 = vpop.f32.mrb[0].mxu0
        %v1758 = vadd.f32 %v1698, %v1757
        %v1759 = vpop.f32.mrb[0].mxu0
        %1760 = vdwg.mxu0
        %s1761 = scalar_lea.vmem %s908, 16
        %v1762 = vld [vmem:[%s1761] sm:$0xf]
        %v1763 = vld [vmem:[%s1761 + $0x4] sm:$0xf]
        %v1764 = vld [vmem:[%s1761 + $0x8] sm:$0xf]
        %v1765 = vld [vmem:[%s1761 + $0xc] sm:$0xf]
        %s1766 = scalar_lea.vmem %s920, 1
        %v1767 = vld [vmem:[%s1766] sm:$0x1]
        %v1769 = vlaneseq
        %v1770 = vshrl.u32 %v1769, 7
        %v1771 = vsub.s32 0, %v1770
        %v1772 = vrot.slane %v1767, %v1771
        %v1778 = vunpack.c.l.b16 %v1762
        %v1779 = vunpack.c.l.b16 %v1763
        %v1780 = vunpack.c.l.b16 %v1764
        %v1781 = vunpack.c.l.b16 %v1765
        %v1782 = vpack.c.b16 %v1779, %v1778
        %v1783 = vpack.c.b16 %v1781, %v1780
        %1786 = vmatprep.subr.bf16.mxu0 0
        %1787 = vmatpush1.bf16.msra.mxu0 %v1782
        %1788 = vmatprep.subr.bf16.mxu0 0
        %1789 = vmatpush1.bf16.msra.mxu0 %v1783
        %1790 = vmatprep.subr.bf16.mxu0 0
        %1791 = vmatpush1.bf16.msra.mxu0 0
        %1792 = vmatprep.subr.bf16.mxu0 0
        %1793 = vmatpush1.bf16.msra.mxu0 0
        %1794 = vmatprep.subr.bf16.mxu0 0
        %1795 = vmatpush1.bf16.msra.mxu0 0
        %1796 = vmatprep.subr.bf16.mxu0 0
        %1797 = vmatpush1.bf16.msra.mxu0 0
        %1798 = vmatprep.subr.bf16.mxu0 0
        %1799 = vmatpush1.bf16.msra.mxu0 0
        %1800 = vmatprep.subr.bf16.mxu0 0
        %1801 = vmatpush1.bf16.msra.mxu0 0
        %1802 = vmatprep.subr.bf16.mxu0 0
        %1803 = vmatpush1.bf16.msra.mxu0 0
        %1804 = vmatprep.subr.bf16.mxu0 0
        %1805 = vmatpush1.bf16.msra.mxu0 0
        %1806 = vmatprep.subr.bf16.mxu0 0
        %1807 = vmatpush1.bf16.msra.mxu0 0
        %1808 = vmatprep.subr.bf16.mxu0 0
        %1809 = vmatpush1.bf16.msra.mxu0 0
        %1810 = vmatprep.subr.bf16.mxu0 0
        %1811 = vmatpush1.bf16.msra.mxu0 0
        %1812 = vmatprep.subr.bf16.mxu0 0
        %1813 = vmatpush1.bf16.msra.mxu0 0
        %1814 = vmatprep.subr.bf16.mxu0 0
        %1815 = vmatpush1.bf16.msra.mxu0 0
        %1816 = vmatprep.subr.bf16.mxu0 0
        %1817 = vmatpush1.bf16.msra.mxu0 0
        %1818 = vmatprep.mubr.bf16.mxu0 0
        %1819 = vmatmul.mubr.bf16.gmra.mrb[0].mxu0 %v1010
        %v1820 = vpop.f32.mrb[0].mxu0
        %v1821 = vadd.f32 %v1772, %v1820
        %v1822 = vpop.f32.mrb[0].mxu0
        %v1823 = vpop.f32.mrb[0].mxu0
        %v1824 = vadd.f32 %v1772, %v1823
        %v1825 = vpop.f32.mrb[0].mxu0
        %1826 = vmatprep.mubr.bf16.mxu0 0
        %1827 = vmatmul.mubr.bf16.gmra.mrb[0].mxu0 %v1013
        %v1828 = vpop.f32.mrb[0].mxu0
        %v1829 = vadd.f32 %v1772, %v1828
        %v1830 = vpop.f32.mrb[0].mxu0
        %v1831 = vpop.f32.mrb[0].mxu0
        %v1832 = vadd.f32 %v1772, %v1831
        %v1833 = vpop.f32.mrb[0].mxu0
        %1834 = vdwg.mxu0
        %v1836 = vsel %vm1208, %v1673, 0
        %v1839 = vsel %vm1208, %v1676, 0
        %v1842 = vsel %vm1208, %v1747, 0
        %v1845 = vsel %vm1208, %v1750, 0
        %1847 = vmatprep.subr.mxu0 0.0
        %1848 = vmatpush1.xpose.msra.mxu0 %v1842
        %1849 = vmatprep.subr.mxu0 0.0
        %1850 = vmatpush1.xpose.msra.mxu0 %v1845
        %1851 = vmatprep.subr.mxu0 0.0
        %1852 = vmatpush1.xpose.msra.mxu0 0.0
        %1853 = vmatprep.subr.mxu0 0.0
        %1854 = vmatpush1.xpose.msra.mxu0 0.0
        %1855 = vmatprep.subr.mxu0 0.0
        %1856 = vmatpush1.xpose.msra.mxu0 0.0
        %1857 = vmatprep.subr.mxu0 0.0
        %1858 = vmatpush1.xpose.msra.mxu0 0.0
        %1859 = vmatprep.subr.mxu0 0.0
        %1860 = vmatpush1.xpose.msra.mxu0 0.0
        %1861 = vmatprep.subr.mxu0 0.0
        %1862 = vmatpush1.xpose.msra.mxu0 0.0
        %1863 = vmatprep.subr.mxu0 0.0
        %1864 = vmatpush1.xpose.msra.mxu0 0.0
        %1865 = vmatprep.subr.mxu0 0.0
        %1866 = vmatpush1.xpose.msra.mxu0 0.0
        %1867 = vmatprep.subr.mxu0 0.0
        %1868 = vmatpush1.xpose.msra.mxu0 0.0
        %1869 = vmatprep.subr.mxu0 0.0
        %1870 = vmatpush1.xpose.msra.mxu0 0.0
        %1871 = vmatprep.subr.mxu0 0.0
        %1872 = vmatpush1.xpose.msra.mxu0 0.0
        %1873 = vmatprep.subr.mxu0 0.0
        %1874 = vmatpush1.xpose.msra.mxu0 0.0
        %1875 = vmatprep.subr.mxu0 0.0
        %1876 = vmatpush1.xpose.msra.mxu0 0.0
        %1877 = vmatprep.subr.mxu0 0.0
        %1878 = vmatpush1.xpose.msra.mxu0 0.0
        %1879 = vmatprep.subr.mxu0 0.0
        %1880 = vmatpush1.xpose.msra.mxu0 0.0
        %1881 = vmatprep.subr.mxu0 0.0
        %1882 = vmatpush1.xpose.msra.mxu0 0.0
        %1883 = vmatprep.subr.mxu0 0.0
        %1884 = vmatpush1.xpose.msra.mxu0 0.0
        %1885 = vmatprep.subr.mxu0 0.0
        %1886 = vmatpush1.xpose.msra.mxu0 0.0
        %1887 = vmatprep.subr.mxu0 0.0
        %1888 = vmatpush1.xpose.msra.mxu0 0.0
        %1889 = vmatprep.subr.mxu0 0.0
        %1890 = vmatpush1.xpose.msra.mxu0 0.0
        %1891 = vmatprep.subr.mxu0 0.0
        %1892 = vmatpush1.xpose.msra.mxu0 0.0
        %1893 = vmatprep.subr.mxu0 0.0
        %1894 = vmatpush1.xpose.msra.mxu0 0.0
        %1895 = vmatprep.subr.mxu0 0.0
        %1896 = vmatpush1.xpose.msra.mxu0 0.0
        %1897 = vmatprep.subr.mxu0 0.0
        %1898 = vmatpush1.xpose.msra.mxu0 0.0
        %1899 = vmatprep.subr.mxu0 0.0
        %1900 = vmatpush1.xpose.msra.mxu0 0.0
        %1901 = vmatprep.subr.mxu0 0.0
        %1902 = vmatpush1.xpose.msra.mxu0 0.0
        %1903 = vmatprep.subr.mxu0 0.0
        %1904 = vmatpush1.xpose.msra.mxu0 0.0
        %1905 = vmatprep.subr.mxu0 0.0
        %1906 = vmatpush1.xpose.msra.mxu0 0.0
        %1907 = vmatprep.subr.mxu0 0.0
        %1908 = vmatpush1.xpose.msra.mxu0 0.0
        %1909 = vmatprep.subr.mxu0 0.0
        %1910 = vmatpush1.xpose.msra.mxu0 0.0
        %1911 = vmatprep.mubr.f32.mxu0 0.0
        %1912 = vmatmul.mubr.f32.gmra.mrb[0].mxu0 %v1836
        %v1913 = vpop.f32.mrb[0].mxu0
        %v1914 = vadd.f32 0.0, %v1913
        %v1915 = vpop.f32.mrb[0].mxu0
        %1916 = vmatprep.mubr.f32.mxu0 0.0
        %1917 = vmatmul.mubr.f32.gmra.mrb[0].mxu0 %v1839
        %v1918 = vpop.f32.mrb[0].mxu0
        %v1919 = vadd.f32 0.0, %v1918
        %v1920 = vpop.f32.mrb[0].mxu0
        %1921 = vdwg.mxu0
        %v1923 = vsel %vm1208, %v1681, 0
        %v1926 = vsel %vm1208, %v1684, 0
        %v1929 = vsel %vm1208, %v1755, 0
        %v1932 = vsel %vm1208, %v1758, 0
        %1934 = vmatprep.subr.mxu0 0.0
        %1935 = vmatpush1.xpose.msra.mxu0 %v1929
        %1936 = vmatprep.subr.mxu0 0.0
        %1937 = vmatpush1.xpose.msra.mxu0 %v1932
        %1938 = vmatprep.subr.mxu0 0.0
        %1939 = vmatpush1.xpose.msra.mxu0 0.0
        %1940 = vmatprep.subr.mxu0 0.0
        %1941 = vmatpush1.xpose.msra.mxu0 0.0
        %1942 = vmatprep.subr.mxu0 0.0
        %1943 = vmatpush1.xpose.msra.mxu0 0.0
        %1944 = vmatprep.subr.mxu0 0.0
        %1945 = vmatpush1.xpose.msra.mxu0 0.0
        %1946 = vmatprep.subr.mxu0 0.0
        %1947 = vmatpush1.xpose.msra.mxu0 0.0
        %1948 = vmatprep.subr.mxu0 0.0
        %1949 = vmatpush1.xpose.msra.mxu0 0.0
        %1950 = vmatprep.subr.mxu0 0.0
        %1951 = vmatpush1.xpose.msra.mxu0 0.0
        %1952 = vmatprep.subr.mxu0 0.0
        %1953 = vmatpush1.xpose.msra.mxu0 0.0
        %1954 = vmatprep.subr.mxu0 0.0
        %1955 = vmatpush1.xpose.msra.mxu0 0.0
        %1956 = vmatprep.subr.mxu0 0.0
        %1957 = vmatpush1.xpose.msra.mxu0 0.0
        %1958 = vmatprep.subr.mxu0 0.0
        %1959 = vmatpush1.xpose.msra.mxu0 0.0
        %1960 = vmatprep.subr.mxu0 0.0
        %1961 = vmatpush1.xpose.msra.mxu0 0.0
        %1962 = vmatprep.subr.mxu0 0.0
        %1963 = vmatpush1.xpose.msra.mxu0 0.0
        %1964 = vmatprep.subr.mxu0 0.0
        %1965 = vmatpush1.xpose.msra.mxu0 0.0
        %1966 = vmatprep.subr.mxu0 0.0
        %1967 = vmatpush1.xpose.msra.mxu0 0.0
        %1968 = vmatprep.subr.mxu0 0.0
        %1969 = vmatpush1.xpose.msra.mxu0 0.0
        %1970 = vmatprep.subr.mxu0 0.0
        %1971 = vmatpush1.xpose.msra.mxu0 0.0
        %1972 = vmatprep.subr.mxu0 0.0
        %1973 = vmatpush1.xpose.msra.mxu0 0.0
        %1974 = vmatprep.subr.mxu0 0.0
        %1975 = vmatpush1.xpose.msra.mxu0 0.0
        %1976 = vmatprep.subr.mxu0 0.0
        %1977 = vmatpush1.xpose.msra.mxu0 0.0
        %1978 = vmatprep.subr.mxu0 0.0
        %1979 = vmatpush1.xpose.msra.mxu0 0.0
        %1980 = vmatprep.subr.mxu0 0.0
        %1981 = vmatpush1.xpose.msra.mxu0 0.0
        %1982 = vmatprep.subr.mxu0 0.0
        %1983 = vmatpush1.xpose.msra.mxu0 0.0
        %1984 = vmatprep.subr.mxu0 0.0
        %1985 = vmatpush1.xpose.msra.mxu0 0.0
        %1986 = vmatprep.subr.mxu0 0.0
        %1987 = vmatpush1.xpose.msra.mxu0 0.0
        %1988 = vmatprep.subr.mxu0 0.0
        %1989 = vmatpush1.xpose.msra.mxu0 0.0
        %1990 = vmatprep.subr.mxu0 0.0
        %1991 = vmatpush1.xpose.msra.mxu0 0.0
        %1992 = vmatprep.subr.mxu0 0.0
        %1993 = vmatpush1.xpose.msra.mxu0 0.0
        %1994 = vmatprep.subr.mxu0 0.0
        %1995 = vmatpush1.xpose.msra.mxu0 0.0
        %1996 = vmatprep.subr.mxu0 0.0
        %1997 = vmatpush1.xpose.msra.mxu0 0.0
        %1998 = vmatprep.mubr.f32.mxu0 0.0
        %1999 = vmatmul.mubr.f32.gmra.mrb[0].mxu0 %v1923
        %v2000 = vpop.f32.mrb[0].mxu0
        %v2001 = vadd.f32 0.0, %v2000
        %v2002 = vpop.f32.mrb[0].mxu0
        %2003 = vmatprep.mubr.f32.mxu0 0.0
        %2004 = vmatmul.mubr.f32.gmra.mrb[0].mxu0 %v1926
        %v2005 = vpop.f32.mrb[0].mxu0
        %v2006 = vadd.f32 0.0, %v2005
        %v2007 = vpop.f32.mrb[0].mxu0
        %2008 = vdwg.mxu0
        %v2009 = vmul.f32 %v1914, 0.35355338
        %v2010 = vmul.f32 %v1919, 0.35355338
        %v2011 = vmul.f32 %v2001, 0.35355338
        %v2012 = vmul.f32 %v2006, 0.35355338
        %v2013 = vadd.f32 %v2009, %v1392
        %v2014 = vadd.f32 %v2010, %v1392
        %v2015 = vadd.f32 %v2011, %v1396
        %v2016 = vadd.f32 %v2012, %v1396
        %v2017 = vsel %vm1403, %v2013, -inf
        %2018 = vmax.xlane.f32.xlu0 %v2017
        %v2019 = vpop.xlane.xlu0 %2018
        %v2020 = vsel %vm1403, %v2014, -inf
        %2021 = vmax.xlane.f32.xlu0 %v2020
        %v2022 = vpop.xlane.xlu0 %2021
        %v2023 = vsel %vm1403, %v2015, -inf
        %2024 = vmax.xlane.f32.xlu0 %v2023
        %v2025 = vpop.xlane.xlu0 %2024
        %v2026 = vsel %vm1403, %v2016, -inf
        %2027 = vmax.xlane.f32.xlu0 %v2026
        %v2028 = vpop.xlane.xlu0 %2027
        %v2029 = vsub.f32 %v2013, %v2019
        %v2030 = vsub.f32 %v2014, %v2022
        %v2031 = vsub.f32 %v2015, %v2025
        %v2032 = vsub.f32 %v2016, %v2028
        %v2033 = vmul.f32 %v2029, 1.442695
        %v2034 = vpow.pop %v2033
        %v2035 = vmul.f32 %v2030, 1.442695
        %v2036 = vpow.pop %v2035
        %v2037 = vmul.f32 %v2031, 1.442695
        %v2038 = vpow.pop %v2037
        %v2039 = vmul.f32 %v2032, 1.442695
        %v2040 = vpow.pop %v2039
        %v2041 = vsel %vm1403, %v2034, 0.0
        %2042 = vadd.xlane.f32.xlu0 %v2041
        %v2043 = vpop.xlane.xlu0 %2042
        %v2044 = vsel %vm1403, %v2036, 0.0
        %2045 = vadd.xlane.f32.xlu0 %v2044
        %v2046 = vpop.xlane.xlu0 %2045
        %v2047 = vsel %vm1403, %v2038, 0.0
        %2048 = vadd.xlane.f32.xlu0 %v2047
        %v2049 = vpop.xlane.xlu0 %2048
        %v2050 = vsel %vm1403, %v2040, 0.0
        %2051 = vadd.xlane.f32.xlu0 %v2050
        %v2052 = vpop.xlane.xlu0 %2051
        %v2053 = vrcp.pop %v2043
        %v2054 = vrcp.pop %v2046
        %v2055 = vrcp.pop %v2049
        %v2056 = vrcp.pop %v2052
        %v2057 = vmul.f32 %v2034, %v2053
        %v2058 = vmul.f32 %v2036, %v2054
        %v2059 = vmul.f32 %v2038, %v2055
        %v2060 = vmul.f32 %v2040, %v2056
        %v2062 = vsel %vm1403, %v2057, 0
        %v2065 = vsel %vm1403, %v2058, 0
        %2067 = vmatprep.subr.mxu0 0.0
        %2068 = vmatpush1.msra.mxu0 %v1821
        %2069 = vmatprep.subr.mxu0 0.0
        %2070 = vmatpush1.msra.mxu0 %v1824
        %2071 = vmatprep.subr.mxu0 0.0
        %2072 = vmatpush1.msra.mxu0 0.0
        %2073 = vmatprep.subr.mxu0 0.0
        %2074 = vmatpush1.msra.mxu0 0.0
        %2075 = vmatprep.subr.mxu0 0.0
        %2076 = vmatpush1.msra.mxu0 0.0
        %2077 = vmatprep.subr.mxu0 0.0
        %2078 = vmatpush1.msra.mxu0 0.0
        %2079 = vmatprep.subr.mxu0 0.0
        %2080 = vmatpush1.msra.mxu0 0.0
        %2081 = vmatprep.subr.mxu0 0.0
        %2082 = vmatpush1.msra.mxu0 0.0
        %2083 = vmatprep.subr.mxu0 0.0
        %2084 = vmatpush1.msra.mxu0 0.0
        %2085 = vmatprep.subr.mxu0 0.0
        %2086 = vmatpush1.msra.mxu0 0.0
        %2087 = vmatprep.subr.mxu0 0.0
        %2088 = vmatpush1.msra.mxu0 0.0
        %2089 = vmatprep.subr.mxu0 0.0
        %2090 = vmatpush1.msra.mxu0 0.0
        %2091 = vmatprep.subr.mxu0 0.0
        %2092 = vmatpush1.msra.mxu0 0.0
        %2093 = vmatprep.subr.mxu0 0.0
        %2094 = vmatpush1.msra.mxu0 0.0
        %2095 = vmatprep.subr.mxu0 0.0
        %2096 = vmatpush1.msra.mxu0 0.0
        %2097 = vmatprep.subr.mxu0 0.0
        %2098 = vmatpush1.msra.mxu0 0.0
        %2099 = vmatprep.subr.mxu0 0.0
        %2100 = vmatpush1.msra.mxu0 0.0
        %2101 = vmatprep.subr.mxu0 0.0
        %2102 = vmatpush1.msra.mxu0 0.0
        %2103 = vmatprep.subr.mxu0 0.0
        %2104 = vmatpush1.msra.mxu0 0.0
        %2105 = vmatprep.subr.mxu0 0.0
        %2106 = vmatpush1.msra.mxu0 0.0
        %2107 = vmatprep.subr.mxu0 0.0
        %2108 = vmatpush1.msra.mxu0 0.0
        %2109 = vmatprep.subr.mxu0 0.0
        %2110 = vmatpush1.msra.mxu0 0.0
        %2111 = vmatprep.subr.mxu0 0.0
        %2112 = vmatpush1.msra.mxu0 0.0
        %2113 = vmatprep.subr.mxu0 0.0
        %2114 = vmatpush1.msra.mxu0 0.0
        %2115 = vmatprep.subr.mxu0 0.0
        %2116 = vmatpush1.msra.mxu0 0.0
        %2117 = vmatprep.subr.mxu0 0.0
        %2118 = vmatpush1.msra.mxu0 0.0
        %2119 = vmatprep.subr.mxu0 0.0
        %2120 = vmatpush1.msra.mxu0 0.0
        %2121 = vmatprep.subr.mxu0 0.0
        %2122 = vmatpush1.msra.mxu0 0.0
        %2123 = vmatprep.subr.mxu0 0.0
        %2124 = vmatpush1.msra.mxu0 0.0
        %2125 = vmatprep.subr.mxu0 0.0
        %2126 = vmatpush1.msra.mxu0 0.0
        %2127 = vmatprep.subr.mxu0 0.0
        %2128 = vmatpush1.msra.mxu0 0.0
        %2129 = vmatprep.subr.mxu0 0.0
        %2130 = vmatpush1.msra.mxu0 0.0
        %2131 = vmatprep.mubr.f32.mxu0 0.0
        %2132 = vmatmul.mubr.f32.gmra.mrb[0].mxu0 %v2062
        %v2133 = vpop.f32.mrb[0].mxu0
        %v2134 = vadd.f32 0.0, %v2133
        %v2135 = vpop.f32.mrb[0].mxu0
        %2136 = vmatprep.mubr.f32.mxu0 0.0
        %2137 = vmatmul.mubr.f32.gmra.mrb[0].mxu0 %v2065
        %v2138 = vpop.f32.mrb[0].mxu0
        %v2139 = vadd.f32 0.0, %v2138
        %v2140 = vpop.f32.mrb[0].mxu0
        %2141 = vdwg.mxu0
        %v2143 = vsel %vm1403, %v2059, 0
        %v2146 = vsel %vm1403, %v2060, 0
        %2148 = vmatprep.subr.mxu0 0.0
        %2149 = vmatpush1.msra.mxu0 %v1829
        %2150 = vmatprep.subr.mxu0 0.0
        %2151 = vmatpush1.msra.mxu0 %v1832
        %2152 = vmatprep.subr.mxu0 0.0
        %2153 = vmatpush1.msra.mxu0 0.0
        %2154 = vmatprep.subr.mxu0 0.0
        %2155 = vmatpush1.msra.mxu0 0.0
        %2156 = vmatprep.subr.mxu0 0.0
        %2157 = vmatpush1.msra.mxu0 0.0
        %2158 = vmatprep.subr.mxu0 0.0
        %2159 = vmatpush1.msra.mxu0 0.0
        %2160 = vmatprep.subr.mxu0 0.0
        %2161 = vmatpush1.msra.mxu0 0.0
        %2162 = vmatprep.subr.mxu0 0.0
        %2163 = vmatpush1.msra.mxu0 0.0
        %2164 = vmatprep.subr.mxu0 0.0
        %2165 = vmatpush1.msra.mxu0 0.0
        %2166 = vmatprep.subr.mxu0 0.0
        %2167 = vmatpush1.msra.mxu0 0.0
        %2168 = vmatprep.subr.mxu0 0.0
        %2169 = vmatpush1.msra.mxu0 0.0
        %2170 = vmatprep.subr.mxu0 0.0
        %2171 = vmatpush1.msra.mxu0 0.0
        %2172 = vmatprep.subr.mxu0 0.0
        %2173 = vmatpush1.msra.mxu0 0.0
        %2174 = vmatprep.subr.mxu0 0.0
        %2175 = vmatpush1.msra.mxu0 0.0
        %2176 = vmatprep.subr.mxu0 0.0
        %2177 = vmatpush1.msra.mxu0 0.0
        %2178 = vmatprep.subr.mxu0 0.0
        %2179 = vmatpush1.msra.mxu0 0.0
        %2180 = vmatprep.subr.mxu0 0.0
        %2181 = vmatpush1.msra.mxu0 0.0
        %2182 = vmatprep.subr.mxu0 0.0
        %2183 = vmatpush1.msra.mxu0 0.0
        %2184 = vmatprep.subr.mxu0 0.0
        %2185 = vmatpush1.msra.mxu0 0.0
        %2186 = vmatprep.subr.mxu0 0.0
        %2187 = vmatpush1.msra.mxu0 0.0
        %2188 = vmatprep.subr.mxu0 0.0
        %2189 = vmatpush1.msra.mxu0 0.0
        %2190 = vmatprep.subr.mxu0 0.0
        %2191 = vmatpush1.msra.mxu0 0.0
        %2192 = vmatprep.subr.mxu0 0.0
        %2193 = vmatpush1.msra.mxu0 0.0
        %2194 = vmatprep.subr.mxu0 0.0
        %2195 = vmatpush1.msra.mxu0 0.0
        %2196 = vmatprep.subr.mxu0 0.0
        %2197 = vmatpush1.msra.mxu0 0.0
        %2198 = vmatprep.subr.mxu0 0.0
        %2199 = vmatpush1.msra.mxu0 0.0
        %2200 = vmatprep.subr.mxu0 0.0
        %2201 = vmatpush1.msra.mxu0 0.0
        %2202 = vmatprep.subr.mxu0 0.0
        %2203 = vmatpush1.msra.mxu0 0.0
        %2204 = vmatprep.subr.mxu0 0.0
        %2205 = vmatpush1.msra.mxu0 0.0
        %2206 = vmatprep.subr.mxu0 0.0
        %2207 = vmatpush1.msra.mxu0 0.0
        %2208 = vmatprep.subr.mxu0 0.0
        %2209 = vmatpush1.msra.mxu0 0.0
        %2210 = vmatprep.subr.mxu0 0.0
        %2211 = vmatpush1.msra.mxu0 0.0
        %2212 = vmatprep.mubr.f32.mxu0 0.0
        %2213 = vmatmul.mubr.f32.gmra.mrb[0].mxu0 %v2143
        %v2214 = vpop.f32.mrb[0].mxu0
        %v2215 = vadd.f32 0.0, %v2214
        %v2216 = vpop.f32.mrb[0].mxu0
        %2217 = vmatprep.mubr.f32.mxu0 0.0
        %2218 = vmatmul.mubr.f32.gmra.mrb[0].mxu0 %v2146
        %v2219 = vpop.f32.mrb[0].mxu0
        %v2220 = vadd.f32 0.0, %v2219
        %v2221 = vpop.f32.mrb[0].mxu0
        %2222 = vdwg.mxu0
        %v2223 = vpack.c.bf16 %v2139, %v2134
        %v2224 = vpack.c.bf16 %v2220, %v2215
        %s2225 = scalar_lea.vmem %s925, 4
        %v2226 = vld [vmem:[%s2225] sm:$0xf]
        %v2228 = vsel %vm1208, %v2223, 0
        %v2231 = vsel %vm1208, %v2224, 0
        %vm2233 = vcmask 1043456
        %v2235 = vsel %vm2233, %v2226, 0
        %2237 = vmatprep.subr.bf16.mxu0 0
        %2238 = vmatpush1.bf16.msra.mxu0 %v2235
        %2239 = vmatprep.subr.bf16.mxu0 0
        %2240 = vmatpush1.bf16.msra.mxu0 0
        %2241 = vmatprep.subr.bf16.mxu0 0
        %2242 = vmatpush1.bf16.msra.mxu0 0
        %2243 = vmatprep.subr.bf16.mxu0 0
        %2244 = vmatpush1.bf16.msra.mxu0 0
        %2245 = vmatprep.subr.bf16.mxu0 0
        %2246 = vmatpush1.bf16.msra.mxu0 0
        %2247 = vmatprep.subr.bf16.mxu0 0
        %2248 = vmatpush1.bf16.msra.mxu0 0
        %2249 = vmatprep.subr.bf16.mxu0 0
        %2250 = vmatpush1.bf16.msra.mxu0 0
        %2251 = vmatprep.subr.bf16.mxu0 0
        %2252 = vmatpush1.bf16.msra.mxu0 0
        %2253 = vmatprep.subr.bf16.mxu0 0
        %2254 = vmatpush1.bf16.msra.mxu0 0
        %2255 = vmatprep.subr.bf16.mxu0 0
        %2256 = vmatpush1.bf16.msra.mxu0 0
        %2257 = vmatprep.subr.bf16.mxu0 0
        %2258 = vmatpush1.bf16.msra.mxu0 0
        %2259 = vmatprep.subr.bf16.mxu0 0
        %2260 = vmatpush1.bf16.msra.mxu0 0
        %2261 = vmatprep.subr.bf16.mxu0 0
        %2262 = vmatpush1.bf16.msra.mxu0 0
        %2263 = vmatprep.subr.bf16.mxu0 0
        %2264 = vmatpush1.bf16.msra.mxu0 0
        %2265 = vmatprep.subr.bf16.mxu0 0
        %2266 = vmatpush1.bf16.msra.mxu0 0
        %2267 = vmatprep.subr.bf16.mxu0 0
        %2268 = vmatpush1.bf16.msra.mxu0 0
        %2269 = vmatprep.mubr.bf16.mxu0 0
        %2270 = vmatmul.mubr.bf16.gmra.mrb[0].mxu0 %v2228
        %v2271 = vpop.f32.mrb[0].mxu0
        %v2272 = vadd.f32 0.0, %v2271
        %v2273 = vpop.f32.mrb[0].mxu0
        %v2274 = vpop.f32.mrb[0].mxu0
        %v2275 = vadd.f32 0.0, %v2274
        %v2276 = vpop.f32.mrb[0].mxu0
        %2277 = vmatprep.mubr.bf16.mxu0 0
        %2278 = vmatmul.mubr.bf16.gmra.mrb[0].mxu0 %v2231
        %v2279 = vpop.f32.mrb[0].mxu0
        %v2280 = vadd.f32 0.0, %v2279
        %v2281 = vpop.f32.mrb[0].mxu0
        %v2282 = vpop.f32.mrb[0].mxu0
        %v2283 = vadd.f32 0.0, %v2282
        %v2284 = vpop.f32.mrb[0].mxu0
        %2285 = vdwg.mxu0
        %v2287 = vsel %vm1208, %v1610, 0
        %v2290 = vsel %vm1208, %v1611, 0
        %v2293 = vsel %vm2233, %v1612, 0
        %2295 = vmatprep.subr.bf16.mxu0 0
        %2296 = vmatpush1.bf16.msra.mxu0 %v2293
        %2297 = vmatprep.subr.bf16.mxu0 0
        %2298 = vmatpush1.bf16.msra.mxu0 0
        %2299 = vmatprep.subr.bf16.mxu0 0
        %2300 = vmatpush1.bf16.msra.mxu0 0
        %2301 = vmatprep.subr.bf16.mxu0 0
        %2302 = vmatpush1.bf16.msra.mxu0 0
        %2303 = vmatprep.subr.bf16.mxu0 0
        %2304 = vmatpush1.bf16.msra.mxu0 0
        %2305 = vmatprep.subr.bf16.mxu0 0
        %2306 = vmatpush1.bf16.msra.mxu0 0
        %2307 = vmatprep.subr.bf16.mxu0 0
        %2308 = vmatpush1.bf16.msra.mxu0 0
        %2309 = vmatprep.subr.bf16.mxu0 0
        %2310 = vmatpush1.bf16.msra.mxu0 0
        %2311 = vmatprep.subr.bf16.mxu0 0
        %2312 = vmatpush1.bf16.msra.mxu0 0
        %2313 = vmatprep.subr.bf16.mxu0 0
        %2314 = vmatpush1.bf16.msra.mxu0 0
        %2315 = vmatprep.subr.bf16.mxu0 0
        %2316 = vmatpush1.bf16.msra.mxu0 0
        %2317 = vmatprep.subr.bf16.mxu0 0
        %2318 = vmatpush1.bf16.msra.mxu0 0
        %2319 = vmatprep.subr.bf16.mxu0 0
        %2320 = vmatpush1.bf16.msra.mxu0 0
        %2321 = vmatprep.subr.bf16.mxu0 0
        %2322 = vmatpush1.bf16.msra.mxu0 0
        %2323 = vmatprep.subr.bf16.mxu0 0
        %2324 = vmatpush1.bf16.msra.mxu0 0
        %2325 = vmatprep.subr.bf16.mxu0 0
        %2326 = vmatpush1.bf16.msra.mxu0 0
        %2327 = vmatprep.mubr.bf16.mxu0 0
        %2328 = vmatmul.mubr.bf16.gmra.mrb[0].mxu0 %v2287
        %v2329 = vpop.f32.mrb[0].mxu0
        %v2330 = vadd.f32 %v2272, %v2329
        %v2331 = vpop.f32.mrb[0].mxu0
        %v2332 = vpop.f32.mrb[0].mxu0
        %v2333 = vadd.f32 %v2275, %v2332
        %v2334 = vpop.f32.mrb[0].mxu0
        %2335 = vmatprep.mubr.bf16.mxu0 0
        %2336 = vmatmul.mubr.bf16.gmra.mrb[0].mxu0 %v2290
        %v2337 = vpop.f32.mrb[0].mxu0
        %v2338 = vadd.f32 %v2280, %v2337
        %v2339 = vpop.f32.mrb[0].mxu0
        %v2340 = vpop.f32.mrb[0].mxu0
        %v2341 = vadd.f32 %v2283, %v2340
        %v2342 = vpop.f32.mrb[0].mxu0
        %2343 = vdwg.mxu0
        %s2344 = scalar_lea.vmem %s898, 32
        %v2345 = vld [vmem:[%s2344] sm:$0xf]
        %v2346 = vld [vmem:[%s2344 + $0x4] sm:$0xf]
        %v2347 = vld [vmem:[%s2344 + $0x8] sm:$0xf]
        %v2348 = vld [vmem:[%s2344 + $0xc] sm:$0xf]
        %s2349 = scalar_lea.vmem %s912, 2
        %v2350 = vld [vmem:[%s2349] sm:$0x1]
        %v2352 = vlaneseq
        %v2353 = vshrl.u32 %v2352, 7
        %v2354 = vsub.s32 0, %v2353
        %v2355 = vrot.slane %v2350, %v2354
        %v2361 = vunpack.c.l.b16 %v2345
        %v2362 = vunpack.c.l.b16 %v2346
        %v2363 = vunpack.c.l.b16 %v2347
        %v2364 = vunpack.c.l.b16 %v2348
        %v2365 = vpack.c.b16 %v2362, %v2361
        %v2366 = vpack.c.b16 %v2364, %v2363
        %2369 = vmatprep.subr.bf16.mxu0 0
        %2370 = vmatpush1.bf16.msra.mxu0 %v2365
        %2371 = vmatprep.subr.bf16.mxu0 0
        %2372 = vmatpush1.bf16.msra.mxu0 %v2366
        %2373 = vmatprep.subr.bf16.mxu0 0
        %2374 = vmatpush1.bf16.msra.mxu0 0
        %2375 = vmatprep.subr.bf16.mxu0 0
        %2376 = vmatpush1.bf16.msra.mxu0 0
        %2377 = vmatprep.subr.bf16.mxu0 0
        %2378 = vmatpush1.bf16.msra.mxu0 0
        %2379 = vmatprep.subr.bf16.mxu0 0
        %2380 = vmatpush1.bf16.msra.mxu0 0
        %2381 = vmatprep.subr.bf16.mxu0 0
        %2382 = vmatpush1.bf16.msra.mxu0 0
        %2383 = vmatprep.subr.bf16.mxu0 0
        %2384 = vmatpush1.bf16.msra.mxu0 0
        %2385 = vmatprep.subr.bf16.mxu0 0
        %2386 = vmatpush1.bf16.msra.mxu0 0
        %2387 = vmatprep.subr.bf16.mxu0 0
        %2388 = vmatpush1.bf16.msra.mxu0 0
        %2389 = vmatprep.subr.bf16.mxu0 0
        %2390 = vmatpush1.bf16.msra.mxu0 0
        %2391 = vmatprep.subr.bf16.mxu0 0
        %2392 = vmatpush1.bf16.msra.mxu0 0
        %2393 = vmatprep.subr.bf16.mxu0 0
        %2394 = vmatpush1.bf16.msra.mxu0 0
        %2395 = vmatprep.subr.bf16.mxu0 0
        %2396 = vmatpush1.bf16.msra.mxu0 0
        %2397 = vmatprep.subr.bf16.mxu0 0
        %2398 = vmatpush1.bf16.msra.mxu0 0
        %2399 = vmatprep.subr.bf16.mxu0 0
        %2400 = vmatpush1.bf16.msra.mxu0 0
        %2401 = vmatprep.mubr.bf16.mxu0 0
        %2402 = vmatmul.mubr.bf16.gmra.mrb[0].mxu0 %v1010
        %v2403 = vpop.f32.mrb[0].mxu0
        %v2404 = vadd.f32 %v2355, %v2403
        %v2405 = vpop.f32.mrb[0].mxu0
        %v2406 = vpop.f32.mrb[0].mxu0
        %v2407 = vadd.f32 %v2355, %v2406
        %v2408 = vpop.f32.mrb[0].mxu0
        %2409 = vmatprep.mubr.bf16.mxu0 0
        %2410 = vmatmul.mubr.bf16.gmra.mrb[0].mxu0 %v1013
        %v2411 = vpop.f32.mrb[0].mxu0
        %v2412 = vadd.f32 %v2355, %v2411
        %v2413 = vpop.f32.mrb[0].mxu0
        %v2414 = vpop.f32.mrb[0].mxu0
        %v2415 = vadd.f32 %v2355, %v2414
        %v2416 = vpop.f32.mrb[0].mxu0
        %2417 = vdwg.mxu0
        %s2418 = scalar_lea.vmem %s903, 32
        %v2419 = vld [vmem:[%s2418] sm:$0xf]
        %v2420 = vld [vmem:[%s2418 + $0x4] sm:$0xf]
        %v2421 = vld [vmem:[%s2418 + $0x8] sm:$0xf]
        %v2422 = vld [vmem:[%s2418 + $0xc] sm:$0xf]
        %s2423 = scalar_lea.vmem %s916, 2
        %v2424 = vld [vmem:[%s2423] sm:$0x1]
        %v2426 = vlaneseq
        %v2427 = vshrl.u32 %v2426, 7
        %v2428 = vsub.s32 0, %v2427
        %v2429 = vrot.slane %v2424, %v2428
        %v2435 = vunpack.c.l.b16 %v2419
        %v2436 = vunpack.c.l.b16 %v2420
        %v2437 = vunpack.c.l.b16 %v2421
        %v2438 = vunpack.c.l.b16 %v2422
        %v2439 = vpack.c.b16 %v2436, %v2435
        %v2440 = vpack.c.b16 %v2438, %v2437
        %2443 = vmatprep.subr.bf16.mxu0 0
        %2444 = vmatpush1.bf16.msra.mxu0 %v2439
        %2445 = vmatprep.subr.bf16.mxu0 0
        %2446 = vmatpush1.bf16.msra.mxu0 %v2440
        %2447 = vmatprep.subr.bf16.mxu0 0
        %2448 = vmatpush1.bf16.msra.mxu0 0
        %2449 = vmatprep.subr.bf16.mxu0 0
        %2450 = vmatpush1.bf16.msra.mxu0 0
        %2451 = vmatprep.subr.bf16.mxu0 0
        %2452 = vmatpush1.bf16.msra.mxu0 0
        %2453 = vmatprep.subr.bf16.mxu0 0
        %2454 = vmatpush1.bf16.msra.mxu0 0
        %2455 = vmatprep.subr.bf16.mxu0 0
        %2456 = vmatpush1.bf16.msra.mxu0 0
        %2457 = vmatprep.subr.bf16.mxu0 0
        %2458 = vmatpush1.bf16.msra.mxu0 0
        %2459 = vmatprep.subr.bf16.mxu0 0
        %2460 = vmatpush1.bf16.msra.mxu0 0
        %2461 = vmatprep.subr.bf16.mxu0 0
        %2462 = vmatpush1.bf16.msra.mxu0 0
        %2463 = vmatprep.subr.bf16.mxu0 0
        %2464 = vmatpush1.bf16.msra.mxu0 0
        %2465 = vmatprep.subr.bf16.mxu0 0
        %2466 = vmatpush1.bf16.msra.mxu0 0
        %2467 = vmatprep.subr.bf16.mxu0 0
        %2468 = vmatpush1.bf16.msra.mxu0 0
        %2469 = vmatprep.subr.bf16.mxu0 0
        %2470 = vmatpush1.bf16.msra.mxu0 0
        %2471 = vmatprep.subr.bf16.mxu0 0
        %2472 = vmatpush1.bf16.msra.mxu0 0
        %2473 = vmatprep.subr.bf16.mxu0 0
        %2474 = vmatpush1.bf16.msra.mxu0 0
        %2475 = vmatprep.mubr.bf16.mxu0 0
        %2476 = vmatmul.mubr.bf16.gmra.mrb[0].mxu0 %v1010
        %v2477 = vpop.f32.mrb[0].mxu0
        %v2478 = vadd.f32 %v2429, %v2477
        %v2479 = vpop.f32.mrb[0].mxu0
        %v2480 = vpop.f32.mrb[0].mxu0
        %v2481 = vadd.f32 %v2429, %v2480
        %v2482 = vpop.f32.mrb[0].mxu0
        %2483 = vmatprep.mubr.bf16.mxu0 0
        %2484 = vmatmul.mubr.bf16.gmra.mrb[0].mxu0 %v1013
        %v2485 = vpop.f32.mrb[0].mxu0
        %v2486 = vadd.f32 %v2429, %v2485
        %v2487 = vpop.f32.mrb[0].mxu0
        %v2488 = vpop.f32.mrb[0].mxu0
        %v2489 = vadd.f32 %v2429, %v2488
        %v2490 = vpop.f32.mrb[0].mxu0
        %2491 = vdwg.mxu0
        %s2492 = scalar_lea.vmem %s908, 32
        %v2493 = vld [vmem:[%s2492] sm:$0xf]
        %v2494 = vld [vmem:[%s2492 + $0x4] sm:$0xf]
        %v2495 = vld [vmem:[%s2492 + $0x8] sm:$0xf]
        %v2496 = vld [vmem:[%s2492 + $0xc] sm:$0xf]
        %s2497 = scalar_lea.vmem %s920, 2
        %v2498 = vld [vmem:[%s2497] sm:$0x1]
        %v2500 = vlaneseq
        %v2501 = vshrl.u32 %v2500, 7
        %v2502 = vsub.s32 0, %v2501
        %v2503 = vrot.slane %v2498, %v2502
        %v2509 = vunpack.c.l.b16 %v2493
        %v2510 = vunpack.c.l.b16 %v2494
        %v2511 = vunpack.c.l.b16 %v2495
        %v2512 = vunpack.c.l.b16 %v2496
        %v2513 = vpack.c.b16 %v2510, %v2509
        %v2514 = vpack.c.b16 %v2512, %v2511
        %2517 = vmatprep.subr.bf16.mxu0 0
        %2518 = vmatpush1.bf16.msra.mxu0 %v2513
        %2519 = vmatprep.subr.bf16.mxu0 0
        %2520 = vmatpush1.bf16.msra.mxu0 %v2514
        %2521 = vmatprep.subr.bf16.mxu0 0
        %2522 = vmatpush1.bf16.msra.mxu0 0
        %2523 = vmatprep.subr.bf16.mxu0 0
        %2524 = vmatpush1.bf16.msra.mxu0 0
        %2525 = vmatprep.subr.bf16.mxu0 0
        %2526 = vmatpush1.bf16.msra.mxu0 0
        %2527 = vmatprep.subr.bf16.mxu0 0
        %2528 = vmatpush1.bf16.msra.mxu0 0
        %2529 = vmatprep.subr.bf16.mxu0 0
        %2530 = vmatpush1.bf16.msra.mxu0 0
        %2531 = vmatprep.subr.bf16.mxu0 0
        %2532 = vmatpush1.bf16.msra.mxu0 0
        %2533 = vmatprep.subr.bf16.mxu0 0
        %2534 = vmatpush1.bf16.msra.mxu0 0
        %2535 = vmatprep.subr.bf16.mxu0 0
        %2536 = vmatpush1.bf16.msra.mxu0 0
        %2537 = vmatprep.subr.bf16.mxu0 0
        %2538 = vmatpush1.bf16.msra.mxu0 0
        %2539 = vmatprep.subr.bf16.mxu0 0
        %2540 = vmatpush1.bf16.msra.mxu0 0
        %2541 = vmatprep.subr.bf16.mxu0 0
        %2542 = vmatpush1.bf16.msra.mxu0 0
        %2543 = vmatprep.subr.bf16.mxu0 0
        %2544 = vmatpush1.bf16.msra.mxu0 0
        %2545 = vmatprep.subr.bf16.mxu0 0
        %2546 = vmatpush1.bf16.msra.mxu0 0
        %2547 = vmatprep.subr.bf16.mxu0 0
        %2548 = vmatpush1.bf16.msra.mxu0 0
        %2549 = vmatprep.mubr.bf16.mxu0 0
        %2550 = vmatmul.mubr.bf16.gmra.mrb[0].mxu0 %v1010
        %v2551 = vpop.f32.mrb[0].mxu0
        %v2552 = vadd.f32 %v2503, %v2551
        %v2553 = vpop.f32.mrb[0].mxu0
        %v2554 = vpop.f32.mrb[0].mxu0
        %v2555 = vadd.f32 %v2503, %v2554
        %v2556 = vpop.f32.mrb[0].mxu0
        %2557 = vmatprep.mubr.bf16.mxu0 0
        %2558 = vmatmul.mubr.bf16.gmra.mrb[0].mxu0 %v1013
        %v2559 = vpop.f32.mrb[0].mxu0
        %v2560 = vadd.f32 %v2503, %v2559
        %v2561 = vpop.f32.mrb[0].mxu0
        %v2562 = vpop.f32.mrb[0].mxu0
        %v2563 = vadd.f32 %v2503, %v2562
        %v2564 = vpop.f32.mrb[0].mxu0
        %2565 = vdwg.mxu0
        %v2567 = vsel %vm1208, %v2404, 0
        %v2570 = vsel %vm1208, %v2407, 0
        %v2573 = vsel %vm1208, %v2478, 0
        %v2576 = vsel %vm1208, %v2481, 0
        %2578 = vmatprep.subr.mxu0 0.0
        %2579 = vmatpush1.xpose.msra.mxu0 %v2573
        %2580 = vmatprep.subr.mxu0 0.0
        %2581 = vmatpush1.xpose.msra.mxu0 %v2576
        %2582 = vmatprep.subr.mxu0 0.0
        %2583 = vmatpush1.xpose.msra.mxu0 0.0
        %2584 = vmatprep.subr.mxu0 0.0
        %2585 = vmatpush1.xpose.msra.mxu0 0.0
        %2586 = vmatprep.subr.mxu0 0.0
        %2587 = vmatpush1.xpose.msra.mxu0 0.0
        %2588 = vmatprep.subr.mxu0 0.0
        %2589 = vmatpush1.xpose.msra.mxu0 0.0
        %2590 = vmatprep.subr.mxu0 0.0
        %2591 = vmatpush1.xpose.msra.mxu0 0.0
        %2592 = vmatprep.subr.mxu0 0.0
        %2593 = vmatpush1.xpose.msra.mxu0 0.0
        %2594 = vmatprep.subr.mxu0 0.0
        %2595 = vmatpush1.xpose.msra.mxu0 0.0
        %2596 = vmatprep.subr.mxu0 0.0
        %2597 = vmatpush1.xpose.msra.mxu0 0.0
        %2598 = vmatprep.subr.mxu0 0.0
        %2599 = vmatpush1.xpose.msra.mxu0 0.0
        %2600 = vmatprep.subr.mxu0 0.0
        %2601 = vmatpush1.xpose.msra.mxu0 0.0
        %2602 = vmatprep.subr.mxu0 0.0
        %2603 = vmatpush1.xpose.msra.mxu0 0.0
        %2604 = vmatprep.subr.mxu0 0.0
        %2605 = vmatpush1.xpose.msra.mxu0 0.0
        %2606 = vmatprep.subr.mxu0 0.0
        %2607 = vmatpush1.xpose.msra.mxu0 0.0
        %2608 = vmatprep.subr.mxu0 0.0
        %2609 = vmatpush1.xpose.msra.mxu0 0.0
        %2610 = vmatprep.subr.mxu0 0.0
        %2611 = vmatpush1.xpose.msra.mxu0 0.0
        %2612 = vmatprep.subr.mxu0 0.0
        %2613 = vmatpush1.xpose.msra.mxu0 0.0
        %2614 = vmatprep.subr.mxu0 0.0
        %2615 = vmatpush1.xpose.msra.mxu0 0.0
        %2616 = vmatprep.subr.mxu0 0.0
        %2617 = vmatpush1.xpose.msra.mxu0 0.0
        %2618 = vmatprep.subr.mxu0 0.0
        %2619 = vmatpush1.xpose.msra.mxu0 0.0
        %2620 = vmatprep.subr.mxu0 0.0
        %2621 = vmatpush1.xpose.msra.mxu0 0.0
        %2622 = vmatprep.subr.mxu0 0.0
        %2623 = vmatpush1.xpose.msra.mxu0 0.0
        %2624 = vmatprep.subr.mxu0 0.0
        %2625 = vmatpush1.xpose.msra.mxu0 0.0
        %2626 = vmatprep.subr.mxu0 0.0
        %2627 = vmatpush1.xpose.msra.mxu0 0.0
        %2628 = vmatprep.subr.mxu0 0.0
        %2629 = vmatpush1.xpose.msra.mxu0 0.0
        %2630 = vmatprep.subr.mxu0 0.0
        %2631 = vmatpush1.xpose.msra.mxu0 0.0
        %2632 = vmatprep.subr.mxu0 0.0
        %2633 = vmatpush1.xpose.msra.mxu0 0.0
        %2634 = vmatprep.subr.mxu0 0.0
        %2635 = vmatpush1.xpose.msra.mxu0 0.0
        %2636 = vmatprep.subr.mxu0 0.0
        %2637 = vmatpush1.xpose.msra.mxu0 0.0
        %2638 = vmatprep.subr.mxu0 0.0
        %2639 = vmatpush1.xpose.msra.mxu0 0.0
        %2640 = vmatprep.subr.mxu0 0.0
        %2641 = vmatpush1.xpose.msra.mxu0 0.0
        %2642 = vmatprep.mubr.f32.mxu0 0.0
        %2643 = vmatmul.mubr.f32.gmra.mrb[0].mxu0 %v2567
        %v2644 = vpop.f32.mrb[0].mxu0
        %v2645 = vadd.f32 0.0, %v2644
        %v2646 = vpop.f32.mrb[0].mxu0
        %2647 = vmatprep.mubr.f32.mxu0 0.0
        %2648 = vmatmul.mubr.f32.gmra.mrb[0].mxu0 %v2570
        %v2649 = vpop.f32.mrb[0].mxu0
        %v2650 = vadd.f32 0.0, %v2649
        %v2651 = vpop.f32.mrb[0].mxu0
        %2652 = vdwg.mxu0
        %v2654 = vsel %vm1208, %v2412, 0
        %v2657 = vsel %vm1208, %v2415, 0
        %v2660 = vsel %vm1208, %v2486, 0
        %v2663 = vsel %vm1208, %v2489, 0
        %2665 = vmatprep.subr.mxu0 0.0
        %2666 = vmatpush1.xpose.msra.mxu0 %v2660
        %2667 = vmatprep.subr.mxu0 0.0
        %2668 = vmatpush1.xpose.msra.mxu0 %v2663
        %2669 = vmatprep.subr.mxu0 0.0
        %2670 = vmatpush1.xpose.msra.mxu0 0.0
        %2671 = vmatprep.subr.mxu0 0.0
        %2672 = vmatpush1.xpose.msra.mxu0 0.0
        %2673 = vmatprep.subr.mxu0 0.0
        %2674 = vmatpush1.xpose.msra.mxu0 0.0
        %2675 = vmatprep.subr.mxu0 0.0
        %2676 = vmatpush1.xpose.msra.mxu0 0.0
        %2677 = vmatprep.subr.mxu0 0.0
        %2678 = vmatpush1.xpose.msra.mxu0 0.0
        %2679 = vmatprep.subr.mxu0 0.0
        %2680 = vmatpush1.xpose.msra.mxu0 0.0
        %2681 = vmatprep.subr.mxu0 0.0
        %2682 = vmatpush1.xpose.msra.mxu0 0.0
        %2683 = vmatprep.subr.mxu0 0.0
        %2684 = vmatpush1.xpose.msra.mxu0 0.0
        %2685 = vmatprep.subr.mxu0 0.0
        %2686 = vmatpush1.xpose.msra.mxu0 0.0
        %2687 = vmatprep.subr.mxu0 0.0
        %2688 = vmatpush1.xpose.msra.mxu0 0.0
        %2689 = vmatprep.subr.mxu0 0.0
        %2690 = vmatpush1.xpose.msra.mxu0 0.0
        %2691 = vmatprep.subr.mxu0 0.0
        %2692 = vmatpush1.xpose.msra.mxu0 0.0
        %2693 = vmatprep.subr.mxu0 0.0
        %2694 = vmatpush1.xpose.msra.mxu0 0.0
        %2695 = vmatprep.subr.mxu0 0.0
        %2696 = vmatpush1.xpose.msra.mxu0 0.0
        %2697 = vmatprep.subr.mxu0 0.0
        %2698 = vmatpush1.xpose.msra.mxu0 0.0
        %2699 = vmatprep.subr.mxu0 0.0
        %2700 = vmatpush1.xpose.msra.mxu0 0.0
        %2701 = vmatprep.subr.mxu0 0.0
        %2702 = vmatpush1.xpose.msra.mxu0 0.0
        %2703 = vmatprep.subr.mxu0 0.0
        %2704 = vmatpush1.xpose.msra.mxu0 0.0
        %2705 = vmatprep.subr.mxu0 0.0
        %2706 = vmatpush1.xpose.msra.mxu0 0.0
        %2707 = vmatprep.subr.mxu0 0.0
        %2708 = vmatpush1.xpose.msra.mxu0 0.0
        %2709 = vmatprep.subr.mxu0 0.0
        %2710 = vmatpush1.xpose.msra.mxu0 0.0
        %2711 = vmatprep.subr.mxu0 0.0
        %2712 = vmatpush1.xpose.msra.mxu0 0.0
        %2713 = vmatprep.subr.mxu0 0.0
        %2714 = vmatpush1.xpose.msra.mxu0 0.0
        %2715 = vmatprep.subr.mxu0 0.0
        %2716 = vmatpush1.xpose.msra.mxu0 0.0
        %2717 = vmatprep.subr.mxu0 0.0
        %2718 = vmatpush1.xpose.msra.mxu0 0.0
        %2719 = vmatprep.subr.mxu0 0.0
        %2720 = vmatpush1.xpose.msra.mxu0 0.0
        %2721 = vmatprep.subr.mxu0 0.0
        %2722 = vmatpush1.xpose.msra.mxu0 0.0
        %2723 = vmatprep.subr.mxu0 0.0
        %2724 = vmatpush1.xpose.msra.mxu0 0.0
        %2725 = vmatprep.subr.mxu0 0.0
        %2726 = vmatpush1.xpose.msra.mxu0 0.0
        %2727 = vmatprep.subr.mxu0 0.0
        %2728 = vmatpush1.xpose.msra.mxu0 0.0
        %2729 = vmatprep.mubr.f32.mxu0 0.0
        %2730 = vmatmul.mubr.f32.gmra.mrb[0].mxu0 %v2654
        %v2731 = vpop.f32.mrb[0].mxu0
        %v2732 = vadd.f32 0.0, %v2731
        %v2733 = vpop.f32.mrb[0].mxu0
        %2734 = vmatprep.mubr.f32.mxu0 0.0
        %2735 = vmatmul.mubr.f32.gmra.mrb[0].mxu0 %v2657
        %v2736 = vpop.f32.mrb[0].mxu0
        %v2737 = vadd.f32 0.0, %v2736
        %v2738 = vpop.f32.mrb[0].mxu0
        %2739 = vdwg.mxu0
        %v2740 = vmul.f32 %v2645, 0.35355338
        %v2741 = vmul.f32 %v2650, 0.35355338
        %v2742 = vmul.f32 %v2732, 0.35355338
        %v2743 = vmul.f32 %v2737, 0.35355338
        %v2744 = vadd.f32 %v2740, %v1392
        %v2745 = vadd.f32 %v2741, %v1392
        %v2746 = vadd.f32 %v2742, %v1396
        %v2747 = vadd.f32 %v2743, %v1396
        %v2748 = vsel %vm1403, %v2744, -inf
        %2749 = vmax.xlane.f32.xlu0 %v2748
        %v2750 = vpop.xlane.xlu0 %2749
        %v2751 = vsel %vm1403, %v2745, -inf
        %2752 = vmax.xlane.f32.xlu0 %v2751
        %v2753 = vpop.xlane.xlu0 %2752
        %v2754 = vsel %vm1403, %v2746, -inf
        %2755 = vmax.xlane.f32.xlu0 %v2754
        %v2756 = vpop.xlane.xlu0 %2755
        %v2757 = vsel %vm1403, %v2747, -inf
        %2758 = vmax.xlane.f32.xlu0 %v2757
        %v2759 = vpop.xlane.xlu0 %2758
        %v2760 = vsub.f32 %v2744, %v2750
        %v2761 = vsub.f32 %v2745, %v2753
        %v2762 = vsub.f32 %v2746, %v2756
        %v2763 = vsub.f32 %v2747, %v2759
        %v2764 = vmul.f32 %v2760, 1.442695
        %v2765 = vpow.pop %v2764
        %v2766 = vmul.f32 %v2761, 1.442695
        %v2767 = vpow.pop %v2766
        %v2768 = vmul.f32 %v2762, 1.442695
        %v2769 = vpow.pop %v2768
        %v2770 = vmul.f32 %v2763, 1.442695
        %v2771 = vpow.pop %v2770
        %v2772 = vsel %vm1403, %v2765, 0.0
        %2773 = vadd.xlane.f32.xlu0 %v2772
        %v2774 = vpop.xlane.xlu0 %2773
        %v2775 = vsel %vm1403, %v2767, 0.0
        %2776 = vadd.xlane.f32.xlu0 %v2775
        %v2777 = vpop.xlane.xlu0 %2776
        %v2778 = vsel %vm1403, %v2769, 0.0
        %2779 = vadd.xlane.f32.xlu0 %v2778
        %v2780 = vpop.xlane.xlu0 %2779
        %v2781 = vsel %vm1403, %v2771, 0.0
        %2782 = vadd.xlane.f32.xlu0 %v2781
        %v2783 = vpop.xlane.xlu0 %2782
        %v2784 = vrcp.pop %v2774
        %v2785 = vrcp.pop %v2777
        %v2786 = vrcp.pop %v2780
        %v2787 = vrcp.pop %v2783
        %v2788 = vmul.f32 %v2765, %v2784
        %v2789 = vmul.f32 %v2767, %v2785
        %v2790 = vmul.f32 %v2769, %v2786
        %v2791 = vmul.f32 %v2771, %v2787
        %v2793 = vsel %vm1403, %v2788, 0
        %v2796 = vsel %vm1403, %v2789, 0
        %2798 = vmatprep.subr.mxu0 0.0
        %2799 = vmatpush1.msra.mxu0 %v2552
        %2800 = vmatprep.subr.mxu0 0.0
        %2801 = vmatpush1.msra.mxu0 %v2555
        %2802 = vmatprep.subr.mxu0 0.0
        %2803 = vmatpush1.msra.mxu0 0.0
        %2804 = vmatprep.subr.mxu0 0.0
        %2805 = vmatpush1.msra.mxu0 0.0
        %2806 = vmatprep.subr.mxu0 0.0
        %2807 = vmatpush1.msra.mxu0 0.0
        %2808 = vmatprep.subr.mxu0 0.0
        %2809 = vmatpush1.msra.mxu0 0.0
        %2810 = vmatprep.subr.mxu0 0.0
        %2811 = vmatpush1.msra.mxu0 0.0
        %2812 = vmatprep.subr.mxu0 0.0
        %2813 = vmatpush1.msra.mxu0 0.0
        %2814 = vmatprep.subr.mxu0 0.0
        %2815 = vmatpush1.msra.mxu0 0.0
        %2816 = vmatprep.subr.mxu0 0.0
        %2817 = vmatpush1.msra.mxu0 0.0
        %2818 = vmatprep.subr.mxu0 0.0
        %2819 = vmatpush1.msra.mxu0 0.0
        %2820 = vmatprep.subr.mxu0 0.0
        %2821 = vmatpush1.msra.mxu0 0.0
        %2822 = vmatprep.subr.mxu0 0.0
        %2823 = vmatpush1.msra.mxu0 0.0
        %2824 = vmatprep.subr.mxu0 0.0
        %2825 = vmatpush1.msra.mxu0 0.0
        %2826 = vmatprep.subr.mxu0 0.0
        %2827 = vmatpush1.msra.mxu0 0.0
        %2828 = vmatprep.subr.mxu0 0.0
        %2829 = vmatpush1.msra.mxu0 0.0
        %2830 = vmatprep.subr.mxu0 0.0
        %2831 = vmatpush1.msra.mxu0 0.0
        %2832 = vmatprep.subr.mxu0 0.0
        %2833 = vmatpush1.msra.mxu0 0.0
        %2834 = vmatprep.subr.mxu0 0.0
        %2835 = vmatpush1.msra.mxu0 0.0
        %2836 = vmatprep.subr.mxu0 0.0
        %2837 = vmatpush1.msra.mxu0 0.0
        %2838 = vmatprep.subr.mxu0 0.0
        %2839 = vmatpush1.msra.mxu0 0.0
        %2840 = vmatprep.subr.mxu0 0.0
        %2841 = vmatpush1.msra.mxu0 0.0
        %2842 = vmatprep.subr.mxu0 0.0
        %2843 = vmatpush1.msra.mxu0 0.0
        %2844 = vmatprep.subr.mxu0 0.0
        %2845 = vmatpush1.msra.mxu0 0.0
        %2846 = vmatprep.subr.mxu0 0.0
        %2847 = vmatpush1.msra.mxu0 0.0
        %2848 = vmatprep.subr.mxu0 0.0
        %2849 = vmatpush1.msra.mxu0 0.0
        %2850 = vmatprep.subr.mxu0 0.0
        %2851 = vmatpush1.msra.mxu0 0.0
        %2852 = vmatprep.subr.mxu0 0.0
        %2853 = vmatpush1.msra.mxu0 0.0
        %2854 = vmatprep.subr.mxu0 0.0
        %2855 = vmatpush1.msra.mxu0 0.0
        %2856 = vmatprep.subr.mxu0 0.0
        %2857 = vmatpush1.msra.mxu0 0.0
        %2858 = vmatprep.subr.mxu0 0.0
        %2859 = vmatpush1.msra.mxu0 0.0
        %2860 = vmatprep.subr.mxu0 0.0
        %2861 = vmatpush1.msra.mxu0 0.0
        %2862 = vmatprep.mubr.f32.mxu0 0.0
        %2863 = vmatmul.mubr.f32.gmra.mrb[0].mxu0 %v2793
        %v2864 = vpop.f32.mrb[0].mxu0
        %v2865 = vadd.f32 0.0, %v2864
        %v2866 = vpop.f32.mrb[0].mxu0
        %2867 = vmatprep.mubr.f32.mxu0 0.0
        %2868 = vmatmul.mubr.f32.gmra.mrb[0].mxu0 %v2796
        %v2869 = vpop.f32.mrb[0].mxu0
        %v2870 = vadd.f32 0.0, %v2869
        %v2871 = vpop.f32.mrb[0].mxu0
        %2872 = vdwg.mxu0
        %v2874 = vsel %vm1403, %v2790, 0
        %v2877 = vsel %vm1403, %v2791, 0
        %2879 = vmatprep.subr.mxu0 0.0
        %2880 = vmatpush1.msra.mxu0 %v2560
        %2881 = vmatprep.subr.mxu0 0.0
        %2882 = vmatpush1.msra.mxu0 %v2563
        %2883 = vmatprep.subr.mxu0 0.0
        %2884 = vmatpush1.msra.mxu0 0.0
        %2885 = vmatprep.subr.mxu0 0.0
        %2886 = vmatpush1.msra.mxu0 0.0
        %2887 = vmatprep.subr.mxu0 0.0
        %2888 = vmatpush1.msra.mxu0 0.0
        %2889 = vmatprep.subr.mxu0 0.0
        %2890 = vmatpush1.msra.mxu0 0.0
        %2891 = vmatprep.subr.mxu0 0.0
        %2892 = vmatpush1.msra.mxu0 0.0
        %2893 = vmatprep.subr.mxu0 0.0
        %2894 = vmatpush1.msra.mxu0 0.0
        %2895 = vmatprep.subr.mxu0 0.0
        %2896 = vmatpush1.msra.mxu0 0.0
        %2897 = vmatprep.subr.mxu0 0.0
        %2898 = vmatpush1.msra.mxu0 0.0
        %2899 = vmatprep.subr.mxu0 0.0
        %2900 = vmatpush1.msra.mxu0 0.0
        %2901 = vmatprep.subr.mxu0 0.0
        %2902 = vmatpush1.msra.mxu0 0.0
        %2903 = vmatprep.subr.mxu0 0.0
        %2904 = vmatpush1.msra.mxu0 0.0
        %2905 = vmatprep.subr.mxu0 0.0
        %2906 = vmatpush1.msra.mxu0 0.0
        %2907 = vmatprep.subr.mxu0 0.0
        %2908 = vmatpush1.msra.mxu0 0.0
        %2909 = vmatprep.subr.mxu0 0.0
        %2910 = vmatpush1.msra.mxu0 0.0
        %2911 = vmatprep.subr.mxu0 0.0
        %2912 = vmatpush1.msra.mxu0 0.0
        %2913 = vmatprep.subr.mxu0 0.0
        %2914 = vmatpush1.msra.mxu0 0.0
        %2915 = vmatprep.subr.mxu0 0.0
        %2916 = vmatpush1.msra.mxu0 0.0
        %2917 = vmatprep.subr.mxu0 0.0
        %2918 = vmatpush1.msra.mxu0 0.0
        %2919 = vmatprep.subr.mxu0 0.0
        %2920 = vmatpush1.msra.mxu0 0.0
        %2921 = vmatprep.subr.mxu0 0.0
        %2922 = vmatpush1.msra.mxu0 0.0
        %2923 = vmatprep.subr.mxu0 0.0
        %2924 = vmatpush1.msra.mxu0 0.0
        %2925 = vmatprep.subr.mxu0 0.0
        %2926 = vmatpush1.msra.mxu0 0.0
        %2927 = vmatprep.subr.mxu0 0.0
        %2928 = vmatpush1.msra.mxu0 0.0
        %2929 = vmatprep.subr.mxu0 0.0
        %2930 = vmatpush1.msra.mxu0 0.0
        %2931 = vmatprep.subr.mxu0 0.0
        %2932 = vmatpush1.msra.mxu0 0.0
        %2933 = vmatprep.subr.mxu0 0.0
        %2934 = vmatpush1.msra.mxu0 0.0
        %2935 = vmatprep.subr.mxu0 0.0
        %2936 = vmatpush1.msra.mxu0 0.0
        %2937 = vmatprep.subr.mxu0 0.0
        %2938 = vmatpush1.msra.mxu0 0.0
        %2939 = vmatprep.subr.mxu0 0.0
        %2940 = vmatpush1.msra.mxu0 0.0
        %2941 = vmatprep.subr.mxu0 0.0
        %2942 = vmatpush1.msra.mxu0 0.0
        %2943 = vmatprep.mubr.f32.mxu0 0.0
        %2944 = vmatmul.mubr.f32.gmra.mrb[0].mxu0 %v2874
        %v2945 = vpop.f32.mrb[0].mxu0
        %v2946 = vadd.f32 0.0, %v2945
        %v2947 = vpop.f32.mrb[0].mxu0
        %2948 = vmatprep.mubr.f32.mxu0 0.0
        %2949 = vmatmul.mubr.f32.gmra.mrb[0].mxu0 %v2877
        %v2950 = vpop.f32.mrb[0].mxu0
        %v2951 = vadd.f32 0.0, %v2950
        %v2952 = vpop.f32.mrb[0].mxu0
        %2953 = vdwg.mxu0
        %v2954 = vpack.c.bf16 %v2870, %v2865
        %v2955 = vpack.c.bf16 %v2951, %v2946
        %s2956 = scalar_lea.vmem %s925, 8
        %v2957 = vld [vmem:[%s2956] sm:$0xf]
        %v2959 = vsel %vm1208, %v2954, 0
        %v2962 = vsel %vm1208, %v2955, 0
        %v2965 = vsel %vm2233, %v2957, 0
        %2967 = vmatprep.subr.bf16.mxu0 0
        %2968 = vmatpush1.bf16.msra.mxu0 %v2965
        %2969 = vmatprep.subr.bf16.mxu0 0
        %2970 = vmatpush1.bf16.msra.mxu0 0
        %2971 = vmatprep.subr.bf16.mxu0 0
        %2972 = vmatpush1.bf16.msra.mxu0 0
        %2973 = vmatprep.subr.bf16.mxu0 0
        %2974 = vmatpush1.bf16.msra.mxu0 0
        %2975 = vmatprep.subr.bf16.mxu0 0
        %2976 = vmatpush1.bf16.msra.mxu0 0
        %2977 = vmatprep.subr.bf16.mxu0 0
        %2978 = vmatpush1.bf16.msra.mxu0 0
        %2979 = vmatprep.subr.bf16.mxu0 0
        %2980 = vmatpush1.bf16.msra.mxu0 0
        %2981 = vmatprep.subr.bf16.mxu0 0
        %2982 = vmatpush1.bf16.msra.mxu0 0
        %2983 = vmatprep.subr.bf16.mxu0 0
        %2984 = vmatpush1.bf16.msra.mxu0 0
        %2985 = vmatprep.subr.bf16.mxu0 0
        %2986 = vmatpush1.bf16.msra.mxu0 0
        %2987 = vmatprep.subr.bf16.mxu0 0
        %2988 = vmatpush1.bf16.msra.mxu0 0
        %2989 = vmatprep.subr.bf16.mxu0 0
        %2990 = vmatpush1.bf16.msra.mxu0 0
        %2991 = vmatprep.subr.bf16.mxu0 0
        %2992 = vmatpush1.bf16.msra.mxu0 0
        %2993 = vmatprep.subr.bf16.mxu0 0
        %2994 = vmatpush1.bf16.msra.mxu0 0
        %2995 = vmatprep.subr.bf16.mxu0 0
        %2996 = vmatpush1.bf16.msra.mxu0 0
        %2997 = vmatprep.subr.bf16.mxu0 0
        %2998 = vmatpush1.bf16.msra.mxu0 0
        %2999 = vmatprep.mubr.bf16.mxu0 0
        %3000 = vmatmul.mubr.bf16.gmra.mrb[0].mxu0 %v2959
        %v3001 = vpop.f32.mrb[0].mxu0
        %v3002 = vadd.f32 0.0, %v3001
        %v3003 = vpop.f32.mrb[0].mxu0
        %v3004 = vpop.f32.mrb[0].mxu0
        %v3005 = vadd.f32 0.0, %v3004
        %v3006 = vpop.f32.mrb[0].mxu0
        %3007 = vmatprep.mubr.bf16.mxu0 0
        %3008 = vmatmul.mubr.bf16.gmra.mrb[0].mxu0 %v2962
        %v3009 = vpop.f32.mrb[0].mxu0
        %v3010 = vadd.f32 0.0, %v3009
        %v3011 = vpop.f32.mrb[0].mxu0
        %v3012 = vpop.f32.mrb[0].mxu0
        %v3013 = vadd.f32 0.0, %v3012
        %v3014 = vpop.f32.mrb[0].mxu0
        %3015 = vdwg.mxu0
        %v3016 = vadd.f32 %v2330, %v3002
        %v3017 = vadd.f32 %v2333, %v3005
        %v3018 = vadd.f32 %v2338, %v3010
        %v3019 = vadd.f32 %v2341, %v3013
        %s3020 = scalar_lea.vmem %s898, 48
        %v3021 = vld [vmem:[%s3020] sm:$0xf]
        %v3022 = vld [vmem:[%s3020 + $0x4] sm:$0xf]
        %v3023 = vld [vmem:[%s3020 + $0x8] sm:$0xf]
        %v3024 = vld [vmem:[%s3020 + $0xc] sm:$0xf]
        %s3025 = scalar_lea.vmem %s912, 3
        %v3026 = vld [vmem:[%s3025] sm:$0x1]
        %v3028 = vlaneseq
        %v3029 = vshrl.u32 %v3028, 7
        %v3030 = vsub.s32 0, %v3029
        %v3031 = vrot.slane %v3026, %v3030
        %v3037 = vunpack.c.l.b16 %v3021
        %v3038 = vunpack.c.l.b16 %v3022
        %v3039 = vunpack.c.l.b16 %v3023
        %v3040 = vunpack.c.l.b16 %v3024
        %v3041 = vpack.c.b16 %v3038, %v3037
        %v3042 = vpack.c.b16 %v3040, %v3039
        %3045 = vmatprep.subr.bf16.mxu0 0
        %3046 = vmatpush1.bf16.msra.mxu0 %v3041
        %3047 = vmatprep.subr.bf16.mxu0 0
        %3048 = vmatpush1.bf16.msra.mxu0 %v3042
        %3049 = vmatprep.subr.bf16.mxu0 0
        %3050 = vmatpush1.bf16.msra.mxu0 0
        %3051 = vmatprep.subr.bf16.mxu0 0
        %3052 = vmatpush1.bf16.msra.mxu0 0
        %3053 = vmatprep.subr.bf16.mxu0 0
        %3054 = vmatpush1.bf16.msra.mxu0 0
        %3055 = vmatprep.subr.bf16.mxu0 0
        %3056 = vmatpush1.bf16.msra.mxu0 0
        %3057 = vmatprep.subr.bf16.mxu0 0
        %3058 = vmatpush1.bf16.msra.mxu0 0
        %3059 = vmatprep.subr.bf16.mxu0 0
        %3060 = vmatpush1.bf16.msra.mxu0 0
        %3061 = vmatprep.subr.bf16.mxu0 0
        %3062 = vmatpush1.bf16.msra.mxu0 0
        %3063 = vmatprep.subr.bf16.mxu0 0
        %3064 = vmatpush1.bf16.msra.mxu0 0
        %3065 = vmatprep.subr.bf16.mxu0 0
        %3066 = vmatpush1.bf16.msra.mxu0 0
        %3067 = vmatprep.subr.bf16.mxu0 0
        %3068 = vmatpush1.bf16.msra.mxu0 0
        %3069 = vmatprep.subr.bf16.mxu0 0
        %3070 = vmatpush1.bf16.msra.mxu0 0
        %3071 = vmatprep.subr.bf16.mxu0 0
        %3072 = vmatpush1.bf16.msra.mxu0 0
        %3073 = vmatprep.subr.bf16.mxu0 0
        %3074 = vmatpush1.bf16.msra.mxu0 0
        %3075 = vmatprep.subr.bf16.mxu0 0
        %3076 = vmatpush1.bf16.msra.mxu0 0
        %3077 = vmatprep.mubr.bf16.mxu0 0
        %3078 = vmatmul.mubr.bf16.gmra.mrb[0].mxu0 %v1010
        %v3079 = vpop.f32.mrb[0].mxu0
        %v3080 = vadd.f32 %v3031, %v3079
        %v3081 = vpop.f32.mrb[0].mxu0
        %v3082 = vpop.f32.mrb[0].mxu0
        %v3083 = vadd.f32 %v3031, %v3082
        %v3084 = vpop.f32.mrb[0].mxu0
        %3085 = vmatprep.mubr.bf16.mxu0 0
        %3086 = vmatmul.mubr.bf16.gmra.mrb[0].mxu0 %v1013
        %v3087 = vpop.f32.mrb[0].mxu0
        %v3088 = vadd.f32 %v3031, %v3087
        %v3089 = vpop.f32.mrb[0].mxu0
        %v3090 = vpop.f32.mrb[0].mxu0
        %v3091 = vadd.f32 %v3031, %v3090
        %v3092 = vpop.f32.mrb[0].mxu0
        %3093 = vdwg.mxu0
        %s3094 = scalar_lea.vmem %s903, 48
        %v3095 = vld [vmem:[%s3094] sm:$0xf]
        %v3096 = vld [vmem:[%s3094 + $0x4] sm:$0xf]
        %v3097 = vld [vmem:[%s3094 + $0x8] sm:$0xf]
        %v3098 = vld [vmem:[%s3094 + $0xc] sm:$0xf]
        %s3099 = scalar_lea.vmem %s916, 3
        %v3100 = vld [vmem:[%s3099] sm:$0x1]
        %v3102 = vlaneseq
        %v3103 = vshrl.u32 %v3102, 7
        %v3104 = vsub.s32 0, %v3103
        %v3105 = vrot.slane %v3100, %v3104
        %v3111 = vunpack.c.l.b16 %v3095
        %v3112 = vunpack.c.l.b16 %v3096
        %v3113 = vunpack.c.l.b16 %v3097
        %v3114 = vunpack.c.l.b16 %v3098
        %v3115 = vpack.c.b16 %v3112, %v3111
        %v3116 = vpack.c.b16 %v3114, %v3113
        %3119 = vmatprep.subr.bf16.mxu0 0
        %3120 = vmatpush1.bf16.msra.mxu0 %v3115
        %3121 = vmatprep.subr.bf16.mxu0 0
        %3122 = vmatpush1.bf16.msra.mxu0 %v3116
        %3123 = vmatprep.subr.bf16.mxu0 0
        %3124 = vmatpush1.bf16.msra.mxu0 0
        %3125 = vmatprep.subr.bf16.mxu0 0
        %3126 = vmatpush1.bf16.msra.mxu0 0
        %3127 = vmatprep.subr.bf16.mxu0 0
        %3128 = vmatpush1.bf16.msra.mxu0 0
        %3129 = vmatprep.subr.bf16.mxu0 0
        %3130 = vmatpush1.bf16.msra.mxu0 0
        %3131 = vmatprep.subr.bf16.mxu0 0
        %3132 = vmatpush1.bf16.msra.mxu0 0
        %3133 = vmatprep.subr.bf16.mxu0 0
        %3134 = vmatpush1.bf16.msra.mxu0 0
        %3135 = vmatprep.subr.bf16.mxu0 0
        %3136 = vmatpush1.bf16.msra.mxu0 0
        %3137 = vmatprep.subr.bf16.mxu0 0
        %3138 = vmatpush1.bf16.msra.mxu0 0
        %3139 = vmatprep.subr.bf16.mxu0 0
        %3140 = vmatpush1.bf16.msra.mxu0 0
        %3141 = vmatprep.subr.bf16.mxu0 0
        %3142 = vmatpush1.bf16.msra.mxu0 0
        %3143 = vmatprep.subr.bf16.mxu0 0
        %3144 = vmatpush1.bf16.msra.mxu0 0
        %3145 = vmatprep.subr.bf16.mxu0 0
        %3146 = vmatpush1.bf16.msra.mxu0 0
        %3147 = vmatprep.subr.bf16.mxu0 0
        %3148 = vmatpush1.bf16.msra.mxu0 0
        %3149 = vmatprep.subr.bf16.mxu0 0
        %3150 = vmatpush1.bf16.msra.mxu0 0
        %3151 = vmatprep.mubr.bf16.mxu0 0
        %3152 = vmatmul.mubr.bf16.gmra.mrb[0].mxu0 %v1010
        %v3153 = vpop.f32.mrb[0].mxu0
        %v3154 = vadd.f32 %v3105, %v3153
        %v3155 = vpop.f32.mrb[0].mxu0
        %v3156 = vpop.f32.mrb[0].mxu0
        %v3157 = vadd.f32 %v3105, %v3156
        %v3158 = vpop.f32.mrb[0].mxu0
        %3159 = vmatprep.mubr.bf16.mxu0 0
        %3160 = vmatmul.mubr.bf16.gmra.mrb[0].mxu0 %v1013
        %v3161 = vpop.f32.mrb[0].mxu0
        %v3162 = vadd.f32 %v3105, %v3161
        %v3163 = vpop.f32.mrb[0].mxu0
        %v3164 = vpop.f32.mrb[0].mxu0
        %v3165 = vadd.f32 %v3105, %v3164
        %v3166 = vpop.f32.mrb[0].mxu0
        %3167 = vdwg.mxu0
        %s3168 = scalar_lea.vmem %s908, 48
        %v3169 = vld [vmem:[%s3168] sm:$0xf]
        %v3170 = vld [vmem:[%s3168 + $0x4] sm:$0xf]
        %v3171 = vld [vmem:[%s3168 + $0x8] sm:$0xf]
        %v3172 = vld [vmem:[%s3168 + $0xc] sm:$0xf]
        %s3173 = scalar_lea.vmem %s920, 3
        %v3174 = vld [vmem:[%s3173] sm:$0x1]
        %v3176 = vlaneseq
        %v3177 = vshrl.u32 %v3176, 7
        %v3178 = vsub.s32 0, %v3177
        %v3179 = vrot.slane %v3174, %v3178
        %v3185 = vunpack.c.l.b16 %v3169
        %v3186 = vunpack.c.l.b16 %v3170
        %v3187 = vunpack.c.l.b16 %v3171
        %v3188 = vunpack.c.l.b16 %v3172
        %v3189 = vpack.c.b16 %v3186, %v3185
        %v3190 = vpack.c.b16 %v3188, %v3187
        %3193 = vmatprep.subr.bf16.mxu0 0
        %3194 = vmatpush1.bf16.msra.mxu0 %v3189
        %3195 = vmatprep.subr.bf16.mxu0 0
        %3196 = vmatpush1.bf16.msra.mxu0 %v3190
        %3197 = vmatprep.subr.bf16.mxu0 0
        %3198 = vmatpush1.bf16.msra.mxu0 0
        %3199 = vmatprep.subr.bf16.mxu0 0
        %3200 = vmatpush1.bf16.msra.mxu0 0
        %3201 = vmatprep.subr.bf16.mxu0 0
        %3202 = vmatpush1.bf16.msra.mxu0 0
        %3203 = vmatprep.subr.bf16.mxu0 0
        %3204 = vmatpush1.bf16.msra.mxu0 0
        %3205 = vmatprep.subr.bf16.mxu0 0
        %3206 = vmatpush1.bf16.msra.mxu0 0
        %3207 = vmatprep.subr.bf16.mxu0 0
        %3208 = vmatpush1.bf16.msra.mxu0 0
        %3209 = vmatprep.subr.bf16.mxu0 0
        %3210 = vmatpush1.bf16.msra.mxu0 0
        %3211 = vmatprep.subr.bf16.mxu0 0
        %3212 = vmatpush1.bf16.msra.mxu0 0
        %3213 = vmatprep.subr.bf16.mxu0 0
        %3214 = vmatpush1.bf16.msra.mxu0 0
        %3215 = vmatprep.subr.bf16.mxu0 0
        %3216 = vmatpush1.bf16.msra.mxu0 0
        %3217 = vmatprep.subr.bf16.mxu0 0
        %3218 = vmatpush1.bf16.msra.mxu0 0
        %3219 = vmatprep.subr.bf16.mxu0 0
        %3220 = vmatpush1.bf16.msra.mxu0 0
        %3221 = vmatprep.subr.bf16.mxu0 0
        %3222 = vmatpush1.bf16.msra.mxu0 0
        %3223 = vmatprep.subr.bf16.mxu0 0
        %3224 = vmatpush1.bf16.msra.mxu0 0
        %3225 = vmatprep.mubr.bf16.mxu0 0
        %3226 = vmatmul.mubr.bf16.gmra.mrb[0].mxu0 %v1010
        %v3227 = vpop.f32.mrb[0].mxu0
        %v3228 = vadd.f32 %v3179, %v3227
        %v3229 = vpop.f32.mrb[0].mxu0
        %v3230 = vpop.f32.mrb[0].mxu0
        %v3231 = vadd.f32 %v3179, %v3230
        %v3232 = vpop.f32.mrb[0].mxu0
        %3233 = vmatprep.mubr.bf16.mxu0 0
        %3234 = vmatmul.mubr.bf16.gmra.mrb[0].mxu0 %v1013
        %v3235 = vpop.f32.mrb[0].mxu0
        %v3236 = vadd.f32 %v3179, %v3235
        %v3237 = vpop.f32.mrb[0].mxu0
        %v3238 = vpop.f32.mrb[0].mxu0
        %v3239 = vadd.f32 %v3179, %v3238
        %v3240 = vpop.f32.mrb[0].mxu0
        %3241 = vdwg.mxu0
        %v3243 = vsel %vm1208, %v3080, 0
        %v3246 = vsel %vm1208, %v3083, 0
        %v3249 = vsel %vm1208, %v3154, 0
        %v3252 = vsel %vm1208, %v3157, 0
        %3254 = vmatprep.subr.mxu0 0.0
        %3255 = vmatpush1.xpose.msra.mxu0 %v3249
        %3256 = vmatprep.subr.mxu0 0.0
        %3257 = vmatpush1.xpose.msra.mxu0 %v3252
        %3258 = vmatprep.subr.mxu0 0.0
        %3259 = vmatpush1.xpose.msra.mxu0 0.0
        %3260 = vmatprep.subr.mxu0 0.0
        %3261 = vmatpush1.xpose.msra.mxu0 0.0
        %3262 = vmatprep.subr.mxu0 0.0
        %3263 = vmatpush1.xpose.msra.mxu0 0.0
        %3264 = vmatprep.subr.mxu0 0.0
        %3265 = vmatpush1.xpose.msra.mxu0 0.0
        %3266 = vmatprep.subr.mxu0 0.0
        %3267 = vmatpush1.xpose.msra.mxu0 0.0
        %3268 = vmatprep.subr.mxu0 0.0
        %3269 = vmatpush1.xpose.msra.mxu0 0.0
        %3270 = vmatprep.subr.mxu0 0.0
        %3271 = vmatpush1.xpose.msra.mxu0 0.0
        %3272 = vmatprep.subr.mxu0 0.0
        %3273 = vmatpush1.xpose.msra.mxu0 0.0
        %3274 = vmatprep.subr.mxu0 0.0
        %3275 = vmatpush1.xpose.msra.mxu0 0.0
        %3276 = vmatprep.subr.mxu0 0.0
        %3277 = vmatpush1.xpose.msra.mxu0 0.0
        %3278 = vmatprep.subr.mxu0 0.0
        %3279 = vmatpush1.xpose.msra.mxu0 0.0
        %3280 = vmatprep.subr.mxu0 0.0
        %3281 = vmatpush1.xpose.msra.mxu0 0.0
        %3282 = vmatprep.subr.mxu0 0.0
        %3283 = vmatpush1.xpose.msra.mxu0 0.0
        %3284 = vmatprep.subr.mxu0 0.0
        %3285 = vmatpush1.xpose.msra.mxu0 0.0
        %3286 = vmatprep.subr.mxu0 0.0
        %3287 = vmatpush1.xpose.msra.mxu0 0.0
        %3288 = vmatprep.subr.mxu0 0.0
        %3289 = vmatpush1.xpose.msra.mxu0 0.0
        %3290 = vmatprep.subr.mxu0 0.0
        %3291 = vmatpush1.xpose.msra.mxu0 0.0
        %3292 = vmatprep.subr.mxu0 0.0
        %3293 = vmatpush1.xpose.msra.mxu0 0.0
        %3294 = vmatprep.subr.mxu0 0.0
        %3295 = vmatpush1.xpose.msra.mxu0 0.0
        %3296 = vmatprep.subr.mxu0 0.0
        %3297 = vmatpush1.xpose.msra.mxu0 0.0
        %3298 = vmatprep.subr.mxu0 0.0
        %3299 = vmatpush1.xpose.msra.mxu0 0.0
        %3300 = vmatprep.subr.mxu0 0.0
        %3301 = vmatpush1.xpose.msra.mxu0 0.0
        %3302 = vmatprep.subr.mxu0 0.0
        %3303 = vmatpush1.xpose.msra.mxu0 0.0
        %3304 = vmatprep.subr.mxu0 0.0
        %3305 = vmatpush1.xpose.msra.mxu0 0.0
        %3306 = vmatprep.subr.mxu0 0.0
        %3307 = vmatpush1.xpose.msra.mxu0 0.0
        %3308 = vmatprep.subr.mxu0 0.0
        %3309 = vmatpush1.xpose.msra.mxu0 0.0
        %3310 = vmatprep.subr.mxu0 0.0
        %3311 = vmatpush1.xpose.msra.mxu0 0.0
        %3312 = vmatprep.subr.mxu0 0.0
        %3313 = vmatpush1.xpose.msra.mxu0 0.0
        %3314 = vmatprep.subr.mxu0 0.0
        %3315 = vmatpush1.xpose.msra.mxu0 0.0
        %3316 = vmatprep.subr.mxu0 0.0
        %3317 = vmatpush1.xpose.msra.mxu0 0.0
        %3318 = vmatprep.mubr.f32.mxu0 0.0
        %3319 = vmatmul.mubr.f32.gmra.mrb[0].mxu0 %v3243
        %v3320 = vpop.f32.mrb[0].mxu0
        %v3321 = vadd.f32 0.0, %v3320
        %v3322 = vpop.f32.mrb[0].mxu0
        %3323 = vmatprep.mubr.f32.mxu0 0.0
        %3324 = vmatmul.mubr.f32.gmra.mrb[0].mxu0 %v3246
        %v3325 = vpop.f32.mrb[0].mxu0
        %v3326 = vadd.f32 0.0, %v3325
        %v3327 = vpop.f32.mrb[0].mxu0
        %3328 = vdwg.mxu0
        %v3330 = vsel %vm1208, %v3088, 0
        %v3333 = vsel %vm1208, %v3091, 0
        %v3336 = vsel %vm1208, %v3162, 0
        %v3339 = vsel %vm1208, %v3165, 0
        %3341 = vmatprep.subr.mxu0 0.0
        %3342 = vmatpush1.xpose.msra.mxu0 %v3336
        %3343 = vmatprep.subr.mxu0 0.0
        %3344 = vmatpush1.xpose.msra.mxu0 %v3339
        %3345 = vmatprep.subr.mxu0 0.0
        %3346 = vmatpush1.xpose.msra.mxu0 0.0
        %3347 = vmatprep.subr.mxu0 0.0
        %3348 = vmatpush1.xpose.msra.mxu0 0.0
        %3349 = vmatprep.subr.mxu0 0.0
        %3350 = vmatpush1.xpose.msra.mxu0 0.0
        %3351 = vmatprep.subr.mxu0 0.0
        %3352 = vmatpush1.xpose.msra.mxu0 0.0
        %3353 = vmatprep.subr.mxu0 0.0
        %3354 = vmatpush1.xpose.msra.mxu0 0.0
        %3355 = vmatprep.subr.mxu0 0.0
        %3356 = vmatpush1.xpose.msra.mxu0 0.0
        %3357 = vmatprep.subr.mxu0 0.0
        %3358 = vmatpush1.xpose.msra.mxu0 0.0
        %3359 = vmatprep.subr.mxu0 0.0
        %3360 = vmatpush1.xpose.msra.mxu0 0.0
        %3361 = vmatprep.subr.mxu0 0.0
        %3362 = vmatpush1.xpose.msra.mxu0 0.0
        %3363 = vmatprep.subr.mxu0 0.0
        %3364 = vmatpush1.xpose.msra.mxu0 0.0
        %3365 = vmatprep.subr.mxu0 0.0
        %3366 = vmatpush1.xpose.msra.mxu0 0.0
        %3367 = vmatprep.subr.mxu0 0.0
        %3368 = vmatpush1.xpose.msra.mxu0 0.0
        %3369 = vmatprep.subr.mxu0 0.0
        %3370 = vmatpush1.xpose.msra.mxu0 0.0
        %3371 = vmatprep.subr.mxu0 0.0
        %3372 = vmatpush1.xpose.msra.mxu0 0.0
        %3373 = vmatprep.subr.mxu0 0.0
        %3374 = vmatpush1.xpose.msra.mxu0 0.0
        %3375 = vmatprep.subr.mxu0 0.0
        %3376 = vmatpush1.xpose.msra.mxu0 0.0
        %3377 = vmatprep.subr.mxu0 0.0
        %3378 = vmatpush1.xpose.msra.mxu0 0.0
        %3379 = vmatprep.subr.mxu0 0.0
        %3380 = vmatpush1.xpose.msra.mxu0 0.0
        %3381 = vmatprep.subr.mxu0 0.0
        %3382 = vmatpush1.xpose.msra.mxu0 0.0
        %3383 = vmatprep.subr.mxu0 0.0
        %3384 = vmatpush1.xpose.msra.mxu0 0.0
        %3385 = vmatprep.subr.mxu0 0.0
        %3386 = vmatpush1.xpose.msra.mxu0 0.0
        %3387 = vmatprep.subr.mxu0 0.0
        %3388 = vmatpush1.xpose.msra.mxu0 0.0
        %3389 = vmatprep.subr.mxu0 0.0
        %3390 = vmatpush1.xpose.msra.mxu0 0.0
        %3391 = vmatprep.subr.mxu0 0.0
        %3392 = vmatpush1.xpose.msra.mxu0 0.0
        %3393 = vmatprep.subr.mxu0 0.0
        %3394 = vmatpush1.xpose.msra.mxu0 0.0
        %3395 = vmatprep.subr.mxu0 0.0
        %3396 = vmatpush1.xpose.msra.mxu0 0.0
        %3397 = vmatprep.subr.mxu0 0.0
        %3398 = vmatpush1.xpose.msra.mxu0 0.0
        %3399 = vmatprep.subr.mxu0 0.0
        %3400 = vmatpush1.xpose.msra.mxu0 0.0
        %3401 = vmatprep.subr.mxu0 0.0
        %3402 = vmatpush1.xpose.msra.mxu0 0.0
        %3403 = vmatprep.subr.mxu0 0.0
        %3404 = vmatpush1.xpose.msra.mxu0 0.0
        %3405 = vmatprep.mubr.f32.mxu0 0.0
        %3406 = vmatmul.mubr.f32.gmra.mrb[0].mxu0 %v3330
        %v3407 = vpop.f32.mrb[0].mxu0
        %v3408 = vadd.f32 0.0, %v3407
        %v3409 = vpop.f32.mrb[0].mxu0
        %3410 = vmatprep.mubr.f32.mxu0 0.0
        %3411 = vmatmul.mubr.f32.gmra.mrb[0].mxu0 %v3333
        %v3412 = vpop.f32.mrb[0].mxu0
        %v3413 = vadd.f32 0.0, %v3412
        %v3414 = vpop.f32.mrb[0].mxu0
        %3415 = vdwg.mxu0
        %v3416 = vmul.f32 %v3321, 0.35355338
        %v3417 = vmul.f32 %v3326, 0.35355338
        %v3418 = vmul.f32 %v3408, 0.35355338
        %v3419 = vmul.f32 %v3413, 0.35355338
        %v3420 = vadd.f32 %v3416, %v1392
        %v3421 = vadd.f32 %v3417, %v1392
        %v3422 = vadd.f32 %v3418, %v1396
        %v3423 = vadd.f32 %v3419, %v1396
        %v3424 = vsel %vm1403, %v3420, -inf
        %3425 = vmax.xlane.f32.xlu0 %v3424
        %v3426 = vpop.xlane.xlu0 %3425
        %v3427 = vsel %vm1403, %v3421, -inf
        %3428 = vmax.xlane.f32.xlu0 %v3427
        %v3429 = vpop.xlane.xlu0 %3428
        %v3430 = vsel %vm1403, %v3422, -inf
        %3431 = vmax.xlane.f32.xlu0 %v3430
        %v3432 = vpop.xlane.xlu0 %3431
        %v3433 = vsel %vm1403, %v3423, -inf
        %3434 = vmax.xlane.f32.xlu0 %v3433
        %v3435 = vpop.xlane.xlu0 %3434
        %v3436 = vsub.f32 %v3420, %v3426
        %v3437 = vsub.f32 %v3421, %v3429
        %v3438 = vsub.f32 %v3422, %v3432
        %v3439 = vsub.f32 %v3423, %v3435
        %v3440 = vmul.f32 %v3436, 1.442695
        %v3441 = vpow.pop %v3440
        %v3442 = vmul.f32 %v3437, 1.442695
        %v3443 = vpow.pop %v3442
        %v3444 = vmul.f32 %v3438, 1.442695
        %v3445 = vpow.pop %v3444
        %v3446 = vmul.f32 %v3439, 1.442695
        %v3447 = vpow.pop %v3446
        %v3448 = vsel %vm1403, %v3441, 0.0
        %3449 = vadd.xlane.f32.xlu0 %v3448
        %v3450 = vpop.xlane.xlu0 %3449
        %v3451 = vsel %vm1403, %v3443, 0.0
        %3452 = vadd.xlane.f32.xlu0 %v3451
        %v3453 = vpop.xlane.xlu0 %3452
        %v3454 = vsel %vm1403, %v3445, 0.0
        %3455 = vadd.xlane.f32.xlu0 %v3454
        %v3456 = vpop.xlane.xlu0 %3455
        %v3457 = vsel %vm1403, %v3447, 0.0
        %3458 = vadd.xlane.f32.xlu0 %v3457
        %v3459 = vpop.xlane.xlu0 %3458
        %v3460 = vrcp.pop %v3450
        %v3461 = vrcp.pop %v3453
        %v3462 = vrcp.pop %v3456
        %v3463 = vrcp.pop %v3459
        %v3464 = vmul.f32 %v3441, %v3460
        %v3465 = vmul.f32 %v3443, %v3461
        %v3466 = vmul.f32 %v3445, %v3462
        %v3467 = vmul.f32 %v3447, %v3463
        %v3469 = vsel %vm1403, %v3464, 0
        %v3472 = vsel %vm1403, %v3465, 0
        %3474 = vmatprep.subr.mxu0 0.0
        %3475 = vmatpush1.msra.mxu0 %v3228
        %3476 = vmatprep.subr.mxu0 0.0
        %3477 = vmatpush1.msra.mxu0 %v3231
        %3478 = vmatprep.subr.mxu0 0.0
        %3479 = vmatpush1.msra.mxu0 0.0
        %3480 = vmatprep.subr.mxu0 0.0
        %3481 = vmatpush1.msra.mxu0 0.0
        %3482 = vmatprep.subr.mxu0 0.0
        %3483 = vmatpush1.msra.mxu0 0.0
        %3484 = vmatprep.subr.mxu0 0.0
        %3485 = vmatpush1.msra.mxu0 0.0
        %3486 = vmatprep.subr.mxu0 0.0
        %3487 = vmatpush1.msra.mxu0 0.0
        %3488 = vmatprep.subr.mxu0 0.0
        %3489 = vmatpush1.msra.mxu0 0.0
        %3490 = vmatprep.subr.mxu0 0.0
        %3491 = vmatpush1.msra.mxu0 0.0
        %3492 = vmatprep.subr.mxu0 0.0
        %3493 = vmatpush1.msra.mxu0 0.0
        %3494 = vmatprep.subr.mxu0 0.0
        %3495 = vmatpush1.msra.mxu0 0.0
        %3496 = vmatprep.subr.mxu0 0.0
        %3497 = vmatpush1.msra.mxu0 0.0
        %3498 = vmatprep.subr.mxu0 0.0
        %3499 = vmatpush1.msra.mxu0 0.0
        %3500 = vmatprep.subr.mxu0 0.0
        %3501 = vmatpush1.msra.mxu0 0.0
        %3502 = vmatprep.subr.mxu0 0.0
        %3503 = vmatpush1.msra.mxu0 0.0
        %3504 = vmatprep.subr.mxu0 0.0
        %3505 = vmatpush1.msra.mxu0 0.0
        %3506 = vmatprep.subr.mxu0 0.0
        %3507 = vmatpush1.msra.mxu0 0.0
        %3508 = vmatprep.subr.mxu0 0.0
        %3509 = vmatpush1.msra.mxu0 0.0
        %3510 = vmatprep.subr.mxu0 0.0
        %3511 = vmatpush1.msra.mxu0 0.0
        %3512 = vmatprep.subr.mxu0 0.0
        %3513 = vmatpush1.msra.mxu0 0.0
        %3514 = vmatprep.subr.mxu0 0.0
        %3515 = vmatpush1.msra.mxu0 0.0
        %3516 = vmatprep.subr.mxu0 0.0
        %3517 = vmatpush1.msra.mxu0 0.0
        %3518 = vmatprep.subr.mxu0 0.0
        %3519 = vmatpush1.msra.mxu0 0.0
        %3520 = vmatprep.subr.mxu0 0.0
        %3521 = vmatpush1.msra.mxu0 0.0
        %3522 = vmatprep.subr.mxu0 0.0
        %3523 = vmatpush1.msra.mxu0 0.0
        %3524 = vmatprep.subr.mxu0 0.0
        %3525 = vmatpush1.msra.mxu0 0.0
        %3526 = vmatprep.subr.mxu0 0.0
        %3527 = vmatpush1.msra.mxu0 0.0
        %3528 = vmatprep.subr.mxu0 0.0
        %3529 = vmatpush1.msra.mxu0 0.0
        %3530 = vmatprep.subr.mxu0 0.0
        %3531 = vmatpush1.msra.mxu0 0.0
        %3532 = vmatprep.subr.mxu0 0.0
        %3533 = vmatpush1.msra.mxu0 0.0
        %3534 = vmatprep.subr.mxu0 0.0
        %3535 = vmatpush1.msra.mxu0 0.0
        %3536 = vmatprep.subr.mxu0 0.0
        %3537 = vmatpush1.msra.mxu0 0.0
        %3538 = vmatprep.mubr.f32.mxu0 0.0
        %3539 = vmatmul.mubr.f32.gmra.mrb[0].mxu0 %v3469
        %v3540 = vpop.f32.mrb[0].mxu0
        %v3541 = vadd.f32 0.0, %v3540
        %v3542 = vpop.f32.mrb[0].mxu0
        %3543 = vmatprep.mubr.f32.mxu0 0.0
        %3544 = vmatmul.mubr.f32.gmra.mrb[0].mxu0 %v3472
        %v3545 = vpop.f32.mrb[0].mxu0
        %v3546 = vadd.f32 0.0, %v3545
        %v3547 = vpop.f32.mrb[0].mxu0
        %3548 = vdwg.mxu0
        %v3550 = vsel %vm1403, %v3466, 0
        %v3553 = vsel %vm1403, %v3467, 0
        %3555 = vmatprep.subr.mxu0 0.0
        %3556 = vmatpush1.msra.mxu0 %v3236
        %3557 = vmatprep.subr.mxu0 0.0
        %3558 = vmatpush1.msra.mxu0 %v3239
        %3559 = vmatprep.subr.mxu0 0.0
        %3560 = vmatpush1.msra.mxu0 0.0
        %3561 = vmatprep.subr.mxu0 0.0
        %3562 = vmatpush1.msra.mxu0 0.0
        %3563 = vmatprep.subr.mxu0 0.0
        %3564 = vmatpush1.msra.mxu0 0.0
        %3565 = vmatprep.subr.mxu0 0.0
        %3566 = vmatpush1.msra.mxu0 0.0
        %3567 = vmatprep.subr.mxu0 0.0
        %3568 = vmatpush1.msra.mxu0 0.0
        %3569 = vmatprep.subr.mxu0 0.0
        %3570 = vmatpush1.msra.mxu0 0.0
        %3571 = vmatprep.subr.mxu0 0.0
        %3572 = vmatpush1.msra.mxu0 0.0
        %3573 = vmatprep.subr.mxu0 0.0
        %3574 = vmatpush1.msra.mxu0 0.0
        %3575 = vmatprep.subr.mxu0 0.0
        %3576 = vmatpush1.msra.mxu0 0.0
        %3577 = vmatprep.subr.mxu0 0.0
        %3578 = vmatpush1.msra.mxu0 0.0
        %3579 = vmatprep.subr.mxu0 0.0
        %3580 = vmatpush1.msra.mxu0 0.0
        %3581 = vmatprep.subr.mxu0 0.0
        %3582 = vmatpush1.msra.mxu0 0.0
        %3583 = vmatprep.subr.mxu0 0.0
        %3584 = vmatpush1.msra.mxu0 0.0
        %3585 = vmatprep.subr.mxu0 0.0
        %3586 = vmatpush1.msra.mxu0 0.0
        %3587 = vmatprep.subr.mxu0 0.0
        %3588 = vmatpush1.msra.mxu0 0.0
        %3589 = vmatprep.subr.mxu0 0.0
        %3590 = vmatpush1.msra.mxu0 0.0
        %3591 = vmatprep.subr.mxu0 0.0
        %3592 = vmatpush1.msra.mxu0 0.0
        %3593 = vmatprep.subr.mxu0 0.0
        %3594 = vmatpush1.msra.mxu0 0.0
        %3595 = vmatprep.subr.mxu0 0.0
        %3596 = vmatpush1.msra.mxu0 0.0
        %3597 = vmatprep.subr.mxu0 0.0
        %3598 = vmatpush1.msra.mxu0 0.0
        %3599 = vmatprep.subr.mxu0 0.0
        %3600 = vmatpush1.msra.mxu0 0.0
        %3601 = vmatprep.subr.mxu0 0.0
        %3602 = vmatpush1.msra.mxu0 0.0
        %3603 = vmatprep.subr.mxu0 0.0
        %3604 = vmatpush1.msra.mxu0 0.0
        %3605 = vmatprep.subr.mxu0 0.0
        %3606 = vmatpush1.msra.mxu0 0.0
        %3607 = vmatprep.subr.mxu0 0.0
        %3608 = vmatpush1.msra.mxu0 0.0
        %3609 = vmatprep.subr.mxu0 0.0
        %3610 = vmatpush1.msra.mxu0 0.0
        %3611 = vmatprep.subr.mxu0 0.0
        %3612 = vmatpush1.msra.mxu0 0.0
        %3613 = vmatprep.subr.mxu0 0.0
        %3614 = vmatpush1.msra.mxu0 0.0
        %3615 = vmatprep.subr.mxu0 0.0
        %3616 = vmatpush1.msra.mxu0 0.0
        %3617 = vmatprep.subr.mxu0 0.0
        %3618 = vmatpush1.msra.mxu0 0.0
        %3619 = vmatprep.mubr.f32.mxu0 0.0
        %3620 = vmatmul.mubr.f32.gmra.mrb[0].mxu0 %v3550
        %v3621 = vpop.f32.mrb[0].mxu0
        %v3622 = vadd.f32 0.0, %v3621
        %v3623 = vpop.f32.mrb[0].mxu0
        %3624 = vmatprep.mubr.f32.mxu0 0.0
        %3625 = vmatmul.mubr.f32.gmra.mrb[0].mxu0 %v3553
        %v3626 = vpop.f32.mrb[0].mxu0
        %v3627 = vadd.f32 0.0, %v3626
        %v3628 = vpop.f32.mrb[0].mxu0
        %3629 = vdwg.mxu0
        %v3630 = vpack.c.bf16 %v3546, %v3541
        %v3631 = vpack.c.bf16 %v3627, %v3622
        %s3632 = scalar_lea.vmem %s925, 12
        %v3633 = vld [vmem:[%s3632] sm:$0xf]
        %v3635 = vsel %vm1208, %v3630, 0
        %v3638 = vsel %vm1208, %v3631, 0
        %v3641 = vsel %vm2233, %v3633, 0
        %3643 = vmatprep.subr.bf16.mxu0 0
        %3644 = vmatpush1.bf16.msra.mxu0 %v3641
        %3645 = vmatprep.subr.bf16.mxu0 0
        %3646 = vmatpush1.bf16.msra.mxu0 0
        %3647 = vmatprep.subr.bf16.mxu0 0
        %3648 = vmatpush1.bf16.msra.mxu0 0
        %3649 = vmatprep.subr.bf16.mxu0 0
        %3650 = vmatpush1.bf16.msra.mxu0 0
        %3651 = vmatprep.subr.bf16.mxu0 0
        %3652 = vmatpush1.bf16.msra.mxu0 0
        %3653 = vmatprep.subr.bf16.mxu0 0
        %3654 = vmatpush1.bf16.msra.mxu0 0
        %3655 = vmatprep.subr.bf16.mxu0 0
        %3656 = vmatpush1.bf16.msra.mxu0 0
        %3657 = vmatprep.subr.bf16.mxu0 0
        %3658 = vmatpush1.bf16.msra.mxu0 0
        %3659 = vmatprep.subr.bf16.mxu0 0
        %3660 = vmatpush1.bf16.msra.mxu0 0
        %3661 = vmatprep.subr.bf16.mxu0 0
        %3662 = vmatpush1.bf16.msra.mxu0 0
        %3663 = vmatprep.subr.bf16.mxu0 0
        %3664 = vmatpush1.bf16.msra.mxu0 0
        %3665 = vmatprep.subr.bf16.mxu0 0
        %3666 = vmatpush1.bf16.msra.mxu0 0
        %3667 = vmatprep.subr.bf16.mxu0 0
        %3668 = vmatpush1.bf16.msra.mxu0 0
        %3669 = vmatprep.subr.bf16.mxu0 0
        %3670 = vmatpush1.bf16.msra.mxu0 0
        %3671 = vmatprep.subr.bf16.mxu0 0
        %3672 = vmatpush1.bf16.msra.mxu0 0
        %3673 = vmatprep.subr.bf16.mxu0 0
        %3674 = vmatpush1.bf16.msra.mxu0 0
        %3675 = vmatprep.mubr.bf16.mxu0 0
        %3676 = vmatmul.mubr.bf16.gmra.mrb[0].mxu0 %v3635
        %v3677 = vpop.f32.mrb[0].mxu0
        %v3678 = vadd.f32 0.0, %v3677
        %v3679 = vpop.f32.mrb[0].mxu0
        %v3680 = vpop.f32.mrb[0].mxu0
        %v3681 = vadd.f32 0.0, %v3680
        %v3682 = vpop.f32.mrb[0].mxu0
        %3683 = vmatprep.mubr.bf16.mxu0 0
        %3684 = vmatmul.mubr.bf16.gmra.mrb[0].mxu0 %v3638
        %v3685 = vpop.f32.mrb[0].mxu0
        %v3686 = vadd.f32 0.0, %v3685
        %v3687 = vpop.f32.mrb[0].mxu0
        %v3688 = vpop.f32.mrb[0].mxu0
        %v3689 = vadd.f32 0.0, %v3688
        %v3690 = vpop.f32.mrb[0].mxu0
        %3691 = vdwg.mxu0
        %v3692 = vadd.f32 %v3016, %v3678
        %v3693 = vadd.f32 %v3017, %v3681
        %v3694 = vadd.f32 %v3018, %v3686
        %v3695 = vadd.f32 %v3019, %v3689
        %v3696 = vadd.f32 %v973, %v3692
        %v3697 = vadd.f32 %v974, %v3693
        %v3698 = vadd.f32 %v975, %v3694
        %v3699 = vadd.f32 %v976, %v3695
        %v3700 = vld [vmem:[%s928] sm:$0x1]
        %v3702 = vlaneseq
        %v3703 = vshrl.u32 %v3702, 7
        %v3704 = vsub.s32 0, %v3703
        %v3705 = vrot.slane %v3700, %v3704
        %v3707 = vadd.f32 %v3696, %v3705
        %v3708 = vadd.f32 %v3697, %v3705
        %v3709 = vadd.f32 %v3698, %v3705
        %v3710 = vadd.f32 %v3699, %v3705
        %v3711 = vld [vmem:[%s931] sm:$0x1]
        %v3712 = vld [vmem:[%s934] sm:$0x1]
        %v3713 = vsel %vm1008, %v3707, 0.0
        %3714 = vadd.xlane.f32.xlu0 %v3713
        %v3715 = vpop.xlane.xlu0 %3714
        %v3716 = vsel %vm1008, %v3708, 0.0
        %3717 = vadd.xlane.f32.xlu0 %v3716
        %v3718 = vpop.xlane.xlu0 %3717
        %v3719 = vsel %vm1008, %v3709, 0.0
        %3720 = vadd.xlane.f32.xlu0 %v3719
        %v3721 = vpop.xlane.xlu0 %3720
        %v3722 = vsel %vm1008, %v3710, 0.0
        %3723 = vadd.xlane.f32.xlu0 %v3722
        %v3724 = vpop.xlane.xlu0 %3723
        %v3725 = vrcp.pop 32.0
        %v3726 = vmul.f32 %v3715, %v3725
        %v3727 = vmul.f32 %v3718, %v3725
        %v3728 = vmul.f32 %v3721, %v3725
        %v3729 = vmul.f32 %v3724, %v3725
        %v3730 = vsub.f32 %v3707, %v3726
        %v3731 = vsub.f32 %v3708, %v3727
        %v3732 = vsub.f32 %v3709, %v3728
        %v3733 = vsub.f32 %v3710, %v3729
        %v3734 = vmul.f32 %v3730, %v3730
        %v3735 = vmul.f32 %v3731, %v3731
        %v3736 = vmul.f32 %v3732, %v3732
        %v3737 = vmul.f32 %v3733, %v3733
        %v3738 = vsel %vm1008, %v3734, 0.0
        %3739 = vadd.xlane.f32.xlu0 %v3738
        %v3740 = vpop.xlane.xlu0 %3739
        %v3741 = vsel %vm1008, %v3735, 0.0
        %3742 = vadd.xlane.f32.xlu0 %v3741
        %v3743 = vpop.xlane.xlu0 %3742
        %v3744 = vsel %vm1008, %v3736, 0.0
        %3745 = vadd.xlane.f32.xlu0 %v3744
        %v3746 = vpop.xlane.xlu0 %3745
        %v3747 = vsel %vm1008, %v3737, 0.0
        %3748 = vadd.xlane.f32.xlu0 %v3747
        %v3749 = vpop.xlane.xlu0 %3748
        %v3750 = vmul.f32 %v3740, %v3725
        %v3751 = vmul.f32 %v3743, %v3725
        %v3752 = vmul.f32 %v3746, %v3725
        %v3753 = vmul.f32 %v3749, %v3725
        %v3754 = vadd.f32 %v3750, 1e-05
        %v3755 = vadd.f32 %v3751, 1e-05
        %v3756 = vadd.f32 %v3752, 1e-05
        %v3757 = vadd.f32 %v3753, 1e-05
        %v3758 = vrsqrt.pop %v3754
        %v3759 = vrsqrt.pop %v3755
        %v3760 = vrsqrt.pop %v3756
        %v3761 = vrsqrt.pop %v3757
        %v3762 = vmul.f32 %v3730, %v3758
        %v3763 = vmul.f32 %v3731, %v3759
        %v3764 = vmul.f32 %v3732, %v3760
        %v3765 = vmul.f32 %v3733, %v3761
        %v3767 = vlaneseq
        %v3768 = vshrl.u32 %v3767, 7
        %v3769 = vsub.s32 0, %v3768
        %v3770 = vrot.slane %v3711, %v3769
        %v3772 = vmul.f32 %v3762, %v3770
        %v3773 = vmul.f32 %v3763, %v3770
        %v3774 = vmul.f32 %v3764, %v3770
        %v3775 = vmul.f32 %v3765, %v3770
        %v3777 = vlaneseq
        %v3778 = vshrl.u32 %v3777, 7
        %v3779 = vsub.s32 0, %v3778
        %v3780 = vrot.slane %v3712, %v3779
        %v3782 = vadd.f32 %v3772, %v3780
        %v3783 = vadd.f32 %v3773, %v3780
        %v3784 = vadd.f32 %v3774, %v3780
        %v3785 = vadd.f32 %v3775, %v3780
        %v3786 = vpack.c.bf16 %v3783, %v3782
        %v3787 = vpack.c.bf16 %v3785, %v3784
        %v3788 = vld [vmem:[%s939] sm:$0xf]
        %v3789 = vld [vmem:[%s939 + $0x4] sm:$0xf]
        %v3790 = vld [vmem:[%s939 + $0x8] sm:$0xf]
        %v3791 = vld [vmem:[%s939 + $0xc] sm:$0xf]
        %v3792 = vld [vmem:[%s942] sm:$0x1]
        %v3794 = vlaneseq
        %v3795 = vshrl.u32 %v3794, 7
        %v3796 = vsub.s32 0, %v3795
        %v3797 = vrot.slane %v3792, %v3796
        %v3803 = vunpack.c.l.b16 %v3788
        %v3804 = vunpack.c.l.b16 %v3789
        %v3805 = vunpack.c.l.b16 %v3790
        %v3806 = vunpack.c.l.b16 %v3791
        %v3807 = vpack.c.b16 %v3804, %v3803
        %v3808 = vpack.c.b16 %v3806, %v3805
        %v3812 = vsel %vm1008, %v3786, 0
        %v3815 = vsel %vm1008, %v3787, 0
        %3817 = vmatprep.subr.bf16.mxu0 0
        %3818 = vmatpush1.bf16.msra.mxu0 %v3807
        %3819 = vmatprep.subr.bf16.mxu0 0
        %3820 = vmatpush1.bf16.msra.mxu0 %v3808
        %3821 = vmatprep.subr.bf16.mxu0 0
        %3822 = vmatpush1.bf16.msra.mxu0 0
        %3823 = vmatprep.subr.bf16.mxu0 0
        %3824 = vmatpush1.bf16.msra.mxu0 0
        %3825 = vmatprep.subr.bf16.mxu0 0
        %3826 = vmatpush1.bf16.msra.mxu0 0
        %3827 = vmatprep.subr.bf16.mxu0 0
        %3828 = vmatpush1.bf16.msra.mxu0 0
        %3829 = vmatprep.subr.bf16.mxu0 0
        %3830 = vmatpush1.bf16.msra.mxu0 0
        %3831 = vmatprep.subr.bf16.mxu0 0
        %3832 = vmatpush1.bf16.msra.mxu0 0
        %3833 = vmatprep.subr.bf16.mxu0 0
        %3834 = vmatpush1.bf16.msra.mxu0 0
        %3835 = vmatprep.subr.bf16.mxu0 0
        %3836 = vmatpush1.bf16.msra.mxu0 0
        %3837 = vmatprep.subr.bf16.mxu0 0
        %3838 = vmatpush1.bf16.msra.mxu0 0
        %3839 = vmatprep.subr.bf16.mxu0 0
        %3840 = vmatpush1.bf16.msra.mxu0 0
        %3841 = vmatprep.subr.bf16.mxu0 0
        %3842 = vmatpush1.bf16.msra.mxu0 0
        %3843 = vmatprep.subr.bf16.mxu0 0
        %3844 = vmatpush1.bf16.msra.mxu0 0
        %3845 = vmatprep.subr.bf16.mxu0 0
        %3846 = vmatpush1.bf16.msra.mxu0 0
        %3847 = vmatprep.subr.bf16.mxu0 0
        %3848 = vmatpush1.bf16.msra.mxu0 0
        %3849 = vmatprep.mubr.bf16.mxu0 0
        %3850 = vmatmul.mubr.bf16.gmra.mrb[0].mxu0 %v3812
        %v3851 = vpop.f32.mrb[0].mxu0
        %v3852 = vadd.f32 %v3797, %v3851
        %v3853 = vpop.f32.mrb[0].mxu0
        %v3854 = vpop.f32.mrb[0].mxu0
        %v3855 = vadd.f32 %v3797, %v3854
        %v3856 = vpop.f32.mrb[0].mxu0
        %3857 = vmatprep.mubr.bf16.mxu0 0
        %3858 = vmatmul.mubr.bf16.gmra.mrb[0].mxu0 %v3815
        %v3859 = vpop.f32.mrb[0].mxu0
        %v3860 = vadd.f32 %v3797, %v3859
        %v3861 = vpop.f32.mrb[0].mxu0
        %v3862 = vpop.f32.mrb[0].mxu0
        %v3863 = vadd.f32 %v3797, %v3862
        %v3864 = vpop.f32.mrb[0].mxu0
        %3865 = vdwg.mxu0
        %v3866 = vmul.f32 %v3852, 0.5
        %v3867 = vmul.f32 %v3855, 0.5
        %v3868 = vmul.f32 %v3860, 0.5
        %v3869 = vmul.f32 %v3863, 0.5
        %v3870 = vmul.f32 %v3852, 0.70710677
        %v3871 = vmul.f32 %v3855, 0.70710677
        %v3872 = vmul.f32 %v3860, 0.70710677
        %v3873 = vmul.f32 %v3863, 0.70710677
        %v3874 = verf.f32.pop %v3870
        %v3875 = verf.f32.pop %v3871
        %v3876 = verf.f32.pop %v3872
        %v3877 = verf.f32.pop %v3873
        %v3878 = vadd.f32 %v3874, 1.0
        %v3879 = vadd.f32 %v3875, 1.0
        %v3880 = vadd.f32 %v3876, 1.0
        %v3881 = vadd.f32 %v3877, 1.0
        %v3882 = vmul.f32 %v3866, %v3878
        %v3883 = vmul.f32 %v3867, %v3879
        %v3884 = vmul.f32 %v3868, %v3880
        %v3885 = vmul.f32 %v3869, %v3881
        %v3886 = vpack.c.bf16 %v3883, %v3882
        %v3887 = vpack.c.bf16 %v3885, %v3884
        %v3888 = vld [vmem:[%s947] sm:$0xf]
        %v3889 = vld [vmem:[%s947 + $0x4] sm:$0xf]
        %v3890 = vld [vmem:[%s947 + $0x8] sm:$0xf]
        %v3891 = vld [vmem:[%s947 + $0xc] sm:$0xf]
        %v3892 = vld [vmem:[%s947 + $0x10] sm:$0xf]
        %v3893 = vld [vmem:[%s947 + $0x14] sm:$0xf]
        %v3894 = vld [vmem:[%s947 + $0x18] sm:$0xf]
        %v3895 = vld [vmem:[%s947 + $0x1c] sm:$0xf]
        %v3896 = vld [vmem:[%s947 + $0x20] sm:$0xf]
        %v3897 = vld [vmem:[%s947 + $0x24] sm:$0xf]
        %v3898 = vld [vmem:[%s947 + $0x28] sm:$0xf]
        %v3899 = vld [vmem:[%s947 + $0x2c] sm:$0xf]
        %v3900 = vld [vmem:[%s947 + $0x30] sm:$0xf]
        %v3901 = vld [vmem:[%s947 + $0x34] sm:$0xf]
        %v3902 = vld [vmem:[%s947 + $0x38] sm:$0xf]
        %v3903 = vld [vmem:[%s947 + $0x3c] sm:$0xf]
        %v3920 = vunpack.c.l.b16 %v3888
        %v3921 = vunpack.c.l.b16 %v3889
        %v3922 = vunpack.c.l.b16 %v3890
        %v3923 = vunpack.c.l.b16 %v3891
        %v3924 = vunpack.c.l.b16 %v3892
        %v3925 = vunpack.c.l.b16 %v3893
        %v3926 = vunpack.c.l.b16 %v3894
        %v3927 = vunpack.c.l.b16 %v3895
        %v3928 = vunpack.c.l.b16 %v3896
        %v3929 = vunpack.c.l.b16 %v3897
        %v3930 = vunpack.c.l.b16 %v3898
        %v3931 = vunpack.c.l.b16 %v3899
        %v3932 = vunpack.c.l.b16 %v3900
        %v3933 = vunpack.c.l.b16 %v3901
        %v3934 = vunpack.c.l.b16 %v3902
        %v3935 = vunpack.c.l.b16 %v3903
        %v3936 = vpack.c.b16 %v3921, %v3920
        %v3937 = vpack.c.b16 %v3923, %v3922
        %v3938 = vpack.c.b16 %v3925, %v3924
        %v3939 = vpack.c.b16 %v3927, %v3926
        %v3940 = vpack.c.b16 %v3929, %v3928
        %v3941 = vpack.c.b16 %v3931, %v3930
        %v3942 = vpack.c.b16 %v3933, %v3932
        %v3943 = vpack.c.b16 %v3935, %v3934
        %3952 = vmatprep.subr.bf16.mxu0 0
        %3953 = vmatpush1.bf16.msra.mxu0 %v3936
        %3954 = vmatprep.subr.bf16.mxu0 0
        %3955 = vmatpush1.bf16.msra.mxu0 %v3937
        %3956 = vmatprep.subr.bf16.mxu0 0
        %3957 = vmatpush1.bf16.msra.mxu0 %v3938
        %3958 = vmatprep.subr.bf16.mxu0 0
        %3959 = vmatpush1.bf16.msra.mxu0 %v3939
        %3960 = vmatprep.subr.bf16.mxu0 0
        %3961 = vmatpush1.bf16.msra.mxu0 %v3940
        %3962 = vmatprep.subr.bf16.mxu0 0
        %3963 = vmatpush1.bf16.msra.mxu0 %v3941
        %3964 = vmatprep.subr.bf16.mxu0 0
        %3965 = vmatpush1.bf16.msra.mxu0 %v3942
        %3966 = vmatprep.subr.bf16.mxu0 0
        %3967 = vmatpush1.bf16.msra.mxu0 %v3943
        %3968 = vmatprep.subr.bf16.mxu0 0
        %3969 = vmatpush1.bf16.msra.mxu0 0
        %3970 = vmatprep.subr.bf16.mxu0 0
        %3971 = vmatpush1.bf16.msra.mxu0 0
        %3972 = vmatprep.subr.bf16.mxu0 0
        %3973 = vmatpush1.bf16.msra.mxu0 0
        %3974 = vmatprep.subr.bf16.mxu0 0
        %3975 = vmatpush1.bf16.msra.mxu0 0
        %3976 = vmatprep.subr.bf16.mxu0 0
        %3977 = vmatpush1.bf16.msra.mxu0 0
        %3978 = vmatprep.subr.bf16.mxu0 0
        %3979 = vmatpush1.bf16.msra.mxu0 0
        %3980 = vmatprep.subr.bf16.mxu0 0
        %3981 = vmatpush1.bf16.msra.mxu0 0
        %3982 = vmatprep.subr.bf16.mxu0 0
        %3983 = vmatpush1.bf16.msra.mxu0 0
        %3984 = vmatprep.mubr.bf16.mxu0 0
        %3985 = vmatmul.mubr.bf16.gmra.mrb[0].mxu0 %v3886
        %v3986 = vpop.f32.mrb[0].mxu0
        %v3987 = vadd.f32 0.0, %v3986
        %v3988 = vpop.f32.mrb[0].mxu0
        %v3989 = vpop.f32.mrb[0].mxu0
        %v3990 = vadd.f32 0.0, %v3989
        %v3991 = vpop.f32.mrb[0].mxu0
        %3992 = vmatprep.mubr.bf16.mxu0 0
        %3993 = vmatmul.mubr.bf16.gmra.mrb[0].mxu0 %v3887
        %v3994 = vpop.f32.mrb[0].mxu0
        %v3995 = vadd.f32 0.0, %v3994
        %v3996 = vpop.f32.mrb[0].mxu0
        %v3997 = vpop.f32.mrb[0].mxu0
        %v3998 = vadd.f32 0.0, %v3997
        %v3999 = vpop.f32.mrb[0].mxu0
        %4000 = vdwg.mxu0
        %v4001 = vadd.f32 %v3782, %v3987
        %v4002 = vadd.f32 %v3783, %v3990
        %v4003 = vadd.f32 %v3784, %v3995
        %v4004 = vadd.f32 %v3785, %v3998
        %v4005 = vld [vmem:[%s950] sm:$0x1]
        %v4007 = vlaneseq
        %v4008 = vshrl.u32 %v4007, 7
        %v4009 = vsub.s32 0, %v4008
        %v4010 = vrot.slane %v4005, %v4009
        %v4012 = vadd.f32 %v4001, %v4010
        %v4013 = vadd.f32 %v4002, %v4010
        %v4014 = vadd.f32 %v4003, %v4010
        %v4015 = vadd.f32 %v4004, %v4010
        %v4016 = vld [vmem:[%s953] sm:$0x1]
        %v4017 = vld [vmem:[%s956] sm:$0x1]
        %v4018 = vsel %vm1008, %v4012, 0.0
        %4019 = vadd.xlane.f32.xlu0 %v4018
        %v4020 = vpop.xlane.xlu0 %4019
        %v4021 = vsel %vm1008, %v4013, 0.0
        %4022 = vadd.xlane.f32.xlu0 %v4021
        %v4023 = vpop.xlane.xlu0 %4022
        %v4024 = vsel %vm1008, %v4014, 0.0
        %4025 = vadd.xlane.f32.xlu0 %v4024
        %v4026 = vpop.xlane.xlu0 %4025
        %v4027 = vsel %vm1008, %v4015, 0.0
        %4028 = vadd.xlane.f32.xlu0 %v4027
        %v4029 = vpop.xlane.xlu0 %4028
        %v4030 = vmul.f32 %v4020, %v3725
        %v4031 = vmul.f32 %v4023, %v3725
        %v4032 = vmul.f32 %v4026, %v3725
        %v4033 = vmul.f32 %v4029, %v3725
        %v4034 = vsub.f32 %v4012, %v4030
        %v4035 = vsub.f32 %v4013, %v4031
        %v4036 = vsub.f32 %v4014, %v4032
        %v4037 = vsub.f32 %v4015, %v4033
        %v4038 = vmul.f32 %v4034, %v4034
        %v4039 = vmul.f32 %v4035, %v4035
        %v4040 = vmul.f32 %v4036, %v4036
        %v4041 = vmul.f32 %v4037, %v4037
        %v4042 = vsel %vm1008, %v4038, 0.0
        %4043 = vadd.xlane.f32.xlu0 %v4042
        %v4044 = vpop.xlane.xlu0 %4043
        %v4045 = vsel %vm1008, %v4039, 0.0
        %4046 = vadd.xlane.f32.xlu0 %v4045
        %v4047 = vpop.xlane.xlu0 %4046
        %v4048 = vsel %vm1008, %v4040, 0.0
        %4049 = vadd.xlane.f32.xlu0 %v4048
        %v4050 = vpop.xlane.xlu0 %4049
        %v4051 = vsel %vm1008, %v4041, 0.0
        %4052 = vadd.xlane.f32.xlu0 %v4051
        %v4053 = vpop.xlane.xlu0 %4052
        %v4054 = vmul.f32 %v4044, %v3725
        %v4055 = vmul.f32 %v4047, %v3725
        %v4056 = vmul.f32 %v4050, %v3725
        %v4057 = vmul.f32 %v4053, %v3725
        %v4058 = vadd.f32 %v4054, 1e-05
        %v4059 = vadd.f32 %v4055, 1e-05
        %v4060 = vadd.f32 %v4056, 1e-05
        %v4061 = vadd.f32 %v4057, 1e-05
        %v4062 = vrsqrt.pop %v4058
        %v4063 = vrsqrt.pop %v4059
        %v4064 = vrsqrt.pop %v4060
        %v4065 = vrsqrt.pop %v4061
        %v4066 = vmul.f32 %v4034, %v4062
        %v4067 = vmul.f32 %v4035, %v4063
        %v4068 = vmul.f32 %v4036, %v4064
        %v4069 = vmul.f32 %v4037, %v4065
        %v4071 = vlaneseq
        %v4072 = vshrl.u32 %v4071, 7
        %v4073 = vsub.s32 0, %v4072
        %v4074 = vrot.slane %v4016, %v4073
        %v4076 = vmul.f32 %v4066, %v4074
        %v4077 = vmul.f32 %v4067, %v4074
        %v4078 = vmul.f32 %v4068, %v4074
        %v4079 = vmul.f32 %v4069, %v4074
        %v4081 = vlaneseq
        %v4082 = vshrl.u32 %v4081, 7
        %v4083 = vsub.s32 0, %v4082
        %v4084 = vrot.slane %v4017, %v4083
        %v4086 = vadd.f32 %v4076, %v4084
        %v4087 = vadd.f32 %v4077, %v4084
        %v4088 = vadd.f32 %v4078, %v4084
        %v4089 = vadd.f32 %v4079, %v4084
        %4090 = vst.msk [vmem:[#allocation2] sm:$0xff] %vm1008, %v4086
        %4091 = vst.msk [vmem:[#allocation2 + $0x8] sm:$0xff] %vm1008, %v4087
        %4092 = vst.msk [vmem:[#allocation2 + $0x10] sm:$0xff] %vm1008, %v4088
        %4093 = vst.msk [vmem:[#allocation2 + $0x18] sm:$0xff] %vm1008, %v4089
        %p4094 = scmp.eq.s32.totalorder %s40, 1
        // Predicated region
        $region105: #{hf_wav2vec2_for_ctc_forward.3} parent=99 // pred_check
          %p4095 = pneg %p4094
        $region106: #{hf_wav2vec2_for_ctc_forward.3} parent=99 // pred_check_branch
          %4097 = sbr.rel (%p4095) target = $region108
        $region107: #{hf_wav2vec2_for_ctc_forward.3} parent=99 // pred_region
          %4098 = vst.msk [vmem:[#allocation3] sm:$0xff] %vm1008, %v4086
          %4099 = vst.msk [vmem:[#allocation3 + $0x8] sm:$0xff] %vm1008, %v4087
          %4100 = vst.msk [vmem:[#allocation3 + $0x10] sm:$0xff] %vm1008, %v4088
          %4101 = vst.msk [vmem:[#allocation3 + $0x18] sm:$0xff] %vm1008, %v4089
          %v4102 = vpack.c.bf16 %v4087, %v4086
          %v4103 = vpack.c.bf16 %v4089, %v4088
          %v4104 = vld [vmem:[%s18] sm:$0xf]
          %v4105 = vld [vmem:[%s18 + $0x4] sm:$0xf]
          %v4106 = vld [vmem:[%s18 + $0x8] sm:$0xf]
          %v4107 = vld [vmem:[%s18 + $0xc] sm:$0xf]
          %v4108 = vld [vmem:[%s19] sm:$0x1]
          %v4110 = vlaneseq
          %v4111 = vshrl.u32 %v4110, 7
          %v4112 = vsub.s32 0, %v4111
          %v4113 = vrot.slane %v4108, %v4112
          %v4119 = vunpack.c.l.b16 %v4104
          %v4120 = vunpack.c.l.b16 %v4105
          %v4121 = vunpack.c.l.b16 %v4106
          %v4122 = vunpack.c.l.b16 %v4107
          %v4123 = vpack.c.b16 %v4120, %v4119
          %v4124 = vpack.c.b16 %v4122, %v4121
          %v4128 = vsel %vm1008, %v4102, 0
          %v4131 = vsel %vm1008, %v4103, 0
          %4133 = vmatprep.subr.bf16.mxu0 0
          %4134 = vmatpush1.bf16.msra.mxu0 %v4123
          %4135 = vmatprep.subr.bf16.mxu0 0
          %4136 = vmatpush1.bf16.msra.mxu0 %v4124
          %4137 = vmatprep.subr.bf16.mxu0 0
          %4138 = vmatpush1.bf16.msra.mxu0 0
          %4139 = vmatprep.subr.bf16.mxu0 0
          %4140 = vmatpush1.bf16.msra.mxu0 0
          %4141 = vmatprep.subr.bf16.mxu0 0
          %4142 = vmatpush1.bf16.msra.mxu0 0
          %4143 = vmatprep.subr.bf16.mxu0 0
          %4144 = vmatpush1.bf16.msra.mxu0 0
          %4145 = vmatprep.subr.bf16.mxu0 0
          %4146 = vmatpush1.bf16.msra.mxu0 0
          %4147 = vmatprep.subr.bf16.mxu0 0
          %4148 = vmatpush1.bf16.msra.mxu0 0
          %4149 = vmatprep.subr.bf16.mxu0 0
          %4150 = vmatpush1.bf16.msra.mxu0 0
          %4151 = vmatprep.subr.bf16.mxu0 0
          %4152 = vmatpush1.bf16.msra.mxu0 0
          %4153 = vmatprep.subr.bf16.mxu0 0
          %4154 = vmatpush1.bf16.msra.mxu0 0
          %4155 = vmatprep.subr.bf16.mxu0 0
          %4156 = vmatpush1.bf16.msra.mxu0 0
          %4157 = vmatprep.subr.bf16.mxu0 0
          %4158 = vmatpush1.bf16.msra.mxu0 0
          %4159 = vmatprep.subr.bf16.mxu0 0
          %4160 = vmatpush1.bf16.msra.mxu0 0
          %4161 = vmatprep.subr.bf16.mxu0 0
          %4162 = vmatpush1.bf16.msra.mxu0 0
          %4163 = vmatprep.subr.bf16.mxu0 0
          %4164 = vmatpush1.bf16.msra.mxu0 0
          %4165 = vmatprep.mubr.bf16.mxu0 0
          %4166 = vmatmul.mubr.bf16.gmra.mrb[0].mxu0 %v4128
          %v4167 = vpop.f32.mrb[0].mxu0
          %v4168 = vadd.f32 %v4113, %v4167
          %v4169 = vpop.f32.mrb[0].mxu0
          %v4170 = vpop.f32.mrb[0].mxu0
          %v4171 = vadd.f32 %v4113, %v4170
          %v4172 = vpop.f32.mrb[0].mxu0
          %4173 = vmatprep.mubr.bf16.mxu0 0
          %4174 = vmatmul.mubr.bf16.gmra.mrb[0].mxu0 %v4131
          %v4175 = vpop.f32.mrb[0].mxu0
          %v4176 = vadd.f32 %v4113, %v4175
          %v4177 = vpop.f32.mrb[0].mxu0
          %v4178 = vpop.f32.mrb[0].mxu0
          %v4179 = vadd.f32 %v4113, %v4178
          %v4180 = vpop.f32.mrb[0].mxu0
          %4181 = vdwg.mxu0
          %4182 = vst [vmem:[#allocation5] sm:$0xff] %v4168
          %4183 = vst [vmem:[#allocation5 + $0x8] sm:$0xff] %v4171
          %4184 = vst [vmem:[#allocation5 + $0x10] sm:$0xff] %v4176
          %4185 = vst [vmem:[#allocation5 + $0x18] sm:$0xff] %v4179
        $region108: #{hf_wav2vec2_for_ctc_forward.3} parent=99 // pred_fallthru
          _
        // Predicated region
        $region109: #{hf_wav2vec2_for_ctc_forward.3} parent=99 // pred_check
          %p4186 = pneg %p575
        $region110: #{hf_wav2vec2_for_ctc_forward.3} parent=99 // pred_check_branch
          %4188 = sbr.rel (%p4186) target = $region112
        $region111: #{hf_wav2vec2_for_ctc_forward.3} parent=99 // pred_region
          %s4189 = smul.u32 2, %s39
          %s4191 = ssub.s32 512, 512
          %4192 = vsyncadd [#allocation4], %s4191
          %s4193 = smul.addr %s4189, 2
          %s4194 = smul.addr %s4193, 128
          %s4195 = scalar_lea.hbm %s20, %s4194
          %s4196 = sshll.u32 [#allocation3], 4
          %s4197 = int_to_ptr.vmem [resolvable:$true] %s4196
          %4202 = dma.vmem_to_hbm [thread:$0]  %s4197, 512, %s4195, [#allocation4], 128, 128, 8
        $region112: #{hf_wav2vec2_for_ctc_forward.3} parent=99 // pred_fallthru
          _
        // Predicated region
        $region113: #{hf_wav2vec2_for_ctc_forward.3} parent=99 // pred_check
          %p4203 = pneg %p601
        $region114: #{hf_wav2vec2_for_ctc_forward.3} parent=99 // pred_check_branch
          %4205 = sbr.rel (%p4203) target = $region116
        $region115: #{hf_wav2vec2_for_ctc_forward.3} parent=99 // pred_region
          %s4206 = smul.u32 2, %s39
          %s4208 = ssub.s32 512, 512
          %4209 = vsyncadd [#allocation6], %s4208
          %s4210 = smul.addr %s4206, 2
          %s4211 = smul.addr %s4210, 128
          %s4212 = scalar_lea.hbm %s21, %s4211
          %s4213 = sshll.u32 [#allocation5], 4
          %s4214 = int_to_ptr.vmem [resolvable:$true] %s4213
          %4219 = dma.vmem_to_hbm [thread:$0]  %s4214, 512, %s4212, [#allocation6], 128, 128, 8
        $region116: #{hf_wav2vec2_for_ctc_forward.3} parent=99 // pred_fallthru
          _
        // Predicated region
        $region117: #{hf_wav2vec2_for_ctc_forward.3} parent=99 // pred_check
          %p4220 = pneg %p575
        $region118: #{hf_wav2vec2_for_ctc_forward.3} parent=99 // pred_check_branch
          %4222 = sbr.rel (%p4220) target = $region120
        $region119: #{hf_wav2vec2_for_ctc_forward.3} parent=99 // pred_region
          %4223 = dma.done [#allocation4], 512
        $region120: #{hf_wav2vec2_for_ctc_forward.3} parent=99 // pred_fallthru
          _
        // Predicated region
        $region121: #{hf_wav2vec2_for_ctc_forward.3} parent=99 // pred_check
          %p4224 = pneg %p601
        $region122: #{hf_wav2vec2_for_ctc_forward.3} parent=99 // pred_check_branch
          %4226 = sbr.rel (%p4224) target = $region124
        $region123: #{hf_wav2vec2_for_ctc_forward.3} parent=99 // pred_region
          %4227 = dma.done [#allocation6], 512
        $region124: #{hf_wav2vec2_for_ctc_forward.3} parent=99 // pred_fallthru
          _
      $region100: #{hf_wav2vec2_for_ctc_forward.3} parent=5 // pred_fallthru
        _
      %p4228 = scmp.le.s32.totalorder 2, %s30
      // Predicated region
      $region125: #{hf_wav2vec2_for_ctc_forward.3} parent=5 // pred_check
        %p4229 = pneg %p4228
      $region126: #{hf_wav2vec2_for_ctc_forward.3} parent=5 // pred_check_branch
        %4231 = sbr.rel (%p4229) target = $region128
      $region127: #{hf_wav2vec2_for_ctc_forward.3} parent=5 // pred_region
        %s4232 = ssub.s32 %s30, 2
      $region128: #{hf_wav2vec2_for_ctc_forward.3} parent=5 // pred_fallthru
        _
    $region6: #{hf_wav2vec2_for_ctc_forward.3} parent=1 // loop_footer
      %s34 = sadd.s32 1, %s30
    $region7: #{hf_wav2vec2_for_ctc_forward.3} parent=1 // loop_footer_branch
      %29 = sbr.rel target = $region3
    $region8: #{hf_wav2vec2_for_ctc_forward.3} parent=1 // loop_exit
      _
    %4233 = vsyncpa [#allocation4], 1
    %s4234 = scalar_lea.sflag [#allocation4], 1
    %4235 = vsyncpa %s4234, 1
    %4236 = vsyncpa [#allocation6], 1

</llo_original>
